<compile_context>
chip_gen: v5e
topology: v5e:2x2
jax: 0.10.0
libtpu: 0.0.40
codegen_flags: <defaults>
</compile_context>

<pallas_src>
import functools

import jax
import jax.numpy as jnp
import numpy as np
from jax.experimental import pallas as pl
from jax.experimental.pallas import tpu as pltpu


def _msfe_kernel(xb_ref, xr_ref, ws_ref, bc_ref, wf_ref, bf_ref, o_ref, acc_ref,
                 *, TH, W, K, Cp):
    """One grid step = one row band of one batch element.

    xb_ref : (TH+K-1, W+K-1, Cp) bf16  padded input band (with halo)
    xr_ref : (TH, W, Cp)         f32   residual (un-padded input rows)
    ws_ref : (K, K*Cp, Cp)       bf16  per-kw weight slabs (rows = kh-major, ci)
    bc_ref : (1, Cp)             f32   concatenated branch biases
    wf_ref : (Cp, Cp)            bf16  1x1 fusion weight
    bf_ref : (1, Cp)             f32   fusion bias
    o_ref  : (TH, W, Cp)         f32   output band
    acc_ref: (TH*W, Cp)          f32   VMEM accumulator scratch
    """
    # 7x7 conv as 7 fat matmuls (one per kw tap column), K = 7*Cp contraction.
    for kw in range(K):
        wide = xb_ref[:, kw:kw + W, :]                      # (TH+K-1, W, Cp) bf16
        lhs = jnp.concatenate([wide[kh:kh + TH] for kh in range(K)], axis=-1)
        lhs = lhs.reshape(TH * W, K * Cp)                   # (TH*W, K*Cp)
        part = jnp.dot(lhs, ws_ref[kw],                     # (K*Cp, Cp)
                       preferred_element_type=jnp.float32)
        if kw == 0:
            acc_ref[...] = part
        else:
            acc_ref[...] += part

    # per-branch bias + ReLU (branches live in disjoint channel blocks), f32
    feats = jnp.maximum(acc_ref[...] + bc_ref[...], 0.0)

    # 1x1 fusion conv (bf16 MXU, f32 acc) + bias + residual, all f32 math
    out = jnp.dot(feats.astype(jnp.bfloat16), wf_ref[...],
                  preferred_element_type=jnp.float32)
    out = out + bf_ref[...] + xr_ref[...].reshape(TH * W, Cp)

    o_ref[...] = out.reshape(TH, W, Cp).astype(o_ref.dtype)


def init_params(key, n_feats):
    """Deterministic synthetic parameters (HWIO conv weight layout)."""
    c4 = n_feats // 4
    ks = jax.random.split(key, 10)

    def w(k, shape, fan_in):
        return jax.random.normal(k, shape, jnp.float32) / np.sqrt(fan_in)

    return dict(
        w1=w(ks[0], (1, 1, n_feats, c4), n_feats * 1),
        b1=w(ks[1], (c4,), n_feats * 1),
        w3=w(ks[2], (3, 3, n_feats, c4), n_feats * 9),
        b3=w(ks[3], (c4,), n_feats * 9),
        w5=w(ks[4], (5, 5, n_feats, c4), n_feats * 25),
        b5=w(ks[5], (c4,), n_feats * 25),
        w7=w(ks[6], (7, 7, n_feats, c4), n_feats * 49),
        b7=w(ks[7], (c4,), n_feats * 49),
        wf=w(ks[8], (1, 1, n_feats, n_feats), n_feats),
        bf=w(ks[9], (n_feats,), n_feats),
    )


def _build_combined(params, C, Cp):
    """Embed 1x1/3x3/5x5/7x7 kernels into one lane-padded 7x7 kernel (HWIO)."""
    c4 = C // 4
    K = 7
    wc = jnp.zeros((K, K, Cp, Cp), jnp.float32)
    wc = wc.at[3:4, 3:4, :C, 0 * c4:1 * c4].set(params["w1"])
    wc = wc.at[2:5, 2:5, :C, 1 * c4:2 * c4].set(params["w3"])
    wc = wc.at[1:6, 1:6, :C, 2 * c4:3 * c4].set(params["w5"])
    wc = wc.at[0:7, 0:7, :C, 3 * c4:4 * c4].set(params["w7"])
    bc = jnp.concatenate([params["b1"], params["b3"], params["b5"], params["b7"]])
    bc = jnp.pad(bc, (0, Cp - C))
    return wc, bc.reshape(1, Cp)


@jax.jit
def multi_scale_feature_extraction(x_nchw, params):
    N, C, H, W = x_nchw.shape
    K = 7
    pad = K // 2

    # Lane-pad channels to a multiple of 128 (padded channels -> exact zeros).
    Cp = ((C + 127) // 128) * 128
    cpad = Cp - C

    # NCHW -> NHWC, channel pad (f32 residual), then spatial zero pad.
    x_nhwc = jnp.transpose(x_nchw, (0, 2, 3, 1)).astype(jnp.float32)
    x_nhwc = jnp.pad(x_nhwc, ((0, 0), (0, 0), (0, 0), (0, cpad)))
    x_pad = jnp.pad(x_nhwc, ((0, 0), (pad, pad), (pad, pad), (0, 0)))

    # Row-band height: largest divisor of H with TH*W in a reasonable range.
    cap = max(8, 1024 // W)
    TH = max(d for d in range(1, H + 1) if H % d == 0 and d <= cap)
    nb = H // TH

    # Overlapping (halo'd) row bands, bf16: (N, nb, TH+6, W+6, Cp).
    row_idx = np.arange(nb)[:, None] * TH + np.arange(TH + 2 * pad)[None, :]
    x_bands = x_pad[:, row_idx].astype(jnp.bfloat16)

    # Combined 7x7 weight -> per-kw slabs (kw, kh*Cp + ci, co), bf16.
    w_comb, b_comb = _build_combined(params, C, Cp)
    w_slabs = jnp.transpose(w_comb, (1, 0, 2, 3)).reshape(K, K * Cp, Cp)
    w_slabs = w_slabs.astype(jnp.bfloat16)
    wf = jnp.pad(params["wf"].reshape(C, C),
                 ((0, cpad), (0, cpad))).astype(jnp.bfloat16)
    bf = jnp.pad(params["bf"], (0, cpad)).reshape(1, Cp)

    kernel = functools.partial(_msfe_kernel, TH=TH, W=W, K=K, Cp=Cp)

    # NOTE: weight/bias operands are grid-invariant; their bf16 footprint is
    # small, so default double-buffering is acceptable.  If VMEM-bound, add
    # pipeline_mode=pl.Buffered(1) to the four constant BlockSpecs below.
    out_nhwc = pl.pallas_call(
        kernel,
        out_shape=jax.ShapeDtypeStruct((N, H, W, Cp), jnp.float32),
        grid_spec=pltpu.PrefetchScalarGridSpec(
            num_scalar_prefetch=0,
            grid=(N, nb),
            in_specs=[
                pl.BlockSpec((None, None, TH + 2 * pad, W + 2 * pad, Cp),
                             lambda b, t: (b, t, 0, 0, 0)),
                pl.BlockSpec((None, TH, W, Cp), lambda b, t: (b, t, 0, 0)),
                pl.BlockSpec((K, K * Cp, Cp), lambda b, t: (0, 0, 0)),
                pl.BlockSpec((1, Cp), lambda b, t: (0, 0)),
                pl.BlockSpec((Cp, Cp), lambda b, t: (0, 0)),
                pl.BlockSpec((1, Cp), lambda b, t: (0, 0)),
            ],
            out_specs=pl.BlockSpec((None, TH, W, Cp), lambda b, t: (b, t, 0, 0)),
            scratch_shapes=[pltpu.VMEM((TH * W, Cp), jnp.float32)],
        ),
        compiler_params=pltpu.CompilerParams(
            dimension_semantics=("parallel", "parallel"),
            vmem_limit_bytes=64 * 1024 * 1024),
    )(x_bands, x_nhwc, w_slabs, b_comb, wf, bf)

    out = out_nhwc[..., :C]                      # drop lane padding
    return jnp.transpose(out, (0, 3, 1, 2))      # back to NCHW


def ref_forward(x_nchw, params):
    """Pure-JAX f32 reference matching the PyTorch forward (for verification)."""
    x = jnp.transpose(x_nchw, (0, 2, 3, 1))
    dn = ("NHWC", "HWIO", "NHWC")

    def conv(inp, w, p):
        return jax.lax.conv_general_dilated(
            inp, w, (1, 1), [(p, p), (p, p)], dimension_numbers=dn)

    x1 = jax.nn.relu(conv(x, params["w1"], 0) + params["b1"])
    x2 = jax.nn.relu(conv(x, params["w3"], 1) + params["b3"])
    x3 = jax.nn.relu(conv(x, params["w5"], 2) + params["b5"])
    x4 = jax.nn.relu(conv(x, params["w7"], 3) + params["b7"])
    feats = jnp.concatenate([x1, x2, x3, x4], axis=-1)
    out = conv(feats, params["wf"], 0) + params["bf"] + x
    return jnp.transpose(out, (0, 3, 1, 2))


if __name__ == "__main__":
    key = jax.random.PRNGKey(0)
    k_x, k_p = jax.random.split(key)

    N, n_feats, H, W = 2, 32, 16, 16            # n_feats must be divisible by 4
    x = jax.random.normal(k_x, (N, n_feats, H, W), jnp.float32)
    params = init_params(k_p, n_feats)

    out = jax.block_until_ready(multi_scale_feature_extraction(x, params))
    ref = jax.block_until_ready(ref_forward(x, params))

    assert out.shape == (N, n_feats, H, W)
    # bf16 activations/weights with f32 accumulation vs f32 reference.
    np.testing.assert_allclose(np.asarray(out), np.asarray(ref),
                               atol=5e-2, rtol=5e-2)
    print("KERNEL_OK")
</pallas_src>

<mosaic_0001>
module attributes {stable_mosaic.version = 11 : i64} {
  func.func @_msfe_kernel(%arg0: i32, %arg1: i32, %arg2: memref<1x1x22x22x128xbf16, #tpu.memory_space<vmem>>, %arg3: memref<1x16x16x128xf32, #tpu.memory_space<vmem>>, %arg4: memref<7x896x128xbf16, #tpu.memory_space<vmem>>, %arg5: memref<1x128xf32, #tpu.memory_space<vmem>>, %arg6: memref<128x128xbf16, #tpu.memory_space<vmem>>, %arg7: memref<1x128xf32, #tpu.memory_space<vmem>>, %arg8: memref<1x16x16x128xf32, #tpu.memory_space<vmem>>, %arg9: memref<256x128xf32, #tpu.memory_space<vmem>>) attributes {dimension_semantics = [#tpu.dimension_semantics<parallel>, #tpu.dimension_semantics<parallel>], iteration_bounds = array<i64: 2, 1>, scalar_prefetch = 0 : i64, scratch_operands = 1 : i64, tpu.core_type = #tpu.core_type<tc>, window_params = [{transform_indices = @transform_0, window_bounds = array<i64: 1, 1, 22, 22, 128>}, {transform_indices = @transform_1, window_bounds = array<i64: 1, 16, 16, 128>}, {pipeline_mode = #tpu.pipeline_mode<synchronous>, transform_indices = @transform_2, window_bounds = array<i64: 7, 896, 128>}, {pipeline_mode = #tpu.pipeline_mode<synchronous>, transform_indices = @transform_3, window_bounds = array<i64: 1, 128>}, {pipeline_mode = #tpu.pipeline_mode<synchronous>, transform_indices = @transform_4, window_bounds = array<i64: 128, 128>}, {pipeline_mode = #tpu.pipeline_mode<synchronous>, transform_indices = @transform_5, window_bounds = array<i64: 1, 128>}, {transform_indices = @transform_6, window_bounds = array<i64: 1, 16, 16, 128>}]} {
    %c0 = arith.constant 0 : index
    %c0_0 = arith.constant 0 : index
    %c0_1 = arith.constant 0 : index
    %c0_2 = arith.constant 0 : index
    %c0_3 = arith.constant 0 : index
    %0 = vector.load %arg2[%c0, %c0_0, %c0_1, %c0_2, %c0_3] : memref<1x1x22x22x128xbf16, #tpu.memory_space<vmem>>, vector<1x1x22x16x128xbf16>
    %1 = vector.shape_cast %0 : vector<1x1x22x16x128xbf16> to vector<22x16x128xbf16>
    %2 = vector.extract_strided_slice %1 {offsets = [0, 0, 0], sizes = [16, 16, 128], strides = [1, 1, 1]} : vector<22x16x128xbf16> to vector<16x16x128xbf16>
    %3 = vector.extract_strided_slice %1 {offsets = [1, 0, 0], sizes = [16, 16, 128], strides = [1, 1, 1]} : vector<22x16x128xbf16> to vector<16x16x128xbf16>
    %4 = vector.extract_strided_slice %1 {offsets = [2, 0, 0], sizes = [16, 16, 128], strides = [1, 1, 1]} : vector<22x16x128xbf16> to vector<16x16x128xbf16>
    %5 = vector.extract_strided_slice %1 {offsets = [3, 0, 0], sizes = [16, 16, 128], strides = [1, 1, 1]} : vector<22x16x128xbf16> to vector<16x16x128xbf16>
    %6 = vector.extract_strided_slice %1 {offsets = [4, 0, 0], sizes = [16, 16, 128], strides = [1, 1, 1]} : vector<22x16x128xbf16> to vector<16x16x128xbf16>
    %7 = vector.extract_strided_slice %1 {offsets = [5, 0, 0], sizes = [16, 16, 128], strides = [1, 1, 1]} : vector<22x16x128xbf16> to vector<16x16x128xbf16>
    %8 = vector.extract_strided_slice %1 {offsets = [6, 0, 0], sizes = [16, 16, 128], strides = [1, 1, 1]} : vector<22x16x128xbf16> to vector<16x16x128xbf16>
    %9 = tpu.concatenate %2, %3, %4, %5, %6, %7, %8 in 2 : vector<16x16x128xbf16>, vector<16x16x128xbf16>, vector<16x16x128xbf16>, vector<16x16x128xbf16>, vector<16x16x128xbf16>, vector<16x16x128xbf16>, vector<16x16x128xbf16> -> vector<16x16x896xbf16>
    %10 = vector.shape_cast %9 : vector<16x16x896xbf16> to vector<256x896xbf16>
    %c0_4 = arith.constant 0 : index
    %c0_5 = arith.constant 0 : index
    %c0_6 = arith.constant 0 : index
    %11 = vector.load %arg4[%c0_4, %c0_5, %c0_6] : memref<7x896x128xbf16, #tpu.memory_space<vmem>>, vector<1x896x128xbf16>
    %12 = vector.shape_cast %11 : vector<1x896x128xbf16> to vector<896x128xbf16>
    %cst = arith.constant dense<0.000000e+00> : vector<256x128xf32>
    %13 = tpu.matmul %10, %12, %cst {dimension_numbers = #tpu.dot_dimension_numbers<[1], [0], [0], [1], [0, 0, 1, 1], [], []>} : vector<256x896xbf16>, vector<896x128xbf16>, vector<256x128xf32> -> vector<256x128xf32>
    %c0_7 = arith.constant 0 : index
    %c0_8 = arith.constant 0 : index
    %14 = vector.load %arg9[%c0_7, %c0_8] : memref<256x128xf32, #tpu.memory_space<vmem>>, vector<256x128xf32>
    tpu.vector_store %arg9[%c0_7, %c0_8], %13 {strides = array<i32>} : memref<256x128xf32, #tpu.memory_space<vmem>>, vector<256x128xf32>,
    %c0_9 = arith.constant 0 : index
    %c0_10 = arith.constant 0 : index
    %c0_11 = arith.constant 0 : index
    %c1 = arith.constant 1 : index
    %c0_12 = arith.constant 0 : index
    %15 = vector.load %arg2[%c0_9, %c0_10, %c0_11, %c1, %c0_12] : memref<1x1x22x22x128xbf16, #tpu.memory_space<vmem>>, vector<1x1x22x16x128xbf16>
    %16 = vector.shape_cast %15 : vector<1x1x22x16x128xbf16> to vector<22x16x128xbf16>
    %17 = vector.extract_strided_slice %16 {offsets = [0, 0, 0], sizes = [16, 16, 128], strides = [1, 1, 1]} : vector<22x16x128xbf16> to vector<16x16x128xbf16>
    %18 = vector.extract_strided_slice %16 {offsets = [1, 0, 0], sizes = [16, 16, 128], strides = [1, 1, 1]} : vector<22x16x128xbf16> to vector<16x16x128xbf16>
    %19 = vector.extract_strided_slice %16 {offsets = [2, 0, 0], sizes = [16, 16, 128], strides = [1, 1, 1]} : vector<22x16x128xbf16> to vector<16x16x128xbf16>
    %20 = vector.extract_strided_slice %16 {offsets = [3, 0, 0], sizes = [16, 16, 128], strides = [1, 1, 1]} : vector<22x16x128xbf16> to vector<16x16x128xbf16>
    %21 = vector.extract_strided_slice %16 {offsets = [4, 0, 0], sizes = [16, 16, 128], strides = [1, 1, 1]} : vector<22x16x128xbf16> to vector<16x16x128xbf16>
    %22 = vector.extract_strided_slice %16 {offsets = [5, 0, 0], sizes = [16, 16, 128], strides = [1, 1, 1]} : vector<22x16x128xbf16> to vector<16x16x128xbf16>
    %23 = vector.extract_strided_slice %16 {offsets = [6, 0, 0], sizes = [16, 16, 128], strides = [1, 1, 1]} : vector<22x16x128xbf16> to vector<16x16x128xbf16>
    %24 = tpu.concatenate %17, %18, %19, %20, %21, %22, %23 in 2 : vector<16x16x128xbf16>, vector<16x16x128xbf16>, vector<16x16x128xbf16>, vector<16x16x128xbf16>, vector<16x16x128xbf16>, vector<16x16x128xbf16>, vector<16x16x128xbf16> -> vector<16x16x896xbf16>
    %25 = vector.shape_cast %24 : vector<16x16x896xbf16> to vector<256x896xbf16>
    %c1_13 = arith.constant 1 : index
    %c0_14 = arith.constant 0 : index
    %c0_15 = arith.constant 0 : index
    %26 = vector.load %arg4[%c1_13, %c0_14, %c0_15] : memref<7x896x128xbf16, #tpu.memory_space<vmem>>, vector<1x896x128xbf16>
    %27 = vector.shape_cast %26 : vector<1x896x128xbf16> to vector<896x128xbf16>
    %cst_16 = arith.constant dense<0.000000e+00> : vector<256x128xf32>
    %28 = tpu.matmul %25, %27, %cst_16 {dimension_numbers = #tpu.dot_dimension_numbers<[1], [0], [0], [1], [0, 0, 1, 1], [], []>} : vector<256x896xbf16>, vector<896x128xbf16>, vector<256x128xf32> -> vector<256x128xf32>
    %c0_17 = arith.constant 0 : index
    %c0_18 = arith.constant 0 : index
    %29 = vector.load %arg9[%c0_17, %c0_18] : memref<256x128xf32, #tpu.memory_space<vmem>>, vector<256x128xf32>
    %30 = arith.addf %29, %28 : vector<256x128xf32>
    %c0_19 = arith.constant 0 : index
    %c0_20 = arith.constant 0 : index
    %31 = vector.load %arg9[%c0_19, %c0_20] : memref<256x128xf32, #tpu.memory_space<vmem>>, vector<256x128xf32>
    tpu.vector_store %arg9[%c0_19, %c0_20], %30 {strides = array<i32>} : memref<256x128xf32, #tpu.memory_space<vmem>>, vector<256x128xf32>,
    %c0_21 = arith.constant 0 : index
    %c0_22 = arith.constant 0 : index
    %c0_23 = arith.constant 0 : index
    %c2 = arith.constant 2 : index
    %c0_24 = arith.constant 0 : index
    %32 = vector.load %arg2[%c0_21, %c0_22, %c0_23, %c2, %c0_24] : memref<1x1x22x22x128xbf16, #tpu.memory_space<vmem>>, vector<1x1x22x16x128xbf16>
    %33 = vector.shape_cast %32 : vector<1x1x22x16x128xbf16> to vector<22x16x128xbf16>
    %34 = vector.extract_strided_slice %33 {offsets = [0, 0, 0], sizes = [16, 16, 128], strides = [1, 1, 1]} : vector<22x16x128xbf16> to vector<16x16x128xbf16>
    %35 = vector.extract_strided_slice %33 {offsets = [1, 0, 0], sizes = [16, 16, 128], strides = [1, 1, 1]} : vector<22x16x128xbf16> to vector<16x16x128xbf16>
    %36 = vector.extract_strided_slice %33 {offsets = [2, 0, 0], sizes = [16, 16, 128], strides = [1, 1, 1]} : vector<22x16x128xbf16> to vector<16x16x128xbf16>
    %37 = vector.extract_strided_slice %33 {offsets = [3, 0, 0], sizes = [16, 16, 128], strides = [1, 1, 1]} : vector<22x16x128xbf16> to vector<16x16x128xbf16>
    %38 = vector.extract_strided_slice %33 {offsets = [4, 0, 0], sizes = [16, 16, 128], strides = [1, 1, 1]} : vector<22x16x128xbf16> to vector<16x16x128xbf16>
    %39 = vector.extract_strided_slice %33 {offsets = [5, 0, 0], sizes = [16, 16, 128], strides = [1, 1, 1]} : vector<22x16x128xbf16> to vector<16x16x128xbf16>
    %40 = vector.extract_strided_slice %33 {offsets = [6, 0, 0], sizes = [16, 16, 128], strides = [1, 1, 1]} : vector<22x16x128xbf16> to vector<16x16x128xbf16>
    %41 = tpu.concatenate %34, %35, %36, %37, %38, %39, %40 in 2 : vector<16x16x128xbf16>, vector<16x16x128xbf16>, vector<16x16x128xbf16>, vector<16x16x128xbf16>, vector<16x16x128xbf16>, vector<16x16x128xbf16>, vector<16x16x128xbf16> -> vector<16x16x896xbf16>
    %42 = vector.shape_cast %41 : vector<16x16x896xbf16> to vector<256x896xbf16>
    %c2_25 = arith.constant 2 : index
    %c0_26 = arith.constant 0 : index
    %c0_27 = arith.constant 0 : index
    %43 = vector.load %arg4[%c2_25, %c0_26, %c0_27] : memref<7x896x128xbf16, #tpu.memory_space<vmem>>, vector<1x896x128xbf16>
    %44 = vector.shape_cast %43 : vector<1x896x128xbf16> to vector<896x128xbf16>
    %cst_28 = arith.constant dense<0.000000e+00> : vector<256x128xf32>
    %45 = tpu.matmul %42, %44, %cst_28 {dimension_numbers = #tpu.dot_dimension_numbers<[1], [0], [0], [1], [0, 0, 1, 1], [], []>} : vector<256x896xbf16>, vector<896x128xbf16>, vector<256x128xf32> -> vector<256x128xf32>
    %c0_29 = arith.constant 0 : index
    %c0_30 = arith.constant 0 : index
    %46 = vector.load %arg9[%c0_29, %c0_30] : memref<256x128xf32, #tpu.memory_space<vmem>>, vector<256x128xf32>
    %47 = arith.addf %46, %45 : vector<256x128xf32>
    %c0_31 = arith.constant 0 : index
    %c0_32 = arith.constant 0 : index
    %48 = vector.load %arg9[%c0_31, %c0_32] : memref<256x128xf32, #tpu.memory_space<vmem>>, vector<256x128xf32>
    tpu.vector_store %arg9[%c0_31, %c0_32], %47 {strides = array<i32>} : memref<256x128xf32, #tpu.memory_space<vmem>>, vector<256x128xf32>,
    %c0_33 = arith.constant 0 : index
    %c0_34 = arith.constant 0 : index
    %c0_35 = arith.constant 0 : index
    %c3 = arith.constant 3 : index
    %c0_36 = arith.constant 0 : index
    %49 = vector.load %arg2[%c0_33, %c0_34, %c0_35, %c3, %c0_36] : memref<1x1x22x22x128xbf16, #tpu.memory_space<vmem>>, vector<1x1x22x16x128xbf16>
    %50 = vector.shape_cast %49 : vector<1x1x22x16x128xbf16> to vector<22x16x128xbf16>
    %51 = vector.extract_strided_slice %50 {offsets = [0, 0, 0], sizes = [16, 16, 128], strides = [1, 1, 1]} : vector<22x16x128xbf16> to vector<16x16x128xbf16>
    %52 = vector.extract_strided_slice %50 {offsets = [1, 0, 0], sizes = [16, 16, 128], strides = [1, 1, 1]} : vector<22x16x128xbf16> to vector<16x16x128xbf16>
    %53 = vector.extract_strided_slice %50 {offsets = [2, 0, 0], sizes = [16, 16, 128], strides = [1, 1, 1]} : vector<22x16x128xbf16> to vector<16x16x128xbf16>
    %54 = vector.extract_strided_slice %50 {offsets = [3, 0, 0], sizes = [16, 16, 128], strides = [1, 1, 1]} : vector<22x16x128xbf16> to vector<16x16x128xbf16>
    %55 = vector.extract_strided_slice %50 {offsets = [4, 0, 0], sizes = [16, 16, 128], strides = [1, 1, 1]} : vector<22x16x128xbf16> to vector<16x16x128xbf16>
    %56 = vector.extract_strided_slice %50 {offsets = [5, 0, 0], sizes = [16, 16, 128], strides = [1, 1, 1]} : vector<22x16x128xbf16> to vector<16x16x128xbf16>
    %57 = vector.extract_strided_slice %50 {offsets = [6, 0, 0], sizes = [16, 16, 128], strides = [1, 1, 1]} : vector<22x16x128xbf16> to vector<16x16x128xbf16>
    %58 = tpu.concatenate %51, %52, %53, %54, %55, %56, %57 in 2 : vector<16x16x128xbf16>, vector<16x16x128xbf16>, vector<16x16x128xbf16>, vector<16x16x128xbf16>, vector<16x16x128xbf16>, vector<16x16x128xbf16>, vector<16x16x128xbf16> -> vector<16x16x896xbf16>
    %59 = vector.shape_cast %58 : vector<16x16x896xbf16> to vector<256x896xbf16>
    %c3_37 = arith.constant 3 : index
    %c0_38 = arith.constant 0 : index
    %c0_39 = arith.constant 0 : index
    %60 = vector.load %arg4[%c3_37, %c0_38, %c0_39] : memref<7x896x128xbf16, #tpu.memory_space<vmem>>, vector<1x896x128xbf16>
    %61 = vector.shape_cast %60 : vector<1x896x128xbf16> to vector<896x128xbf16>
    %cst_40 = arith.constant dense<0.000000e+00> : vector<256x128xf32>
    %62 = tpu.matmul %59, %61, %cst_40 {dimension_numbers = #tpu.dot_dimension_numbers<[1], [0], [0], [1], [0, 0, 1, 1], [], []>} : vector<256x896xbf16>, vector<896x128xbf16>, vector<256x128xf32> -> vector<256x128xf32>
    %c0_41 = arith.constant 0 : index
    %c0_42 = arith.constant 0 : index
    %63 = vector.load %arg9[%c0_41, %c0_42] : memref<256x128xf32, #tpu.memory_space<vmem>>, vector<256x128xf32>
    %64 = arith.addf %63, %62 : vector<256x128xf32>
    %c0_43 = arith.constant 0 : index
    %c0_44 = arith.constant 0 : index
    %65 = vector.load %arg9[%c0_43, %c0_44] : memref<256x128xf32, #tpu.memory_space<vmem>>, vector<256x128xf32>
    tpu.vector_store %arg9[%c0_43, %c0_44], %64 {strides = array<i32>} : memref<256x128xf32, #tpu.memory_space<vmem>>, vector<256x128xf32>,
    %c0_45 = arith.constant 0 : index
    %c0_46 = arith.constant 0 : index
    %c0_47 = arith.constant 0 : index
    %c4 = arith.constant 4 : index
    %c0_48 = arith.constant 0 : index
    %66 = vector.load %arg2[%c0_45, %c0_46, %c0_47, %c4, %c0_48] : memref<1x1x22x22x128xbf16, #tpu.memory_space<vmem>>, vector<1x1x22x16x128xbf16>
    %67 = vector.shape_cast %66 : vector<1x1x22x16x128xbf16> to vector<22x16x128xbf16>
    %68 = vector.extract_strided_slice %67 {offsets = [0, 0, 0], sizes = [16, 16, 128], strides = [1, 1, 1]} : vector<22x16x128xbf16> to vector<16x16x128xbf16>
    %69 = vector.extract_strided_slice %67 {offsets = [1, 0, 0], sizes = [16, 16, 128], strides = [1, 1, 1]} : vector<22x16x128xbf16> to vector<16x16x128xbf16>
    %70 = vector.extract_strided_slice %67 {offsets = [2, 0, 0], sizes = [16, 16, 128], strides = [1, 1, 1]} : vector<22x16x128xbf16> to vector<16x16x128xbf16>
    %71 = vector.extract_strided_slice %67 {offsets = [3, 0, 0], sizes = [16, 16, 128], strides = [1, 1, 1]} : vector<22x16x128xbf16> to vector<16x16x128xbf16>
    %72 = vector.extract_strided_slice %67 {offsets = [4, 0, 0], sizes = [16, 16, 128], strides = [1, 1, 1]} : vector<22x16x128xbf16> to vector<16x16x128xbf16>
    %73 = vector.extract_strided_slice %67 {offsets = [5, 0, 0], sizes = [16, 16, 128], strides = [1, 1, 1]} : vector<22x16x128xbf16> to vector<16x16x128xbf16>
    %74 = vector.extract_strided_slice %67 {offsets = [6, 0, 0], sizes = [16, 16, 128], strides = [1, 1, 1]} : vector<22x16x128xbf16> to vector<16x16x128xbf16>
    %75 = tpu.concatenate %68, %69, %70, %71, %72, %73, %74 in 2 : vector<16x16x128xbf16>, vector<16x16x128xbf16>, vector<16x16x128xbf16>, vector<16x16x128xbf16>, vector<16x16x128xbf16>, vector<16x16x128xbf16>, vector<16x16x128xbf16> -> vector<16x16x896xbf16>
    %76 = vector.shape_cast %75 : vector<16x16x896xbf16> to vector<256x896xbf16>
    %c4_49 = arith.constant 4 : index
    %c0_50 = arith.constant 0 : index
    %c0_51 = arith.constant 0 : index
    %77 = vector.load %arg4[%c4_49, %c0_50, %c0_51] : memref<7x896x128xbf16, #tpu.memory_space<vmem>>, vector<1x896x128xbf16>
    %78 = vector.shape_cast %77 : vector<1x896x128xbf16> to vector<896x128xbf16>
    %cst_52 = arith.constant dense<0.000000e+00> : vector<256x128xf32>
    %79 = tpu.matmul %76, %78, %cst_52 {dimension_numbers = #tpu.dot_dimension_numbers<[1], [0], [0], [1], [0, 0, 1, 1], [], []>} : vector<256x896xbf16>, vector<896x128xbf16>, vector<256x128xf32> -> vector<256x128xf32>
    %c0_53 = arith.constant 0 : index
    %c0_54 = arith.constant 0 : index
    %80 = vector.load %arg9[%c0_53, %c0_54] : memref<256x128xf32, #tpu.memory_space<vmem>>, vector<256x128xf32>
    %81 = arith.addf %80, %79 : vector<256x128xf32>
    %c0_55 = arith.constant 0 : index
    %c0_56 = arith.constant 0 : index
    %82 = vector.load %arg9[%c0_55, %c0_56] : memref<256x128xf32, #tpu.memory_space<vmem>>, vector<256x128xf32>
    tpu.vector_store %arg9[%c0_55, %c0_56], %81 {strides = array<i32>} : memref<256x128xf32, #tpu.memory_space<vmem>>, vector<256x128xf32>,
    %c0_57 = arith.constant 0 : index
    %c0_58 = arith.constant 0 : index
    %c0_59 = arith.constant 0 : index
    %c5 = arith.constant 5 : index
    %c0_60 = arith.constant 0 : index
    %83 = vector.load %arg2[%c0_57, %c0_58, %c0_59, %c5, %c0_60] : memref<1x1x22x22x128xbf16, #tpu.memory_space<vmem>>, vector<1x1x22x16x128xbf16>
    %84 = vector.shape_cast %83 : vector<1x1x22x16x128xbf16> to vector<22x16x128xbf16>
    %85 = vector.extract_strided_slice %84 {offsets = [0, 0, 0], sizes = [16, 16, 128], strides = [1, 1, 1]} : vector<22x16x128xbf16> to vector<16x16x128xbf16>
    %86 = vector.extract_strided_slice %84 {offsets = [1, 0, 0], sizes = [16, 16, 128], strides = [1, 1, 1]} : vector<22x16x128xbf16> to vector<16x16x128xbf16>
    %87 = vector.extract_strided_slice %84 {offsets = [2, 0, 0], sizes = [16, 16, 128], strides = [1, 1, 1]} : vector<22x16x128xbf16> to vector<16x16x128xbf16>
    %88 = vector.extract_strided_slice %84 {offsets = [3, 0, 0], sizes = [16, 16, 128], strides = [1, 1, 1]} : vector<22x16x128xbf16> to vector<16x16x128xbf16>
    %89 = vector.extract_strided_slice %84 {offsets = [4, 0, 0], sizes = [16, 16, 128], strides = [1, 1, 1]} : vector<22x16x128xbf16> to vector<16x16x128xbf16>
    %90 = vector.extract_strided_slice %84 {offsets = [5, 0, 0], sizes = [16, 16, 128], strides = [1, 1, 1]} : vector<22x16x128xbf16> to vector<16x16x128xbf16>
    %91 = vector.extract_strided_slice %84 {offsets = [6, 0, 0], sizes = [16, 16, 128], strides = [1, 1, 1]} : vector<22x16x128xbf16> to vector<16x16x128xbf16>
    %92 = tpu.concatenate %85, %86, %87, %88, %89, %90, %91 in 2 : vector<16x16x128xbf16>, vector<16x16x128xbf16>, vector<16x16x128xbf16>, vector<16x16x128xbf16>, vector<16x16x128xbf16>, vector<16x16x128xbf16>, vector<16x16x128xbf16> -> vector<16x16x896xbf16>
    %93 = vector.shape_cast %92 : vector<16x16x896xbf16> to vector<256x896xbf16>
    %c5_61 = arith.constant 5 : index
    %c0_62 = arith.constant 0 : index
    %c0_63 = arith.constant 0 : index
    %94 = vector.load %arg4[%c5_61, %c0_62, %c0_63] : memref<7x896x128xbf16, #tpu.memory_space<vmem>>, vector<1x896x128xbf16>
    %95 = vector.shape_cast %94 : vector<1x896x128xbf16> to vector<896x128xbf16>
    %cst_64 = arith.constant dense<0.000000e+00> : vector<256x128xf32>
    %96 = tpu.matmul %93, %95, %cst_64 {dimension_numbers = #tpu.dot_dimension_numbers<[1], [0], [0], [1], [0, 0, 1, 1], [], []>} : vector<256x896xbf16>, vector<896x128xbf16>, vector<256x128xf32> -> vector<256x128xf32>
    %c0_65 = arith.constant 0 : index
    %c0_66 = arith.constant 0 : index
    %97 = vector.load %arg9[%c0_65, %c0_66] : memref<256x128xf32, #tpu.memory_space<vmem>>, vector<256x128xf32>
    %98 = arith.addf %97, %96 : vector<256x128xf32>
    %c0_67 = arith.constant 0 : index
    %c0_68 = arith.constant 0 : index
    %99 = vector.load %arg9[%c0_67, %c0_68] : memref<256x128xf32, #tpu.memory_space<vmem>>, vector<256x128xf32>
    tpu.vector_store %arg9[%c0_67, %c0_68], %98 {strides = array<i32>} : memref<256x128xf32, #tpu.memory_space<vmem>>, vector<256x128xf32>,
    %c0_69 = arith.constant 0 : index
    %c0_70 = arith.constant 0 : index
    %c0_71 = arith.constant 0 : index
    %c6 = arith.constant 6 : index
    %c0_72 = arith.constant 0 : index
    %100 = vector.load %arg2[%c0_69, %c0_70, %c0_71, %c6, %c0_72] : memref<1x1x22x22x128xbf16, #tpu.memory_space<vmem>>, vector<1x1x22x16x128xbf16>
    %101 = vector.shape_cast %100 : vector<1x1x22x16x128xbf16> to vector<22x16x128xbf16>
    %102 = vector.extract_strided_slice %101 {offsets = [0, 0, 0], sizes = [16, 16, 128], strides = [1, 1, 1]} : vector<22x16x128xbf16> to vector<16x16x128xbf16>
    %103 = vector.extract_strided_slice %101 {offsets = [1, 0, 0], sizes = [16, 16, 128], strides = [1, 1, 1]} : vector<22x16x128xbf16> to vector<16x16x128xbf16>
    %104 = vector.extract_strided_slice %101 {offsets = [2, 0, 0], sizes = [16, 16, 128], strides = [1, 1, 1]} : vector<22x16x128xbf16> to vector<16x16x128xbf16>
    %105 = vector.extract_strided_slice %101 {offsets = [3, 0, 0], sizes = [16, 16, 128], strides = [1, 1, 1]} : vector<22x16x128xbf16> to vector<16x16x128xbf16>
    %106 = vector.extract_strided_slice %101 {offsets = [4, 0, 0], sizes = [16, 16, 128], strides = [1, 1, 1]} : vector<22x16x128xbf16> to vector<16x16x128xbf16>
    %107 = vector.extract_strided_slice %101 {offsets = [5, 0, 0], sizes = [16, 16, 128], strides = [1, 1, 1]} : vector<22x16x128xbf16> to vector<16x16x128xbf16>
    %108 = vector.extract_strided_slice %101 {offsets = [6, 0, 0], sizes = [16, 16, 128], strides = [1, 1, 1]} : vector<22x16x128xbf16> to vector<16x16x128xbf16>
    %109 = tpu.concatenate %102, %103, %104, %105, %106, %107, %108 in 2 : vector<16x16x128xbf16>, vector<16x16x128xbf16>, vector<16x16x128xbf16>, vector<16x16x128xbf16>, vector<16x16x128xbf16>, vector<16x16x128xbf16>, vector<16x16x128xbf16> -> vector<16x16x896xbf16>
    %110 = vector.shape_cast %109 : vector<16x16x896xbf16> to vector<256x896xbf16>
    %c6_73 = arith.constant 6 : index
    %c0_74 = arith.constant 0 : index
    %c0_75 = arith.constant 0 : index
    %111 = vector.load %arg4[%c6_73, %c0_74, %c0_75] : memref<7x896x128xbf16, #tpu.memory_space<vmem>>, vector<1x896x128xbf16>
    %112 = vector.shape_cast %111 : vector<1x896x128xbf16> to vector<896x128xbf16>
    %cst_76 = arith.constant dense<0.000000e+00> : vector<256x128xf32>
    %113 = tpu.matmul %110, %112, %cst_76 {dimension_numbers = #tpu.dot_dimension_numbers<[1], [0], [0], [1], [0, 0, 1, 1], [], []>} : vector<256x896xbf16>, vector<896x128xbf16>, vector<256x128xf32> -> vector<256x128xf32>
    %c0_77 = arith.constant 0 : index
    %c0_78 = arith.constant 0 : index
    %114 = vector.load %arg9[%c0_77, %c0_78] : memref<256x128xf32, #tpu.memory_space<vmem>>, vector<256x128xf32>
    %115 = arith.addf %114, %113 : vector<256x128xf32>
    %c0_79 = arith.constant 0 : index
    %c0_80 = arith.constant 0 : index
    %116 = vector.load %arg9[%c0_79, %c0_80] : memref<256x128xf32, #tpu.memory_space<vmem>>, vector<256x128xf32>
    tpu.vector_store %arg9[%c0_79, %c0_80], %115 {strides = array<i32>} : memref<256x128xf32, #tpu.memory_space<vmem>>, vector<256x128xf32>,
    %c0_81 = arith.constant 0 : index
    %c0_82 = arith.constant 0 : index
    %117 = vector.load %arg9[%c0_81, %c0_82] : memref<256x128xf32, #tpu.memory_space<vmem>>, vector<256x128xf32>
    %c0_83 = arith.constant 0 : index
    %c0_84 = arith.constant 0 : index
    %118 = vector.load %arg5[%c0_83, %c0_84] : memref<1x128xf32, #tpu.memory_space<vmem>>, vector<1x128xf32>
    %119 = vector.broadcast %118 : vector<1x128xf32> to vector<256x128xf32>
    %120 = arith.addf %117, %119 : vector<256x128xf32>
    %cst_85 = arith.constant 0.000000e+00 : f32
    %121 = vector.broadcast %cst_85 : f32 to vector<256x128xf32>
    %122 = arith.maximumf %120, %121 : vector<256x128xf32>
    %123 = arith.truncf %122 : vector<256x128xf32> to vector<256x128xbf16>
    %c0_86 = arith.constant 0 : index
    %c0_87 = arith.constant 0 : index
    %124 = vector.load %arg6[%c0_86, %c0_87] : memref<128x128xbf16, #tpu.memory_space<vmem>>, vector<128x128xbf16>
    %cst_88 = arith.constant dense<0.000000e+00> : vector<256x128xf32>
    %125 = tpu.matmul %123, %124, %cst_88 {dimension_numbers = #tpu.dot_dimension_numbers<[1], [0], [0], [1], [0, 0, 1, 1], [], []>} : vector<256x128xbf16>, vector<128x128xbf16>, vector<256x128xf32> -> vector<256x128xf32>
    %c0_89 = arith.constant 0 : index
    %c0_90 = arith.constant 0 : index
    %126 = vector.load %arg7[%c0_89, %c0_90] : memref<1x128xf32, #tpu.memory_space<vmem>>, vector<1x128xf32>
    %127 = vector.broadcast %126 : vector<1x128xf32> to vector<256x128xf32>
    %128 = arith.addf %125, %127 : vector<256x128xf32>
    %c0_91 = arith.constant 0 : index
    %c0_92 = arith.constant 0 : index
    %c0_93 = arith.constant 0 : index
    %c0_94 = arith.constant 0 : index
    %129 = vector.load %arg3[%c0_91, %c0_92, %c0_93, %c0_94] : memref<1x16x16x128xf32, #tpu.memory_space<vmem>>, vector<1x16x16x128xf32>
    %130 = vector.shape_cast %129 : vector<1x16x16x128xf32> to vector<16x16x128xf32>
    %131 = vector.shape_cast %130 : vector<16x16x128xf32> to vector<256x128xf32>
    %132 = arith.addf %128, %131 : vector<256x128xf32>
    %133 = vector.shape_cast %132 : vector<256x128xf32> to vector<16x16x128xf32>
    %c0_95 = arith.constant 0 : index
    %c0_96 = arith.constant 0 : index
    %c0_97 = arith.constant 0 : index
    %c0_98 = arith.constant 0 : index
    %134 = vector.load %arg8[%c0_95, %c0_96, %c0_97, %c0_98] : memref<1x16x16x128xf32, #tpu.memory_space<vmem>>, vector<1x16x16x128xf32>
    %135 = vector.shape_cast %134 : vector<1x16x16x128xf32> to vector<16x16x128xf32>
    %136 = vector.shape_cast %133 : vector<16x16x128xf32> to vector<1x16x16x128xf32>
    tpu.vector_store %arg8[%c0_95, %c0_96, %c0_97, %c0_98], %136 {strides = array<i32>} : memref<1x16x16x128xf32, #tpu.memory_space<vmem>>, vector<1x16x16x128xf32>,
    return
  }
  func.func @transform_0(%arg0: i32, %arg1: i32) -> (i32, i32, i32, i32, i32) {
    %c0_i32 = arith.constant 0 : i32
    %c0_i32_0 = arith.constant 0 : i32
    %c0_i32_1 = arith.constant 0 : i32
    %c0_i32_2 = arith.constant 0 : i32
    return %arg0, %arg1, %c0_i32, %c0_i32_0, %c0_i32_1 : i32, i32, i32, i32, i32
  }
  func.func @transform_1(%arg0: i32, %arg1: i32) -> (i32, i32, i32, i32) {
    %c0_i32 = arith.constant 0 : i32
    %c0_i32_0 = arith.constant 0 : i32
    %c0_i32_1 = arith.constant 0 : i32
    return %arg0, %arg1, %c0_i32, %c0_i32_0 : i32, i32, i32, i32
  }
  func.func @transform_2(%arg0: i32, %arg1: i32) -> (i32, i32, i32) {
    %c0_i32 = arith.constant 0 : i32
    %c0_i32_0 = arith.constant 0 : i32
    %c0_i32_1 = arith.constant 0 : i32
    %c0_i32_2 = arith.constant 0 : i32
    return %c0_i32, %c0_i32_0, %c0_i32_1 : i32, i32, i32
  }
  func.func @transform_3(%arg0: i32, %arg1: i32) -> (i32, i32) {
    %c0_i32 = arith.constant 0 : i32
    %c0_i32_0 = arith.constant 0 : i32
    %c0_i32_1 = arith.constant 0 : i32
    return %c0_i32, %c0_i32_0 : i32, i32
  }
  func.func @transform_4(%arg0: i32, %arg1: i32) -> (i32, i32) {
    %c0_i32 = arith.constant 0 : i32
    %c0_i32_0 = arith.constant 0 : i32
    %c0_i32_1 = arith.constant 0 : i32
    return %c0_i32, %c0_i32_0 : i32, i32
  }
  func.func @transform_5(%arg0: i32, %arg1: i32) -> (i32, i32) {
    %c0_i32 = arith.constant 0 : i32
    %c0_i32_0 = arith.constant 0 : i32
    %c0_i32_1 = arith.constant 0 : i32
    return %c0_i32, %c0_i32_0 : i32, i32
  }
  func.func @transform_6(%arg0: i32, %arg1: i32) -> (i32, i32, i32, i32) {
    %c0_i32 = arith.constant 0 : i32
    %c0_i32_0 = arith.constant 0 : i32
    %c0_i32_1 = arith.constant 0 : i32
    return %arg0, %arg1, %c0_i32, %c0_i32_0 : i32, i32, i32, i32
  }
}

</mosaic_0001>

<llo_original>
// kernel: multi_scale_feature_extraction.1
$region0: #{multi_scale_feature_extraction.1}
  #allocation0 [shape = 'u32[]', space=smem, size = 0x4, offset = 0x4, fixed_abs, tag = 'smem constant byte address 0x4 - core index']
  #allocation1 [shape = 'u32[72,128]{1,0:T(1,128)}', space=vmem, size = 0x9000, scoped, tag = 'internal scratch']
  #allocation2 [shape = 'f32[256,128]{1,0:T(8,128)}', space=vmem, size = 0x20000, scoped, tag = 'scratch operand']
  %s0 = inlined_call_operand.vmem [shape: bf16[2,1,22,22,128], index: 0, kind: input, shape index: {}]
  %s1 = inlined_call_operand.vmem [shape: f32[2,16,16,128], index: 1, kind: input, shape index: {}]
  %s2 = inlined_call_operand.vmem [shape: bf16[7,896,128], index: 2, kind: input, shape index: {}]
  %s3 = inlined_call_operand.vmem [shape: f32[1,128], index: 3, kind: input, shape index: {}]
  %s4 = inlined_call_operand.vmem [shape: bf16[128,128], index: 4, kind: input, shape index: {}]
  %s5 = inlined_call_operand.vmem [shape: f32[1,128], index: 5, kind: input, shape index: {}]
  %s6 = inlined_call_operand.vmem [shape: f32[2,16,16,128], index: 6, kind: output, shape index: {}]
  %s7 = sld [smem:[#allocation0]]
  $region57: #{multi_scale_feature_extraction.1} parent=0
    _
  %s9 = ssub.s32 1, %s7
  %s10 = scalar_select 0, %s9, %s7
  loop: start=0, step=1, limit=4
  $region2: #{multi_scale_feature_extraction.1} parent=0 // loop_pre_header
    _
  $region3: #{multi_scale_feature_extraction.1} parent=0 // loop_header
    %s12 = sphi 0, %s16
    %p13 = scmp.ge.s32.totalorder %s12, 4
    %s19 = sphi 0, %s31
    %s20 = sphi 0, %s27
    %s21 = sphi 0, %s19
    %s22 = sphi 0, %s20
    %s23 = sphi 0, %s21
    %s24 = sphi 0, %s22
    %s36 = sphi 0, %s38
    %s39 = sphi 0, %s36
    %s40 = sphi 0, %s39
    %s56 = sphi 0, %s40
    %s64 = sphi 0, %s66
    %s67 = sphi 0, %s64
    %s68 = sphi 0, %s67
    %s84 = sphi 0, %s68
    %s88 = sphi 0, %s88
    %s90 = sphi 0, %s88
    %s91 = sphi 0, %s90
    %s105 = sphi 0, %s91
    %s109 = sphi 0, %s109
    %s111 = sphi 0, %s109
    %s112 = sphi 0, %s111
    %s126 = sphi 0, %s112
    %s130 = sphi 0, %s130
    %s132 = sphi 0, %s130
    %s133 = sphi 0, %s132
    %s147 = sphi 0, %s133
    %s151 = sphi 0, %s151
    %s153 = sphi 0, %s151
    %s154 = sphi 0, %s153
    %s168 = sphi 0, %s154
    %s176 = sphi 0, %s178
    %s179 = sphi 0, %s176
    %s180 = sphi 0, %s179
    %s196 = sphi 0, %s180
  $region4: #{multi_scale_feature_extraction.1} parent=0 // loop_header_branch
    %15 = sbr.rel (%p13) target = $region8
  $region5: #{multi_scale_feature_extraction.1} parent=0 // loop_body
    %s17 = ssub.s32 %s12, 1
    %s18 = ssub.s32 %s12, 2
    %s25 = sadd.s32 1, %s20
    %p26 = scmp.ge.s32.totalorder %s25, 1
    %s27 = scalar_select %p26, 0, %s25
    %s28 = sadd.s32 1, %s19
    %s29 = scalar_select %p26, %s28, %s19
    %p30 = scmp.ge.s32.totalorder %s29, 2
    %s31 = scalar_select %p30, 0, %s29
    %s32 = ssub.s32 %s19, %s31
    %s33 = ssub.s32 %s20, %s27
    %s34 = sor.u32 %s32, %s33
    %p35 = scmp.eq.s32.totalorder %s34, 0
    %s37 = sadd.s32 %s36, 1
    %s38 = scalar_select %p35, %s36, %s37
    %p41 = pneg %p35
    %p42 = scmp.eq.s32.totalorder %s12, 1
    %p43 = por %p41, %p42
    %p44 = scmp.ne.s32.totalorder %s36, %s39
    %p45 = scmp.eq.s32.totalorder %s12, 0
    %p46 = por %p44, %p45
    %p47 = scmp.ne.s32.totalorder %s36, %s39
    %p48 = scmp.eq.s32.totalorder %s17, 1
    %p49 = por %p47, %p48
    %p50 = scmp.ne.s32.totalorder %s39, %s40
    %p51 = scmp.eq.s32.totalorder %s17, 0
    %p52 = por %p50, %p51
    %p53 = scmp.ne.s32.totalorder %s39, %s40
    %p54 = scmp.eq.s32.totalorder %s18, 1
    %p55 = por %p53, %p54
    %p57 = scmp.ne.s32.totalorder %s40, %s56
    %p58 = scmp.eq.s32.totalorder %s18, 0
    %p59 = por %p57, %p58
    %s60 = ssub.s32 %s19, %s31
    %s61 = ssub.s32 %s20, %s27
    %s62 = sor.u32 %s60, %s61
    %p63 = scmp.eq.s32.totalorder %s62, 0
    %s65 = sadd.s32 %s64, 1
    %s66 = scalar_select %p63, %s64, %s65
    %p69 = pneg %p63
    %p70 = scmp.eq.s32.totalorder %s12, 1
    %p71 = por %p69, %p70
    %p72 = scmp.ne.s32.totalorder %s64, %s67
    %p73 = scmp.eq.s32.totalorder %s12, 0
    %p74 = por %p72, %p73
    %p75 = scmp.ne.s32.totalorder %s64, %s67
    %p76 = scmp.eq.s32.totalorder %s17, 1
    %p77 = por %p75, %p76
    %p78 = scmp.ne.s32.totalorder %s67, %s68
    %p79 = scmp.eq.s32.totalorder %s17, 0
    %p80 = por %p78, %p79
    %p81 = scmp.ne.s32.totalorder %s67, %s68
    %p82 = scmp.eq.s32.totalorder %s18, 1
    %p83 = por %p81, %p82
    %p85 = scmp.ne.s32.totalorder %s68, %s84
    %p86 = scmp.eq.s32.totalorder %s18, 0
    %p87 = por %p85, %p86
    %s89 = sadd.s32 %s88, 1
    %p92 = scmp.eq.s32.totalorder %s12, 1
    %p93 = scmp.ne.s32.totalorder %s88, %s90
    %p94 = scmp.eq.s32.totalorder %s12, 0
    %p95 = por %p93, %p94
    %p96 = scmp.ne.s32.totalorder %s88, %s90
    %p97 = scmp.eq.s32.totalorder %s17, 1
    %p98 = por %p96, %p97
    %p99 = scmp.ne.s32.totalorder %s90, %s91
    %p100 = scmp.eq.s32.totalorder %s17, 0
    %p101 = por %p99, %p100
    %p102 = scmp.ne.s32.totalorder %s90, %s91
    %p103 = scmp.eq.s32.totalorder %s18, 1
    %p104 = por %p102, %p103
    %p106 = scmp.ne.s32.totalorder %s91, %s105
    %p107 = scmp.eq.s32.totalorder %s18, 0
    %p108 = por %p106, %p107
    %s110 = sadd.s32 %s109, 1
    %p113 = scmp.eq.s32.totalorder %s12, 1
    %p114 = scmp.ne.s32.totalorder %s109, %s111
    %p115 = scmp.eq.s32.totalorder %s12, 0
    %p116 = por %p114, %p115
    %p117 = scmp.ne.s32.totalorder %s109, %s111
    %p118 = scmp.eq.s32.totalorder %s17, 1
    %p119 = por %p117, %p118
    %p120 = scmp.ne.s32.totalorder %s111, %s112
    %p121 = scmp.eq.s32.totalorder %s17, 0
    %p122 = por %p120, %p121
    %p123 = scmp.ne.s32.totalorder %s111, %s112
    %p124 = scmp.eq.s32.totalorder %s18, 1
    %p125 = por %p123, %p124
    %p127 = scmp.ne.s32.totalorder %s112, %s126
    %p128 = scmp.eq.s32.totalorder %s18, 0
    %p129 = por %p127, %p128
    %s131 = sadd.s32 %s130, 1
    %p134 = scmp.eq.s32.totalorder %s12, 1
    %p135 = scmp.ne.s32.totalorder %s130, %s132
    %p136 = scmp.eq.s32.totalorder %s12, 0
    %p137 = por %p135, %p136
    %p138 = scmp.ne.s32.totalorder %s130, %s132
    %p139 = scmp.eq.s32.totalorder %s17, 1
    %p140 = por %p138, %p139
    %p141 = scmp.ne.s32.totalorder %s132, %s133
    %p142 = scmp.eq.s32.totalorder %s17, 0
    %p143 = por %p141, %p142
    %p144 = scmp.ne.s32.totalorder %s132, %s133
    %p145 = scmp.eq.s32.totalorder %s18, 1
    %p146 = por %p144, %p145
    %p148 = scmp.ne.s32.totalorder %s133, %s147
    %p149 = scmp.eq.s32.totalorder %s18, 0
    %p150 = por %p148, %p149
    %s152 = sadd.s32 %s151, 1
    %p155 = scmp.eq.s32.totalorder %s12, 1
    %p156 = scmp.ne.s32.totalorder %s151, %s153
    %p157 = scmp.eq.s32.totalorder %s12, 0
    %p158 = por %p156, %p157
    %p159 = scmp.ne.s32.totalorder %s151, %s153
    %p160 = scmp.eq.s32.totalorder %s17, 1
    %p161 = por %p159, %p160
    %p162 = scmp.ne.s32.totalorder %s153, %s154
    %p163 = scmp.eq.s32.totalorder %s17, 0
    %p164 = por %p162, %p163
    %p165 = scmp.ne.s32.totalorder %s153, %s154
    %p166 = scmp.eq.s32.totalorder %s18, 1
    %p167 = por %p165, %p166
    %p169 = scmp.ne.s32.totalorder %s154, %s168
    %p170 = scmp.eq.s32.totalorder %s18, 0
    %p171 = por %p169, %p170
    %s172 = ssub.s32 %s19, %s31
    %s173 = ssub.s32 %s20, %s27
    %s174 = sor.u32 %s172, %s173
    %p175 = scmp.eq.s32.totalorder %s174, 0
    %s177 = sadd.s32 %s176, 1
    %s178 = scalar_select %p175, %s176, %s177
    %p181 = pneg %p175
    %p182 = scmp.eq.s32.totalorder %s12, 1
    %p183 = por %p181, %p182
    %p184 = scmp.ne.s32.totalorder %s176, %s179
    %p185 = scmp.eq.s32.totalorder %s12, 0
    %p186 = por %p184, %p185
    %p187 = scmp.ne.s32.totalorder %s176, %s179
    %p188 = scmp.eq.s32.totalorder %s17, 1
    %p189 = por %p187, %p188
    %p190 = scmp.ne.s32.totalorder %s179, %s180
    %p191 = scmp.eq.s32.totalorder %s17, 0
    %p192 = por %p190, %p191
    %p193 = scmp.ne.s32.totalorder %s179, %s180
    %p194 = scmp.eq.s32.totalorder %s18, 1
    %p195 = por %p193, %p194
    %p197 = scmp.ne.s32.totalorder %s180, %s196
    %p198 = scmp.eq.s32.totalorder %s18, 0
    %p199 = por %p197, %p198
    %p200 = scmp.le.s32.totalorder 1, %s12
    %p201 = scmp.lt.s32.totalorder %s12, 3
    %p202 = pnand %p200, %p201
    %p203 = pneg %p202
    // Predicated region
    $region9: #{multi_scale_feature_extraction.1} parent=5 // pred_check
      _
    $region10: #{multi_scale_feature_extraction.1} parent=5 // pred_check_branch
      %205 = sbr.rel (%p202) target = $region12
    $region11: #{multi_scale_feature_extraction.1} parent=5 // pred_region
      %s206 = ssub.s32 %s12, 1
      // Predicated region
      $region13: #{multi_scale_feature_extraction.1} parent=11 // pred_check
        %p207 = pneg %p101
      $region14: #{multi_scale_feature_extraction.1} parent=11 // pred_check_branch
        %209 = sbr.rel (%p207) target = $region16
      $region15: #{multi_scale_feature_extraction.1} parent=11 // pred_region
        _
      $region16: #{multi_scale_feature_extraction.1} parent=11 // pred_fallthru
        _
      // Predicated region
      $region17: #{multi_scale_feature_extraction.1} parent=11 // pred_check
        %p210 = pneg %p122
      $region18: #{multi_scale_feature_extraction.1} parent=11 // pred_check_branch
        %212 = sbr.rel (%p210) target = $region20
      $region19: #{multi_scale_feature_extraction.1} parent=11 // pred_region
        _
      $region20: #{multi_scale_feature_extraction.1} parent=11 // pred_fallthru
        _
      // Predicated region
      $region21: #{multi_scale_feature_extraction.1} parent=11 // pred_check
        %p213 = pneg %p143
      $region22: #{multi_scale_feature_extraction.1} parent=11 // pred_check_branch
        %215 = sbr.rel (%p213) target = $region24
      $region23: #{multi_scale_feature_extraction.1} parent=11 // pred_region
        _
      $region24: #{multi_scale_feature_extraction.1} parent=11 // pred_fallthru
        _
      // Predicated region
      $region25: #{multi_scale_feature_extraction.1} parent=11 // pred_check
        %p216 = pneg %p164
      $region26: #{multi_scale_feature_extraction.1} parent=11 // pred_check_branch
        %218 = sbr.rel (%p216) target = $region28
      $region27: #{multi_scale_feature_extraction.1} parent=11 // pred_region
        _
      $region28: #{multi_scale_feature_extraction.1} parent=11 // pred_fallthru
        _
    $region12: #{multi_scale_feature_extraction.1} parent=5 // pred_fallthru
      _
    %p219 = scmp.lt.s32.totalorder %s12, 2
    // Predicated region
    $region29: #{multi_scale_feature_extraction.1} parent=5 // pred_check
      %p220 = pneg %p219
    $region30: #{multi_scale_feature_extraction.1} parent=5 // pred_check_branch
      %222 = sbr.rel (%p220) target = $region32
    $region31: #{multi_scale_feature_extraction.1} parent=5 // pred_region
      // Predicated region
      $region33: #{multi_scale_feature_extraction.1} parent=31 // pred_check
        %p223 = pneg %p46
      $region34: #{multi_scale_feature_extraction.1} parent=31 // pred_check_branch
        %225 = sbr.rel (%p223) target = $region36
      $region35: #{multi_scale_feature_extraction.1} parent=31 // pred_region
        %p226 = scmp.lt.s32.totalorder %s19, 1
        %s227 = scalar_select %p226, %s19, 1
        %p228 = scmp.lt.s32.totalorder %s20, 0
        %s229 = scalar_select %p228, %s20, 0
        %s230 = smul.addr %s229, 66
        %s231 = smul.addr %s227, 66
        %s232 = sadd.s32 %s230, %s231
        %s233 = smul.addr %s232, 4
        %s234 = scalar_lea.vmem %s0, %s233
      $region36: #{multi_scale_feature_extraction.1} parent=31 // pred_fallthru
        _
      // Predicated region
      $region37: #{multi_scale_feature_extraction.1} parent=31 // pred_check
        %p235 = pneg %p74
      $region38: #{multi_scale_feature_extraction.1} parent=31 // pred_check_branch
        %237 = sbr.rel (%p235) target = $region40
      $region39: #{multi_scale_feature_extraction.1} parent=31 // pred_region
        %s238 = smul.u32 16, %s20
        %p239 = scmp.lt.s32.totalorder %s19, 1
        %s240 = scalar_select %p239, %s19, 1
        %p241 = scmp.lt.s32.totalorder %s238, 15
        %s242 = scalar_select %p241, %s238, 15
        %s243 = smul.addr %s242, 2
        %s244 = smul.addr %s240, 32
        %s245 = sadd.s32 %s243, %s244
        %s246 = smul.addr %s245, 8
        %s247 = scalar_lea.vmem %s1, %s246
        %s248 = smul.u32 16, %s20
      $region40: #{multi_scale_feature_extraction.1} parent=31 // pred_fallthru
        _
    $region32: #{multi_scale_feature_extraction.1} parent=5 // pred_fallthru
      _
    %p249 = scmp.le.s32.totalorder 1, %s12
    %p250 = scmp.lt.s32.totalorder %s12, 3
    %p251 = pnand %p249, %p250
    %p252 = pneg %p251
    // Predicated region
    $region41: #{multi_scale_feature_extraction.1} parent=5 // pred_check
      _
    $region42: #{multi_scale_feature_extraction.1} parent=5 // pred_check_branch
      %254 = sbr.rel (%p251) target = $region44
    $region43: #{multi_scale_feature_extraction.1} parent=5 // pred_region
      %s255 = ssub.s32 %s12, 1
      %p256 = scmp.lt.s32.totalorder %s21, 1
      %s257 = scalar_select %p256, %s21, 1
      %p258 = scmp.lt.s32.totalorder %s22, 0
      %s259 = scalar_select %p258, %s22, 0
      %s260 = smul.addr %s259, 66
      %s261 = smul.addr %s257, 66
      %s262 = sadd.s32 %s260, %s261
      %s263 = smul.addr %s262, 4
      %s264 = scalar_lea.vmem %s0, %s263
      %p265 = pneg %p52
      %p266 = pneg %p49
      %s267 = smul.u32 16, %s22
      %p268 = scmp.lt.s32.totalorder %s21, 1
      %s269 = scalar_select %p268, %s21, 1
      %p270 = scmp.lt.s32.totalorder %s267, 15
      %s271 = scalar_select %p270, %s267, 15
      %s272 = smul.addr %s271, 2
      %s273 = smul.addr %s269, 32
      %s274 = sadd.s32 %s272, %s273
      %s275 = smul.addr %s274, 8
      %s276 = scalar_lea.vmem %s1, %s275
      %p277 = pneg %p80
      %p278 = pneg %p77
      %p279 = pneg %p101
      %p280 = pneg %p98
      %p281 = pneg %p122
      %p282 = pneg %p119
      %p283 = pneg %p143
      %p284 = pneg %p140
      %p285 = pneg %p164
      %p286 = pneg %p161
      %p287 = pneg %p192
      %p288 = pneg %p189
      %s289 = smul.u32 16, %s22
      %p290 = scmp.lt.s32.totalorder %s21, 1
      %s291 = scalar_select %p290, %s21, 1
      %p292 = scmp.lt.s32.totalorder %s289, 15
      %s293 = scalar_select %p292, %s289, 15
      %s294 = smul.addr %s293, 2
      %s295 = smul.addr %s291, 32
      %s296 = sadd.s32 %s294, %s295
      %s297 = smul.addr %s296, 8
      %s298 = scalar_lea.vmem %s6, %s297
      %p299 = scmp.lt.s32.totalorder %s21, 1
      %s300 = scalar_select %p299, %s21, 1
      %p301 = scmp.lt.s32.totalorder %s22, 0
      %s302 = scalar_select %p301, %s22, 0
      %s303 = smul.addr %s302, 66
      %s304 = smul.addr %s300, 66
      %s305 = sadd.s32 %s303, %s304
      %s306 = smul.addr %s305, 4
      %s307 = scalar_lea.vmem %s0, %s306
      %s308 = smul.u32 16, %s22
      %p309 = scmp.lt.s32.totalorder %s21, 1
      %s310 = scalar_select %p309, %s21, 1
      %p311 = scmp.lt.s32.totalorder %s308, 15
      %s312 = scalar_select %p311, %s308, 15
      %s313 = smul.addr %s312, 2
      %s314 = smul.addr %s310, 32
      %s315 = sadd.s32 %s313, %s314
      %s316 = smul.addr %s315, 8
      %s317 = scalar_lea.vmem %s1, %s316
      %s318 = smul.u32 16, %s22
      %s319 = smul.u32 16, %s22
      %p320 = scmp.lt.s32.totalorder %s21, 1
      %s321 = scalar_select %p320, %s21, 1
      %p322 = scmp.lt.s32.totalorder %s319, 15
      %s323 = scalar_select %p322, %s319, 15
      %s324 = smul.addr %s323, 2
      %s325 = smul.addr %s321, 32
      %s326 = sadd.s32 %s324, %s325
      %s327 = smul.addr %s326, 8
      %s328 = scalar_lea.vmem %s6, %s327
      %s329 = smul.u32 16, %s22
      %v330 = vld [vmem:[%s307] sm:$0xf]
      %v331 = vld [vmem:[%s307 + $0x4] sm:$0xf]
      %v332 = vld [vmem:[%s307 + $0xc] sm:$0xf]
      %v333 = vld [vmem:[%s307 + $0x10] sm:$0xf]
      %v334 = vld [vmem:[%s307 + $0x18] sm:$0xf]
      %v335 = vld [vmem:[%s307 + $0x1c] sm:$0xf]
      %v336 = vld [vmem:[%s307 + $0x24] sm:$0xf]
      %v337 = vld [vmem:[%s307 + $0x28] sm:$0xf]
      %v338 = vld [vmem:[%s307 + $0x30] sm:$0xf]
      %v339 = vld [vmem:[%s307 + $0x34] sm:$0xf]
      %v340 = vld [vmem:[%s307 + $0x3c] sm:$0xf]
      %v341 = vld [vmem:[%s307 + $0x40] sm:$0xf]
      %v342 = vld [vmem:[%s307 + $0x48] sm:$0xf]
      %v343 = vld [vmem:[%s307 + $0x4c] sm:$0xf]
      %v344 = vld [vmem:[%s307 + $0x54] sm:$0xf]
      %v345 = vld [vmem:[%s307 + $0x58] sm:$0xf]
      %v346 = vld [vmem:[%s307 + $0x60] sm:$0xf]
      %v347 = vld [vmem:[%s307 + $0x64] sm:$0xf]
      %v348 = vld [vmem:[%s307 + $0x6c] sm:$0xf]
      %v349 = vld [vmem:[%s307 + $0x70] sm:$0xf]
      %v350 = vld [vmem:[%s307 + $0x78] sm:$0xf]
      %v351 = vld [vmem:[%s307 + $0x7c] sm:$0xf]
      %v352 = vld [vmem:[%s307 + $0x84] sm:$0xf]
      %v353 = vld [vmem:[%s307 + $0x88] sm:$0xf]
      %v354 = vld [vmem:[%s307 + $0x90] sm:$0xf]
      %v355 = vld [vmem:[%s307 + $0x94] sm:$0xf]
      %v356 = vld [vmem:[%s307 + $0x9c] sm:$0xf]
      %v357 = vld [vmem:[%s307 + $0xa0] sm:$0xf]
      %v358 = vld [vmem:[%s307 + $0xa8] sm:$0xf]
      %v359 = vld [vmem:[%s307 + $0xac] sm:$0xf]
      %v360 = vld [vmem:[%s307 + $0xb4] sm:$0xf]
      %v361 = vld [vmem:[%s307 + $0xb8] sm:$0xf]
      %v362 = vld [vmem:[%s307 + $0xc0] sm:$0xf]
      %v363 = vld [vmem:[%s307 + $0xc4] sm:$0xf]
      %v364 = vld [vmem:[%s307 + $0xcc] sm:$0xf]
      %v365 = vld [vmem:[%s307 + $0xd0] sm:$0xf]
      %v366 = vld [vmem:[%s307 + $0xd8] sm:$0xf]
      %v367 = vld [vmem:[%s307 + $0xdc] sm:$0xf]
      %v368 = vld [vmem:[%s307 + $0xe4] sm:$0xf]
      %v369 = vld [vmem:[%s307 + $0xe8] sm:$0xf]
      %v370 = vld [vmem:[%s307 + $0xf0] sm:$0xf]
      %v371 = vld [vmem:[%s307 + $0xf4] sm:$0xf]
      %v372 = vld [vmem:[%s307 + $0xfc] sm:$0xf]
      %v373 = vld [vmem:[%s307 + $0x100] sm:$0xf]
      %v406 = vunpack.c.l.b16 %v330
      %v407 = vunpack.c.l.b16 %v331
      %v408 = vunpack.c.l.b16 %v332
      %v409 = vunpack.c.l.b16 %v333
      %v410 = vunpack.c.l.b16 %v334
      %v411 = vunpack.c.l.b16 %v335
      %v412 = vunpack.c.l.b16 %v336
      %v413 = vunpack.c.l.b16 %v337
      %v414 = vunpack.c.l.b16 %v338
      %v415 = vunpack.c.l.b16 %v339
      %v416 = vunpack.c.l.b16 %v340
      %v417 = vunpack.c.l.b16 %v341
      %v418 = vunpack.c.l.b16 %v342
      %v419 = vunpack.c.l.b16 %v343
      %v420 = vunpack.c.l.b16 %v344
      %v421 = vunpack.c.l.b16 %v345
      %v422 = vunpack.c.l.b16 %v346
      %v423 = vunpack.c.l.b16 %v347
      %v424 = vunpack.c.l.b16 %v348
      %v425 = vunpack.c.l.b16 %v349
      %v426 = vunpack.c.l.b16 %v350
      %v427 = vunpack.c.l.b16 %v351
      %v428 = vunpack.c.l.b16 %v352
      %v429 = vunpack.c.l.b16 %v353
      %v430 = vunpack.c.l.b16 %v354
      %v431 = vunpack.c.l.b16 %v355
      %v432 = vunpack.c.l.b16 %v356
      %v433 = vunpack.c.l.b16 %v357
      %v434 = vunpack.c.l.b16 %v358
      %v435 = vunpack.c.l.b16 %v359
      %v436 = vunpack.c.l.b16 %v360
      %v437 = vunpack.c.l.b16 %v361
      %v438 = vpack.c.b16 %v407, %v406
      %v439 = vpack.c.b16 %v409, %v408
      %v440 = vpack.c.b16 %v411, %v410
      %v441 = vpack.c.b16 %v413, %v412
      %v442 = vpack.c.b16 %v415, %v414
      %v443 = vpack.c.b16 %v417, %v416
      %v444 = vpack.c.b16 %v419, %v418
      %v445 = vpack.c.b16 %v421, %v420
      %v446 = vpack.c.b16 %v423, %v422
      %v447 = vpack.c.b16 %v425, %v424
      %v448 = vpack.c.b16 %v427, %v426
      %v449 = vpack.c.b16 %v429, %v428
      %v450 = vpack.c.b16 %v431, %v430
      %v451 = vpack.c.b16 %v433, %v432
      %v452 = vpack.c.b16 %v435, %v434
      %v453 = vpack.c.b16 %v437, %v436
      %v472 = vunpack.c.l.b16 %v362
      %v473 = vunpack.c.l.b16 %v363
      %v474 = vpack.c.b16 %v473, %v472
      %v478 = vunpack.c.l.b16 %v364
      %v479 = vunpack.c.l.b16 %v365
      %v480 = vpack.c.b16 %v479, %v478
      %v484 = vunpack.c.l.b16 %v366
      %v485 = vunpack.c.l.b16 %v367
      %v486 = vpack.c.b16 %v485, %v484
      %v490 = vunpack.c.l.b16 %v368
      %v491 = vunpack.c.l.b16 %v369
      %v492 = vpack.c.b16 %v491, %v490
      %v496 = vunpack.c.l.b16 %v370
      %v497 = vunpack.c.l.b16 %v371
      %v498 = vpack.c.b16 %v497, %v496
      %v502 = vunpack.c.l.b16 %v372
      %v503 = vunpack.c.l.b16 %v373
      %v504 = vpack.c.b16 %v503, %v502
      %v506 = vld [vmem:[%s2] sm:$0xf]
      %v507 = vld [vmem:[%s2 + $0x4] sm:$0xf]
      %v508 = vld [vmem:[%s2 + $0x8] sm:$0xf]
      %v509 = vld [vmem:[%s2 + $0xc] sm:$0xf]
      %v510 = vld [vmem:[%s2 + $0x10] sm:$0xf]
      %v511 = vld [vmem:[%s2 + $0x14] sm:$0xf]
      %v512 = vld [vmem:[%s2 + $0x18] sm:$0xf]
      %v513 = vld [vmem:[%s2 + $0x1c] sm:$0xf]
      %v514 = vld [vmem:[%s2 + $0x20] sm:$0xf]
      %v515 = vld [vmem:[%s2 + $0x24] sm:$0xf]
      %v516 = vld [vmem:[%s2 + $0x28] sm:$0xf]
      %v517 = vld [vmem:[%s2 + $0x2c] sm:$0xf]
      %v518 = vld [vmem:[%s2 + $0x30] sm:$0xf]
      %v519 = vld [vmem:[%s2 + $0x34] sm:$0xf]
      %v520 = vld [vmem:[%s2 + $0x38] sm:$0xf]
      %v521 = vld [vmem:[%s2 + $0x3c] sm:$0xf]
      %v522 = vld [vmem:[%s2 + $0x40] sm:$0xf]
      %v523 = vld [vmem:[%s2 + $0x44] sm:$0xf]
      %v524 = vld [vmem:[%s2 + $0x48] sm:$0xf]
      %v525 = vld [vmem:[%s2 + $0x4c] sm:$0xf]
      %v526 = vld [vmem:[%s2 + $0x50] sm:$0xf]
      %v527 = vld [vmem:[%s2 + $0x54] sm:$0xf]
      %v528 = vld [vmem:[%s2 + $0x58] sm:$0xf]
      %v529 = vld [vmem:[%s2 + $0x5c] sm:$0xf]
      %v530 = vld [vmem:[%s2 + $0x60] sm:$0xf]
      %v531 = vld [vmem:[%s2 + $0x64] sm:$0xf]
      %v532 = vld [vmem:[%s2 + $0x68] sm:$0xf]
      %v533 = vld [vmem:[%s2 + $0x6c] sm:$0xf]
      %v534 = vld [vmem:[%s2 + $0x70] sm:$0xf]
      %v535 = vld [vmem:[%s2 + $0x74] sm:$0xf]
      %v536 = vld [vmem:[%s2 + $0x78] sm:$0xf]
      %v537 = vld [vmem:[%s2 + $0x7c] sm:$0xf]
      %v538 = vld [vmem:[%s2 + $0x80] sm:$0xf]
      %v539 = vld [vmem:[%s2 + $0x84] sm:$0xf]
      %v540 = vld [vmem:[%s2 + $0x88] sm:$0xf]
      %v541 = vld [vmem:[%s2 + $0x8c] sm:$0xf]
      %v542 = vld [vmem:[%s2 + $0x90] sm:$0xf]
      %v543 = vld [vmem:[%s2 + $0x94] sm:$0xf]
      %v544 = vld [vmem:[%s2 + $0x98] sm:$0xf]
      %v545 = vld [vmem:[%s2 + $0x9c] sm:$0xf]
      %v546 = vld [vmem:[%s2 + $0xa0] sm:$0xf]
      %v547 = vld [vmem:[%s2 + $0xa4] sm:$0xf]
      %v548 = vld [vmem:[%s2 + $0xa8] sm:$0xf]
      %v549 = vld [vmem:[%s2 + $0xac] sm:$0xf]
      %v550 = vld [vmem:[%s2 + $0xb0] sm:$0xf]
      %v551 = vld [vmem:[%s2 + $0xb4] sm:$0xf]
      %v552 = vld [vmem:[%s2 + $0xb8] sm:$0xf]
      %v553 = vld [vmem:[%s2 + $0xbc] sm:$0xf]
      %v554 = vld [vmem:[%s2 + $0xc0] sm:$0xf]
      %v555 = vld [vmem:[%s2 + $0xc4] sm:$0xf]
      %v556 = vld [vmem:[%s2 + $0xc8] sm:$0xf]
      %v557 = vld [vmem:[%s2 + $0xcc] sm:$0xf]
      %v558 = vld [vmem:[%s2 + $0xd0] sm:$0xf]
      %v559 = vld [vmem:[%s2 + $0xd4] sm:$0xf]
      %v560 = vld [vmem:[%s2 + $0xd8] sm:$0xf]
      %v561 = vld [vmem:[%s2 + $0xdc] sm:$0xf]
      %v562 = vld [vmem:[%s2 + $0xe0] sm:$0xf]
      %v563 = vld [vmem:[%s2 + $0xe4] sm:$0xf]
      %v564 = vld [vmem:[%s2 + $0xe8] sm:$0xf]
      %v565 = vld [vmem:[%s2 + $0xec] sm:$0xf]
      %v566 = vld [vmem:[%s2 + $0xf0] sm:$0xf]
      %v567 = vld [vmem:[%s2 + $0xf4] sm:$0xf]
      %v568 = vld [vmem:[%s2 + $0xf8] sm:$0xf]
      %v569 = vld [vmem:[%s2 + $0xfc] sm:$0xf]
      %v570 = vld [vmem:[%s2 + $0x100] sm:$0xf]
      %v571 = vld [vmem:[%s2 + $0x104] sm:$0xf]
      %v572 = vld [vmem:[%s2 + $0x108] sm:$0xf]
      %v573 = vld [vmem:[%s2 + $0x10c] sm:$0xf]
      %v574 = vld [vmem:[%s2 + $0x110] sm:$0xf]
      %v575 = vld [vmem:[%s2 + $0x114] sm:$0xf]
      %v576 = vld [vmem:[%s2 + $0x118] sm:$0xf]
      %v577 = vld [vmem:[%s2 + $0x11c] sm:$0xf]
      %v578 = vld [vmem:[%s2 + $0x120] sm:$0xf]
      %v579 = vld [vmem:[%s2 + $0x124] sm:$0xf]
      %v580 = vld [vmem:[%s2 + $0x128] sm:$0xf]
      %v581 = vld [vmem:[%s2 + $0x12c] sm:$0xf]
      %v582 = vld [vmem:[%s2 + $0x130] sm:$0xf]
      %v583 = vld [vmem:[%s2 + $0x134] sm:$0xf]
      %v584 = vld [vmem:[%s2 + $0x138] sm:$0xf]
      %v585 = vld [vmem:[%s2 + $0x13c] sm:$0xf]
      %v586 = vld [vmem:[%s2 + $0x140] sm:$0xf]
      %v587 = vld [vmem:[%s2 + $0x144] sm:$0xf]
      %v588 = vld [vmem:[%s2 + $0x148] sm:$0xf]
      %v589 = vld [vmem:[%s2 + $0x14c] sm:$0xf]
      %v590 = vld [vmem:[%s2 + $0x150] sm:$0xf]
      %v591 = vld [vmem:[%s2 + $0x154] sm:$0xf]
      %v592 = vld [vmem:[%s2 + $0x158] sm:$0xf]
      %v593 = vld [vmem:[%s2 + $0x15c] sm:$0xf]
      %v594 = vld [vmem:[%s2 + $0x160] sm:$0xf]
      %v595 = vld [vmem:[%s2 + $0x164] sm:$0xf]
      %v596 = vld [vmem:[%s2 + $0x168] sm:$0xf]
      %v597 = vld [vmem:[%s2 + $0x16c] sm:$0xf]
      %v598 = vld [vmem:[%s2 + $0x170] sm:$0xf]
      %v599 = vld [vmem:[%s2 + $0x174] sm:$0xf]
      %v600 = vld [vmem:[%s2 + $0x178] sm:$0xf]
      %v601 = vld [vmem:[%s2 + $0x17c] sm:$0xf]
      %v602 = vld [vmem:[%s2 + $0x180] sm:$0xf]
      %v603 = vld [vmem:[%s2 + $0x184] sm:$0xf]
      %v604 = vld [vmem:[%s2 + $0x188] sm:$0xf]
      %v605 = vld [vmem:[%s2 + $0x18c] sm:$0xf]
      %v606 = vld [vmem:[%s2 + $0x190] sm:$0xf]
      %v607 = vld [vmem:[%s2 + $0x194] sm:$0xf]
      %v608 = vld [vmem:[%s2 + $0x198] sm:$0xf]
      %v609 = vld [vmem:[%s2 + $0x19c] sm:$0xf]
      %v610 = vld [vmem:[%s2 + $0x1a0] sm:$0xf]
      %v611 = vld [vmem:[%s2 + $0x1a4] sm:$0xf]
      %v612 = vld [vmem:[%s2 + $0x1a8] sm:$0xf]
      %v613 = vld [vmem:[%s2 + $0x1ac] sm:$0xf]
      %v614 = vld [vmem:[%s2 + $0x1b0] sm:$0xf]
      %v615 = vld [vmem:[%s2 + $0x1b4] sm:$0xf]
      %v616 = vld [vmem:[%s2 + $0x1b8] sm:$0xf]
      %v617 = vld [vmem:[%s2 + $0x1bc] sm:$0xf]
      %v730 = vunpack.c.l.b16 %v506
      %v731 = vunpack.c.l.b16 %v507
      %v732 = vunpack.c.l.b16 %v508
      %v733 = vunpack.c.l.b16 %v509
      %v734 = vunpack.c.l.b16 %v510
      %v735 = vunpack.c.l.b16 %v511
      %v736 = vunpack.c.l.b16 %v512
      %v737 = vunpack.c.l.b16 %v513
      %v738 = vunpack.c.l.b16 %v514
      %v739 = vunpack.c.l.b16 %v515
      %v740 = vunpack.c.l.b16 %v516
      %v741 = vunpack.c.l.b16 %v517
      %v742 = vunpack.c.l.b16 %v518
      %v743 = vunpack.c.l.b16 %v519
      %v744 = vunpack.c.l.b16 %v520
      %v745 = vunpack.c.l.b16 %v521
      %v746 = vunpack.c.l.b16 %v522
      %v747 = vunpack.c.l.b16 %v523
      %v748 = vunpack.c.l.b16 %v524
      %v749 = vunpack.c.l.b16 %v525
      %v750 = vunpack.c.l.b16 %v526
      %v751 = vunpack.c.l.b16 %v527
      %v752 = vunpack.c.l.b16 %v528
      %v753 = vunpack.c.l.b16 %v529
      %v754 = vunpack.c.l.b16 %v530
      %v755 = vunpack.c.l.b16 %v531
      %v756 = vunpack.c.l.b16 %v532
      %v757 = vunpack.c.l.b16 %v533
      %v758 = vunpack.c.l.b16 %v534
      %v759 = vunpack.c.l.b16 %v535
      %v760 = vunpack.c.l.b16 %v536
      %v761 = vunpack.c.l.b16 %v537
      %v762 = vunpack.c.l.b16 %v538
      %v763 = vunpack.c.l.b16 %v539
      %v764 = vunpack.c.l.b16 %v540
      %v765 = vunpack.c.l.b16 %v541
      %v766 = vunpack.c.l.b16 %v542
      %v767 = vunpack.c.l.b16 %v543
      %v768 = vunpack.c.l.b16 %v544
      %v769 = vunpack.c.l.b16 %v545
      %v770 = vunpack.c.l.b16 %v546
      %v771 = vunpack.c.l.b16 %v547
      %v772 = vunpack.c.l.b16 %v548
      %v773 = vunpack.c.l.b16 %v549
      %v774 = vunpack.c.l.b16 %v550
      %v775 = vunpack.c.l.b16 %v551
      %v776 = vunpack.c.l.b16 %v552
      %v777 = vunpack.c.l.b16 %v553
      %v778 = vunpack.c.l.b16 %v554
      %v779 = vunpack.c.l.b16 %v555
      %v780 = vunpack.c.l.b16 %v556
      %v781 = vunpack.c.l.b16 %v557
      %v782 = vunpack.c.l.b16 %v558
      %v783 = vunpack.c.l.b16 %v559
      %v784 = vunpack.c.l.b16 %v560
      %v785 = vunpack.c.l.b16 %v561
      %v786 = vunpack.c.l.b16 %v562
      %v787 = vunpack.c.l.b16 %v563
      %v788 = vunpack.c.l.b16 %v564
      %v789 = vunpack.c.l.b16 %v565
      %v790 = vunpack.c.l.b16 %v566
      %v791 = vunpack.c.l.b16 %v567
      %v792 = vunpack.c.l.b16 %v568
      %v793 = vunpack.c.l.b16 %v569
      %v794 = vunpack.c.l.b16 %v570
      %v795 = vunpack.c.l.b16 %v571
      %v796 = vunpack.c.l.b16 %v572
      %v797 = vunpack.c.l.b16 %v573
      %v798 = vunpack.c.l.b16 %v574
      %v799 = vunpack.c.l.b16 %v575
      %v800 = vunpack.c.l.b16 %v576
      %v801 = vunpack.c.l.b16 %v577
      %v802 = vunpack.c.l.b16 %v578
      %v803 = vunpack.c.l.b16 %v579
      %v804 = vunpack.c.l.b16 %v580
      %v805 = vunpack.c.l.b16 %v581
      %v806 = vunpack.c.l.b16 %v582
      %v807 = vunpack.c.l.b16 %v583
      %v808 = vunpack.c.l.b16 %v584
      %v809 = vunpack.c.l.b16 %v585
      %v810 = vunpack.c.l.b16 %v586
      %v811 = vunpack.c.l.b16 %v587
      %v812 = vunpack.c.l.b16 %v588
      %v813 = vunpack.c.l.b16 %v589
      %v814 = vunpack.c.l.b16 %v590
      %v815 = vunpack.c.l.b16 %v591
      %v816 = vunpack.c.l.b16 %v592
      %v817 = vunpack.c.l.b16 %v593
      %v818 = vunpack.c.l.b16 %v594
      %v819 = vunpack.c.l.b16 %v595
      %v820 = vunpack.c.l.b16 %v596
      %v821 = vunpack.c.l.b16 %v597
      %v822 = vunpack.c.l.b16 %v598
      %v823 = vunpack.c.l.b16 %v599
      %v824 = vunpack.c.l.b16 %v600
      %v825 = vunpack.c.l.b16 %v601
      %v826 = vunpack.c.l.b16 %v602
      %v827 = vunpack.c.l.b16 %v603
      %v828 = vunpack.c.l.b16 %v604
      %v829 = vunpack.c.l.b16 %v605
      %v830 = vunpack.c.l.b16 %v606
      %v831 = vunpack.c.l.b16 %v607
      %v832 = vunpack.c.l.b16 %v608
      %v833 = vunpack.c.l.b16 %v609
      %v834 = vunpack.c.l.b16 %v610
      %v835 = vunpack.c.l.b16 %v611
      %v836 = vunpack.c.l.b16 %v612
      %v837 = vunpack.c.l.b16 %v613
      %v838 = vunpack.c.l.b16 %v614
      %v839 = vunpack.c.l.b16 %v615
      %v840 = vunpack.c.l.b16 %v616
      %v841 = vunpack.c.l.b16 %v617
      %v842 = vpack.c.b16 %v731, %v730
      %v843 = vpack.c.b16 %v733, %v732
      %v844 = vpack.c.b16 %v735, %v734
      %v845 = vpack.c.b16 %v737, %v736
      %v846 = vpack.c.b16 %v739, %v738
      %v847 = vpack.c.b16 %v741, %v740
      %v848 = vpack.c.b16 %v743, %v742
      %v849 = vpack.c.b16 %v745, %v744
      %v850 = vpack.c.b16 %v747, %v746
      %v851 = vpack.c.b16 %v749, %v748
      %v852 = vpack.c.b16 %v751, %v750
      %v853 = vpack.c.b16 %v753, %v752
      %v854 = vpack.c.b16 %v755, %v754
      %v855 = vpack.c.b16 %v757, %v756
      %v856 = vpack.c.b16 %v759, %v758
      %v857 = vpack.c.b16 %v761, %v760
      %v858 = vpack.c.b16 %v763, %v762
      %v859 = vpack.c.b16 %v765, %v764
      %v860 = vpack.c.b16 %v767, %v766
      %v861 = vpack.c.b16 %v769, %v768
      %v862 = vpack.c.b16 %v771, %v770
      %v863 = vpack.c.b16 %v773, %v772
      %v864 = vpack.c.b16 %v775, %v774
      %v865 = vpack.c.b16 %v777, %v776
      %v866 = vpack.c.b16 %v779, %v778
      %v867 = vpack.c.b16 %v781, %v780
      %v868 = vpack.c.b16 %v783, %v782
      %v869 = vpack.c.b16 %v785, %v784
      %v870 = vpack.c.b16 %v787, %v786
      %v871 = vpack.c.b16 %v789, %v788
      %v872 = vpack.c.b16 %v791, %v790
      %v873 = vpack.c.b16 %v793, %v792
      %v874 = vpack.c.b16 %v795, %v794
      %v875 = vpack.c.b16 %v797, %v796
      %v876 = vpack.c.b16 %v799, %v798
      %v877 = vpack.c.b16 %v801, %v800
      %v878 = vpack.c.b16 %v803, %v802
      %v879 = vpack.c.b16 %v805, %v804
      %v880 = vpack.c.b16 %v807, %v806
      %v881 = vpack.c.b16 %v809, %v808
      %v882 = vpack.c.b16 %v811, %v810
      %v883 = vpack.c.b16 %v813, %v812
      %v884 = vpack.c.b16 %v815, %v814
      %v885 = vpack.c.b16 %v817, %v816
      %v886 = vpack.c.b16 %v819, %v818
      %v887 = vpack.c.b16 %v821, %v820
      %v888 = vpack.c.b16 %v823, %v822
      %v889 = vpack.c.b16 %v825, %v824
      %v890 = vpack.c.b16 %v827, %v826
      %v891 = vpack.c.b16 %v829, %v828
      %v892 = vpack.c.b16 %v831, %v830
      %v893 = vpack.c.b16 %v833, %v832
      %v894 = vpack.c.b16 %v835, %v834
      %v895 = vpack.c.b16 %v837, %v836
      %v896 = vpack.c.b16 %v839, %v838
      %v897 = vpack.c.b16 %v841, %v840
      %954 = vmatpush.bf16.msra.mxu0 %v849
      %955 = vmatpush.bf16.msra.mxu0 %v848
      %956 = vmatpush.bf16.msra.mxu0 %v847
      %957 = vmatpush.bf16.msra.mxu0 %v846
      %958 = vmatpush.bf16.msra.mxu0 %v845
      %959 = vmatpush.bf16.msra.mxu0 %v844
      %960 = vmatpush.bf16.msra.mxu0 %v843
      %961 = vmatpush.bf16.msra.mxu0 %v842
      %962 = vmatmul.bf16.gmra.mxu0 %v438
      %v963 = vpop.f32.mrf.mxu0
      %v964 = vadd.f32 0.0, %v963
      %v965 = vpop.f32.mrf.mxu0
      %v966 = vadd.f32 0.0, %v965
      %967 = vmatmul.bf16.gmra.mxu0 %v439
      %v968 = vpop.f32.mrf.mxu0
      %v969 = vadd.f32 0.0, %v968
      %v970 = vpop.f32.mrf.mxu0
      %v971 = vadd.f32 0.0, %v970
      %972 = vmatmul.bf16.gmra.mxu0 %v440
      %v973 = vpop.f32.mrf.mxu0
      %v974 = vadd.f32 0.0, %v973
      %v975 = vpop.f32.mrf.mxu0
      %v976 = vadd.f32 0.0, %v975
      %977 = vmatmul.bf16.gmra.mxu0 %v441
      %v978 = vpop.f32.mrf.mxu0
      %v979 = vadd.f32 0.0, %v978
      %v980 = vpop.f32.mrf.mxu0
      %v981 = vadd.f32 0.0, %v980
      %982 = vmatmul.bf16.gmra.mxu0 %v442
      %v983 = vpop.f32.mrf.mxu0
      %v984 = vadd.f32 0.0, %v983
      %v985 = vpop.f32.mrf.mxu0
      %v986 = vadd.f32 0.0, %v985
      %987 = vmatmul.bf16.gmra.mxu0 %v443
      %v988 = vpop.f32.mrf.mxu0
      %v989 = vadd.f32 0.0, %v988
      %v990 = vpop.f32.mrf.mxu0
      %v991 = vadd.f32 0.0, %v990
      %992 = vmatmul.bf16.gmra.mxu0 %v444
      %v993 = vpop.f32.mrf.mxu0
      %v994 = vadd.f32 0.0, %v993
      %v995 = vpop.f32.mrf.mxu0
      %v996 = vadd.f32 0.0, %v995
      %997 = vmatmul.bf16.gmra.mxu0 %v445
      %v998 = vpop.f32.mrf.mxu0
      %v999 = vadd.f32 0.0, %v998
      %v1000 = vpop.f32.mrf.mxu0
      %v1001 = vadd.f32 0.0, %v1000
      %1002 = vmatmul.bf16.gmra.mxu0 %v446
      %v1003 = vpop.f32.mrf.mxu0
      %v1004 = vadd.f32 0.0, %v1003
      %v1005 = vpop.f32.mrf.mxu0
      %v1006 = vadd.f32 0.0, %v1005
      %1007 = vmatmul.bf16.gmra.mxu0 %v447
      %v1008 = vpop.f32.mrf.mxu0
      %v1009 = vadd.f32 0.0, %v1008
      %v1010 = vpop.f32.mrf.mxu0
      %v1011 = vadd.f32 0.0, %v1010
      %1012 = vmatmul.bf16.gmra.mxu0 %v448
      %v1013 = vpop.f32.mrf.mxu0
      %v1014 = vadd.f32 0.0, %v1013
      %v1015 = vpop.f32.mrf.mxu0
      %v1016 = vadd.f32 0.0, %v1015
      %1017 = vmatmul.bf16.gmra.mxu0 %v449
      %v1018 = vpop.f32.mrf.mxu0
      %v1019 = vadd.f32 0.0, %v1018
      %v1020 = vpop.f32.mrf.mxu0
      %v1021 = vadd.f32 0.0, %v1020
      %1022 = vmatmul.bf16.gmra.mxu0 %v450
      %v1023 = vpop.f32.mrf.mxu0
      %v1024 = vadd.f32 0.0, %v1023
      %v1025 = vpop.f32.mrf.mxu0
      %v1026 = vadd.f32 0.0, %v1025
      %1027 = vmatmul.bf16.gmra.mxu0 %v451
      %v1028 = vpop.f32.mrf.mxu0
      %v1029 = vadd.f32 0.0, %v1028
      %v1030 = vpop.f32.mrf.mxu0
      %v1031 = vadd.f32 0.0, %v1030
      %1032 = vmatmul.bf16.gmra.mxu0 %v452
      %v1033 = vpop.f32.mrf.mxu0
      %v1034 = vadd.f32 0.0, %v1033
      %v1035 = vpop.f32.mrf.mxu0
      %v1036 = vadd.f32 0.0, %v1035
      %1037 = vmatmul.bf16.gmra.mxu0 %v453
      %v1038 = vpop.f32.mrf.mxu0
      %v1039 = vadd.f32 0.0, %v1038
      %v1040 = vpop.f32.mrf.mxu0
      %v1041 = vadd.f32 0.0, %v1040
      %1042 = vdwg.mxu0
      %1043 = vmatpush.bf16.msra.mxu0 %v857
      %1044 = vmatpush.bf16.msra.mxu0 %v856
      %1045 = vmatpush.bf16.msra.mxu0 %v855
      %1046 = vmatpush.bf16.msra.mxu0 %v854
      %1047 = vmatpush.bf16.msra.mxu0 %v853
      %1048 = vmatpush.bf16.msra.mxu0 %v852
      %1049 = vmatpush.bf16.msra.mxu0 %v851
      %1050 = vmatpush.bf16.msra.mxu0 %v850
      %1051 = vmatmul.bf16.gmra.mxu0 %v439
      %v1052 = vpop.f32.mrf.mxu0
      %v1053 = vadd.f32 %v964, %v1052
      %v1054 = vpop.f32.mrf.mxu0
      %v1055 = vadd.f32 %v966, %v1054
      %1056 = vmatmul.bf16.gmra.mxu0 %v440
      %v1057 = vpop.f32.mrf.mxu0
      %v1058 = vadd.f32 %v969, %v1057
      %v1059 = vpop.f32.mrf.mxu0
      %v1060 = vadd.f32 %v971, %v1059
      %1061 = vmatmul.bf16.gmra.mxu0 %v441
      %v1062 = vpop.f32.mrf.mxu0
      %v1063 = vadd.f32 %v974, %v1062
      %v1064 = vpop.f32.mrf.mxu0
      %v1065 = vadd.f32 %v976, %v1064
      %1066 = vmatmul.bf16.gmra.mxu0 %v442
      %v1067 = vpop.f32.mrf.mxu0
      %v1068 = vadd.f32 %v979, %v1067
      %v1069 = vpop.f32.mrf.mxu0
      %v1070 = vadd.f32 %v981, %v1069
      %1071 = vmatmul.bf16.gmra.mxu0 %v443
      %v1072 = vpop.f32.mrf.mxu0
      %v1073 = vadd.f32 %v984, %v1072
      %v1074 = vpop.f32.mrf.mxu0
      %v1075 = vadd.f32 %v986, %v1074
      %1076 = vmatmul.bf16.gmra.mxu0 %v444
      %v1077 = vpop.f32.mrf.mxu0
      %v1078 = vadd.f32 %v989, %v1077
      %v1079 = vpop.f32.mrf.mxu0
      %v1080 = vadd.f32 %v991, %v1079
      %1081 = vmatmul.bf16.gmra.mxu0 %v445
      %v1082 = vpop.f32.mrf.mxu0
      %v1083 = vadd.f32 %v994, %v1082
      %v1084 = vpop.f32.mrf.mxu0
      %v1085 = vadd.f32 %v996, %v1084
      %1086 = vmatmul.bf16.gmra.mxu0 %v446
      %v1087 = vpop.f32.mrf.mxu0
      %v1088 = vadd.f32 %v999, %v1087
      %v1089 = vpop.f32.mrf.mxu0
      %v1090 = vadd.f32 %v1001, %v1089
      %1091 = vmatmul.bf16.gmra.mxu0 %v447
      %v1092 = vpop.f32.mrf.mxu0
      %v1093 = vadd.f32 %v1004, %v1092
      %v1094 = vpop.f32.mrf.mxu0
      %v1095 = vadd.f32 %v1006, %v1094
      %1096 = vmatmul.bf16.gmra.mxu0 %v448
      %v1097 = vpop.f32.mrf.mxu0
      %v1098 = vadd.f32 %v1009, %v1097
      %v1099 = vpop.f32.mrf.mxu0
      %v1100 = vadd.f32 %v1011, %v1099
      %1101 = vmatmul.bf16.gmra.mxu0 %v449
      %v1102 = vpop.f32.mrf.mxu0
      %v1103 = vadd.f32 %v1014, %v1102
      %v1104 = vpop.f32.mrf.mxu0
      %v1105 = vadd.f32 %v1016, %v1104
      %1106 = vmatmul.bf16.gmra.mxu0 %v450
      %v1107 = vpop.f32.mrf.mxu0
      %v1108 = vadd.f32 %v1019, %v1107
      %v1109 = vpop.f32.mrf.mxu0
      %v1110 = vadd.f32 %v1021, %v1109
      %1111 = vmatmul.bf16.gmra.mxu0 %v451
      %v1112 = vpop.f32.mrf.mxu0
      %v1113 = vadd.f32 %v1024, %v1112
      %v1114 = vpop.f32.mrf.mxu0
      %v1115 = vadd.f32 %v1026, %v1114
      %1116 = vmatmul.bf16.gmra.mxu0 %v452
      %v1117 = vpop.f32.mrf.mxu0
      %v1118 = vadd.f32 %v1029, %v1117
      %v1119 = vpop.f32.mrf.mxu0
      %v1120 = vadd.f32 %v1031, %v1119
      %1121 = vmatmul.bf16.gmra.mxu0 %v453
      %v1122 = vpop.f32.mrf.mxu0
      %v1123 = vadd.f32 %v1034, %v1122
      %v1124 = vpop.f32.mrf.mxu0
      %v1125 = vadd.f32 %v1036, %v1124
      %1126 = vmatmul.bf16.gmra.mxu0 %v474
      %v1127 = vpop.f32.mrf.mxu0
      %v1128 = vadd.f32 %v1039, %v1127
      %v1129 = vpop.f32.mrf.mxu0
      %v1130 = vadd.f32 %v1041, %v1129
      %1131 = vdwg.mxu0
      %1132 = vmatpush.bf16.msra.mxu0 %v865
      %1133 = vmatpush.bf16.msra.mxu0 %v864
      %1134 = vmatpush.bf16.msra.mxu0 %v863
      %1135 = vmatpush.bf16.msra.mxu0 %v862
      %1136 = vmatpush.bf16.msra.mxu0 %v861
      %1137 = vmatpush.bf16.msra.mxu0 %v860
      %1138 = vmatpush.bf16.msra.mxu0 %v859
      %1139 = vmatpush.bf16.msra.mxu0 %v858
      %1140 = vmatmul.bf16.gmra.mxu0 %v440
      %v1141 = vpop.f32.mrf.mxu0
      %v1142 = vadd.f32 %v1053, %v1141
      %v1143 = vpop.f32.mrf.mxu0
      %v1144 = vadd.f32 %v1055, %v1143
      %1145 = vmatmul.bf16.gmra.mxu0 %v441
      %v1146 = vpop.f32.mrf.mxu0
      %v1147 = vadd.f32 %v1058, %v1146
      %v1148 = vpop.f32.mrf.mxu0
      %v1149 = vadd.f32 %v1060, %v1148
      %1150 = vmatmul.bf16.gmra.mxu0 %v442
      %v1151 = vpop.f32.mrf.mxu0
      %v1152 = vadd.f32 %v1063, %v1151
      %v1153 = vpop.f32.mrf.mxu0
      %v1154 = vadd.f32 %v1065, %v1153
      %1155 = vmatmul.bf16.gmra.mxu0 %v443
      %v1156 = vpop.f32.mrf.mxu0
      %v1157 = vadd.f32 %v1068, %v1156
      %v1158 = vpop.f32.mrf.mxu0
      %v1159 = vadd.f32 %v1070, %v1158
      %1160 = vmatmul.bf16.gmra.mxu0 %v444
      %v1161 = vpop.f32.mrf.mxu0
      %v1162 = vadd.f32 %v1073, %v1161
      %v1163 = vpop.f32.mrf.mxu0
      %v1164 = vadd.f32 %v1075, %v1163
      %1165 = vmatmul.bf16.gmra.mxu0 %v445
      %v1166 = vpop.f32.mrf.mxu0
      %v1167 = vadd.f32 %v1078, %v1166
      %v1168 = vpop.f32.mrf.mxu0
      %v1169 = vadd.f32 %v1080, %v1168
      %1170 = vmatmul.bf16.gmra.mxu0 %v446
      %v1171 = vpop.f32.mrf.mxu0
      %v1172 = vadd.f32 %v1083, %v1171
      %v1173 = vpop.f32.mrf.mxu0
      %v1174 = vadd.f32 %v1085, %v1173
      %1175 = vmatmul.bf16.gmra.mxu0 %v447
      %v1176 = vpop.f32.mrf.mxu0
      %v1177 = vadd.f32 %v1088, %v1176
      %v1178 = vpop.f32.mrf.mxu0
      %v1179 = vadd.f32 %v1090, %v1178
      %1180 = vmatmul.bf16.gmra.mxu0 %v448
      %v1181 = vpop.f32.mrf.mxu0
      %v1182 = vadd.f32 %v1093, %v1181
      %v1183 = vpop.f32.mrf.mxu0
      %v1184 = vadd.f32 %v1095, %v1183
      %1185 = vmatmul.bf16.gmra.mxu0 %v449
      %v1186 = vpop.f32.mrf.mxu0
      %v1187 = vadd.f32 %v1098, %v1186
      %v1188 = vpop.f32.mrf.mxu0
      %v1189 = vadd.f32 %v1100, %v1188
      %1190 = vmatmul.bf16.gmra.mxu0 %v450
      %v1191 = vpop.f32.mrf.mxu0
      %v1192 = vadd.f32 %v1103, %v1191
      %v1193 = vpop.f32.mrf.mxu0
      %v1194 = vadd.f32 %v1105, %v1193
      %1195 = vmatmul.bf16.gmra.mxu0 %v451
      %v1196 = vpop.f32.mrf.mxu0
      %v1197 = vadd.f32 %v1108, %v1196
      %v1198 = vpop.f32.mrf.mxu0
      %v1199 = vadd.f32 %v1110, %v1198
      %1200 = vmatmul.bf16.gmra.mxu0 %v452
      %v1201 = vpop.f32.mrf.mxu0
      %v1202 = vadd.f32 %v1113, %v1201
      %v1203 = vpop.f32.mrf.mxu0
      %v1204 = vadd.f32 %v1115, %v1203
      %1205 = vmatmul.bf16.gmra.mxu0 %v453
      %v1206 = vpop.f32.mrf.mxu0
      %v1207 = vadd.f32 %v1118, %v1206
      %v1208 = vpop.f32.mrf.mxu0
      %v1209 = vadd.f32 %v1120, %v1208
      %1210 = vmatmul.bf16.gmra.mxu0 %v474
      %v1211 = vpop.f32.mrf.mxu0
      %v1212 = vadd.f32 %v1123, %v1211
      %v1213 = vpop.f32.mrf.mxu0
      %v1214 = vadd.f32 %v1125, %v1213
      %1215 = vmatmul.bf16.gmra.mxu0 %v480
      %v1216 = vpop.f32.mrf.mxu0
      %v1217 = vadd.f32 %v1128, %v1216
      %v1218 = vpop.f32.mrf.mxu0
      %v1219 = vadd.f32 %v1130, %v1218
      %1220 = vdwg.mxu0
      %1221 = vmatpush.bf16.msra.mxu0 %v873
      %1222 = vmatpush.bf16.msra.mxu0 %v872
      %1223 = vmatpush.bf16.msra.mxu0 %v871
      %1224 = vmatpush.bf16.msra.mxu0 %v870
      %1225 = vmatpush.bf16.msra.mxu0 %v869
      %1226 = vmatpush.bf16.msra.mxu0 %v868
      %1227 = vmatpush.bf16.msra.mxu0 %v867
      %1228 = vmatpush.bf16.msra.mxu0 %v866
      %1229 = vmatmul.bf16.gmra.mxu0 %v441
      %v1230 = vpop.f32.mrf.mxu0
      %v1231 = vadd.f32 %v1142, %v1230
      %v1232 = vpop.f32.mrf.mxu0
      %v1233 = vadd.f32 %v1144, %v1232
      %1234 = vmatmul.bf16.gmra.mxu0 %v442
      %v1235 = vpop.f32.mrf.mxu0
      %v1236 = vadd.f32 %v1147, %v1235
      %v1237 = vpop.f32.mrf.mxu0
      %v1238 = vadd.f32 %v1149, %v1237
      %1239 = vmatmul.bf16.gmra.mxu0 %v443
      %v1240 = vpop.f32.mrf.mxu0
      %v1241 = vadd.f32 %v1152, %v1240
      %v1242 = vpop.f32.mrf.mxu0
      %v1243 = vadd.f32 %v1154, %v1242
      %1244 = vmatmul.bf16.gmra.mxu0 %v444
      %v1245 = vpop.f32.mrf.mxu0
      %v1246 = vadd.f32 %v1157, %v1245
      %v1247 = vpop.f32.mrf.mxu0
      %v1248 = vadd.f32 %v1159, %v1247
      %1249 = vmatmul.bf16.gmra.mxu0 %v445
      %v1250 = vpop.f32.mrf.mxu0
      %v1251 = vadd.f32 %v1162, %v1250
      %v1252 = vpop.f32.mrf.mxu0
      %v1253 = vadd.f32 %v1164, %v1252
      %1254 = vmatmul.bf16.gmra.mxu0 %v446
      %v1255 = vpop.f32.mrf.mxu0
      %v1256 = vadd.f32 %v1167, %v1255
      %v1257 = vpop.f32.mrf.mxu0
      %v1258 = vadd.f32 %v1169, %v1257
      %1259 = vmatmul.bf16.gmra.mxu0 %v447
      %v1260 = vpop.f32.mrf.mxu0
      %v1261 = vadd.f32 %v1172, %v1260
      %v1262 = vpop.f32.mrf.mxu0
      %v1263 = vadd.f32 %v1174, %v1262
      %1264 = vmatmul.bf16.gmra.mxu0 %v448
      %v1265 = vpop.f32.mrf.mxu0
      %v1266 = vadd.f32 %v1177, %v1265
      %v1267 = vpop.f32.mrf.mxu0
      %v1268 = vadd.f32 %v1179, %v1267
      %1269 = vmatmul.bf16.gmra.mxu0 %v449
      %v1270 = vpop.f32.mrf.mxu0
      %v1271 = vadd.f32 %v1182, %v1270
      %v1272 = vpop.f32.mrf.mxu0
      %v1273 = vadd.f32 %v1184, %v1272
      %1274 = vmatmul.bf16.gmra.mxu0 %v450
      %v1275 = vpop.f32.mrf.mxu0
      %v1276 = vadd.f32 %v1187, %v1275
      %v1277 = vpop.f32.mrf.mxu0
      %v1278 = vadd.f32 %v1189, %v1277
      %1279 = vmatmul.bf16.gmra.mxu0 %v451
      %v1280 = vpop.f32.mrf.mxu0
      %v1281 = vadd.f32 %v1192, %v1280
      %v1282 = vpop.f32.mrf.mxu0
      %v1283 = vadd.f32 %v1194, %v1282
      %1284 = vmatmul.bf16.gmra.mxu0 %v452
      %v1285 = vpop.f32.mrf.mxu0
      %v1286 = vadd.f32 %v1197, %v1285
      %v1287 = vpop.f32.mrf.mxu0
      %v1288 = vadd.f32 %v1199, %v1287
      %1289 = vmatmul.bf16.gmra.mxu0 %v453
      %v1290 = vpop.f32.mrf.mxu0
      %v1291 = vadd.f32 %v1202, %v1290
      %v1292 = vpop.f32.mrf.mxu0
      %v1293 = vadd.f32 %v1204, %v1292
      %1294 = vmatmul.bf16.gmra.mxu0 %v474
      %v1295 = vpop.f32.mrf.mxu0
      %v1296 = vadd.f32 %v1207, %v1295
      %v1297 = vpop.f32.mrf.mxu0
      %v1298 = vadd.f32 %v1209, %v1297
      %1299 = vmatmul.bf16.gmra.mxu0 %v480
      %v1300 = vpop.f32.mrf.mxu0
      %v1301 = vadd.f32 %v1212, %v1300
      %v1302 = vpop.f32.mrf.mxu0
      %v1303 = vadd.f32 %v1214, %v1302
      %1304 = vmatmul.bf16.gmra.mxu0 %v486
      %v1305 = vpop.f32.mrf.mxu0
      %v1306 = vadd.f32 %v1217, %v1305
      %v1307 = vpop.f32.mrf.mxu0
      %v1308 = vadd.f32 %v1219, %v1307
      %1309 = vdwg.mxu0
      %1310 = vmatpush.bf16.msra.mxu0 %v881
      %1311 = vmatpush.bf16.msra.mxu0 %v880
      %1312 = vmatpush.bf16.msra.mxu0 %v879
      %1313 = vmatpush.bf16.msra.mxu0 %v878
      %1314 = vmatpush.bf16.msra.mxu0 %v877
      %1315 = vmatpush.bf16.msra.mxu0 %v876
      %1316 = vmatpush.bf16.msra.mxu0 %v875
      %1317 = vmatpush.bf16.msra.mxu0 %v874
      %1318 = vmatmul.bf16.gmra.mxu0 %v442
      %v1319 = vpop.f32.mrf.mxu0
      %v1320 = vadd.f32 %v1231, %v1319
      %v1321 = vpop.f32.mrf.mxu0
      %v1322 = vadd.f32 %v1233, %v1321
      %1323 = vmatmul.bf16.gmra.mxu0 %v443
      %v1324 = vpop.f32.mrf.mxu0
      %v1325 = vadd.f32 %v1236, %v1324
      %v1326 = vpop.f32.mrf.mxu0
      %v1327 = vadd.f32 %v1238, %v1326
      %1328 = vmatmul.bf16.gmra.mxu0 %v444
      %v1329 = vpop.f32.mrf.mxu0
      %v1330 = vadd.f32 %v1241, %v1329
      %v1331 = vpop.f32.mrf.mxu0
      %v1332 = vadd.f32 %v1243, %v1331
      %1333 = vmatmul.bf16.gmra.mxu0 %v445
      %v1334 = vpop.f32.mrf.mxu0
      %v1335 = vadd.f32 %v1246, %v1334
      %v1336 = vpop.f32.mrf.mxu0
      %v1337 = vadd.f32 %v1248, %v1336
      %1338 = vmatmul.bf16.gmra.mxu0 %v446
      %v1339 = vpop.f32.mrf.mxu0
      %v1340 = vadd.f32 %v1251, %v1339
      %v1341 = vpop.f32.mrf.mxu0
      %v1342 = vadd.f32 %v1253, %v1341
      %1343 = vmatmul.bf16.gmra.mxu0 %v447
      %v1344 = vpop.f32.mrf.mxu0
      %v1345 = vadd.f32 %v1256, %v1344
      %v1346 = vpop.f32.mrf.mxu0
      %v1347 = vadd.f32 %v1258, %v1346
      %1348 = vmatmul.bf16.gmra.mxu0 %v448
      %v1349 = vpop.f32.mrf.mxu0
      %v1350 = vadd.f32 %v1261, %v1349
      %v1351 = vpop.f32.mrf.mxu0
      %v1352 = vadd.f32 %v1263, %v1351
      %1353 = vmatmul.bf16.gmra.mxu0 %v449
      %v1354 = vpop.f32.mrf.mxu0
      %v1355 = vadd.f32 %v1266, %v1354
      %v1356 = vpop.f32.mrf.mxu0
      %v1357 = vadd.f32 %v1268, %v1356
      %1358 = vmatmul.bf16.gmra.mxu0 %v450
      %v1359 = vpop.f32.mrf.mxu0
      %v1360 = vadd.f32 %v1271, %v1359
      %v1361 = vpop.f32.mrf.mxu0
      %v1362 = vadd.f32 %v1273, %v1361
      %1363 = vmatmul.bf16.gmra.mxu0 %v451
      %v1364 = vpop.f32.mrf.mxu0
      %v1365 = vadd.f32 %v1276, %v1364
      %v1366 = vpop.f32.mrf.mxu0
      %v1367 = vadd.f32 %v1278, %v1366
      %1368 = vmatmul.bf16.gmra.mxu0 %v452
      %v1369 = vpop.f32.mrf.mxu0
      %v1370 = vadd.f32 %v1281, %v1369
      %v1371 = vpop.f32.mrf.mxu0
      %v1372 = vadd.f32 %v1283, %v1371
      %1373 = vmatmul.bf16.gmra.mxu0 %v453
      %v1374 = vpop.f32.mrf.mxu0
      %v1375 = vadd.f32 %v1286, %v1374
      %v1376 = vpop.f32.mrf.mxu0
      %v1377 = vadd.f32 %v1288, %v1376
      %1378 = vmatmul.bf16.gmra.mxu0 %v474
      %v1379 = vpop.f32.mrf.mxu0
      %v1380 = vadd.f32 %v1291, %v1379
      %v1381 = vpop.f32.mrf.mxu0
      %v1382 = vadd.f32 %v1293, %v1381
      %1383 = vmatmul.bf16.gmra.mxu0 %v480
      %v1384 = vpop.f32.mrf.mxu0
      %v1385 = vadd.f32 %v1296, %v1384
      %v1386 = vpop.f32.mrf.mxu0
      %v1387 = vadd.f32 %v1298, %v1386
      %1388 = vmatmul.bf16.gmra.mxu0 %v486
      %v1389 = vpop.f32.mrf.mxu0
      %v1390 = vadd.f32 %v1301, %v1389
      %v1391 = vpop.f32.mrf.mxu0
      %v1392 = vadd.f32 %v1303, %v1391
      %1393 = vmatmul.bf16.gmra.mxu0 %v492
      %v1394 = vpop.f32.mrf.mxu0
      %v1395 = vadd.f32 %v1306, %v1394
      %v1396 = vpop.f32.mrf.mxu0
      %v1397 = vadd.f32 %v1308, %v1396
      %1398 = vdwg.mxu0
      %1399 = vmatpush.bf16.msra.mxu0 %v889
      %1400 = vmatpush.bf16.msra.mxu0 %v888
      %1401 = vmatpush.bf16.msra.mxu0 %v887
      %1402 = vmatpush.bf16.msra.mxu0 %v886
      %1403 = vmatpush.bf16.msra.mxu0 %v885
      %1404 = vmatpush.bf16.msra.mxu0 %v884
      %1405 = vmatpush.bf16.msra.mxu0 %v883
      %1406 = vmatpush.bf16.msra.mxu0 %v882
      %1407 = vmatmul.bf16.gmra.mxu0 %v443
      %v1408 = vpop.f32.mrf.mxu0
      %v1409 = vadd.f32 %v1320, %v1408
      %v1410 = vpop.f32.mrf.mxu0
      %v1411 = vadd.f32 %v1322, %v1410
      %1412 = vmatmul.bf16.gmra.mxu0 %v444
      %v1413 = vpop.f32.mrf.mxu0
      %v1414 = vadd.f32 %v1325, %v1413
      %v1415 = vpop.f32.mrf.mxu0
      %v1416 = vadd.f32 %v1327, %v1415
      %1417 = vmatmul.bf16.gmra.mxu0 %v445
      %v1418 = vpop.f32.mrf.mxu0
      %v1419 = vadd.f32 %v1330, %v1418
      %v1420 = vpop.f32.mrf.mxu0
      %v1421 = vadd.f32 %v1332, %v1420
      %1422 = vmatmul.bf16.gmra.mxu0 %v446
      %v1423 = vpop.f32.mrf.mxu0
      %v1424 = vadd.f32 %v1335, %v1423
      %v1425 = vpop.f32.mrf.mxu0
      %v1426 = vadd.f32 %v1337, %v1425
      %1427 = vmatmul.bf16.gmra.mxu0 %v447
      %v1428 = vpop.f32.mrf.mxu0
      %v1429 = vadd.f32 %v1340, %v1428
      %v1430 = vpop.f32.mrf.mxu0
      %v1431 = vadd.f32 %v1342, %v1430
      %1432 = vmatmul.bf16.gmra.mxu0 %v448
      %v1433 = vpop.f32.mrf.mxu0
      %v1434 = vadd.f32 %v1345, %v1433
      %v1435 = vpop.f32.mrf.mxu0
      %v1436 = vadd.f32 %v1347, %v1435
      %1437 = vmatmul.bf16.gmra.mxu0 %v449
      %v1438 = vpop.f32.mrf.mxu0
      %v1439 = vadd.f32 %v1350, %v1438
      %v1440 = vpop.f32.mrf.mxu0
      %v1441 = vadd.f32 %v1352, %v1440
      %1442 = vmatmul.bf16.gmra.mxu0 %v450
      %v1443 = vpop.f32.mrf.mxu0
      %v1444 = vadd.f32 %v1355, %v1443
      %v1445 = vpop.f32.mrf.mxu0
      %v1446 = vadd.f32 %v1357, %v1445
      %1447 = vmatmul.bf16.gmra.mxu0 %v451
      %v1448 = vpop.f32.mrf.mxu0
      %v1449 = vadd.f32 %v1360, %v1448
      %v1450 = vpop.f32.mrf.mxu0
      %v1451 = vadd.f32 %v1362, %v1450
      %1452 = vmatmul.bf16.gmra.mxu0 %v452
      %v1453 = vpop.f32.mrf.mxu0
      %v1454 = vadd.f32 %v1365, %v1453
      %v1455 = vpop.f32.mrf.mxu0
      %v1456 = vadd.f32 %v1367, %v1455
      %1457 = vmatmul.bf16.gmra.mxu0 %v453
      %v1458 = vpop.f32.mrf.mxu0
      %v1459 = vadd.f32 %v1370, %v1458
      %v1460 = vpop.f32.mrf.mxu0
      %v1461 = vadd.f32 %v1372, %v1460
      %1462 = vmatmul.bf16.gmra.mxu0 %v474
      %v1463 = vpop.f32.mrf.mxu0
      %v1464 = vadd.f32 %v1375, %v1463
      %v1465 = vpop.f32.mrf.mxu0
      %v1466 = vadd.f32 %v1377, %v1465
      %1467 = vmatmul.bf16.gmra.mxu0 %v480
      %v1468 = vpop.f32.mrf.mxu0
      %v1469 = vadd.f32 %v1380, %v1468
      %v1470 = vpop.f32.mrf.mxu0
      %v1471 = vadd.f32 %v1382, %v1470
      %1472 = vmatmul.bf16.gmra.mxu0 %v486
      %v1473 = vpop.f32.mrf.mxu0
      %v1474 = vadd.f32 %v1385, %v1473
      %v1475 = vpop.f32.mrf.mxu0
      %v1476 = vadd.f32 %v1387, %v1475
      %1477 = vmatmul.bf16.gmra.mxu0 %v492
      %v1478 = vpop.f32.mrf.mxu0
      %v1479 = vadd.f32 %v1390, %v1478
      %v1480 = vpop.f32.mrf.mxu0
      %v1481 = vadd.f32 %v1392, %v1480
      %1482 = vmatmul.bf16.gmra.mxu0 %v498
      %v1483 = vpop.f32.mrf.mxu0
      %v1484 = vadd.f32 %v1395, %v1483
      %v1485 = vpop.f32.mrf.mxu0
      %v1486 = vadd.f32 %v1397, %v1485
      %1487 = vdwg.mxu0
      %1488 = vmatpush.bf16.msra.mxu0 %v897
      %1489 = vmatpush.bf16.msra.mxu0 %v896
      %1490 = vmatpush.bf16.msra.mxu0 %v895
      %1491 = vmatpush.bf16.msra.mxu0 %v894
      %1492 = vmatpush.bf16.msra.mxu0 %v893
      %1493 = vmatpush.bf16.msra.mxu0 %v892
      %1494 = vmatpush.bf16.msra.mxu0 %v891
      %1495 = vmatpush.bf16.msra.mxu0 %v890
      %1496 = vmatmul.bf16.gmra.mxu0 %v444
      %v1497 = vpop.f32.mrf.mxu0
      %v1498 = vadd.f32 %v1409, %v1497
      %v1499 = vpop.f32.mrf.mxu0
      %v1500 = vadd.f32 %v1411, %v1499
      %1501 = vmatmul.bf16.gmra.mxu0 %v445
      %v1502 = vpop.f32.mrf.mxu0
      %v1503 = vadd.f32 %v1414, %v1502
      %v1504 = vpop.f32.mrf.mxu0
      %v1505 = vadd.f32 %v1416, %v1504
      %1506 = vmatmul.bf16.gmra.mxu0 %v446
      %v1507 = vpop.f32.mrf.mxu0
      %v1508 = vadd.f32 %v1419, %v1507
      %v1509 = vpop.f32.mrf.mxu0
      %v1510 = vadd.f32 %v1421, %v1509
      %1511 = vmatmul.bf16.gmra.mxu0 %v447
      %v1512 = vpop.f32.mrf.mxu0
      %v1513 = vadd.f32 %v1424, %v1512
      %v1514 = vpop.f32.mrf.mxu0
      %v1515 = vadd.f32 %v1426, %v1514
      %1516 = vmatmul.bf16.gmra.mxu0 %v448
      %v1517 = vpop.f32.mrf.mxu0
      %v1518 = vadd.f32 %v1429, %v1517
      %v1519 = vpop.f32.mrf.mxu0
      %v1520 = vadd.f32 %v1431, %v1519
      %1521 = vmatmul.bf16.gmra.mxu0 %v449
      %v1522 = vpop.f32.mrf.mxu0
      %v1523 = vadd.f32 %v1434, %v1522
      %v1524 = vpop.f32.mrf.mxu0
      %v1525 = vadd.f32 %v1436, %v1524
      %1526 = vmatmul.bf16.gmra.mxu0 %v450
      %v1527 = vpop.f32.mrf.mxu0
      %v1528 = vadd.f32 %v1439, %v1527
      %v1529 = vpop.f32.mrf.mxu0
      %v1530 = vadd.f32 %v1441, %v1529
      %1531 = vmatmul.bf16.gmra.mxu0 %v451
      %v1532 = vpop.f32.mrf.mxu0
      %v1533 = vadd.f32 %v1444, %v1532
      %v1534 = vpop.f32.mrf.mxu0
      %v1535 = vadd.f32 %v1446, %v1534
      %1536 = vmatmul.bf16.gmra.mxu0 %v452
      %v1537 = vpop.f32.mrf.mxu0
      %v1538 = vadd.f32 %v1449, %v1537
      %v1539 = vpop.f32.mrf.mxu0
      %v1540 = vadd.f32 %v1451, %v1539
      %1541 = vmatmul.bf16.gmra.mxu0 %v453
      %v1542 = vpop.f32.mrf.mxu0
      %v1543 = vadd.f32 %v1454, %v1542
      %v1544 = vpop.f32.mrf.mxu0
      %v1545 = vadd.f32 %v1456, %v1544
      %1546 = vmatmul.bf16.gmra.mxu0 %v474
      %v1547 = vpop.f32.mrf.mxu0
      %v1548 = vadd.f32 %v1459, %v1547
      %v1549 = vpop.f32.mrf.mxu0
      %v1550 = vadd.f32 %v1461, %v1549
      %1551 = vmatmul.bf16.gmra.mxu0 %v480
      %v1552 = vpop.f32.mrf.mxu0
      %v1553 = vadd.f32 %v1464, %v1552
      %v1554 = vpop.f32.mrf.mxu0
      %v1555 = vadd.f32 %v1466, %v1554
      %1556 = vmatmul.bf16.gmra.mxu0 %v486
      %v1557 = vpop.f32.mrf.mxu0
      %v1558 = vadd.f32 %v1469, %v1557
      %v1559 = vpop.f32.mrf.mxu0
      %v1560 = vadd.f32 %v1471, %v1559
      %1561 = vmatmul.bf16.gmra.mxu0 %v492
      %v1562 = vpop.f32.mrf.mxu0
      %v1563 = vadd.f32 %v1474, %v1562
      %v1564 = vpop.f32.mrf.mxu0
      %v1565 = vadd.f32 %v1476, %v1564
      %1566 = vmatmul.bf16.gmra.mxu0 %v498
      %v1567 = vpop.f32.mrf.mxu0
      %v1568 = vadd.f32 %v1479, %v1567
      %v1569 = vpop.f32.mrf.mxu0
      %v1570 = vadd.f32 %v1481, %v1569
      %1571 = vmatmul.bf16.gmra.mxu0 %v504
      %v1572 = vpop.f32.mrf.mxu0
      %v1573 = vadd.f32 %v1484, %v1572
      %v1574 = vpop.f32.mrf.mxu0
      %v1575 = vadd.f32 %v1486, %v1574
      %1576 = vdwg.mxu0
      %1577 = vst [vmem:[#allocation2] sm:$0xff] %v1498
      %1578 = vst [vmem:[#allocation2 + $0x8] sm:$0xff] %v1500
      %1579 = vst [vmem:[#allocation2 + $0x10] sm:$0xff] %v1503
      %1580 = vst [vmem:[#allocation2 + $0x18] sm:$0xff] %v1505
      %1581 = vst [vmem:[#allocation2 + $0x20] sm:$0xff] %v1508
      %1582 = vst [vmem:[#allocation2 + $0x28] sm:$0xff] %v1510
      %1583 = vst [vmem:[#allocation2 + $0x30] sm:$0xff] %v1513
      %1584 = vst [vmem:[#allocation2 + $0x38] sm:$0xff] %v1515
      %1585 = vst [vmem:[#allocation2 + $0x40] sm:$0xff] %v1518
      %1586 = vst [vmem:[#allocation2 + $0x48] sm:$0xff] %v1520
      %1587 = vst [vmem:[#allocation2 + $0x50] sm:$0xff] %v1523
      %1588 = vst [vmem:[#allocation2 + $0x58] sm:$0xff] %v1525
      %1589 = vst [vmem:[#allocation2 + $0x60] sm:$0xff] %v1528
      %1590 = vst [vmem:[#allocation2 + $0x68] sm:$0xff] %v1530
      %1591 = vst [vmem:[#allocation2 + $0x70] sm:$0xff] %v1533
      %1592 = vst [vmem:[#allocation2 + $0x78] sm:$0xff] %v1535
      %1593 = vst [vmem:[#allocation2 + $0x80] sm:$0xff] %v1538
      %1594 = vst [vmem:[#allocation2 + $0x88] sm:$0xff] %v1540
      %1595 = vst [vmem:[#allocation2 + $0x90] sm:$0xff] %v1543
      %1596 = vst [vmem:[#allocation2 + $0x98] sm:$0xff] %v1545
      %1597 = vst [vmem:[#allocation2 + $0xa0] sm:$0xff] %v1548
      %1598 = vst [vmem:[#allocation2 + $0xa8] sm:$0xff] %v1550
      %1599 = vst [vmem:[#allocation2 + $0xb0] sm:$0xff] %v1553
      %1600 = vst [vmem:[#allocation2 + $0xb8] sm:$0xff] %v1555
      %1601 = vst [vmem:[#allocation2 + $0xc0] sm:$0xff] %v1558
      %1602 = vst [vmem:[#allocation2 + $0xc8] sm:$0xff] %v1560
      %1603 = vst [vmem:[#allocation2 + $0xd0] sm:$0xff] %v1563
      %1604 = vst [vmem:[#allocation2 + $0xd8] sm:$0xff] %v1565
      %1605 = vst [vmem:[#allocation2 + $0xe0] sm:$0xff] %v1568
      %1606 = vst [vmem:[#allocation2 + $0xe8] sm:$0xff] %v1570
      %1607 = vst [vmem:[#allocation2 + $0xf0] sm:$0xff] %v1573
      %1608 = vst [vmem:[#allocation2 + $0xf8] sm:$0xff] %v1575
      %v1609 = vld [vmem:[%s307] sm:$0xf]
      %v1610 = vld [vmem:[%s307 + $0x4] sm:$0xf]
      %v1611 = vld [vmem:[%s307 + $0x8] sm:$0x1]
      %v1612 = vld [vmem:[%s307 + $0xc] sm:$0xf]
      %v1613 = vld [vmem:[%s307 + $0x10] sm:$0xf]
      %v1614 = vld [vmem:[%s307 + $0x14] sm:$0x1]
      %v1615 = vld [vmem:[%s307 + $0x18] sm:$0xf]
      %v1616 = vld [vmem:[%s307 + $0x1c] sm:$0xf]
      %v1617 = vld [vmem:[%s307 + $0x20] sm:$0x1]
      %v1618 = vld [vmem:[%s307 + $0x24] sm:$0xf]
      %v1619 = vld [vmem:[%s307 + $0x28] sm:$0xf]
      %v1620 = vld [vmem:[%s307 + $0x2c] sm:$0x1]
      %v1621 = vld [vmem:[%s307 + $0x30] sm:$0xf]
      %v1622 = vld [vmem:[%s307 + $0x34] sm:$0xf]
      %v1623 = vld [vmem:[%s307 + $0x38] sm:$0x1]
      %v1624 = vld [vmem:[%s307 + $0x3c] sm:$0xf]
      %v1625 = vld [vmem:[%s307 + $0x40] sm:$0xf]
      %v1626 = vld [vmem:[%s307 + $0x44] sm:$0x1]
      %v1627 = vld [vmem:[%s307 + $0x48] sm:$0xf]
      %v1628 = vld [vmem:[%s307 + $0x4c] sm:$0xf]
      %v1629 = vld [vmem:[%s307 + $0x50] sm:$0x1]
      %v1630 = vld [vmem:[%s307 + $0x54] sm:$0xf]
      %v1631 = vld [vmem:[%s307 + $0x58] sm:$0xf]
      %v1632 = vld [vmem:[%s307 + $0x5c] sm:$0x1]
      %v1633 = vld [vmem:[%s307 + $0x60] sm:$0xf]
      %v1634 = vld [vmem:[%s307 + $0x64] sm:$0xf]
      %v1635 = vld [vmem:[%s307 + $0x68] sm:$0x1]
      %v1636 = vld [vmem:[%s307 + $0x6c] sm:$0xf]
      %v1637 = vld [vmem:[%s307 + $0x70] sm:$0xf]
      %v1638 = vld [vmem:[%s307 + $0x74] sm:$0x1]
      %v1639 = vld [vmem:[%s307 + $0x78] sm:$0xf]
      %v1640 = vld [vmem:[%s307 + $0x7c] sm:$0xf]
      %v1641 = vld [vmem:[%s307 + $0x80] sm:$0x1]
      %v1642 = vld [vmem:[%s307 + $0x84] sm:$0xf]
      %v1643 = vld [vmem:[%s307 + $0x88] sm:$0xf]
      %v1644 = vld [vmem:[%s307 + $0x8c] sm:$0x1]
      %v1645 = vld [vmem:[%s307 + $0x90] sm:$0xf]
      %v1646 = vld [vmem:[%s307 + $0x94] sm:$0xf]
      %v1647 = vld [vmem:[%s307 + $0x98] sm:$0x1]
      %v1648 = vld [vmem:[%s307 + $0x9c] sm:$0xf]
      %v1649 = vld [vmem:[%s307 + $0xa0] sm:$0xf]
      %v1650 = vld [vmem:[%s307 + $0xa4] sm:$0x1]
      %v1651 = vld [vmem:[%s307 + $0xa8] sm:$0xf]
      %v1652 = vld [vmem:[%s307 + $0xac] sm:$0xf]
      %v1653 = vld [vmem:[%s307 + $0xb0] sm:$0x1]
      %v1654 = vld [vmem:[%s307 + $0xb4] sm:$0xf]
      %v1655 = vld [vmem:[%s307 + $0xb8] sm:$0xf]
      %v1656 = vld [vmem:[%s307 + $0xbc] sm:$0x1]
      %v1657 = vld [vmem:[%s307 + $0xc0] sm:$0xf]
      %v1658 = vld [vmem:[%s307 + $0xc4] sm:$0xf]
      %v1659 = vld [vmem:[%s307 + $0xc8] sm:$0x1]
      %v1660 = vld [vmem:[%s307 + $0xcc] sm:$0xf]
      %v1661 = vld [vmem:[%s307 + $0xd0] sm:$0xf]
      %v1662 = vld [vmem:[%s307 + $0xd4] sm:$0x1]
      %v1663 = vld [vmem:[%s307 + $0xd8] sm:$0xf]
      %v1664 = vld [vmem:[%s307 + $0xdc] sm:$0xf]
      %v1665 = vld [vmem:[%s307 + $0xe0] sm:$0x1]
      %v1666 = vld [vmem:[%s307 + $0xe4] sm:$0xf]
      %v1667 = vld [vmem:[%s307 + $0xe8] sm:$0xf]
      %v1668 = vld [vmem:[%s307 + $0xec] sm:$0x1]
      %v1669 = vld [vmem:[%s307 + $0xf0] sm:$0xf]
      %v1670 = vld [vmem:[%s307 + $0xf4] sm:$0xf]
      %v1671 = vld [vmem:[%s307 + $0xf8] sm:$0x1]
      %v1672 = vld [vmem:[%s307 + $0xfc] sm:$0xf]
      %v1673 = vld [vmem:[%s307 + $0x100] sm:$0xf]
      %v1674 = vld [vmem:[%s307 + $0x104] sm:$0x1]
      %v1723 = vunpack.c.l.b16 %v1609
      %v1724 = vunpack.c.l.b16 %v1610
      %v1725 = vunpack.c.l.b16 %v1611
      %v1726 = vunpack.c.l.b16 %v1612
      %v1727 = vunpack.c.l.b16 %v1613
      %v1728 = vunpack.c.l.b16 %v1614
      %v1729 = vunpack.c.l.b16 %v1615
      %v1730 = vunpack.c.l.b16 %v1616
      %v1731 = vunpack.c.l.b16 %v1617
      %v1732 = vunpack.c.l.b16 %v1618
      %v1733 = vunpack.c.l.b16 %v1619
      %v1734 = vunpack.c.l.b16 %v1620
      %v1735 = vunpack.c.l.b16 %v1621
      %v1736 = vunpack.c.l.b16 %v1622
      %v1737 = vunpack.c.l.b16 %v1623
      %v1738 = vunpack.c.l.b16 %v1624
      %v1739 = vunpack.c.l.b16 %v1625
      %v1740 = vunpack.c.l.b16 %v1626
      %v1741 = vunpack.c.l.b16 %v1627
      %v1742 = vunpack.c.l.b16 %v1628
      %v1743 = vunpack.c.l.b16 %v1629
      %v1744 = vunpack.c.l.b16 %v1630
      %v1745 = vunpack.c.l.b16 %v1631
      %v1746 = vunpack.c.l.b16 %v1632
      %v1747 = vunpack.c.l.b16 %v1633
      %v1748 = vunpack.c.l.b16 %v1634
      %v1749 = vunpack.c.l.b16 %v1635
      %v1750 = vunpack.c.l.b16 %v1636
      %v1751 = vunpack.c.l.b16 %v1637
      %v1752 = vunpack.c.l.b16 %v1638
      %v1753 = vunpack.c.l.b16 %v1639
      %v1754 = vunpack.c.l.b16 %v1640
      %v1755 = vunpack.c.l.b16 %v1641
      %v1756 = vunpack.c.l.b16 %v1642
      %v1757 = vunpack.c.l.b16 %v1643
      %v1758 = vunpack.c.l.b16 %v1644
      %v1759 = vunpack.c.l.b16 %v1645
      %v1760 = vunpack.c.l.b16 %v1646
      %v1761 = vunpack.c.l.b16 %v1647
      %v1762 = vunpack.c.l.b16 %v1648
      %v1763 = vunpack.c.l.b16 %v1649
      %v1764 = vunpack.c.l.b16 %v1650
      %v1765 = vunpack.c.l.b16 %v1651
      %v1766 = vunpack.c.l.b16 %v1652
      %v1767 = vunpack.c.l.b16 %v1653
      %v1768 = vunpack.c.l.b16 %v1654
      %v1769 = vunpack.c.l.b16 %v1655
      %v1770 = vunpack.c.l.b16 %v1656
      %v1771 = vpack.c.b16 %v1724, %v1723
      %v1772 = vpack.c.b16 %v1725, %v1725
      %v1773 = vpack.c.b16 %v1727, %v1726
      %v1774 = vpack.c.b16 %v1728, %v1728
      %v1775 = vpack.c.b16 %v1730, %v1729
      %v1776 = vpack.c.b16 %v1731, %v1731
      %v1777 = vpack.c.b16 %v1733, %v1732
      %v1778 = vpack.c.b16 %v1734, %v1734
      %v1779 = vpack.c.b16 %v1736, %v1735
      %v1780 = vpack.c.b16 %v1737, %v1737
      %v1781 = vpack.c.b16 %v1739, %v1738
      %v1782 = vpack.c.b16 %v1740, %v1740
      %v1783 = vpack.c.b16 %v1742, %v1741
      %v1784 = vpack.c.b16 %v1743, %v1743
      %v1785 = vpack.c.b16 %v1745, %v1744
      %v1786 = vpack.c.b16 %v1746, %v1746
      %v1787 = vpack.c.b16 %v1748, %v1747
      %v1788 = vpack.c.b16 %v1749, %v1749
      %v1789 = vpack.c.b16 %v1751, %v1750
      %v1790 = vpack.c.b16 %v1752, %v1752
      %v1791 = vpack.c.b16 %v1754, %v1753
      %v1792 = vpack.c.b16 %v1755, %v1755
      %v1793 = vpack.c.b16 %v1757, %v1756
      %v1794 = vpack.c.b16 %v1758, %v1758
      %v1795 = vpack.c.b16 %v1760, %v1759
      %v1796 = vpack.c.b16 %v1761, %v1761
      %v1797 = vpack.c.b16 %v1763, %v1762
      %v1798 = vpack.c.b16 %v1764, %v1764
      %v1799 = vpack.c.b16 %v1766, %v1765
      %v1800 = vpack.c.b16 %v1767, %v1767
      %v1801 = vpack.c.b16 %v1769, %v1768
      %v1802 = vpack.c.b16 %v1770, %v1770
      %v1806 = vunpack.c.l.b16 %v1657
      %v1807 = vunpack.c.l.b16 %v1658
      %v1808 = vunpack.c.l.b16 %v1659
      %v1809 = vpack.c.b16 %v1807, %v1806
      %v1810 = vpack.c.b16 %v1808, %v1808
      %v1814 = vunpack.c.l.b16 %v1660
      %v1815 = vunpack.c.l.b16 %v1661
      %v1816 = vunpack.c.l.b16 %v1662
      %v1817 = vpack.c.b16 %v1815, %v1814
      %v1818 = vpack.c.b16 %v1816, %v1816
      %v1822 = vunpack.c.l.b16 %v1663
      %v1823 = vunpack.c.l.b16 %v1664
      %v1824 = vunpack.c.l.b16 %v1665
      %v1825 = vpack.c.b16 %v1823, %v1822
      %v1826 = vpack.c.b16 %v1824, %v1824
      %v1830 = vunpack.c.l.b16 %v1666
      %v1831 = vunpack.c.l.b16 %v1667
      %v1832 = vunpack.c.l.b16 %v1668
      %v1833 = vpack.c.b16 %v1831, %v1830
      %v1834 = vpack.c.b16 %v1832, %v1832
      %v1838 = vunpack.c.l.b16 %v1669
      %v1839 = vunpack.c.l.b16 %v1670
      %v1840 = vunpack.c.l.b16 %v1671
      %v1841 = vpack.c.b16 %v1839, %v1838
      %v1842 = vpack.c.b16 %v1840, %v1840
      %v1846 = vunpack.c.l.b16 %v1672
      %v1847 = vunpack.c.l.b16 %v1673
      %v1848 = vunpack.c.l.b16 %v1674
      %v1849 = vpack.c.b16 %v1847, %v1846
      %v1850 = vpack.c.b16 %v1848, %v1848
      %vm1851 = vsmask.f32 7424
      %v1853 = vshrl.u32 %v1771, 16
      %v1855 = vshll.u32 %v1771, 16
      %v1857 = vrot.slane %v1855, 1
      %v1858 = vor.u32 %v1853, %v1857
      %v1860 = vshll.u32 %v1772, 16
      %v1862 = vrot.slane %v1860, 1
      %v1863 = vsel %vm1851, %v1858, %v1862
      %v1865 = vshrl.u32 %v1773, 16
      %v1867 = vshll.u32 %v1773, 16
      %v1869 = vrot.slane %v1867, 1
      %v1870 = vor.u32 %v1865, %v1869
      %v1872 = vshll.u32 %v1774, 16
      %v1874 = vrot.slane %v1872, 1
      %v1875 = vsel %vm1851, %v1870, %v1874
      %v1877 = vshrl.u32 %v1775, 16
      %v1879 = vshll.u32 %v1775, 16
      %v1881 = vrot.slane %v1879, 1
      %v1882 = vor.u32 %v1877, %v1881
      %v1884 = vshll.u32 %v1776, 16
      %v1886 = vrot.slane %v1884, 1
      %v1887 = vsel %vm1851, %v1882, %v1886
      %v1889 = vshrl.u32 %v1777, 16
      %v1891 = vshll.u32 %v1777, 16
      %v1893 = vrot.slane %v1891, 1
      %v1894 = vor.u32 %v1889, %v1893
      %v1896 = vshll.u32 %v1778, 16
      %v1898 = vrot.slane %v1896, 1
      %v1899 = vsel %vm1851, %v1894, %v1898
      %v1901 = vshrl.u32 %v1779, 16
      %v1903 = vshll.u32 %v1779, 16
      %v1905 = vrot.slane %v1903, 1
      %v1906 = vor.u32 %v1901, %v1905
      %v1908 = vshll.u32 %v1780, 16
      %v1910 = vrot.slane %v1908, 1
      %v1911 = vsel %vm1851, %v1906, %v1910
      %v1913 = vshrl.u32 %v1781, 16
      %v1915 = vshll.u32 %v1781, 16
      %v1917 = vrot.slane %v1915, 1
      %v1918 = vor.u32 %v1913, %v1917
      %v1920 = vshll.u32 %v1782, 16
      %v1922 = vrot.slane %v1920, 1
      %v1923 = vsel %vm1851, %v1918, %v1922
      %v1925 = vshrl.u32 %v1783, 16
      %v1927 = vshll.u32 %v1783, 16
      %v1929 = vrot.slane %v1927, 1
      %v1930 = vor.u32 %v1925, %v1929
      %v1932 = vshll.u32 %v1784, 16
      %v1934 = vrot.slane %v1932, 1
      %v1935 = vsel %vm1851, %v1930, %v1934
      %v1937 = vshrl.u32 %v1785, 16
      %v1939 = vshll.u32 %v1785, 16
      %v1941 = vrot.slane %v1939, 1
      %v1942 = vor.u32 %v1937, %v1941
      %v1944 = vshll.u32 %v1786, 16
      %v1946 = vrot.slane %v1944, 1
      %v1947 = vsel %vm1851, %v1942, %v1946
      %v1949 = vshrl.u32 %v1787, 16
      %v1951 = vshll.u32 %v1787, 16
      %v1953 = vrot.slane %v1951, 1
      %v1954 = vor.u32 %v1949, %v1953
      %v1956 = vshll.u32 %v1788, 16
      %v1958 = vrot.slane %v1956, 1
      %v1959 = vsel %vm1851, %v1954, %v1958
      %v1961 = vshrl.u32 %v1789, 16
      %v1963 = vshll.u32 %v1789, 16
      %v1965 = vrot.slane %v1963, 1
      %v1966 = vor.u32 %v1961, %v1965
      %v1968 = vshll.u32 %v1790, 16
      %v1970 = vrot.slane %v1968, 1
      %v1971 = vsel %vm1851, %v1966, %v1970
      %v1973 = vshrl.u32 %v1791, 16
      %v1975 = vshll.u32 %v1791, 16
      %v1977 = vrot.slane %v1975, 1
      %v1978 = vor.u32 %v1973, %v1977
      %v1980 = vshll.u32 %v1792, 16
      %v1982 = vrot.slane %v1980, 1
      %v1983 = vsel %vm1851, %v1978, %v1982
      %v1985 = vshrl.u32 %v1793, 16
      %v1987 = vshll.u32 %v1793, 16
      %v1989 = vrot.slane %v1987, 1
      %v1990 = vor.u32 %v1985, %v1989
      %v1992 = vshll.u32 %v1794, 16
      %v1994 = vrot.slane %v1992, 1
      %v1995 = vsel %vm1851, %v1990, %v1994
      %v1997 = vshrl.u32 %v1795, 16
      %v1999 = vshll.u32 %v1795, 16
      %v2001 = vrot.slane %v1999, 1
      %v2002 = vor.u32 %v1997, %v2001
      %v2004 = vshll.u32 %v1796, 16
      %v2006 = vrot.slane %v2004, 1
      %v2007 = vsel %vm1851, %v2002, %v2006
      %v2009 = vshrl.u32 %v1797, 16
      %v2011 = vshll.u32 %v1797, 16
      %v2013 = vrot.slane %v2011, 1
      %v2014 = vor.u32 %v2009, %v2013
      %v2016 = vshll.u32 %v1798, 16
      %v2018 = vrot.slane %v2016, 1
      %v2019 = vsel %vm1851, %v2014, %v2018
      %v2021 = vshrl.u32 %v1799, 16
      %v2023 = vshll.u32 %v1799, 16
      %v2025 = vrot.slane %v2023, 1
      %v2026 = vor.u32 %v2021, %v2025
      %v2028 = vshll.u32 %v1800, 16
      %v2030 = vrot.slane %v2028, 1
      %v2031 = vsel %vm1851, %v2026, %v2030
      %v2033 = vshrl.u32 %v1801, 16
      %v2035 = vshll.u32 %v1801, 16
      %v2037 = vrot.slane %v2035, 1
      %v2038 = vor.u32 %v2033, %v2037
      %v2040 = vshll.u32 %v1802, 16
      %v2042 = vrot.slane %v2040, 1
      %v2043 = vsel %vm1851, %v2038, %v2042
      %v2045 = vshrl.u32 %v1809, 16
      %v2047 = vshll.u32 %v1809, 16
      %v2049 = vrot.slane %v2047, 1
      %v2050 = vor.u32 %v2045, %v2049
      %v2052 = vshll.u32 %v1810, 16
      %v2054 = vrot.slane %v2052, 1
      %v2055 = vsel %vm1851, %v2050, %v2054
      %v2057 = vshrl.u32 %v1817, 16
      %v2059 = vshll.u32 %v1817, 16
      %v2061 = vrot.slane %v2059, 1
      %v2062 = vor.u32 %v2057, %v2061
      %v2064 = vshll.u32 %v1818, 16
      %v2066 = vrot.slane %v2064, 1
      %v2067 = vsel %vm1851, %v2062, %v2066
      %v2069 = vshrl.u32 %v1825, 16
      %v2071 = vshll.u32 %v1825, 16
      %v2073 = vrot.slane %v2071, 1
      %v2074 = vor.u32 %v2069, %v2073
      %v2076 = vshll.u32 %v1826, 16
      %v2078 = vrot.slane %v2076, 1
      %v2079 = vsel %vm1851, %v2074, %v2078
      %v2081 = vshrl.u32 %v1833, 16
      %v2083 = vshll.u32 %v1833, 16
      %v2085 = vrot.slane %v2083, 1
      %v2086 = vor.u32 %v2081, %v2085
      %v2088 = vshll.u32 %v1834, 16
      %v2090 = vrot.slane %v2088, 1
      %v2091 = vsel %vm1851, %v2086, %v2090
      %v2093 = vshrl.u32 %v1841, 16
      %v2095 = vshll.u32 %v1841, 16
      %v2097 = vrot.slane %v2095, 1
      %v2098 = vor.u32 %v2093, %v2097
      %v2100 = vshll.u32 %v1842, 16
      %v2102 = vrot.slane %v2100, 1
      %v2103 = vsel %vm1851, %v2098, %v2102
      %v2105 = vshrl.u32 %v1849, 16
      %v2107 = vshll.u32 %v1849, 16
      %v2109 = vrot.slane %v2107, 1
      %v2110 = vor.u32 %v2105, %v2109
      %v2112 = vshll.u32 %v1850, 16
      %v2114 = vrot.slane %v2112, 1
      %v2115 = vsel %vm1851, %v2110, %v2114
      %s2138 = scalar_lea.vmem %s2, 448
      %v2139 = vld [vmem:[%s2138] sm:$0xf]
      %v2140 = vld [vmem:[%s2138 + $0x4] sm:$0xf]
      %v2141 = vld [vmem:[%s2138 + $0x8] sm:$0xf]
      %v2142 = vld [vmem:[%s2138 + $0xc] sm:$0xf]
      %v2143 = vld [vmem:[%s2138 + $0x10] sm:$0xf]
      %v2144 = vld [vmem:[%s2138 + $0x14] sm:$0xf]
      %v2145 = vld [vmem:[%s2138 + $0x18] sm:$0xf]
      %v2146 = vld [vmem:[%s2138 + $0x1c] sm:$0xf]
      %v2147 = vld [vmem:[%s2138 + $0x20] sm:$0xf]
      %v2148 = vld [vmem:[%s2138 + $0x24] sm:$0xf]
      %v2149 = vld [vmem:[%s2138 + $0x28] sm:$0xf]
      %v2150 = vld [vmem:[%s2138 + $0x2c] sm:$0xf]
      %v2151 = vld [vmem:[%s2138 + $0x30] sm:$0xf]
      %v2152 = vld [vmem:[%s2138 + $0x34] sm:$0xf]
      %v2153 = vld [vmem:[%s2138 + $0x38] sm:$0xf]
      %v2154 = vld [vmem:[%s2138 + $0x3c] sm:$0xf]
      %v2155 = vld [vmem:[%s2138 + $0x40] sm:$0xf]
      %v2156 = vld [vmem:[%s2138 + $0x44] sm:$0xf]
      %v2157 = vld [vmem:[%s2138 + $0x48] sm:$0xf]
      %v2158 = vld [vmem:[%s2138 + $0x4c] sm:$0xf]
      %v2159 = vld [vmem:[%s2138 + $0x50] sm:$0xf]
      %v2160 = vld [vmem:[%s2138 + $0x54] sm:$0xf]
      %v2161 = vld [vmem:[%s2138 + $0x58] sm:$0xf]
      %v2162 = vld [vmem:[%s2138 + $0x5c] sm:$0xf]
      %v2163 = vld [vmem:[%s2138 + $0x60] sm:$0xf]
      %v2164 = vld [vmem:[%s2138 + $0x64] sm:$0xf]
      %v2165 = vld [vmem:[%s2138 + $0x68] sm:$0xf]
      %v2166 = vld [vmem:[%s2138 + $0x6c] sm:$0xf]
      %v2167 = vld [vmem:[%s2138 + $0x70] sm:$0xf]
      %v2168 = vld [vmem:[%s2138 + $0x74] sm:$0xf]
      %v2169 = vld [vmem:[%s2138 + $0x78] sm:$0xf]
      %v2170 = vld [vmem:[%s2138 + $0x7c] sm:$0xf]
      %v2171 = vld [vmem:[%s2138 + $0x80] sm:$0xf]
      %v2172 = vld [vmem:[%s2138 + $0x84] sm:$0xf]
      %v2173 = vld [vmem:[%s2138 + $0x88] sm:$0xf]
      %v2174 = vld [vmem:[%s2138 + $0x8c] sm:$0xf]
      %v2175 = vld [vmem:[%s2138 + $0x90] sm:$0xf]
      %v2176 = vld [vmem:[%s2138 + $0x94] sm:$0xf]
      %v2177 = vld [vmem:[%s2138 + $0x98] sm:$0xf]
      %v2178 = vld [vmem:[%s2138 + $0x9c] sm:$0xf]
      %v2179 = vld [vmem:[%s2138 + $0xa0] sm:$0xf]
      %v2180 = vld [vmem:[%s2138 + $0xa4] sm:$0xf]
      %v2181 = vld [vmem:[%s2138 + $0xa8] sm:$0xf]
      %v2182 = vld [vmem:[%s2138 + $0xac] sm:$0xf]
      %v2183 = vld [vmem:[%s2138 + $0xb0] sm:$0xf]
      %v2184 = vld [vmem:[%s2138 + $0xb4] sm:$0xf]
      %v2185 = vld [vmem:[%s2138 + $0xb8] sm:$0xf]
      %v2186 = vld [vmem:[%s2138 + $0xbc] sm:$0xf]
      %v2187 = vld [vmem:[%s2138 + $0xc0] sm:$0xf]
      %v2188 = vld [vmem:[%s2138 + $0xc4] sm:$0xf]
      %v2189 = vld [vmem:[%s2138 + $0xc8] sm:$0xf]
      %v2190 = vld [vmem:[%s2138 + $0xcc] sm:$0xf]
      %v2191 = vld [vmem:[%s2138 + $0xd0] sm:$0xf]
      %v2192 = vld [vmem:[%s2138 + $0xd4] sm:$0xf]
      %v2193 = vld [vmem:[%s2138 + $0xd8] sm:$0xf]
      %v2194 = vld [vmem:[%s2138 + $0xdc] sm:$0xf]
      %v2195 = vld [vmem:[%s2138 + $0xe0] sm:$0xf]
      %v2196 = vld [vmem:[%s2138 + $0xe4] sm:$0xf]
      %v2197 = vld [vmem:[%s2138 + $0xe8] sm:$0xf]
      %v2198 = vld [vmem:[%s2138 + $0xec] sm:$0xf]
      %v2199 = vld [vmem:[%s2138 + $0xf0] sm:$0xf]
      %v2200 = vld [vmem:[%s2138 + $0xf4] sm:$0xf]
      %v2201 = vld [vmem:[%s2138 + $0xf8] sm:$0xf]
      %v2202 = vld [vmem:[%s2138 + $0xfc] sm:$0xf]
      %v2203 = vld [vmem:[%s2138 + $0x100] sm:$0xf]
      %v2204 = vld [vmem:[%s2138 + $0x104] sm:$0xf]
      %v2205 = vld [vmem:[%s2138 + $0x108] sm:$0xf]
      %v2206 = vld [vmem:[%s2138 + $0x10c] sm:$0xf]
      %v2207 = vld [vmem:[%s2138 + $0x110] sm:$0xf]
      %v2208 = vld [vmem:[%s2138 + $0x114] sm:$0xf]
      %v2209 = vld [vmem:[%s2138 + $0x118] sm:$0xf]
      %v2210 = vld [vmem:[%s2138 + $0x11c] sm:$0xf]
      %v2211 = vld [vmem:[%s2138 + $0x120] sm:$0xf]
      %v2212 = vld [vmem:[%s2138 + $0x124] sm:$0xf]
      %v2213 = vld [vmem:[%s2138 + $0x128] sm:$0xf]
      %v2214 = vld [vmem:[%s2138 + $0x12c] sm:$0xf]
      %v2215 = vld [vmem:[%s2138 + $0x130] sm:$0xf]
      %v2216 = vld [vmem:[%s2138 + $0x134] sm:$0xf]
      %v2217 = vld [vmem:[%s2138 + $0x138] sm:$0xf]
      %v2218 = vld [vmem:[%s2138 + $0x13c] sm:$0xf]
      %v2219 = vld [vmem:[%s2138 + $0x140] sm:$0xf]
      %v2220 = vld [vmem:[%s2138 + $0x144] sm:$0xf]
      %v2221 = vld [vmem:[%s2138 + $0x148] sm:$0xf]
      %v2222 = vld [vmem:[%s2138 + $0x14c] sm:$0xf]
      %v2223 = vld [vmem:[%s2138 + $0x150] sm:$0xf]
      %v2224 = vld [vmem:[%s2138 + $0x154] sm:$0xf]
      %v2225 = vld [vmem:[%s2138 + $0x158] sm:$0xf]
      %v2226 = vld [vmem:[%s2138 + $0x15c] sm:$0xf]
      %v2227 = vld [vmem:[%s2138 + $0x160] sm:$0xf]
      %v2228 = vld [vmem:[%s2138 + $0x164] sm:$0xf]
      %v2229 = vld [vmem:[%s2138 + $0x168] sm:$0xf]
      %v2230 = vld [vmem:[%s2138 + $0x16c] sm:$0xf]
      %v2231 = vld [vmem:[%s2138 + $0x170] sm:$0xf]
      %v2232 = vld [vmem:[%s2138 + $0x174] sm:$0xf]
      %v2233 = vld [vmem:[%s2138 + $0x178] sm:$0xf]
      %v2234 = vld [vmem:[%s2138 + $0x17c] sm:$0xf]
      %v2235 = vld [vmem:[%s2138 + $0x180] sm:$0xf]
      %v2236 = vld [vmem:[%s2138 + $0x184] sm:$0xf]
      %v2237 = vld [vmem:[%s2138 + $0x188] sm:$0xf]
      %v2238 = vld [vmem:[%s2138 + $0x18c] sm:$0xf]
      %v2239 = vld [vmem:[%s2138 + $0x190] sm:$0xf]
      %v2240 = vld [vmem:[%s2138 + $0x194] sm:$0xf]
      %v2241 = vld [vmem:[%s2138 + $0x198] sm:$0xf]
      %v2242 = vld [vmem:[%s2138 + $0x19c] sm:$0xf]
      %v2243 = vld [vmem:[%s2138 + $0x1a0] sm:$0xf]
      %v2244 = vld [vmem:[%s2138 + $0x1a4] sm:$0xf]
      %v2245 = vld [vmem:[%s2138 + $0x1a8] sm:$0xf]
      %v2246 = vld [vmem:[%s2138 + $0x1ac] sm:$0xf]
      %v2247 = vld [vmem:[%s2138 + $0x1b0] sm:$0xf]
      %v2248 = vld [vmem:[%s2138 + $0x1b4] sm:$0xf]
      %v2249 = vld [vmem:[%s2138 + $0x1b8] sm:$0xf]
      %v2250 = vld [vmem:[%s2138 + $0x1bc] sm:$0xf]
      %v2363 = vunpack.c.l.b16 %v2139
      %v2364 = vunpack.c.l.b16 %v2140
      %v2365 = vunpack.c.l.b16 %v2141
      %v2366 = vunpack.c.l.b16 %v2142
      %v2367 = vunpack.c.l.b16 %v2143
      %v2368 = vunpack.c.l.b16 %v2144
      %v2369 = vunpack.c.l.b16 %v2145
      %v2370 = vunpack.c.l.b16 %v2146
      %v2371 = vunpack.c.l.b16 %v2147
      %v2372 = vunpack.c.l.b16 %v2148
      %v2373 = vunpack.c.l.b16 %v2149
      %v2374 = vunpack.c.l.b16 %v2150
      %v2375 = vunpack.c.l.b16 %v2151
      %v2376 = vunpack.c.l.b16 %v2152
      %v2377 = vunpack.c.l.b16 %v2153
      %v2378 = vunpack.c.l.b16 %v2154
      %v2379 = vunpack.c.l.b16 %v2155
      %v2380 = vunpack.c.l.b16 %v2156
      %v2381 = vunpack.c.l.b16 %v2157
      %v2382 = vunpack.c.l.b16 %v2158
      %v2383 = vunpack.c.l.b16 %v2159
      %v2384 = vunpack.c.l.b16 %v2160
      %v2385 = vunpack.c.l.b16 %v2161
      %v2386 = vunpack.c.l.b16 %v2162
      %v2387 = vunpack.c.l.b16 %v2163
      %v2388 = vunpack.c.l.b16 %v2164
      %v2389 = vunpack.c.l.b16 %v2165
      %v2390 = vunpack.c.l.b16 %v2166
      %v2391 = vunpack.c.l.b16 %v2167
      %v2392 = vunpack.c.l.b16 %v2168
      %v2393 = vunpack.c.l.b16 %v2169
      %v2394 = vunpack.c.l.b16 %v2170
      %v2395 = vunpack.c.l.b16 %v2171
      %v2396 = vunpack.c.l.b16 %v2172
      %v2397 = vunpack.c.l.b16 %v2173
      %v2398 = vunpack.c.l.b16 %v2174
      %v2399 = vunpack.c.l.b16 %v2175
      %v2400 = vunpack.c.l.b16 %v2176
      %v2401 = vunpack.c.l.b16 %v2177
      %v2402 = vunpack.c.l.b16 %v2178
      %v2403 = vunpack.c.l.b16 %v2179
      %v2404 = vunpack.c.l.b16 %v2180
      %v2405 = vunpack.c.l.b16 %v2181
      %v2406 = vunpack.c.l.b16 %v2182
      %v2407 = vunpack.c.l.b16 %v2183
      %v2408 = vunpack.c.l.b16 %v2184
      %v2409 = vunpack.c.l.b16 %v2185
      %v2410 = vunpack.c.l.b16 %v2186
      %v2411 = vunpack.c.l.b16 %v2187
      %v2412 = vunpack.c.l.b16 %v2188
      %v2413 = vunpack.c.l.b16 %v2189
      %v2414 = vunpack.c.l.b16 %v2190
      %v2415 = vunpack.c.l.b16 %v2191
      %v2416 = vunpack.c.l.b16 %v2192
      %v2417 = vunpack.c.l.b16 %v2193
      %v2418 = vunpack.c.l.b16 %v2194
      %v2419 = vunpack.c.l.b16 %v2195
      %v2420 = vunpack.c.l.b16 %v2196
      %v2421 = vunpack.c.l.b16 %v2197
      %v2422 = vunpack.c.l.b16 %v2198
      %v2423 = vunpack.c.l.b16 %v2199
      %v2424 = vunpack.c.l.b16 %v2200
      %v2425 = vunpack.c.l.b16 %v2201
      %v2426 = vunpack.c.l.b16 %v2202
      %v2427 = vunpack.c.l.b16 %v2203
      %v2428 = vunpack.c.l.b16 %v2204
      %v2429 = vunpack.c.l.b16 %v2205
      %v2430 = vunpack.c.l.b16 %v2206
      %v2431 = vunpack.c.l.b16 %v2207
      %v2432 = vunpack.c.l.b16 %v2208
      %v2433 = vunpack.c.l.b16 %v2209
      %v2434 = vunpack.c.l.b16 %v2210
      %v2435 = vunpack.c.l.b16 %v2211
      %v2436 = vunpack.c.l.b16 %v2212
      %v2437 = vunpack.c.l.b16 %v2213
      %v2438 = vunpack.c.l.b16 %v2214
      %v2439 = vunpack.c.l.b16 %v2215
      %v2440 = vunpack.c.l.b16 %v2216
      %v2441 = vunpack.c.l.b16 %v2217
      %v2442 = vunpack.c.l.b16 %v2218
      %v2443 = vunpack.c.l.b16 %v2219
      %v2444 = vunpack.c.l.b16 %v2220
      %v2445 = vunpack.c.l.b16 %v2221
      %v2446 = vunpack.c.l.b16 %v2222
      %v2447 = vunpack.c.l.b16 %v2223
      %v2448 = vunpack.c.l.b16 %v2224
      %v2449 = vunpack.c.l.b16 %v2225
      %v2450 = vunpack.c.l.b16 %v2226
      %v2451 = vunpack.c.l.b16 %v2227
      %v2452 = vunpack.c.l.b16 %v2228
      %v2453 = vunpack.c.l.b16 %v2229
      %v2454 = vunpack.c.l.b16 %v2230
      %v2455 = vunpack.c.l.b16 %v2231
      %v2456 = vunpack.c.l.b16 %v2232
      %v2457 = vunpack.c.l.b16 %v2233
      %v2458 = vunpack.c.l.b16 %v2234
      %v2459 = vunpack.c.l.b16 %v2235
      %v2460 = vunpack.c.l.b16 %v2236
      %v2461 = vunpack.c.l.b16 %v2237
      %v2462 = vunpack.c.l.b16 %v2238
      %v2463 = vunpack.c.l.b16 %v2239
      %v2464 = vunpack.c.l.b16 %v2240
      %v2465 = vunpack.c.l.b16 %v2241
      %v2466 = vunpack.c.l.b16 %v2242
      %v2467 = vunpack.c.l.b16 %v2243
      %v2468 = vunpack.c.l.b16 %v2244
      %v2469 = vunpack.c.l.b16 %v2245
      %v2470 = vunpack.c.l.b16 %v2246
      %v2471 = vunpack.c.l.b16 %v2247
      %v2472 = vunpack.c.l.b16 %v2248
      %v2473 = vunpack.c.l.b16 %v2249
      %v2474 = vunpack.c.l.b16 %v2250
      %v2475 = vpack.c.b16 %v2364, %v2363
      %v2476 = vpack.c.b16 %v2366, %v2365
      %v2477 = vpack.c.b16 %v2368, %v2367
      %v2478 = vpack.c.b16 %v2370, %v2369
      %v2479 = vpack.c.b16 %v2372, %v2371
      %v2480 = vpack.c.b16 %v2374, %v2373
      %v2481 = vpack.c.b16 %v2376, %v2375
      %v2482 = vpack.c.b16 %v2378, %v2377
      %v2483 = vpack.c.b16 %v2380, %v2379
      %v2484 = vpack.c.b16 %v2382, %v2381
      %v2485 = vpack.c.b16 %v2384, %v2383
      %v2486 = vpack.c.b16 %v2386, %v2385
      %v2487 = vpack.c.b16 %v2388, %v2387
      %v2488 = vpack.c.b16 %v2390, %v2389
      %v2489 = vpack.c.b16 %v2392, %v2391
      %v2490 = vpack.c.b16 %v2394, %v2393
      %v2491 = vpack.c.b16 %v2396, %v2395
      %v2492 = vpack.c.b16 %v2398, %v2397
      %v2493 = vpack.c.b16 %v2400, %v2399
      %v2494 = vpack.c.b16 %v2402, %v2401
      %v2495 = vpack.c.b16 %v2404, %v2403
      %v2496 = vpack.c.b16 %v2406, %v2405
      %v2497 = vpack.c.b16 %v2408, %v2407
      %v2498 = vpack.c.b16 %v2410, %v2409
      %v2499 = vpack.c.b16 %v2412, %v2411
      %v2500 = vpack.c.b16 %v2414, %v2413
      %v2501 = vpack.c.b16 %v2416, %v2415
      %v2502 = vpack.c.b16 %v2418, %v2417
      %v2503 = vpack.c.b16 %v2420, %v2419
      %v2504 = vpack.c.b16 %v2422, %v2421
      %v2505 = vpack.c.b16 %v2424, %v2423
      %v2506 = vpack.c.b16 %v2426, %v2425
      %v2507 = vpack.c.b16 %v2428, %v2427
      %v2508 = vpack.c.b16 %v2430, %v2429
      %v2509 = vpack.c.b16 %v2432, %v2431
      %v2510 = vpack.c.b16 %v2434, %v2433
      %v2511 = vpack.c.b16 %v2436, %v2435
      %v2512 = vpack.c.b16 %v2438, %v2437
      %v2513 = vpack.c.b16 %v2440, %v2439
      %v2514 = vpack.c.b16 %v2442, %v2441
      %v2515 = vpack.c.b16 %v2444, %v2443
      %v2516 = vpack.c.b16 %v2446, %v2445
      %v2517 = vpack.c.b16 %v2448, %v2447
      %v2518 = vpack.c.b16 %v2450, %v2449
      %v2519 = vpack.c.b16 %v2452, %v2451
      %v2520 = vpack.c.b16 %v2454, %v2453
      %v2521 = vpack.c.b16 %v2456, %v2455
      %v2522 = vpack.c.b16 %v2458, %v2457
      %v2523 = vpack.c.b16 %v2460, %v2459
      %v2524 = vpack.c.b16 %v2462, %v2461
      %v2525 = vpack.c.b16 %v2464, %v2463
      %v2526 = vpack.c.b16 %v2466, %v2465
      %v2527 = vpack.c.b16 %v2468, %v2467
      %v2528 = vpack.c.b16 %v2470, %v2469
      %v2529 = vpack.c.b16 %v2472, %v2471
      %v2530 = vpack.c.b16 %v2474, %v2473
      %2587 = vmatpush.bf16.msra.mxu0 %v2482
      %2588 = vmatpush.bf16.msra.mxu0 %v2481
      %2589 = vmatpush.bf16.msra.mxu0 %v2480
      %2590 = vmatpush.bf16.msra.mxu0 %v2479
      %2591 = vmatpush.bf16.msra.mxu0 %v2478
      %2592 = vmatpush.bf16.msra.mxu0 %v2477
      %2593 = vmatpush.bf16.msra.mxu0 %v2476
      %2594 = vmatpush.bf16.msra.mxu0 %v2475
      %2595 = vmatmul.bf16.gmra.mxu0 %v1863
      %v2596 = vpop.f32.mrf.mxu0
      %v2597 = vadd.f32 0.0, %v2596
      %v2598 = vpop.f32.mrf.mxu0
      %v2599 = vadd.f32 0.0, %v2598
      %2600 = vmatmul.bf16.gmra.mxu0 %v1875
      %v2601 = vpop.f32.mrf.mxu0
      %v2602 = vadd.f32 0.0, %v2601
      %v2603 = vpop.f32.mrf.mxu0
      %v2604 = vadd.f32 0.0, %v2603
      %2605 = vmatmul.bf16.gmra.mxu0 %v1887
      %v2606 = vpop.f32.mrf.mxu0
      %v2607 = vadd.f32 0.0, %v2606
      %v2608 = vpop.f32.mrf.mxu0
      %v2609 = vadd.f32 0.0, %v2608
      %2610 = vmatmul.bf16.gmra.mxu0 %v1899
      %v2611 = vpop.f32.mrf.mxu0
      %v2612 = vadd.f32 0.0, %v2611
      %v2613 = vpop.f32.mrf.mxu0
      %v2614 = vadd.f32 0.0, %v2613
      %2615 = vmatmul.bf16.gmra.mxu0 %v1911
      %v2616 = vpop.f32.mrf.mxu0
      %v2617 = vadd.f32 0.0, %v2616
      %v2618 = vpop.f32.mrf.mxu0
      %v2619 = vadd.f32 0.0, %v2618
      %2620 = vmatmul.bf16.gmra.mxu0 %v1923
      %v2621 = vpop.f32.mrf.mxu0
      %v2622 = vadd.f32 0.0, %v2621
      %v2623 = vpop.f32.mrf.mxu0
      %v2624 = vadd.f32 0.0, %v2623
      %2625 = vmatmul.bf16.gmra.mxu0 %v1935
      %v2626 = vpop.f32.mrf.mxu0
      %v2627 = vadd.f32 0.0, %v2626
      %v2628 = vpop.f32.mrf.mxu0
      %v2629 = vadd.f32 0.0, %v2628
      %2630 = vmatmul.bf16.gmra.mxu0 %v1947
      %v2631 = vpop.f32.mrf.mxu0
      %v2632 = vadd.f32 0.0, %v2631
      %v2633 = vpop.f32.mrf.mxu0
      %v2634 = vadd.f32 0.0, %v2633
      %2635 = vmatmul.bf16.gmra.mxu0 %v1959
      %v2636 = vpop.f32.mrf.mxu0
      %v2637 = vadd.f32 0.0, %v2636
      %v2638 = vpop.f32.mrf.mxu0
      %v2639 = vadd.f32 0.0, %v2638
      %2640 = vmatmul.bf16.gmra.mxu0 %v1971
      %v2641 = vpop.f32.mrf.mxu0
      %v2642 = vadd.f32 0.0, %v2641
      %v2643 = vpop.f32.mrf.mxu0
      %v2644 = vadd.f32 0.0, %v2643
      %2645 = vmatmul.bf16.gmra.mxu0 %v1983
      %v2646 = vpop.f32.mrf.mxu0
      %v2647 = vadd.f32 0.0, %v2646
      %v2648 = vpop.f32.mrf.mxu0
      %v2649 = vadd.f32 0.0, %v2648
      %2650 = vmatmul.bf16.gmra.mxu0 %v1995
      %v2651 = vpop.f32.mrf.mxu0
      %v2652 = vadd.f32 0.0, %v2651
      %v2653 = vpop.f32.mrf.mxu0
      %v2654 = vadd.f32 0.0, %v2653
      %2655 = vmatmul.bf16.gmra.mxu0 %v2007
      %v2656 = vpop.f32.mrf.mxu0
      %v2657 = vadd.f32 0.0, %v2656
      %v2658 = vpop.f32.mrf.mxu0
      %v2659 = vadd.f32 0.0, %v2658
      %2660 = vmatmul.bf16.gmra.mxu0 %v2019
      %v2661 = vpop.f32.mrf.mxu0
      %v2662 = vadd.f32 0.0, %v2661
      %v2663 = vpop.f32.mrf.mxu0
      %v2664 = vadd.f32 0.0, %v2663
      %2665 = vmatmul.bf16.gmra.mxu0 %v2031
      %v2666 = vpop.f32.mrf.mxu0
      %v2667 = vadd.f32 0.0, %v2666
      %v2668 = vpop.f32.mrf.mxu0
      %v2669 = vadd.f32 0.0, %v2668
      %2670 = vmatmul.bf16.gmra.mxu0 %v2043
      %v2671 = vpop.f32.mrf.mxu0
      %v2672 = vadd.f32 0.0, %v2671
      %v2673 = vpop.f32.mrf.mxu0
      %v2674 = vadd.f32 0.0, %v2673
      %2675 = vdwg.mxu0
      %2676 = vmatpush.bf16.msra.mxu0 %v2490
      %2677 = vmatpush.bf16.msra.mxu0 %v2489
      %2678 = vmatpush.bf16.msra.mxu0 %v2488
      %2679 = vmatpush.bf16.msra.mxu0 %v2487
      %2680 = vmatpush.bf16.msra.mxu0 %v2486
      %2681 = vmatpush.bf16.msra.mxu0 %v2485
      %2682 = vmatpush.bf16.msra.mxu0 %v2484
      %2683 = vmatpush.bf16.msra.mxu0 %v2483
      %2684 = vmatmul.bf16.gmra.mxu0 %v1875
      %v2685 = vpop.f32.mrf.mxu0
      %v2686 = vadd.f32 %v2597, %v2685
      %v2687 = vpop.f32.mrf.mxu0
      %v2688 = vadd.f32 %v2599, %v2687
      %2689 = vmatmul.bf16.gmra.mxu0 %v1887
      %v2690 = vpop.f32.mrf.mxu0
      %v2691 = vadd.f32 %v2602, %v2690
      %v2692 = vpop.f32.mrf.mxu0
      %v2693 = vadd.f32 %v2604, %v2692
      %2694 = vmatmul.bf16.gmra.mxu0 %v1899
      %v2695 = vpop.f32.mrf.mxu0
      %v2696 = vadd.f32 %v2607, %v2695
      %v2697 = vpop.f32.mrf.mxu0
      %v2698 = vadd.f32 %v2609, %v2697
      %2699 = vmatmul.bf16.gmra.mxu0 %v1911
      %v2700 = vpop.f32.mrf.mxu0
      %v2701 = vadd.f32 %v2612, %v2700
      %v2702 = vpop.f32.mrf.mxu0
      %v2703 = vadd.f32 %v2614, %v2702
      %2704 = vmatmul.bf16.gmra.mxu0 %v1923
      %v2705 = vpop.f32.mrf.mxu0
      %v2706 = vadd.f32 %v2617, %v2705
      %v2707 = vpop.f32.mrf.mxu0
      %v2708 = vadd.f32 %v2619, %v2707
      %2709 = vmatmul.bf16.gmra.mxu0 %v1935
      %v2710 = vpop.f32.mrf.mxu0
      %v2711 = vadd.f32 %v2622, %v2710
      %v2712 = vpop.f32.mrf.mxu0
      %v2713 = vadd.f32 %v2624, %v2712
      %2714 = vmatmul.bf16.gmra.mxu0 %v1947
      %v2715 = vpop.f32.mrf.mxu0
      %v2716 = vadd.f32 %v2627, %v2715
      %v2717 = vpop.f32.mrf.mxu0
      %v2718 = vadd.f32 %v2629, %v2717
      %2719 = vmatmul.bf16.gmra.mxu0 %v1959
      %v2720 = vpop.f32.mrf.mxu0
      %v2721 = vadd.f32 %v2632, %v2720
      %v2722 = vpop.f32.mrf.mxu0
      %v2723 = vadd.f32 %v2634, %v2722
      %2724 = vmatmul.bf16.gmra.mxu0 %v1971
      %v2725 = vpop.f32.mrf.mxu0
      %v2726 = vadd.f32 %v2637, %v2725
      %v2727 = vpop.f32.mrf.mxu0
      %v2728 = vadd.f32 %v2639, %v2727
      %2729 = vmatmul.bf16.gmra.mxu0 %v1983
      %v2730 = vpop.f32.mrf.mxu0
      %v2731 = vadd.f32 %v2642, %v2730
      %v2732 = vpop.f32.mrf.mxu0
      %v2733 = vadd.f32 %v2644, %v2732
      %2734 = vmatmul.bf16.gmra.mxu0 %v1995
      %v2735 = vpop.f32.mrf.mxu0
      %v2736 = vadd.f32 %v2647, %v2735
      %v2737 = vpop.f32.mrf.mxu0
      %v2738 = vadd.f32 %v2649, %v2737
      %2739 = vmatmul.bf16.gmra.mxu0 %v2007
      %v2740 = vpop.f32.mrf.mxu0
      %v2741 = vadd.f32 %v2652, %v2740
      %v2742 = vpop.f32.mrf.mxu0
      %v2743 = vadd.f32 %v2654, %v2742
      %2744 = vmatmul.bf16.gmra.mxu0 %v2019
      %v2745 = vpop.f32.mrf.mxu0
      %v2746 = vadd.f32 %v2657, %v2745
      %v2747 = vpop.f32.mrf.mxu0
      %v2748 = vadd.f32 %v2659, %v2747
      %2749 = vmatmul.bf16.gmra.mxu0 %v2031
      %v2750 = vpop.f32.mrf.mxu0
      %v2751 = vadd.f32 %v2662, %v2750
      %v2752 = vpop.f32.mrf.mxu0
      %v2753 = vadd.f32 %v2664, %v2752
      %2754 = vmatmul.bf16.gmra.mxu0 %v2043
      %v2755 = vpop.f32.mrf.mxu0
      %v2756 = vadd.f32 %v2667, %v2755
      %v2757 = vpop.f32.mrf.mxu0
      %v2758 = vadd.f32 %v2669, %v2757
      %2759 = vmatmul.bf16.gmra.mxu0 %v2055
      %v2760 = vpop.f32.mrf.mxu0
      %v2761 = vadd.f32 %v2672, %v2760
      %v2762 = vpop.f32.mrf.mxu0
      %v2763 = vadd.f32 %v2674, %v2762
      %2764 = vdwg.mxu0
      %2765 = vmatpush.bf16.msra.mxu0 %v2498
      %2766 = vmatpush.bf16.msra.mxu0 %v2497
      %2767 = vmatpush.bf16.msra.mxu0 %v2496
      %2768 = vmatpush.bf16.msra.mxu0 %v2495
      %2769 = vmatpush.bf16.msra.mxu0 %v2494
      %2770 = vmatpush.bf16.msra.mxu0 %v2493
      %2771 = vmatpush.bf16.msra.mxu0 %v2492
      %2772 = vmatpush.bf16.msra.mxu0 %v2491
      %2773 = vmatmul.bf16.gmra.mxu0 %v1887
      %v2774 = vpop.f32.mrf.mxu0
      %v2775 = vadd.f32 %v2686, %v2774
      %v2776 = vpop.f32.mrf.mxu0
      %v2777 = vadd.f32 %v2688, %v2776
      %2778 = vmatmul.bf16.gmra.mxu0 %v1899
      %v2779 = vpop.f32.mrf.mxu0
      %v2780 = vadd.f32 %v2691, %v2779
      %v2781 = vpop.f32.mrf.mxu0
      %v2782 = vadd.f32 %v2693, %v2781
      %2783 = vmatmul.bf16.gmra.mxu0 %v1911
      %v2784 = vpop.f32.mrf.mxu0
      %v2785 = vadd.f32 %v2696, %v2784
      %v2786 = vpop.f32.mrf.mxu0
      %v2787 = vadd.f32 %v2698, %v2786
      %2788 = vmatmul.bf16.gmra.mxu0 %v1923
      %v2789 = vpop.f32.mrf.mxu0
      %v2790 = vadd.f32 %v2701, %v2789
      %v2791 = vpop.f32.mrf.mxu0
      %v2792 = vadd.f32 %v2703, %v2791
      %2793 = vmatmul.bf16.gmra.mxu0 %v1935
      %v2794 = vpop.f32.mrf.mxu0
      %v2795 = vadd.f32 %v2706, %v2794
      %v2796 = vpop.f32.mrf.mxu0
      %v2797 = vadd.f32 %v2708, %v2796
      %2798 = vmatmul.bf16.gmra.mxu0 %v1947
      %v2799 = vpop.f32.mrf.mxu0
      %v2800 = vadd.f32 %v2711, %v2799
      %v2801 = vpop.f32.mrf.mxu0
      %v2802 = vadd.f32 %v2713, %v2801
      %2803 = vmatmul.bf16.gmra.mxu0 %v1959
      %v2804 = vpop.f32.mrf.mxu0
      %v2805 = vadd.f32 %v2716, %v2804
      %v2806 = vpop.f32.mrf.mxu0
      %v2807 = vadd.f32 %v2718, %v2806
      %2808 = vmatmul.bf16.gmra.mxu0 %v1971
      %v2809 = vpop.f32.mrf.mxu0
      %v2810 = vadd.f32 %v2721, %v2809
      %v2811 = vpop.f32.mrf.mxu0
      %v2812 = vadd.f32 %v2723, %v2811
      %2813 = vmatmul.bf16.gmra.mxu0 %v1983
      %v2814 = vpop.f32.mrf.mxu0
      %v2815 = vadd.f32 %v2726, %v2814
      %v2816 = vpop.f32.mrf.mxu0
      %v2817 = vadd.f32 %v2728, %v2816
      %2818 = vmatmul.bf16.gmra.mxu0 %v1995
      %v2819 = vpop.f32.mrf.mxu0
      %v2820 = vadd.f32 %v2731, %v2819
      %v2821 = vpop.f32.mrf.mxu0
      %v2822 = vadd.f32 %v2733, %v2821
      %2823 = vmatmul.bf16.gmra.mxu0 %v2007
      %v2824 = vpop.f32.mrf.mxu0
      %v2825 = vadd.f32 %v2736, %v2824
      %v2826 = vpop.f32.mrf.mxu0
      %v2827 = vadd.f32 %v2738, %v2826
      %2828 = vmatmul.bf16.gmra.mxu0 %v2019
      %v2829 = vpop.f32.mrf.mxu0
      %v2830 = vadd.f32 %v2741, %v2829
      %v2831 = vpop.f32.mrf.mxu0
      %v2832 = vadd.f32 %v2743, %v2831
      %2833 = vmatmul.bf16.gmra.mxu0 %v2031
      %v2834 = vpop.f32.mrf.mxu0
      %v2835 = vadd.f32 %v2746, %v2834
      %v2836 = vpop.f32.mrf.mxu0
      %v2837 = vadd.f32 %v2748, %v2836
      %2838 = vmatmul.bf16.gmra.mxu0 %v2043
      %v2839 = vpop.f32.mrf.mxu0
      %v2840 = vadd.f32 %v2751, %v2839
      %v2841 = vpop.f32.mrf.mxu0
      %v2842 = vadd.f32 %v2753, %v2841
      %2843 = vmatmul.bf16.gmra.mxu0 %v2055
      %v2844 = vpop.f32.mrf.mxu0
      %v2845 = vadd.f32 %v2756, %v2844
      %v2846 = vpop.f32.mrf.mxu0
      %v2847 = vadd.f32 %v2758, %v2846
      %2848 = vmatmul.bf16.gmra.mxu0 %v2067
      %v2849 = vpop.f32.mrf.mxu0
      %v2850 = vadd.f32 %v2761, %v2849
      %v2851 = vpop.f32.mrf.mxu0
      %v2852 = vadd.f32 %v2763, %v2851
      %2853 = vdwg.mxu0
      %2854 = vmatpush.bf16.msra.mxu0 %v2506
      %2855 = vmatpush.bf16.msra.mxu0 %v2505
      %2856 = vmatpush.bf16.msra.mxu0 %v2504
      %2857 = vmatpush.bf16.msra.mxu0 %v2503
      %2858 = vmatpush.bf16.msra.mxu0 %v2502
      %2859 = vmatpush.bf16.msra.mxu0 %v2501
      %2860 = vmatpush.bf16.msra.mxu0 %v2500
      %2861 = vmatpush.bf16.msra.mxu0 %v2499
      %2862 = vmatmul.bf16.gmra.mxu0 %v1899
      %v2863 = vpop.f32.mrf.mxu0
      %v2864 = vadd.f32 %v2775, %v2863
      %v2865 = vpop.f32.mrf.mxu0
      %v2866 = vadd.f32 %v2777, %v2865
      %2867 = vmatmul.bf16.gmra.mxu0 %v1911
      %v2868 = vpop.f32.mrf.mxu0
      %v2869 = vadd.f32 %v2780, %v2868
      %v2870 = vpop.f32.mrf.mxu0
      %v2871 = vadd.f32 %v2782, %v2870
      %2872 = vmatmul.bf16.gmra.mxu0 %v1923
      %v2873 = vpop.f32.mrf.mxu0
      %v2874 = vadd.f32 %v2785, %v2873
      %v2875 = vpop.f32.mrf.mxu0
      %v2876 = vadd.f32 %v2787, %v2875
      %2877 = vmatmul.bf16.gmra.mxu0 %v1935
      %v2878 = vpop.f32.mrf.mxu0
      %v2879 = vadd.f32 %v2790, %v2878
      %v2880 = vpop.f32.mrf.mxu0
      %v2881 = vadd.f32 %v2792, %v2880
      %2882 = vmatmul.bf16.gmra.mxu0 %v1947
      %v2883 = vpop.f32.mrf.mxu0
      %v2884 = vadd.f32 %v2795, %v2883
      %v2885 = vpop.f32.mrf.mxu0
      %v2886 = vadd.f32 %v2797, %v2885
      %2887 = vmatmul.bf16.gmra.mxu0 %v1959
      %v2888 = vpop.f32.mrf.mxu0
      %v2889 = vadd.f32 %v2800, %v2888
      %v2890 = vpop.f32.mrf.mxu0
      %v2891 = vadd.f32 %v2802, %v2890
      %2892 = vmatmul.bf16.gmra.mxu0 %v1971
      %v2893 = vpop.f32.mrf.mxu0
      %v2894 = vadd.f32 %v2805, %v2893
      %v2895 = vpop.f32.mrf.mxu0
      %v2896 = vadd.f32 %v2807, %v2895
      %2897 = vmatmul.bf16.gmra.mxu0 %v1983
      %v2898 = vpop.f32.mrf.mxu0
      %v2899 = vadd.f32 %v2810, %v2898
      %v2900 = vpop.f32.mrf.mxu0
      %v2901 = vadd.f32 %v2812, %v2900
      %2902 = vmatmul.bf16.gmra.mxu0 %v1995
      %v2903 = vpop.f32.mrf.mxu0
      %v2904 = vadd.f32 %v2815, %v2903
      %v2905 = vpop.f32.mrf.mxu0
      %v2906 = vadd.f32 %v2817, %v2905
      %2907 = vmatmul.bf16.gmra.mxu0 %v2007
      %v2908 = vpop.f32.mrf.mxu0
      %v2909 = vadd.f32 %v2820, %v2908
      %v2910 = vpop.f32.mrf.mxu0
      %v2911 = vadd.f32 %v2822, %v2910
      %2912 = vmatmul.bf16.gmra.mxu0 %v2019
      %v2913 = vpop.f32.mrf.mxu0
      %v2914 = vadd.f32 %v2825, %v2913
      %v2915 = vpop.f32.mrf.mxu0
      %v2916 = vadd.f32 %v2827, %v2915
      %2917 = vmatmul.bf16.gmra.mxu0 %v2031
      %v2918 = vpop.f32.mrf.mxu0
      %v2919 = vadd.f32 %v2830, %v2918
      %v2920 = vpop.f32.mrf.mxu0
      %v2921 = vadd.f32 %v2832, %v2920
      %2922 = vmatmul.bf16.gmra.mxu0 %v2043
      %v2923 = vpop.f32.mrf.mxu0
      %v2924 = vadd.f32 %v2835, %v2923
      %v2925 = vpop.f32.mrf.mxu0
      %v2926 = vadd.f32 %v2837, %v2925
      %2927 = vmatmul.bf16.gmra.mxu0 %v2055
      %v2928 = vpop.f32.mrf.mxu0
      %v2929 = vadd.f32 %v2840, %v2928
      %v2930 = vpop.f32.mrf.mxu0
      %v2931 = vadd.f32 %v2842, %v2930
      %2932 = vmatmul.bf16.gmra.mxu0 %v2067
      %v2933 = vpop.f32.mrf.mxu0
      %v2934 = vadd.f32 %v2845, %v2933
      %v2935 = vpop.f32.mrf.mxu0
      %v2936 = vadd.f32 %v2847, %v2935
      %2937 = vmatmul.bf16.gmra.mxu0 %v2079
      %v2938 = vpop.f32.mrf.mxu0
      %v2939 = vadd.f32 %v2850, %v2938
      %v2940 = vpop.f32.mrf.mxu0
      %v2941 = vadd.f32 %v2852, %v2940
      %2942 = vdwg.mxu0
      %2943 = vmatpush.bf16.msra.mxu0 %v2514
      %2944 = vmatpush.bf16.msra.mxu0 %v2513
      %2945 = vmatpush.bf16.msra.mxu0 %v2512
      %2946 = vmatpush.bf16.msra.mxu0 %v2511
      %2947 = vmatpush.bf16.msra.mxu0 %v2510
      %2948 = vmatpush.bf16.msra.mxu0 %v2509
      %2949 = vmatpush.bf16.msra.mxu0 %v2508
      %2950 = vmatpush.bf16.msra.mxu0 %v2507
      %2951 = vmatmul.bf16.gmra.mxu0 %v1911
      %v2952 = vpop.f32.mrf.mxu0
      %v2953 = vadd.f32 %v2864, %v2952
      %v2954 = vpop.f32.mrf.mxu0
      %v2955 = vadd.f32 %v2866, %v2954
      %2956 = vmatmul.bf16.gmra.mxu0 %v1923
      %v2957 = vpop.f32.mrf.mxu0
      %v2958 = vadd.f32 %v2869, %v2957
      %v2959 = vpop.f32.mrf.mxu0
      %v2960 = vadd.f32 %v2871, %v2959
      %2961 = vmatmul.bf16.gmra.mxu0 %v1935
      %v2962 = vpop.f32.mrf.mxu0
      %v2963 = vadd.f32 %v2874, %v2962
      %v2964 = vpop.f32.mrf.mxu0
      %v2965 = vadd.f32 %v2876, %v2964
      %2966 = vmatmul.bf16.gmra.mxu0 %v1947
      %v2967 = vpop.f32.mrf.mxu0
      %v2968 = vadd.f32 %v2879, %v2967
      %v2969 = vpop.f32.mrf.mxu0
      %v2970 = vadd.f32 %v2881, %v2969
      %2971 = vmatmul.bf16.gmra.mxu0 %v1959
      %v2972 = vpop.f32.mrf.mxu0
      %v2973 = vadd.f32 %v2884, %v2972
      %v2974 = vpop.f32.mrf.mxu0
      %v2975 = vadd.f32 %v2886, %v2974
      %2976 = vmatmul.bf16.gmra.mxu0 %v1971
      %v2977 = vpop.f32.mrf.mxu0
      %v2978 = vadd.f32 %v2889, %v2977
      %v2979 = vpop.f32.mrf.mxu0
      %v2980 = vadd.f32 %v2891, %v2979
      %2981 = vmatmul.bf16.gmra.mxu0 %v1983
      %v2982 = vpop.f32.mrf.mxu0
      %v2983 = vadd.f32 %v2894, %v2982
      %v2984 = vpop.f32.mrf.mxu0
      %v2985 = vadd.f32 %v2896, %v2984
      %2986 = vmatmul.bf16.gmra.mxu0 %v1995
      %v2987 = vpop.f32.mrf.mxu0
      %v2988 = vadd.f32 %v2899, %v2987
      %v2989 = vpop.f32.mrf.mxu0
      %v2990 = vadd.f32 %v2901, %v2989
      %2991 = vmatmul.bf16.gmra.mxu0 %v2007
      %v2992 = vpop.f32.mrf.mxu0
      %v2993 = vadd.f32 %v2904, %v2992
      %v2994 = vpop.f32.mrf.mxu0
      %v2995 = vadd.f32 %v2906, %v2994
      %2996 = vmatmul.bf16.gmra.mxu0 %v2019
      %v2997 = vpop.f32.mrf.mxu0
      %v2998 = vadd.f32 %v2909, %v2997
      %v2999 = vpop.f32.mrf.mxu0
      %v3000 = vadd.f32 %v2911, %v2999
      %3001 = vmatmul.bf16.gmra.mxu0 %v2031
      %v3002 = vpop.f32.mrf.mxu0
      %v3003 = vadd.f32 %v2914, %v3002
      %v3004 = vpop.f32.mrf.mxu0
      %v3005 = vadd.f32 %v2916, %v3004
      %3006 = vmatmul.bf16.gmra.mxu0 %v2043
      %v3007 = vpop.f32.mrf.mxu0
      %v3008 = vadd.f32 %v2919, %v3007
      %v3009 = vpop.f32.mrf.mxu0
      %v3010 = vadd.f32 %v2921, %v3009
      %3011 = vmatmul.bf16.gmra.mxu0 %v2055
      %v3012 = vpop.f32.mrf.mxu0
      %v3013 = vadd.f32 %v2924, %v3012
      %v3014 = vpop.f32.mrf.mxu0
      %v3015 = vadd.f32 %v2926, %v3014
      %3016 = vmatmul.bf16.gmra.mxu0 %v2067
      %v3017 = vpop.f32.mrf.mxu0
      %v3018 = vadd.f32 %v2929, %v3017
      %v3019 = vpop.f32.mrf.mxu0
      %v3020 = vadd.f32 %v2931, %v3019
      %3021 = vmatmul.bf16.gmra.mxu0 %v2079
      %v3022 = vpop.f32.mrf.mxu0
      %v3023 = vadd.f32 %v2934, %v3022
      %v3024 = vpop.f32.mrf.mxu0
      %v3025 = vadd.f32 %v2936, %v3024
      %3026 = vmatmul.bf16.gmra.mxu0 %v2091
      %v3027 = vpop.f32.mrf.mxu0
      %v3028 = vadd.f32 %v2939, %v3027
      %v3029 = vpop.f32.mrf.mxu0
      %v3030 = vadd.f32 %v2941, %v3029
      %3031 = vdwg.mxu0
      %3032 = vmatpush.bf16.msra.mxu0 %v2522
      %3033 = vmatpush.bf16.msra.mxu0 %v2521
      %3034 = vmatpush.bf16.msra.mxu0 %v2520
      %3035 = vmatpush.bf16.msra.mxu0 %v2519
      %3036 = vmatpush.bf16.msra.mxu0 %v2518
      %3037 = vmatpush.bf16.msra.mxu0 %v2517
      %3038 = vmatpush.bf16.msra.mxu0 %v2516
      %3039 = vmatpush.bf16.msra.mxu0 %v2515
      %3040 = vmatmul.bf16.gmra.mxu0 %v1923
      %v3041 = vpop.f32.mrf.mxu0
      %v3042 = vadd.f32 %v2953, %v3041
      %v3043 = vpop.f32.mrf.mxu0
      %v3044 = vadd.f32 %v2955, %v3043
      %3045 = vmatmul.bf16.gmra.mxu0 %v1935
      %v3046 = vpop.f32.mrf.mxu0
      %v3047 = vadd.f32 %v2958, %v3046
      %v3048 = vpop.f32.mrf.mxu0
      %v3049 = vadd.f32 %v2960, %v3048
      %3050 = vmatmul.bf16.gmra.mxu0 %v1947
      %v3051 = vpop.f32.mrf.mxu0
      %v3052 = vadd.f32 %v2963, %v3051
      %v3053 = vpop.f32.mrf.mxu0
      %v3054 = vadd.f32 %v2965, %v3053
      %3055 = vmatmul.bf16.gmra.mxu0 %v1959
      %v3056 = vpop.f32.mrf.mxu0
      %v3057 = vadd.f32 %v2968, %v3056
      %v3058 = vpop.f32.mrf.mxu0
      %v3059 = vadd.f32 %v2970, %v3058
      %3060 = vmatmul.bf16.gmra.mxu0 %v1971
      %v3061 = vpop.f32.mrf.mxu0
      %v3062 = vadd.f32 %v2973, %v3061
      %v3063 = vpop.f32.mrf.mxu0
      %v3064 = vadd.f32 %v2975, %v3063
      %3065 = vmatmul.bf16.gmra.mxu0 %v1983
      %v3066 = vpop.f32.mrf.mxu0
      %v3067 = vadd.f32 %v2978, %v3066
      %v3068 = vpop.f32.mrf.mxu0
      %v3069 = vadd.f32 %v2980, %v3068
      %3070 = vmatmul.bf16.gmra.mxu0 %v1995
      %v3071 = vpop.f32.mrf.mxu0
      %v3072 = vadd.f32 %v2983, %v3071
      %v3073 = vpop.f32.mrf.mxu0
      %v3074 = vadd.f32 %v2985, %v3073
      %3075 = vmatmul.bf16.gmra.mxu0 %v2007
      %v3076 = vpop.f32.mrf.mxu0
      %v3077 = vadd.f32 %v2988, %v3076
      %v3078 = vpop.f32.mrf.mxu0
      %v3079 = vadd.f32 %v2990, %v3078
      %3080 = vmatmul.bf16.gmra.mxu0 %v2019
      %v3081 = vpop.f32.mrf.mxu0
      %v3082 = vadd.f32 %v2993, %v3081
      %v3083 = vpop.f32.mrf.mxu0
      %v3084 = vadd.f32 %v2995, %v3083
      %3085 = vmatmul.bf16.gmra.mxu0 %v2031
      %v3086 = vpop.f32.mrf.mxu0
      %v3087 = vadd.f32 %v2998, %v3086
      %v3088 = vpop.f32.mrf.mxu0
      %v3089 = vadd.f32 %v3000, %v3088
      %3090 = vmatmul.bf16.gmra.mxu0 %v2043
      %v3091 = vpop.f32.mrf.mxu0
      %v3092 = vadd.f32 %v3003, %v3091
      %v3093 = vpop.f32.mrf.mxu0
      %v3094 = vadd.f32 %v3005, %v3093
      %3095 = vmatmul.bf16.gmra.mxu0 %v2055
      %v3096 = vpop.f32.mrf.mxu0
      %v3097 = vadd.f32 %v3008, %v3096
      %v3098 = vpop.f32.mrf.mxu0
      %v3099 = vadd.f32 %v3010, %v3098
      %3100 = vmatmul.bf16.gmra.mxu0 %v2067
      %v3101 = vpop.f32.mrf.mxu0
      %v3102 = vadd.f32 %v3013, %v3101
      %v3103 = vpop.f32.mrf.mxu0
      %v3104 = vadd.f32 %v3015, %v3103
      %3105 = vmatmul.bf16.gmra.mxu0 %v2079
      %v3106 = vpop.f32.mrf.mxu0
      %v3107 = vadd.f32 %v3018, %v3106
      %v3108 = vpop.f32.mrf.mxu0
      %v3109 = vadd.f32 %v3020, %v3108
      %3110 = vmatmul.bf16.gmra.mxu0 %v2091
      %v3111 = vpop.f32.mrf.mxu0
      %v3112 = vadd.f32 %v3023, %v3111
      %v3113 = vpop.f32.mrf.mxu0
      %v3114 = vadd.f32 %v3025, %v3113
      %3115 = vmatmul.bf16.gmra.mxu0 %v2103
      %v3116 = vpop.f32.mrf.mxu0
      %v3117 = vadd.f32 %v3028, %v3116
      %v3118 = vpop.f32.mrf.mxu0
      %v3119 = vadd.f32 %v3030, %v3118
      %3120 = vdwg.mxu0
      %3121 = vmatpush.bf16.msra.mxu0 %v2530
      %3122 = vmatpush.bf16.msra.mxu0 %v2529
      %3123 = vmatpush.bf16.msra.mxu0 %v2528
      %3124 = vmatpush.bf16.msra.mxu0 %v2527
      %3125 = vmatpush.bf16.msra.mxu0 %v2526
      %3126 = vmatpush.bf16.msra.mxu0 %v2525
      %3127 = vmatpush.bf16.msra.mxu0 %v2524
      %3128 = vmatpush.bf16.msra.mxu0 %v2523
      %3129 = vmatmul.bf16.gmra.mxu0 %v1935
      %v3130 = vpop.f32.mrf.mxu0
      %v3131 = vadd.f32 %v3042, %v3130
      %v3132 = vpop.f32.mrf.mxu0
      %v3133 = vadd.f32 %v3044, %v3132
      %3134 = vmatmul.bf16.gmra.mxu0 %v1947
      %v3135 = vpop.f32.mrf.mxu0
      %v3136 = vadd.f32 %v3047, %v3135
      %v3137 = vpop.f32.mrf.mxu0
      %v3138 = vadd.f32 %v3049, %v3137
      %3139 = vmatmul.bf16.gmra.mxu0 %v1959
      %v3140 = vpop.f32.mrf.mxu0
      %v3141 = vadd.f32 %v3052, %v3140
      %v3142 = vpop.f32.mrf.mxu0
      %v3143 = vadd.f32 %v3054, %v3142
      %3144 = vmatmul.bf16.gmra.mxu0 %v1971
      %v3145 = vpop.f32.mrf.mxu0
      %v3146 = vadd.f32 %v3057, %v3145
      %v3147 = vpop.f32.mrf.mxu0
      %v3148 = vadd.f32 %v3059, %v3147
      %3149 = vmatmul.bf16.gmra.mxu0 %v1983
      %v3150 = vpop.f32.mrf.mxu0
      %v3151 = vadd.f32 %v3062, %v3150
      %v3152 = vpop.f32.mrf.mxu0
      %v3153 = vadd.f32 %v3064, %v3152
      %3154 = vmatmul.bf16.gmra.mxu0 %v1995
      %v3155 = vpop.f32.mrf.mxu0
      %v3156 = vadd.f32 %v3067, %v3155
      %v3157 = vpop.f32.mrf.mxu0
      %v3158 = vadd.f32 %v3069, %v3157
      %3159 = vmatmul.bf16.gmra.mxu0 %v2007
      %v3160 = vpop.f32.mrf.mxu0
      %v3161 = vadd.f32 %v3072, %v3160
      %v3162 = vpop.f32.mrf.mxu0
      %v3163 = vadd.f32 %v3074, %v3162
      %3164 = vmatmul.bf16.gmra.mxu0 %v2019
      %v3165 = vpop.f32.mrf.mxu0
      %v3166 = vadd.f32 %v3077, %v3165
      %v3167 = vpop.f32.mrf.mxu0
      %v3168 = vadd.f32 %v3079, %v3167
      %3169 = vmatmul.bf16.gmra.mxu0 %v2031
      %v3170 = vpop.f32.mrf.mxu0
      %v3171 = vadd.f32 %v3082, %v3170
      %v3172 = vpop.f32.mrf.mxu0
      %v3173 = vadd.f32 %v3084, %v3172
      %3174 = vmatmul.bf16.gmra.mxu0 %v2043
      %v3175 = vpop.f32.mrf.mxu0
      %v3176 = vadd.f32 %v3087, %v3175
      %v3177 = vpop.f32.mrf.mxu0
      %v3178 = vadd.f32 %v3089, %v3177
      %3179 = vmatmul.bf16.gmra.mxu0 %v2055
      %v3180 = vpop.f32.mrf.mxu0
      %v3181 = vadd.f32 %v3092, %v3180
      %v3182 = vpop.f32.mrf.mxu0
      %v3183 = vadd.f32 %v3094, %v3182
      %3184 = vmatmul.bf16.gmra.mxu0 %v2067
      %v3185 = vpop.f32.mrf.mxu0
      %v3186 = vadd.f32 %v3097, %v3185
      %v3187 = vpop.f32.mrf.mxu0
      %v3188 = vadd.f32 %v3099, %v3187
      %3189 = vmatmul.bf16.gmra.mxu0 %v2079
      %v3190 = vpop.f32.mrf.mxu0
      %v3191 = vadd.f32 %v3102, %v3190
      %v3192 = vpop.f32.mrf.mxu0
      %v3193 = vadd.f32 %v3104, %v3192
      %3194 = vmatmul.bf16.gmra.mxu0 %v2091
      %v3195 = vpop.f32.mrf.mxu0
      %v3196 = vadd.f32 %v3107, %v3195
      %v3197 = vpop.f32.mrf.mxu0
      %v3198 = vadd.f32 %v3109, %v3197
      %3199 = vmatmul.bf16.gmra.mxu0 %v2103
      %v3200 = vpop.f32.mrf.mxu0
      %v3201 = vadd.f32 %v3112, %v3200
      %v3202 = vpop.f32.mrf.mxu0
      %v3203 = vadd.f32 %v3114, %v3202
      %3204 = vmatmul.bf16.gmra.mxu0 %v2115
      %v3205 = vpop.f32.mrf.mxu0
      %v3206 = vadd.f32 %v3117, %v3205
      %v3207 = vpop.f32.mrf.mxu0
      %v3208 = vadd.f32 %v3119, %v3207
      %3209 = vdwg.mxu0
      %v3210 = vld [vmem:[#allocation2] sm:$0xff]
      %v3211 = vld [vmem:[#allocation2 + $0x8] sm:$0xff]
      %v3212 = vld [vmem:[#allocation2 + $0x10] sm:$0xff]
      %v3213 = vld [vmem:[#allocation2 + $0x18] sm:$0xff]
      %v3214 = vld [vmem:[#allocation2 + $0x20] sm:$0xff]
      %v3215 = vld [vmem:[#allocation2 + $0x28] sm:$0xff]
      %v3216 = vld [vmem:[#allocation2 + $0x30] sm:$0xff]
      %v3217 = vld [vmem:[#allocation2 + $0x38] sm:$0xff]
      %v3218 = vld [vmem:[#allocation2 + $0x40] sm:$0xff]
      %v3219 = vld [vmem:[#allocation2 + $0x48] sm:$0xff]
      %v3220 = vld [vmem:[#allocation2 + $0x50] sm:$0xff]
      %v3221 = vld [vmem:[#allocation2 + $0x58] sm:$0xff]
      %v3222 = vld [vmem:[#allocation2 + $0x60] sm:$0xff]
      %v3223 = vld [vmem:[#allocation2 + $0x68] sm:$0xff]
      %v3224 = vld [vmem:[#allocation2 + $0x70] sm:$0xff]
      %v3225 = vld [vmem:[#allocation2 + $0x78] sm:$0xff]
      %v3226 = vld [vmem:[#allocation2 + $0x80] sm:$0xff]
      %v3227 = vld [vmem:[#allocation2 + $0x88] sm:$0xff]
      %v3228 = vld [vmem:[#allocation2 + $0x90] sm:$0xff]
      %v3229 = vld [vmem:[#allocation2 + $0x98] sm:$0xff]
      %v3230 = vld [vmem:[#allocation2 + $0xa0] sm:$0xff]
      %v3231 = vld [vmem:[#allocation2 + $0xa8] sm:$0xff]
      %v3232 = vld [vmem:[#allocation2 + $0xb0] sm:$0xff]
      %v3233 = vld [vmem:[#allocation2 + $0xb8] sm:$0xff]
      %v3234 = vld [vmem:[#allocation2 + $0xc0] sm:$0xff]
      %v3235 = vld [vmem:[#allocation2 + $0xc8] sm:$0xff]
      %v3236 = vld [vmem:[#allocation2 + $0xd0] sm:$0xff]
      %v3237 = vld [vmem:[#allocation2 + $0xd8] sm:$0xff]
      %v3238 = vld [vmem:[#allocation2 + $0xe0] sm:$0xff]
      %v3239 = vld [vmem:[#allocation2 + $0xe8] sm:$0xff]
      %v3240 = vld [vmem:[#allocation2 + $0xf0] sm:$0xff]
      %v3241 = vld [vmem:[#allocation2 + $0xf8] sm:$0xff]
      %v3242 = vadd.f32 %v3210, %v3131
      %v3243 = vadd.f32 %v3211, %v3133
      %v3244 = vadd.f32 %v3212, %v3136
      %v3245 = vadd.f32 %v3213, %v3138
      %v3246 = vadd.f32 %v3214, %v3141
      %v3247 = vadd.f32 %v3215, %v3143
      %v3248 = vadd.f32 %v3216, %v3146
      %v3249 = vadd.f32 %v3217, %v3148
      %v3250 = vadd.f32 %v3218, %v3151
      %v3251 = vadd.f32 %v3219, %v3153
      %v3252 = vadd.f32 %v3220, %v3156
      %v3253 = vadd.f32 %v3221, %v3158
      %v3254 = vadd.f32 %v3222, %v3161
      %v3255 = vadd.f32 %v3223, %v3163
      %v3256 = vadd.f32 %v3224, %v3166
      %v3257 = vadd.f32 %v3225, %v3168
      %v3258 = vadd.f32 %v3226, %v3171
      %v3259 = vadd.f32 %v3227, %v3173
      %v3260 = vadd.f32 %v3228, %v3176
      %v3261 = vadd.f32 %v3229, %v3178
      %v3262 = vadd.f32 %v3230, %v3181
      %v3263 = vadd.f32 %v3231, %v3183
      %v3264 = vadd.f32 %v3232, %v3186
      %v3265 = vadd.f32 %v3233, %v3188
      %v3266 = vadd.f32 %v3234, %v3191
      %v3267 = vadd.f32 %v3235, %v3193
      %v3268 = vadd.f32 %v3236, %v3196
      %v3269 = vadd.f32 %v3237, %v3198
      %v3270 = vadd.f32 %v3238, %v3201
      %v3271 = vadd.f32 %v3239, %v3203
      %v3272 = vadd.f32 %v3240, %v3206
      %v3273 = vadd.f32 %v3241, %v3208
      %3274 = vst [vmem:[#allocation2] sm:$0xff] %v3242
      %3275 = vst [vmem:[#allocation2 + $0x8] sm:$0xff] %v3243
      %3276 = vst [vmem:[#allocation2 + $0x10] sm:$0xff] %v3244
      %3277 = vst [vmem:[#allocation2 + $0x18] sm:$0xff] %v3245
      %3278 = vst [vmem:[#allocation2 + $0x20] sm:$0xff] %v3246
      %3279 = vst [vmem:[#allocation2 + $0x28] sm:$0xff] %v3247
      %3280 = vst [vmem:[#allocation2 + $0x30] sm:$0xff] %v3248
      %3281 = vst [vmem:[#allocation2 + $0x38] sm:$0xff] %v3249
      %3282 = vst [vmem:[#allocation2 + $0x40] sm:$0xff] %v3250
      %3283 = vst [vmem:[#allocation2 + $0x48] sm:$0xff] %v3251
      %3284 = vst [vmem:[#allocation2 + $0x50] sm:$0xff] %v3252
      %3285 = vst [vmem:[#allocation2 + $0x58] sm:$0xff] %v3253
      %3286 = vst [vmem:[#allocation2 + $0x60] sm:$0xff] %v3254
      %3287 = vst [vmem:[#allocation2 + $0x68] sm:$0xff] %v3255
      %3288 = vst [vmem:[#allocation2 + $0x70] sm:$0xff] %v3256
      %3289 = vst [vmem:[#allocation2 + $0x78] sm:$0xff] %v3257
      %3290 = vst [vmem:[#allocation2 + $0x80] sm:$0xff] %v3258
      %3291 = vst [vmem:[#allocation2 + $0x88] sm:$0xff] %v3259
      %3292 = vst [vmem:[#allocation2 + $0x90] sm:$0xff] %v3260
      %3293 = vst [vmem:[#allocation2 + $0x98] sm:$0xff] %v3261
      %3294 = vst [vmem:[#allocation2 + $0xa0] sm:$0xff] %v3262
      %3295 = vst [vmem:[#allocation2 + $0xa8] sm:$0xff] %v3263
      %3296 = vst [vmem:[#allocation2 + $0xb0] sm:$0xff] %v3264
      %3297 = vst [vmem:[#allocation2 + $0xb8] sm:$0xff] %v3265
      %3298 = vst [vmem:[#allocation2 + $0xc0] sm:$0xff] %v3266
      %3299 = vst [vmem:[#allocation2 + $0xc8] sm:$0xff] %v3267
      %3300 = vst [vmem:[#allocation2 + $0xd0] sm:$0xff] %v3268
      %3301 = vst [vmem:[#allocation2 + $0xd8] sm:$0xff] %v3269
      %3302 = vst [vmem:[#allocation2 + $0xe0] sm:$0xff] %v3270
      %3303 = vst [vmem:[#allocation2 + $0xe8] sm:$0xff] %v3271
      %3304 = vst [vmem:[#allocation2 + $0xf0] sm:$0xff] %v3272
      %3305 = vst [vmem:[#allocation2 + $0xf8] sm:$0xff] %v3273
      %v3306 = vld [vmem:[%s307] sm:$0xe]
      %v3307 = vld [vmem:[%s307 + $0x4] sm:$0xf]
      %v3308 = vld [vmem:[%s307 + $0x8] sm:$0x1]
      %v3309 = vld [vmem:[%s307 + $0xc] sm:$0xe]
      %v3310 = vld [vmem:[%s307 + $0x10] sm:$0xf]
      %v3311 = vld [vmem:[%s307 + $0x14] sm:$0x1]
      %v3312 = vld [vmem:[%s307 + $0x18] sm:$0xe]
      %v3313 = vld [vmem:[%s307 + $0x1c] sm:$0xf]
      %v3314 = vld [vmem:[%s307 + $0x20] sm:$0x1]
      %v3315 = vld [vmem:[%s307 + $0x24] sm:$0xe]
      %v3316 = vld [vmem:[%s307 + $0x28] sm:$0xf]
      %v3317 = vld [vmem:[%s307 + $0x2c] sm:$0x1]
      %v3318 = vld [vmem:[%s307 + $0x30] sm:$0xe]
      %v3319 = vld [vmem:[%s307 + $0x34] sm:$0xf]
      %v3320 = vld [vmem:[%s307 + $0x38] sm:$0x1]
      %v3321 = vld [vmem:[%s307 + $0x3c] sm:$0xe]
      %v3322 = vld [vmem:[%s307 + $0x40] sm:$0xf]
      %v3323 = vld [vmem:[%s307 + $0x44] sm:$0x1]
      %v3324 = vld [vmem:[%s307 + $0x48] sm:$0xe]
      %v3325 = vld [vmem:[%s307 + $0x4c] sm:$0xf]
      %v3326 = vld [vmem:[%s307 + $0x50] sm:$0x1]
      %v3327 = vld [vmem:[%s307 + $0x54] sm:$0xe]
      %v3328 = vld [vmem:[%s307 + $0x58] sm:$0xf]
      %v3329 = vld [vmem:[%s307 + $0x5c] sm:$0x1]
      %v3330 = vld [vmem:[%s307 + $0x60] sm:$0xe]
      %v3331 = vld [vmem:[%s307 + $0x64] sm:$0xf]
      %v3332 = vld [vmem:[%s307 + $0x68] sm:$0x1]
      %v3333 = vld [vmem:[%s307 + $0x6c] sm:$0xe]
      %v3334 = vld [vmem:[%s307 + $0x70] sm:$0xf]
      %v3335 = vld [vmem:[%s307 + $0x74] sm:$0x1]
      %v3336 = vld [vmem:[%s307 + $0x78] sm:$0xe]
      %v3337 = vld [vmem:[%s307 + $0x7c] sm:$0xf]
      %v3338 = vld [vmem:[%s307 + $0x80] sm:$0x1]
      %v3339 = vld [vmem:[%s307 + $0x84] sm:$0xe]
      %v3340 = vld [vmem:[%s307 + $0x88] sm:$0xf]
      %v3341 = vld [vmem:[%s307 + $0x8c] sm:$0x1]
      %v3342 = vld [vmem:[%s307 + $0x90] sm:$0xe]
      %v3343 = vld [vmem:[%s307 + $0x94] sm:$0xf]
      %v3344 = vld [vmem:[%s307 + $0x98] sm:$0x1]
      %v3345 = vld [vmem:[%s307 + $0x9c] sm:$0xe]
      %v3346 = vld [vmem:[%s307 + $0xa0] sm:$0xf]
      %v3347 = vld [vmem:[%s307 + $0xa4] sm:$0x1]
      %v3348 = vld [vmem:[%s307 + $0xa8] sm:$0xe]
      %v3349 = vld [vmem:[%s307 + $0xac] sm:$0xf]
      %v3350 = vld [vmem:[%s307 + $0xb0] sm:$0x1]
      %v3351 = vld [vmem:[%s307 + $0xb4] sm:$0xe]
      %v3352 = vld [vmem:[%s307 + $0xb8] sm:$0xf]
      %v3353 = vld [vmem:[%s307 + $0xbc] sm:$0x1]
      %v3354 = vld [vmem:[%s307 + $0xc0] sm:$0xe]
      %v3355 = vld [vmem:[%s307 + $0xc4] sm:$0xf]
      %v3356 = vld [vmem:[%s307 + $0xc8] sm:$0x1]
      %v3357 = vld [vmem:[%s307 + $0xcc] sm:$0xe]
      %v3358 = vld [vmem:[%s307 + $0xd0] sm:$0xf]
      %v3359 = vld [vmem:[%s307 + $0xd4] sm:$0x1]
      %v3360 = vld [vmem:[%s307 + $0xd8] sm:$0xe]
      %v3361 = vld [vmem:[%s307 + $0xdc] sm:$0xf]
      %v3362 = vld [vmem:[%s307 + $0xe0] sm:$0x1]
      %v3363 = vld [vmem:[%s307 + $0xe4] sm:$0xe]
      %v3364 = vld [vmem:[%s307 + $0xe8] sm:$0xf]
      %v3365 = vld [vmem:[%s307 + $0xec] sm:$0x1]
      %v3366 = vld [vmem:[%s307 + $0xf0] sm:$0xe]
      %v3367 = vld [vmem:[%s307 + $0xf4] sm:$0xf]
      %v3368 = vld [vmem:[%s307 + $0xf8] sm:$0x1]
      %v3369 = vld [vmem:[%s307 + $0xfc] sm:$0xe]
      %v3370 = vld [vmem:[%s307 + $0x100] sm:$0xf]
      %v3371 = vld [vmem:[%s307 + $0x104] sm:$0x1]
      %v3420 = vunpack.c.l.b16 %v3306
      %v3421 = vunpack.c.l.b16 %v3307
      %v3422 = vunpack.c.l.b16 %v3308
      %v3423 = vunpack.c.l.b16 %v3309
      %v3424 = vunpack.c.l.b16 %v3310
      %v3425 = vunpack.c.l.b16 %v3311
      %v3426 = vunpack.c.l.b16 %v3312
      %v3427 = vunpack.c.l.b16 %v3313
      %v3428 = vunpack.c.l.b16 %v3314
      %v3429 = vunpack.c.l.b16 %v3315
      %v3430 = vunpack.c.l.b16 %v3316
      %v3431 = vunpack.c.l.b16 %v3317
      %v3432 = vunpack.c.l.b16 %v3318
      %v3433 = vunpack.c.l.b16 %v3319
      %v3434 = vunpack.c.l.b16 %v3320
      %v3435 = vunpack.c.l.b16 %v3321
      %v3436 = vunpack.c.l.b16 %v3322
      %v3437 = vunpack.c.l.b16 %v3323
      %v3438 = vunpack.c.l.b16 %v3324
      %v3439 = vunpack.c.l.b16 %v3325
      %v3440 = vunpack.c.l.b16 %v3326
      %v3441 = vunpack.c.l.b16 %v3327
      %v3442 = vunpack.c.l.b16 %v3328
      %v3443 = vunpack.c.l.b16 %v3329
      %v3444 = vunpack.c.l.b16 %v3330
      %v3445 = vunpack.c.l.b16 %v3331
      %v3446 = vunpack.c.l.b16 %v3332
      %v3447 = vunpack.c.l.b16 %v3333
      %v3448 = vunpack.c.l.b16 %v3334
      %v3449 = vunpack.c.l.b16 %v3335
      %v3450 = vunpack.c.l.b16 %v3336
      %v3451 = vunpack.c.l.b16 %v3337
      %v3452 = vunpack.c.l.b16 %v3338
      %v3453 = vunpack.c.l.b16 %v3339
      %v3454 = vunpack.c.l.b16 %v3340
      %v3455 = vunpack.c.l.b16 %v3341
      %v3456 = vunpack.c.l.b16 %v3342
      %v3457 = vunpack.c.l.b16 %v3343
      %v3458 = vunpack.c.l.b16 %v3344
      %v3459 = vunpack.c.l.b16 %v3345
      %v3460 = vunpack.c.l.b16 %v3346
      %v3461 = vunpack.c.l.b16 %v3347
      %v3462 = vunpack.c.l.b16 %v3348
      %v3463 = vunpack.c.l.b16 %v3349
      %v3464 = vunpack.c.l.b16 %v3350
      %v3465 = vunpack.c.l.b16 %v3351
      %v3466 = vunpack.c.l.b16 %v3352
      %v3467 = vunpack.c.l.b16 %v3353
      %v3468 = vpack.c.b16 %v3421, %v3420
      %v3469 = vpack.c.b16 %v3422, %v3422
      %v3470 = vpack.c.b16 %v3424, %v3423
      %v3471 = vpack.c.b16 %v3425, %v3425
      %v3472 = vpack.c.b16 %v3427, %v3426
      %v3473 = vpack.c.b16 %v3428, %v3428
      %v3474 = vpack.c.b16 %v3430, %v3429
      %v3475 = vpack.c.b16 %v3431, %v3431
      %v3476 = vpack.c.b16 %v3433, %v3432
      %v3477 = vpack.c.b16 %v3434, %v3434
      %v3478 = vpack.c.b16 %v3436, %v3435
      %v3479 = vpack.c.b16 %v3437, %v3437
      %v3480 = vpack.c.b16 %v3439, %v3438
      %v3481 = vpack.c.b16 %v3440, %v3440
      %v3482 = vpack.c.b16 %v3442, %v3441
      %v3483 = vpack.c.b16 %v3443, %v3443
      %v3484 = vpack.c.b16 %v3445, %v3444
      %v3485 = vpack.c.b16 %v3446, %v3446
      %v3486 = vpack.c.b16 %v3448, %v3447
      %v3487 = vpack.c.b16 %v3449, %v3449
      %v3488 = vpack.c.b16 %v3451, %v3450
      %v3489 = vpack.c.b16 %v3452, %v3452
      %v3490 = vpack.c.b16 %v3454, %v3453
      %v3491 = vpack.c.b16 %v3455, %v3455
      %v3492 = vpack.c.b16 %v3457, %v3456
      %v3493 = vpack.c.b16 %v3458, %v3458
      %v3494 = vpack.c.b16 %v3460, %v3459
      %v3495 = vpack.c.b16 %v3461, %v3461
      %v3496 = vpack.c.b16 %v3463, %v3462
      %v3497 = vpack.c.b16 %v3464, %v3464
      %v3498 = vpack.c.b16 %v3466, %v3465
      %v3499 = vpack.c.b16 %v3467, %v3467
      %v3503 = vunpack.c.l.b16 %v3354
      %v3504 = vunpack.c.l.b16 %v3355
      %v3505 = vunpack.c.l.b16 %v3356
      %v3506 = vpack.c.b16 %v3504, %v3503
      %v3507 = vpack.c.b16 %v3505, %v3505
      %v3511 = vunpack.c.l.b16 %v3357
      %v3512 = vunpack.c.l.b16 %v3358
      %v3513 = vunpack.c.l.b16 %v3359
      %v3514 = vpack.c.b16 %v3512, %v3511
      %v3515 = vpack.c.b16 %v3513, %v3513
      %v3519 = vunpack.c.l.b16 %v3360
      %v3520 = vunpack.c.l.b16 %v3361
      %v3521 = vunpack.c.l.b16 %v3362
      %v3522 = vpack.c.b16 %v3520, %v3519
      %v3523 = vpack.c.b16 %v3521, %v3521
      %v3527 = vunpack.c.l.b16 %v3363
      %v3528 = vunpack.c.l.b16 %v3364
      %v3529 = vunpack.c.l.b16 %v3365
      %v3530 = vpack.c.b16 %v3528, %v3527
      %v3531 = vpack.c.b16 %v3529, %v3529
      %v3535 = vunpack.c.l.b16 %v3366
      %v3536 = vunpack.c.l.b16 %v3367
      %v3537 = vunpack.c.l.b16 %v3368
      %v3538 = vpack.c.b16 %v3536, %v3535
      %v3539 = vpack.c.b16 %v3537, %v3537
      %v3543 = vunpack.c.l.b16 %v3369
      %v3544 = vunpack.c.l.b16 %v3370
      %v3545 = vunpack.c.l.b16 %v3371
      %v3546 = vpack.c.b16 %v3544, %v3543
      %v3547 = vpack.c.b16 %v3545, %v3545
      %vm3548 = vcmask 1046528
      %v3549 = vrot.slane %v3468, 1
      %v3550 = vrot.slane %v3469, 1
      %v3551 = vsel %vm3548, %v3549, %v3550
      %v3552 = vrot.slane %v3470, 1
      %v3553 = vrot.slane %v3471, 1
      %v3554 = vsel %vm3548, %v3552, %v3553
      %v3555 = vrot.slane %v3472, 1
      %v3556 = vrot.slane %v3473, 1
      %v3557 = vsel %vm3548, %v3555, %v3556
      %v3558 = vrot.slane %v3474, 1
      %v3559 = vrot.slane %v3475, 1
      %v3560 = vsel %vm3548, %v3558, %v3559
      %v3561 = vrot.slane %v3476, 1
      %v3562 = vrot.slane %v3477, 1
      %v3563 = vsel %vm3548, %v3561, %v3562
      %v3564 = vrot.slane %v3478, 1
      %v3565 = vrot.slane %v3479, 1
      %v3566 = vsel %vm3548, %v3564, %v3565
      %v3567 = vrot.slane %v3480, 1
      %v3568 = vrot.slane %v3481, 1
      %v3569 = vsel %vm3548, %v3567, %v3568
      %v3570 = vrot.slane %v3482, 1
      %v3571 = vrot.slane %v3483, 1
      %v3572 = vsel %vm3548, %v3570, %v3571
      %v3573 = vrot.slane %v3484, 1
      %v3574 = vrot.slane %v3485, 1
      %v3575 = vsel %vm3548, %v3573, %v3574
      %v3576 = vrot.slane %v3486, 1
      %v3577 = vrot.slane %v3487, 1
      %v3578 = vsel %vm3548, %v3576, %v3577
      %v3579 = vrot.slane %v3488, 1
      %v3580 = vrot.slane %v3489, 1
      %v3581 = vsel %vm3548, %v3579, %v3580
      %v3582 = vrot.slane %v3490, 1
      %v3583 = vrot.slane %v3491, 1
      %v3584 = vsel %vm3548, %v3582, %v3583
      %v3585 = vrot.slane %v3492, 1
      %v3586 = vrot.slane %v3493, 1
      %v3587 = vsel %vm3548, %v3585, %v3586
      %v3588 = vrot.slane %v3494, 1
      %v3589 = vrot.slane %v3495, 1
      %v3590 = vsel %vm3548, %v3588, %v3589
      %v3591 = vrot.slane %v3496, 1
      %v3592 = vrot.slane %v3497, 1
      %v3593 = vsel %vm3548, %v3591, %v3592
      %v3594 = vrot.slane %v3498, 1
      %v3595 = vrot.slane %v3499, 1
      %v3596 = vsel %vm3548, %v3594, %v3595
      %v3597 = vrot.slane %v3506, 1
      %v3598 = vrot.slane %v3507, 1
      %v3599 = vsel %vm3548, %v3597, %v3598
      %v3600 = vrot.slane %v3514, 1
      %v3601 = vrot.slane %v3515, 1
      %v3602 = vsel %vm3548, %v3600, %v3601
      %v3603 = vrot.slane %v3522, 1
      %v3604 = vrot.slane %v3523, 1
      %v3605 = vsel %vm3548, %v3603, %v3604
      %v3606 = vrot.slane %v3530, 1
      %v3607 = vrot.slane %v3531, 1
      %v3608 = vsel %vm3548, %v3606, %v3607
      %v3609 = vrot.slane %v3538, 1
      %v3610 = vrot.slane %v3539, 1
      %v3611 = vsel %vm3548, %v3609, %v3610
      %v3612 = vrot.slane %v3546, 1
      %v3613 = vrot.slane %v3547, 1
      %v3614 = vsel %vm3548, %v3612, %v3613
      %s3637 = scalar_lea.vmem %s2, 896
      %v3638 = vld [vmem:[%s3637] sm:$0xf]
      %v3639 = vld [vmem:[%s3637 + $0x4] sm:$0xf]
      %v3640 = vld [vmem:[%s3637 + $0x8] sm:$0xf]
      %v3641 = vld [vmem:[%s3637 + $0xc] sm:$0xf]
      %v3642 = vld [vmem:[%s3637 + $0x10] sm:$0xf]
      %v3643 = vld [vmem:[%s3637 + $0x14] sm:$0xf]
      %v3644 = vld [vmem:[%s3637 + $0x18] sm:$0xf]
      %v3645 = vld [vmem:[%s3637 + $0x1c] sm:$0xf]
      %v3646 = vld [vmem:[%s3637 + $0x20] sm:$0xf]
      %v3647 = vld [vmem:[%s3637 + $0x24] sm:$0xf]
      %v3648 = vld [vmem:[%s3637 + $0x28] sm:$0xf]
      %v3649 = vld [vmem:[%s3637 + $0x2c] sm:$0xf]
      %v3650 = vld [vmem:[%s3637 + $0x30] sm:$0xf]
      %v3651 = vld [vmem:[%s3637 + $0x34] sm:$0xf]
      %v3652 = vld [vmem:[%s3637 + $0x38] sm:$0xf]
      %v3653 = vld [vmem:[%s3637 + $0x3c] sm:$0xf]
      %v3654 = vld [vmem:[%s3637 + $0x40] sm:$0xf]
      %v3655 = vld [vmem:[%s3637 + $0x44] sm:$0xf]
      %v3656 = vld [vmem:[%s3637 + $0x48] sm:$0xf]
      %v3657 = vld [vmem:[%s3637 + $0x4c] sm:$0xf]
      %v3658 = vld [vmem:[%s3637 + $0x50] sm:$0xf]
      %v3659 = vld [vmem:[%s3637 + $0x54] sm:$0xf]
      %v3660 = vld [vmem:[%s3637 + $0x58] sm:$0xf]
      %v3661 = vld [vmem:[%s3637 + $0x5c] sm:$0xf]
      %v3662 = vld [vmem:[%s3637 + $0x60] sm:$0xf]
      %v3663 = vld [vmem:[%s3637 + $0x64] sm:$0xf]
      %v3664 = vld [vmem:[%s3637 + $0x68] sm:$0xf]
      %v3665 = vld [vmem:[%s3637 + $0x6c] sm:$0xf]
      %v3666 = vld [vmem:[%s3637 + $0x70] sm:$0xf]
      %v3667 = vld [vmem:[%s3637 + $0x74] sm:$0xf]
      %v3668 = vld [vmem:[%s3637 + $0x78] sm:$0xf]
      %v3669 = vld [vmem:[%s3637 + $0x7c] sm:$0xf]
      %v3670 = vld [vmem:[%s3637 + $0x80] sm:$0xf]
      %v3671 = vld [vmem:[%s3637 + $0x84] sm:$0xf]
      %v3672 = vld [vmem:[%s3637 + $0x88] sm:$0xf]
      %v3673 = vld [vmem:[%s3637 + $0x8c] sm:$0xf]
      %v3674 = vld [vmem:[%s3637 + $0x90] sm:$0xf]
      %v3675 = vld [vmem:[%s3637 + $0x94] sm:$0xf]
      %v3676 = vld [vmem:[%s3637 + $0x98] sm:$0xf]
      %v3677 = vld [vmem:[%s3637 + $0x9c] sm:$0xf]
      %v3678 = vld [vmem:[%s3637 + $0xa0] sm:$0xf]
      %v3679 = vld [vmem:[%s3637 + $0xa4] sm:$0xf]
      %v3680 = vld [vmem:[%s3637 + $0xa8] sm:$0xf]
      %v3681 = vld [vmem:[%s3637 + $0xac] sm:$0xf]
      %v3682 = vld [vmem:[%s3637 + $0xb0] sm:$0xf]
      %v3683 = vld [vmem:[%s3637 + $0xb4] sm:$0xf]
      %v3684 = vld [vmem:[%s3637 + $0xb8] sm:$0xf]
      %v3685 = vld [vmem:[%s3637 + $0xbc] sm:$0xf]
      %v3686 = vld [vmem:[%s3637 + $0xc0] sm:$0xf]
      %v3687 = vld [vmem:[%s3637 + $0xc4] sm:$0xf]
      %v3688 = vld [vmem:[%s3637 + $0xc8] sm:$0xf]
      %v3689 = vld [vmem:[%s3637 + $0xcc] sm:$0xf]
      %v3690 = vld [vmem:[%s3637 + $0xd0] sm:$0xf]
      %v3691 = vld [vmem:[%s3637 + $0xd4] sm:$0xf]
      %v3692 = vld [vmem:[%s3637 + $0xd8] sm:$0xf]
      %v3693 = vld [vmem:[%s3637 + $0xdc] sm:$0xf]
      %v3694 = vld [vmem:[%s3637 + $0xe0] sm:$0xf]
      %v3695 = vld [vmem:[%s3637 + $0xe4] sm:$0xf]
      %v3696 = vld [vmem:[%s3637 + $0xe8] sm:$0xf]
      %v3697 = vld [vmem:[%s3637 + $0xec] sm:$0xf]
      %v3698 = vld [vmem:[%s3637 + $0xf0] sm:$0xf]
      %v3699 = vld [vmem:[%s3637 + $0xf4] sm:$0xf]
      %v3700 = vld [vmem:[%s3637 + $0xf8] sm:$0xf]
      %v3701 = vld [vmem:[%s3637 + $0xfc] sm:$0xf]
      %v3702 = vld [vmem:[%s3637 + $0x100] sm:$0xf]
      %v3703 = vld [vmem:[%s3637 + $0x104] sm:$0xf]
      %v3704 = vld [vmem:[%s3637 + $0x108] sm:$0xf]
      %v3705 = vld [vmem:[%s3637 + $0x10c] sm:$0xf]
      %v3706 = vld [vmem:[%s3637 + $0x110] sm:$0xf]
      %v3707 = vld [vmem:[%s3637 + $0x114] sm:$0xf]
      %v3708 = vld [vmem:[%s3637 + $0x118] sm:$0xf]
      %v3709 = vld [vmem:[%s3637 + $0x11c] sm:$0xf]
      %v3710 = vld [vmem:[%s3637 + $0x120] sm:$0xf]
      %v3711 = vld [vmem:[%s3637 + $0x124] sm:$0xf]
      %v3712 = vld [vmem:[%s3637 + $0x128] sm:$0xf]
      %v3713 = vld [vmem:[%s3637 + $0x12c] sm:$0xf]
      %v3714 = vld [vmem:[%s3637 + $0x130] sm:$0xf]
      %v3715 = vld [vmem:[%s3637 + $0x134] sm:$0xf]
      %v3716 = vld [vmem:[%s3637 + $0x138] sm:$0xf]
      %v3717 = vld [vmem:[%s3637 + $0x13c] sm:$0xf]
      %v3718 = vld [vmem:[%s3637 + $0x140] sm:$0xf]
      %v3719 = vld [vmem:[%s3637 + $0x144] sm:$0xf]
      %v3720 = vld [vmem:[%s3637 + $0x148] sm:$0xf]
      %v3721 = vld [vmem:[%s3637 + $0x14c] sm:$0xf]
      %v3722 = vld [vmem:[%s3637 + $0x150] sm:$0xf]
      %v3723 = vld [vmem:[%s3637 + $0x154] sm:$0xf]
      %v3724 = vld [vmem:[%s3637 + $0x158] sm:$0xf]
      %v3725 = vld [vmem:[%s3637 + $0x15c] sm:$0xf]
      %v3726 = vld [vmem:[%s3637 + $0x160] sm:$0xf]
      %v3727 = vld [vmem:[%s3637 + $0x164] sm:$0xf]
      %v3728 = vld [vmem:[%s3637 + $0x168] sm:$0xf]
      %v3729 = vld [vmem:[%s3637 + $0x16c] sm:$0xf]
      %v3730 = vld [vmem:[%s3637 + $0x170] sm:$0xf]
      %v3731 = vld [vmem:[%s3637 + $0x174] sm:$0xf]
      %v3732 = vld [vmem:[%s3637 + $0x178] sm:$0xf]
      %v3733 = vld [vmem:[%s3637 + $0x17c] sm:$0xf]
      %v3734 = vld [vmem:[%s3637 + $0x180] sm:$0xf]
      %v3735 = vld [vmem:[%s3637 + $0x184] sm:$0xf]
      %v3736 = vld [vmem:[%s3637 + $0x188] sm:$0xf]
      %v3737 = vld [vmem:[%s3637 + $0x18c] sm:$0xf]
      %v3738 = vld [vmem:[%s3637 + $0x190] sm:$0xf]
      %v3739 = vld [vmem:[%s3637 + $0x194] sm:$0xf]
      %v3740 = vld [vmem:[%s3637 + $0x198] sm:$0xf]
      %v3741 = vld [vmem:[%s3637 + $0x19c] sm:$0xf]
      %v3742 = vld [vmem:[%s3637 + $0x1a0] sm:$0xf]
      %v3743 = vld [vmem:[%s3637 + $0x1a4] sm:$0xf]
      %v3744 = vld [vmem:[%s3637 + $0x1a8] sm:$0xf]
      %v3745 = vld [vmem:[%s3637 + $0x1ac] sm:$0xf]
      %v3746 = vld [vmem:[%s3637 + $0x1b0] sm:$0xf]
      %v3747 = vld [vmem:[%s3637 + $0x1b4] sm:$0xf]
      %v3748 = vld [vmem:[%s3637 + $0x1b8] sm:$0xf]
      %v3749 = vld [vmem:[%s3637 + $0x1bc] sm:$0xf]
      %v3862 = vunpack.c.l.b16 %v3638
      %v3863 = vunpack.c.l.b16 %v3639
      %v3864 = vunpack.c.l.b16 %v3640
      %v3865 = vunpack.c.l.b16 %v3641
      %v3866 = vunpack.c.l.b16 %v3642
      %v3867 = vunpack.c.l.b16 %v3643
      %v3868 = vunpack.c.l.b16 %v3644
      %v3869 = vunpack.c.l.b16 %v3645
      %v3870 = vunpack.c.l.b16 %v3646
      %v3871 = vunpack.c.l.b16 %v3647
      %v3872 = vunpack.c.l.b16 %v3648
      %v3873 = vunpack.c.l.b16 %v3649
      %v3874 = vunpack.c.l.b16 %v3650
      %v3875 = vunpack.c.l.b16 %v3651
      %v3876 = vunpack.c.l.b16 %v3652
      %v3877 = vunpack.c.l.b16 %v3653
      %v3878 = vunpack.c.l.b16 %v3654
      %v3879 = vunpack.c.l.b16 %v3655
      %v3880 = vunpack.c.l.b16 %v3656
      %v3881 = vunpack.c.l.b16 %v3657
      %v3882 = vunpack.c.l.b16 %v3658
      %v3883 = vunpack.c.l.b16 %v3659
      %v3884 = vunpack.c.l.b16 %v3660
      %v3885 = vunpack.c.l.b16 %v3661
      %v3886 = vunpack.c.l.b16 %v3662
      %v3887 = vunpack.c.l.b16 %v3663
      %v3888 = vunpack.c.l.b16 %v3664
      %v3889 = vunpack.c.l.b16 %v3665
      %v3890 = vunpack.c.l.b16 %v3666
      %v3891 = vunpack.c.l.b16 %v3667
      %v3892 = vunpack.c.l.b16 %v3668
      %v3893 = vunpack.c.l.b16 %v3669
      %v3894 = vunpack.c.l.b16 %v3670
      %v3895 = vunpack.c.l.b16 %v3671
      %v3896 = vunpack.c.l.b16 %v3672
      %v3897 = vunpack.c.l.b16 %v3673
      %v3898 = vunpack.c.l.b16 %v3674
      %v3899 = vunpack.c.l.b16 %v3675
      %v3900 = vunpack.c.l.b16 %v3676
      %v3901 = vunpack.c.l.b16 %v3677
      %v3902 = vunpack.c.l.b16 %v3678
      %v3903 = vunpack.c.l.b16 %v3679
      %v3904 = vunpack.c.l.b16 %v3680
      %v3905 = vunpack.c.l.b16 %v3681
      %v3906 = vunpack.c.l.b16 %v3682
      %v3907 = vunpack.c.l.b16 %v3683
      %v3908 = vunpack.c.l.b16 %v3684
      %v3909 = vunpack.c.l.b16 %v3685
      %v3910 = vunpack.c.l.b16 %v3686
      %v3911 = vunpack.c.l.b16 %v3687
      %v3912 = vunpack.c.l.b16 %v3688
      %v3913 = vunpack.c.l.b16 %v3689
      %v3914 = vunpack.c.l.b16 %v3690
      %v3915 = vunpack.c.l.b16 %v3691
      %v3916 = vunpack.c.l.b16 %v3692
      %v3917 = vunpack.c.l.b16 %v3693
      %v3918 = vunpack.c.l.b16 %v3694
      %v3919 = vunpack.c.l.b16 %v3695
      %v3920 = vunpack.c.l.b16 %v3696
      %v3921 = vunpack.c.l.b16 %v3697
      %v3922 = vunpack.c.l.b16 %v3698
      %v3923 = vunpack.c.l.b16 %v3699
      %v3924 = vunpack.c.l.b16 %v3700
      %v3925 = vunpack.c.l.b16 %v3701
      %v3926 = vunpack.c.l.b16 %v3702
      %v3927 = vunpack.c.l.b16 %v3703
      %v3928 = vunpack.c.l.b16 %v3704
      %v3929 = vunpack.c.l.b16 %v3705
      %v3930 = vunpack.c.l.b16 %v3706
      %v3931 = vunpack.c.l.b16 %v3707
      %v3932 = vunpack.c.l.b16 %v3708
      %v3933 = vunpack.c.l.b16 %v3709
      %v3934 = vunpack.c.l.b16 %v3710
      %v3935 = vunpack.c.l.b16 %v3711
      %v3936 = vunpack.c.l.b16 %v3712
      %v3937 = vunpack.c.l.b16 %v3713
      %v3938 = vunpack.c.l.b16 %v3714
      %v3939 = vunpack.c.l.b16 %v3715
      %v3940 = vunpack.c.l.b16 %v3716
      %v3941 = vunpack.c.l.b16 %v3717
      %v3942 = vunpack.c.l.b16 %v3718
      %v3943 = vunpack.c.l.b16 %v3719
      %v3944 = vunpack.c.l.b16 %v3720
      %v3945 = vunpack.c.l.b16 %v3721
      %v3946 = vunpack.c.l.b16 %v3722
      %v3947 = vunpack.c.l.b16 %v3723
      %v3948 = vunpack.c.l.b16 %v3724
      %v3949 = vunpack.c.l.b16 %v3725
      %v3950 = vunpack.c.l.b16 %v3726
      %v3951 = vunpack.c.l.b16 %v3727
      %v3952 = vunpack.c.l.b16 %v3728
      %v3953 = vunpack.c.l.b16 %v3729
      %v3954 = vunpack.c.l.b16 %v3730
      %v3955 = vunpack.c.l.b16 %v3731
      %v3956 = vunpack.c.l.b16 %v3732
      %v3957 = vunpack.c.l.b16 %v3733
      %v3958 = vunpack.c.l.b16 %v3734
      %v3959 = vunpack.c.l.b16 %v3735
      %v3960 = vunpack.c.l.b16 %v3736
      %v3961 = vunpack.c.l.b16 %v3737
      %v3962 = vunpack.c.l.b16 %v3738
      %v3963 = vunpack.c.l.b16 %v3739
      %v3964 = vunpack.c.l.b16 %v3740
      %v3965 = vunpack.c.l.b16 %v3741
      %v3966 = vunpack.c.l.b16 %v3742
      %v3967 = vunpack.c.l.b16 %v3743
      %v3968 = vunpack.c.l.b16 %v3744
      %v3969 = vunpack.c.l.b16 %v3745
      %v3970 = vunpack.c.l.b16 %v3746
      %v3971 = vunpack.c.l.b16 %v3747
      %v3972 = vunpack.c.l.b16 %v3748
      %v3973 = vunpack.c.l.b16 %v3749
      %v3974 = vpack.c.b16 %v3863, %v3862
      %v3975 = vpack.c.b16 %v3865, %v3864
      %v3976 = vpack.c.b16 %v3867, %v3866
      %v3977 = vpack.c.b16 %v3869, %v3868
      %v3978 = vpack.c.b16 %v3871, %v3870
      %v3979 = vpack.c.b16 %v3873, %v3872
      %v3980 = vpack.c.b16 %v3875, %v3874
      %v3981 = vpack.c.b16 %v3877, %v3876
      %v3982 = vpack.c.b16 %v3879, %v3878
      %v3983 = vpack.c.b16 %v3881, %v3880
      %v3984 = vpack.c.b16 %v3883, %v3882
      %v3985 = vpack.c.b16 %v3885, %v3884
      %v3986 = vpack.c.b16 %v3887, %v3886
      %v3987 = vpack.c.b16 %v3889, %v3888
      %v3988 = vpack.c.b16 %v3891, %v3890
      %v3989 = vpack.c.b16 %v3893, %v3892
      %v3990 = vpack.c.b16 %v3895, %v3894
      %v3991 = vpack.c.b16 %v3897, %v3896
      %v3992 = vpack.c.b16 %v3899, %v3898
      %v3993 = vpack.c.b16 %v3901, %v3900
      %v3994 = vpack.c.b16 %v3903, %v3902
      %v3995 = vpack.c.b16 %v3905, %v3904
      %v3996 = vpack.c.b16 %v3907, %v3906
      %v3997 = vpack.c.b16 %v3909, %v3908
      %v3998 = vpack.c.b16 %v3911, %v3910
      %v3999 = vpack.c.b16 %v3913, %v3912
      %v4000 = vpack.c.b16 %v3915, %v3914
      %v4001 = vpack.c.b16 %v3917, %v3916
      %v4002 = vpack.c.b16 %v3919, %v3918
      %v4003 = vpack.c.b16 %v3921, %v3920
      %v4004 = vpack.c.b16 %v3923, %v3922
      %v4005 = vpack.c.b16 %v3925, %v3924
      %v4006 = vpack.c.b16 %v3927, %v3926
      %v4007 = vpack.c.b16 %v3929, %v3928
      %v4008 = vpack.c.b16 %v3931, %v3930
      %v4009 = vpack.c.b16 %v3933, %v3932
      %v4010 = vpack.c.b16 %v3935, %v3934
      %v4011 = vpack.c.b16 %v3937, %v3936
      %v4012 = vpack.c.b16 %v3939, %v3938
      %v4013 = vpack.c.b16 %v3941, %v3940
      %v4014 = vpack.c.b16 %v3943, %v3942
      %v4015 = vpack.c.b16 %v3945, %v3944
      %v4016 = vpack.c.b16 %v3947, %v3946
      %v4017 = vpack.c.b16 %v3949, %v3948
      %v4018 = vpack.c.b16 %v3951, %v3950
      %v4019 = vpack.c.b16 %v3953, %v3952
      %v4020 = vpack.c.b16 %v3955, %v3954
      %v4021 = vpack.c.b16 %v3957, %v3956
      %v4022 = vpack.c.b16 %v3959, %v3958
      %v4023 = vpack.c.b16 %v3961, %v3960
      %v4024 = vpack.c.b16 %v3963, %v3962
      %v4025 = vpack.c.b16 %v3965, %v3964
      %v4026 = vpack.c.b16 %v3967, %v3966
      %v4027 = vpack.c.b16 %v3969, %v3968
      %v4028 = vpack.c.b16 %v3971, %v3970
      %v4029 = vpack.c.b16 %v3973, %v3972
      %4086 = vmatpush.bf16.msra.mxu0 %v3981
      %4087 = vmatpush.bf16.msra.mxu0 %v3980
      %4088 = vmatpush.bf16.msra.mxu0 %v3979
      %4089 = vmatpush.bf16.msra.mxu0 %v3978
      %4090 = vmatpush.bf16.msra.mxu0 %v3977
      %4091 = vmatpush.bf16.msra.mxu0 %v3976
      %4092 = vmatpush.bf16.msra.mxu0 %v3975
      %4093 = vmatpush.bf16.msra.mxu0 %v3974
      %4094 = vmatmul.bf16.gmra.mxu0 %v3551
      %v4095 = vpop.f32.mrf.mxu0
      %v4096 = vadd.f32 0.0, %v4095
      %v4097 = vpop.f32.mrf.mxu0
      %v4098 = vadd.f32 0.0, %v4097
      %4099 = vmatmul.bf16.gmra.mxu0 %v3554
      %v4100 = vpop.f32.mrf.mxu0
      %v4101 = vadd.f32 0.0, %v4100
      %v4102 = vpop.f32.mrf.mxu0
      %v4103 = vadd.f32 0.0, %v4102
      %4104 = vmatmul.bf16.gmra.mxu0 %v3557
      %v4105 = vpop.f32.mrf.mxu0
      %v4106 = vadd.f32 0.0, %v4105
      %v4107 = vpop.f32.mrf.mxu0
      %v4108 = vadd.f32 0.0, %v4107
      %4109 = vmatmul.bf16.gmra.mxu0 %v3560
      %v4110 = vpop.f32.mrf.mxu0
      %v4111 = vadd.f32 0.0, %v4110
      %v4112 = vpop.f32.mrf.mxu0
      %v4113 = vadd.f32 0.0, %v4112
      %4114 = vmatmul.bf16.gmra.mxu0 %v3563
      %v4115 = vpop.f32.mrf.mxu0
      %v4116 = vadd.f32 0.0, %v4115
      %v4117 = vpop.f32.mrf.mxu0
      %v4118 = vadd.f32 0.0, %v4117
      %4119 = vmatmul.bf16.gmra.mxu0 %v3566
      %v4120 = vpop.f32.mrf.mxu0
      %v4121 = vadd.f32 0.0, %v4120
      %v4122 = vpop.f32.mrf.mxu0
      %v4123 = vadd.f32 0.0, %v4122
      %4124 = vmatmul.bf16.gmra.mxu0 %v3569
      %v4125 = vpop.f32.mrf.mxu0
      %v4126 = vadd.f32 0.0, %v4125
      %v4127 = vpop.f32.mrf.mxu0
      %v4128 = vadd.f32 0.0, %v4127
      %4129 = vmatmul.bf16.gmra.mxu0 %v3572
      %v4130 = vpop.f32.mrf.mxu0
      %v4131 = vadd.f32 0.0, %v4130
      %v4132 = vpop.f32.mrf.mxu0
      %v4133 = vadd.f32 0.0, %v4132
      %4134 = vmatmul.bf16.gmra.mxu0 %v3575
      %v4135 = vpop.f32.mrf.mxu0
      %v4136 = vadd.f32 0.0, %v4135
      %v4137 = vpop.f32.mrf.mxu0
      %v4138 = vadd.f32 0.0, %v4137
      %4139 = vmatmul.bf16.gmra.mxu0 %v3578
      %v4140 = vpop.f32.mrf.mxu0
      %v4141 = vadd.f32 0.0, %v4140
      %v4142 = vpop.f32.mrf.mxu0
      %v4143 = vadd.f32 0.0, %v4142
      %4144 = vmatmul.bf16.gmra.mxu0 %v3581
      %v4145 = vpop.f32.mrf.mxu0
      %v4146 = vadd.f32 0.0, %v4145
      %v4147 = vpop.f32.mrf.mxu0
      %v4148 = vadd.f32 0.0, %v4147
      %4149 = vmatmul.bf16.gmra.mxu0 %v3584
      %v4150 = vpop.f32.mrf.mxu0
      %v4151 = vadd.f32 0.0, %v4150
      %v4152 = vpop.f32.mrf.mxu0
      %v4153 = vadd.f32 0.0, %v4152
      %4154 = vmatmul.bf16.gmra.mxu0 %v3587
      %v4155 = vpop.f32.mrf.mxu0
      %v4156 = vadd.f32 0.0, %v4155
      %v4157 = vpop.f32.mrf.mxu0
      %v4158 = vadd.f32 0.0, %v4157
      %4159 = vmatmul.bf16.gmra.mxu0 %v3590
      %v4160 = vpop.f32.mrf.mxu0
      %v4161 = vadd.f32 0.0, %v4160
      %v4162 = vpop.f32.mrf.mxu0
      %v4163 = vadd.f32 0.0, %v4162
      %4164 = vmatmul.bf16.gmra.mxu0 %v3593
      %v4165 = vpop.f32.mrf.mxu0
      %v4166 = vadd.f32 0.0, %v4165
      %v4167 = vpop.f32.mrf.mxu0
      %v4168 = vadd.f32 0.0, %v4167
      %4169 = vmatmul.bf16.gmra.mxu0 %v3596
      %v4170 = vpop.f32.mrf.mxu0
      %v4171 = vadd.f32 0.0, %v4170
      %v4172 = vpop.f32.mrf.mxu0
      %v4173 = vadd.f32 0.0, %v4172
      %4174 = vdwg.mxu0
      %4175 = vmatpush.bf16.msra.mxu0 %v3989
      %4176 = vmatpush.bf16.msra.mxu0 %v3988
      %4177 = vmatpush.bf16.msra.mxu0 %v3987
      %4178 = vmatpush.bf16.msra.mxu0 %v3986
      %4179 = vmatpush.bf16.msra.mxu0 %v3985
      %4180 = vmatpush.bf16.msra.mxu0 %v3984
      %4181 = vmatpush.bf16.msra.mxu0 %v3983
      %4182 = vmatpush.bf16.msra.mxu0 %v3982
      %4183 = vmatmul.bf16.gmra.mxu0 %v3554
      %v4184 = vpop.f32.mrf.mxu0
      %v4185 = vadd.f32 %v4096, %v4184
      %v4186 = vpop.f32.mrf.mxu0
      %v4187 = vadd.f32 %v4098, %v4186
      %4188 = vmatmul.bf16.gmra.mxu0 %v3557
      %v4189 = vpop.f32.mrf.mxu0
      %v4190 = vadd.f32 %v4101, %v4189
      %v4191 = vpop.f32.mrf.mxu0
      %v4192 = vadd.f32 %v4103, %v4191
      %4193 = vmatmul.bf16.gmra.mxu0 %v3560
      %v4194 = vpop.f32.mrf.mxu0
      %v4195 = vadd.f32 %v4106, %v4194
      %v4196 = vpop.f32.mrf.mxu0
      %v4197 = vadd.f32 %v4108, %v4196
      %4198 = vmatmul.bf16.gmra.mxu0 %v3563
      %v4199 = vpop.f32.mrf.mxu0
      %v4200 = vadd.f32 %v4111, %v4199
      %v4201 = vpop.f32.mrf.mxu0
      %v4202 = vadd.f32 %v4113, %v4201
      %4203 = vmatmul.bf16.gmra.mxu0 %v3566
      %v4204 = vpop.f32.mrf.mxu0
      %v4205 = vadd.f32 %v4116, %v4204
      %v4206 = vpop.f32.mrf.mxu0
      %v4207 = vadd.f32 %v4118, %v4206
      %4208 = vmatmul.bf16.gmra.mxu0 %v3569
      %v4209 = vpop.f32.mrf.mxu0
      %v4210 = vadd.f32 %v4121, %v4209
      %v4211 = vpop.f32.mrf.mxu0
      %v4212 = vadd.f32 %v4123, %v4211
      %4213 = vmatmul.bf16.gmra.mxu0 %v3572
      %v4214 = vpop.f32.mrf.mxu0
      %v4215 = vadd.f32 %v4126, %v4214
      %v4216 = vpop.f32.mrf.mxu0
      %v4217 = vadd.f32 %v4128, %v4216
      %4218 = vmatmul.bf16.gmra.mxu0 %v3575
      %v4219 = vpop.f32.mrf.mxu0
      %v4220 = vadd.f32 %v4131, %v4219
      %v4221 = vpop.f32.mrf.mxu0
      %v4222 = vadd.f32 %v4133, %v4221
      %4223 = vmatmul.bf16.gmra.mxu0 %v3578
      %v4224 = vpop.f32.mrf.mxu0
      %v4225 = vadd.f32 %v4136, %v4224
      %v4226 = vpop.f32.mrf.mxu0
      %v4227 = vadd.f32 %v4138, %v4226
      %4228 = vmatmul.bf16.gmra.mxu0 %v3581
      %v4229 = vpop.f32.mrf.mxu0
      %v4230 = vadd.f32 %v4141, %v4229
      %v4231 = vpop.f32.mrf.mxu0
      %v4232 = vadd.f32 %v4143, %v4231
      %4233 = vmatmul.bf16.gmra.mxu0 %v3584
      %v4234 = vpop.f32.mrf.mxu0
      %v4235 = vadd.f32 %v4146, %v4234
      %v4236 = vpop.f32.mrf.mxu0
      %v4237 = vadd.f32 %v4148, %v4236
      %4238 = vmatmul.bf16.gmra.mxu0 %v3587
      %v4239 = vpop.f32.mrf.mxu0
      %v4240 = vadd.f32 %v4151, %v4239
      %v4241 = vpop.f32.mrf.mxu0
      %v4242 = vadd.f32 %v4153, %v4241
      %4243 = vmatmul.bf16.gmra.mxu0 %v3590
      %v4244 = vpop.f32.mrf.mxu0
      %v4245 = vadd.f32 %v4156, %v4244
      %v4246 = vpop.f32.mrf.mxu0
      %v4247 = vadd.f32 %v4158, %v4246
      %4248 = vmatmul.bf16.gmra.mxu0 %v3593
      %v4249 = vpop.f32.mrf.mxu0
      %v4250 = vadd.f32 %v4161, %v4249
      %v4251 = vpop.f32.mrf.mxu0
      %v4252 = vadd.f32 %v4163, %v4251
      %4253 = vmatmul.bf16.gmra.mxu0 %v3596
      %v4254 = vpop.f32.mrf.mxu0
      %v4255 = vadd.f32 %v4166, %v4254
      %v4256 = vpop.f32.mrf.mxu0
      %v4257 = vadd.f32 %v4168, %v4256
      %4258 = vmatmul.bf16.gmra.mxu0 %v3599
      %v4259 = vpop.f32.mrf.mxu0
      %v4260 = vadd.f32 %v4171, %v4259
      %v4261 = vpop.f32.mrf.mxu0
      %v4262 = vadd.f32 %v4173, %v4261
      %4263 = vdwg.mxu0
      %4264 = vmatpush.bf16.msra.mxu0 %v3997
      %4265 = vmatpush.bf16.msra.mxu0 %v3996
      %4266 = vmatpush.bf16.msra.mxu0 %v3995
      %4267 = vmatpush.bf16.msra.mxu0 %v3994
      %4268 = vmatpush.bf16.msra.mxu0 %v3993
      %4269 = vmatpush.bf16.msra.mxu0 %v3992
      %4270 = vmatpush.bf16.msra.mxu0 %v3991
      %4271 = vmatpush.bf16.msra.mxu0 %v3990
      %4272 = vmatmul.bf16.gmra.mxu0 %v3557
      %v4273 = vpop.f32.mrf.mxu0
      %v4274 = vadd.f32 %v4185, %v4273
      %v4275 = vpop.f32.mrf.mxu0
      %v4276 = vadd.f32 %v4187, %v4275
      %4277 = vmatmul.bf16.gmra.mxu0 %v3560
      %v4278 = vpop.f32.mrf.mxu0
      %v4279 = vadd.f32 %v4190, %v4278
      %v4280 = vpop.f32.mrf.mxu0
      %v4281 = vadd.f32 %v4192, %v4280
      %4282 = vmatmul.bf16.gmra.mxu0 %v3563
      %v4283 = vpop.f32.mrf.mxu0
      %v4284 = vadd.f32 %v4195, %v4283
      %v4285 = vpop.f32.mrf.mxu0
      %v4286 = vadd.f32 %v4197, %v4285
      %4287 = vmatmul.bf16.gmra.mxu0 %v3566
      %v4288 = vpop.f32.mrf.mxu0
      %v4289 = vadd.f32 %v4200, %v4288
      %v4290 = vpop.f32.mrf.mxu0
      %v4291 = vadd.f32 %v4202, %v4290
      %4292 = vmatmul.bf16.gmra.mxu0 %v3569
      %v4293 = vpop.f32.mrf.mxu0
      %v4294 = vadd.f32 %v4205, %v4293
      %v4295 = vpop.f32.mrf.mxu0
      %v4296 = vadd.f32 %v4207, %v4295
      %4297 = vmatmul.bf16.gmra.mxu0 %v3572
      %v4298 = vpop.f32.mrf.mxu0
      %v4299 = vadd.f32 %v4210, %v4298
      %v4300 = vpop.f32.mrf.mxu0
      %v4301 = vadd.f32 %v4212, %v4300
      %4302 = vmatmul.bf16.gmra.mxu0 %v3575
      %v4303 = vpop.f32.mrf.mxu0
      %v4304 = vadd.f32 %v4215, %v4303
      %v4305 = vpop.f32.mrf.mxu0
      %v4306 = vadd.f32 %v4217, %v4305
      %4307 = vmatmul.bf16.gmra.mxu0 %v3578
      %v4308 = vpop.f32.mrf.mxu0
      %v4309 = vadd.f32 %v4220, %v4308
      %v4310 = vpop.f32.mrf.mxu0
      %v4311 = vadd.f32 %v4222, %v4310
      %4312 = vmatmul.bf16.gmra.mxu0 %v3581
      %v4313 = vpop.f32.mrf.mxu0
      %v4314 = vadd.f32 %v4225, %v4313
      %v4315 = vpop.f32.mrf.mxu0
      %v4316 = vadd.f32 %v4227, %v4315
      %4317 = vmatmul.bf16.gmra.mxu0 %v3584
      %v4318 = vpop.f32.mrf.mxu0
      %v4319 = vadd.f32 %v4230, %v4318
      %v4320 = vpop.f32.mrf.mxu0
      %v4321 = vadd.f32 %v4232, %v4320
      %4322 = vmatmul.bf16.gmra.mxu0 %v3587
      %v4323 = vpop.f32.mrf.mxu0
      %v4324 = vadd.f32 %v4235, %v4323
      %v4325 = vpop.f32.mrf.mxu0
      %v4326 = vadd.f32 %v4237, %v4325
      %4327 = vmatmul.bf16.gmra.mxu0 %v3590
      %v4328 = vpop.f32.mrf.mxu0
      %v4329 = vadd.f32 %v4240, %v4328
      %v4330 = vpop.f32.mrf.mxu0
      %v4331 = vadd.f32 %v4242, %v4330
      %4332 = vmatmul.bf16.gmra.mxu0 %v3593
      %v4333 = vpop.f32.mrf.mxu0
      %v4334 = vadd.f32 %v4245, %v4333
      %v4335 = vpop.f32.mrf.mxu0
      %v4336 = vadd.f32 %v4247, %v4335
      %4337 = vmatmul.bf16.gmra.mxu0 %v3596
      %v4338 = vpop.f32.mrf.mxu0
      %v4339 = vadd.f32 %v4250, %v4338
      %v4340 = vpop.f32.mrf.mxu0
      %v4341 = vadd.f32 %v4252, %v4340
      %4342 = vmatmul.bf16.gmra.mxu0 %v3599
      %v4343 = vpop.f32.mrf.mxu0
      %v4344 = vadd.f32 %v4255, %v4343
      %v4345 = vpop.f32.mrf.mxu0
      %v4346 = vadd.f32 %v4257, %v4345
      %4347 = vmatmul.bf16.gmra.mxu0 %v3602
      %v4348 = vpop.f32.mrf.mxu0
      %v4349 = vadd.f32 %v4260, %v4348
      %v4350 = vpop.f32.mrf.mxu0
      %v4351 = vadd.f32 %v4262, %v4350
      %4352 = vdwg.mxu0
      %4353 = vmatpush.bf16.msra.mxu0 %v4005
      %4354 = vmatpush.bf16.msra.mxu0 %v4004
      %4355 = vmatpush.bf16.msra.mxu0 %v4003
      %4356 = vmatpush.bf16.msra.mxu0 %v4002
      %4357 = vmatpush.bf16.msra.mxu0 %v4001
      %4358 = vmatpush.bf16.msra.mxu0 %v4000
      %4359 = vmatpush.bf16.msra.mxu0 %v3999
      %4360 = vmatpush.bf16.msra.mxu0 %v3998
      %4361 = vmatmul.bf16.gmra.mxu0 %v3560
      %v4362 = vpop.f32.mrf.mxu0
      %v4363 = vadd.f32 %v4274, %v4362
      %v4364 = vpop.f32.mrf.mxu0
      %v4365 = vadd.f32 %v4276, %v4364
      %4366 = vmatmul.bf16.gmra.mxu0 %v3563
      %v4367 = vpop.f32.mrf.mxu0
      %v4368 = vadd.f32 %v4279, %v4367
      %v4369 = vpop.f32.mrf.mxu0
      %v4370 = vadd.f32 %v4281, %v4369
      %4371 = vmatmul.bf16.gmra.mxu0 %v3566
      %v4372 = vpop.f32.mrf.mxu0
      %v4373 = vadd.f32 %v4284, %v4372
      %v4374 = vpop.f32.mrf.mxu0
      %v4375 = vadd.f32 %v4286, %v4374
      %4376 = vmatmul.bf16.gmra.mxu0 %v3569
      %v4377 = vpop.f32.mrf.mxu0
      %v4378 = vadd.f32 %v4289, %v4377
      %v4379 = vpop.f32.mrf.mxu0
      %v4380 = vadd.f32 %v4291, %v4379
      %4381 = vmatmul.bf16.gmra.mxu0 %v3572
      %v4382 = vpop.f32.mrf.mxu0
      %v4383 = vadd.f32 %v4294, %v4382
      %v4384 = vpop.f32.mrf.mxu0
      %v4385 = vadd.f32 %v4296, %v4384
      %4386 = vmatmul.bf16.gmra.mxu0 %v3575
      %v4387 = vpop.f32.mrf.mxu0
      %v4388 = vadd.f32 %v4299, %v4387
      %v4389 = vpop.f32.mrf.mxu0
      %v4390 = vadd.f32 %v4301, %v4389
      %4391 = vmatmul.bf16.gmra.mxu0 %v3578
      %v4392 = vpop.f32.mrf.mxu0
      %v4393 = vadd.f32 %v4304, %v4392
      %v4394 = vpop.f32.mrf.mxu0
      %v4395 = vadd.f32 %v4306, %v4394
      %4396 = vmatmul.bf16.gmra.mxu0 %v3581
      %v4397 = vpop.f32.mrf.mxu0
      %v4398 = vadd.f32 %v4309, %v4397
      %v4399 = vpop.f32.mrf.mxu0
      %v4400 = vadd.f32 %v4311, %v4399
      %4401 = vmatmul.bf16.gmra.mxu0 %v3584
      %v4402 = vpop.f32.mrf.mxu0
      %v4403 = vadd.f32 %v4314, %v4402
      %v4404 = vpop.f32.mrf.mxu0
      %v4405 = vadd.f32 %v4316, %v4404
      %4406 = vmatmul.bf16.gmra.mxu0 %v3587
      %v4407 = vpop.f32.mrf.mxu0
      %v4408 = vadd.f32 %v4319, %v4407
      %v4409 = vpop.f32.mrf.mxu0
      %v4410 = vadd.f32 %v4321, %v4409
      %4411 = vmatmul.bf16.gmra.mxu0 %v3590
      %v4412 = vpop.f32.mrf.mxu0
      %v4413 = vadd.f32 %v4324, %v4412
      %v4414 = vpop.f32.mrf.mxu0
      %v4415 = vadd.f32 %v4326, %v4414
      %4416 = vmatmul.bf16.gmra.mxu0 %v3593
      %v4417 = vpop.f32.mrf.mxu0
      %v4418 = vadd.f32 %v4329, %v4417
      %v4419 = vpop.f32.mrf.mxu0
      %v4420 = vadd.f32 %v4331, %v4419
      %4421 = vmatmul.bf16.gmra.mxu0 %v3596
      %v4422 = vpop.f32.mrf.mxu0
      %v4423 = vadd.f32 %v4334, %v4422
      %v4424 = vpop.f32.mrf.mxu0
      %v4425 = vadd.f32 %v4336, %v4424
      %4426 = vmatmul.bf16.gmra.mxu0 %v3599
      %v4427 = vpop.f32.mrf.mxu0
      %v4428 = vadd.f32 %v4339, %v4427
      %v4429 = vpop.f32.mrf.mxu0
      %v4430 = vadd.f32 %v4341, %v4429
      %4431 = vmatmul.bf16.gmra.mxu0 %v3602
      %v4432 = vpop.f32.mrf.mxu0
      %v4433 = vadd.f32 %v4344, %v4432
      %v4434 = vpop.f32.mrf.mxu0
      %v4435 = vadd.f32 %v4346, %v4434
      %4436 = vmatmul.bf16.gmra.mxu0 %v3605
      %v4437 = vpop.f32.mrf.mxu0
      %v4438 = vadd.f32 %v4349, %v4437
      %v4439 = vpop.f32.mrf.mxu0
      %v4440 = vadd.f32 %v4351, %v4439
      %4441 = vdwg.mxu0
      %4442 = vmatpush.bf16.msra.mxu0 %v4013
      %4443 = vmatpush.bf16.msra.mxu0 %v4012
      %4444 = vmatpush.bf16.msra.mxu0 %v4011
      %4445 = vmatpush.bf16.msra.mxu0 %v4010
      %4446 = vmatpush.bf16.msra.mxu0 %v4009
      %4447 = vmatpush.bf16.msra.mxu0 %v4008
      %4448 = vmatpush.bf16.msra.mxu0 %v4007
      %4449 = vmatpush.bf16.msra.mxu0 %v4006
      %4450 = vmatmul.bf16.gmra.mxu0 %v3563
      %v4451 = vpop.f32.mrf.mxu0
      %v4452 = vadd.f32 %v4363, %v4451
      %v4453 = vpop.f32.mrf.mxu0
      %v4454 = vadd.f32 %v4365, %v4453
      %4455 = vmatmul.bf16.gmra.mxu0 %v3566
      %v4456 = vpop.f32.mrf.mxu0
      %v4457 = vadd.f32 %v4368, %v4456
      %v4458 = vpop.f32.mrf.mxu0
      %v4459 = vadd.f32 %v4370, %v4458
      %4460 = vmatmul.bf16.gmra.mxu0 %v3569
      %v4461 = vpop.f32.mrf.mxu0
      %v4462 = vadd.f32 %v4373, %v4461
      %v4463 = vpop.f32.mrf.mxu0
      %v4464 = vadd.f32 %v4375, %v4463
      %4465 = vmatmul.bf16.gmra.mxu0 %v3572
      %v4466 = vpop.f32.mrf.mxu0
      %v4467 = vadd.f32 %v4378, %v4466
      %v4468 = vpop.f32.mrf.mxu0
      %v4469 = vadd.f32 %v4380, %v4468
      %4470 = vmatmul.bf16.gmra.mxu0 %v3575
      %v4471 = vpop.f32.mrf.mxu0
      %v4472 = vadd.f32 %v4383, %v4471
      %v4473 = vpop.f32.mrf.mxu0
      %v4474 = vadd.f32 %v4385, %v4473
      %4475 = vmatmul.bf16.gmra.mxu0 %v3578
      %v4476 = vpop.f32.mrf.mxu0
      %v4477 = vadd.f32 %v4388, %v4476
      %v4478 = vpop.f32.mrf.mxu0
      %v4479 = vadd.f32 %v4390, %v4478
      %4480 = vmatmul.bf16.gmra.mxu0 %v3581
      %v4481 = vpop.f32.mrf.mxu0
      %v4482 = vadd.f32 %v4393, %v4481
      %v4483 = vpop.f32.mrf.mxu0
      %v4484 = vadd.f32 %v4395, %v4483
      %4485 = vmatmul.bf16.gmra.mxu0 %v3584
      %v4486 = vpop.f32.mrf.mxu0
      %v4487 = vadd.f32 %v4398, %v4486
      %v4488 = vpop.f32.mrf.mxu0
      %v4489 = vadd.f32 %v4400, %v4488
      %4490 = vmatmul.bf16.gmra.mxu0 %v3587
      %v4491 = vpop.f32.mrf.mxu0
      %v4492 = vadd.f32 %v4403, %v4491
      %v4493 = vpop.f32.mrf.mxu0
      %v4494 = vadd.f32 %v4405, %v4493
      %4495 = vmatmul.bf16.gmra.mxu0 %v3590
      %v4496 = vpop.f32.mrf.mxu0
      %v4497 = vadd.f32 %v4408, %v4496
      %v4498 = vpop.f32.mrf.mxu0
      %v4499 = vadd.f32 %v4410, %v4498
      %4500 = vmatmul.bf16.gmra.mxu0 %v3593
      %v4501 = vpop.f32.mrf.mxu0
      %v4502 = vadd.f32 %v4413, %v4501
      %v4503 = vpop.f32.mrf.mxu0
      %v4504 = vadd.f32 %v4415, %v4503
      %4505 = vmatmul.bf16.gmra.mxu0 %v3596
      %v4506 = vpop.f32.mrf.mxu0
      %v4507 = vadd.f32 %v4418, %v4506
      %v4508 = vpop.f32.mrf.mxu0
      %v4509 = vadd.f32 %v4420, %v4508
      %4510 = vmatmul.bf16.gmra.mxu0 %v3599
      %v4511 = vpop.f32.mrf.mxu0
      %v4512 = vadd.f32 %v4423, %v4511
      %v4513 = vpop.f32.mrf.mxu0
      %v4514 = vadd.f32 %v4425, %v4513
      %4515 = vmatmul.bf16.gmra.mxu0 %v3602
      %v4516 = vpop.f32.mrf.mxu0
      %v4517 = vadd.f32 %v4428, %v4516
      %v4518 = vpop.f32.mrf.mxu0
      %v4519 = vadd.f32 %v4430, %v4518
      %4520 = vmatmul.bf16.gmra.mxu0 %v3605
      %v4521 = vpop.f32.mrf.mxu0
      %v4522 = vadd.f32 %v4433, %v4521
      %v4523 = vpop.f32.mrf.mxu0
      %v4524 = vadd.f32 %v4435, %v4523
      %4525 = vmatmul.bf16.gmra.mxu0 %v3608
      %v4526 = vpop.f32.mrf.mxu0
      %v4527 = vadd.f32 %v4438, %v4526
      %v4528 = vpop.f32.mrf.mxu0
      %v4529 = vadd.f32 %v4440, %v4528
      %4530 = vdwg.mxu0
      %4531 = vmatpush.bf16.msra.mxu0 %v4021
      %4532 = vmatpush.bf16.msra.mxu0 %v4020
      %4533 = vmatpush.bf16.msra.mxu0 %v4019
      %4534 = vmatpush.bf16.msra.mxu0 %v4018
      %4535 = vmatpush.bf16.msra.mxu0 %v4017
      %4536 = vmatpush.bf16.msra.mxu0 %v4016
      %4537 = vmatpush.bf16.msra.mxu0 %v4015
      %4538 = vmatpush.bf16.msra.mxu0 %v4014
      %4539 = vmatmul.bf16.gmra.mxu0 %v3566
      %v4540 = vpop.f32.mrf.mxu0
      %v4541 = vadd.f32 %v4452, %v4540
      %v4542 = vpop.f32.mrf.mxu0
      %v4543 = vadd.f32 %v4454, %v4542
      %4544 = vmatmul.bf16.gmra.mxu0 %v3569
      %v4545 = vpop.f32.mrf.mxu0
      %v4546 = vadd.f32 %v4457, %v4545
      %v4547 = vpop.f32.mrf.mxu0
      %v4548 = vadd.f32 %v4459, %v4547
      %4549 = vmatmul.bf16.gmra.mxu0 %v3572
      %v4550 = vpop.f32.mrf.mxu0
      %v4551 = vadd.f32 %v4462, %v4550
      %v4552 = vpop.f32.mrf.mxu0
      %v4553 = vadd.f32 %v4464, %v4552
      %4554 = vmatmul.bf16.gmra.mxu0 %v3575
      %v4555 = vpop.f32.mrf.mxu0
      %v4556 = vadd.f32 %v4467, %v4555
      %v4557 = vpop.f32.mrf.mxu0
      %v4558 = vadd.f32 %v4469, %v4557
      %4559 = vmatmul.bf16.gmra.mxu0 %v3578
      %v4560 = vpop.f32.mrf.mxu0
      %v4561 = vadd.f32 %v4472, %v4560
      %v4562 = vpop.f32.mrf.mxu0
      %v4563 = vadd.f32 %v4474, %v4562
      %4564 = vmatmul.bf16.gmra.mxu0 %v3581
      %v4565 = vpop.f32.mrf.mxu0
      %v4566 = vadd.f32 %v4477, %v4565
      %v4567 = vpop.f32.mrf.mxu0
      %v4568 = vadd.f32 %v4479, %v4567
      %4569 = vmatmul.bf16.gmra.mxu0 %v3584
      %v4570 = vpop.f32.mrf.mxu0
      %v4571 = vadd.f32 %v4482, %v4570
      %v4572 = vpop.f32.mrf.mxu0
      %v4573 = vadd.f32 %v4484, %v4572
      %4574 = vmatmul.bf16.gmra.mxu0 %v3587
      %v4575 = vpop.f32.mrf.mxu0
      %v4576 = vadd.f32 %v4487, %v4575
      %v4577 = vpop.f32.mrf.mxu0
      %v4578 = vadd.f32 %v4489, %v4577
      %4579 = vmatmul.bf16.gmra.mxu0 %v3590
      %v4580 = vpop.f32.mrf.mxu0
      %v4581 = vadd.f32 %v4492, %v4580
      %v4582 = vpop.f32.mrf.mxu0
      %v4583 = vadd.f32 %v4494, %v4582
      %4584 = vmatmul.bf16.gmra.mxu0 %v3593
      %v4585 = vpop.f32.mrf.mxu0
      %v4586 = vadd.f32 %v4497, %v4585
      %v4587 = vpop.f32.mrf.mxu0
      %v4588 = vadd.f32 %v4499, %v4587
      %4589 = vmatmul.bf16.gmra.mxu0 %v3596
      %v4590 = vpop.f32.mrf.mxu0
      %v4591 = vadd.f32 %v4502, %v4590
      %v4592 = vpop.f32.mrf.mxu0
      %v4593 = vadd.f32 %v4504, %v4592
      %4594 = vmatmul.bf16.gmra.mxu0 %v3599
      %v4595 = vpop.f32.mrf.mxu0
      %v4596 = vadd.f32 %v4507, %v4595
      %v4597 = vpop.f32.mrf.mxu0
      %v4598 = vadd.f32 %v4509, %v4597
      %4599 = vmatmul.bf16.gmra.mxu0 %v3602
      %v4600 = vpop.f32.mrf.mxu0
      %v4601 = vadd.f32 %v4512, %v4600
      %v4602 = vpop.f32.mrf.mxu0
      %v4603 = vadd.f32 %v4514, %v4602
      %4604 = vmatmul.bf16.gmra.mxu0 %v3605
      %v4605 = vpop.f32.mrf.mxu0
      %v4606 = vadd.f32 %v4517, %v4605
      %v4607 = vpop.f32.mrf.mxu0
      %v4608 = vadd.f32 %v4519, %v4607
      %4609 = vmatmul.bf16.gmra.mxu0 %v3608
      %v4610 = vpop.f32.mrf.mxu0
      %v4611 = vadd.f32 %v4522, %v4610
      %v4612 = vpop.f32.mrf.mxu0
      %v4613 = vadd.f32 %v4524, %v4612
      %4614 = vmatmul.bf16.gmra.mxu0 %v3611
      %v4615 = vpop.f32.mrf.mxu0
      %v4616 = vadd.f32 %v4527, %v4615
      %v4617 = vpop.f32.mrf.mxu0
      %v4618 = vadd.f32 %v4529, %v4617
      %4619 = vdwg.mxu0
      %4620 = vmatpush.bf16.msra.mxu0 %v4029
      %4621 = vmatpush.bf16.msra.mxu0 %v4028
      %4622 = vmatpush.bf16.msra.mxu0 %v4027
      %4623 = vmatpush.bf16.msra.mxu0 %v4026
      %4624 = vmatpush.bf16.msra.mxu0 %v4025
      %4625 = vmatpush.bf16.msra.mxu0 %v4024
      %4626 = vmatpush.bf16.msra.mxu0 %v4023
      %4627 = vmatpush.bf16.msra.mxu0 %v4022
      %4628 = vmatmul.bf16.gmra.mxu0 %v3569
      %v4629 = vpop.f32.mrf.mxu0
      %v4630 = vadd.f32 %v4541, %v4629
      %v4631 = vpop.f32.mrf.mxu0
      %v4632 = vadd.f32 %v4543, %v4631
      %4633 = vmatmul.bf16.gmra.mxu0 %v3572
      %v4634 = vpop.f32.mrf.mxu0
      %v4635 = vadd.f32 %v4546, %v4634
      %v4636 = vpop.f32.mrf.mxu0
      %v4637 = vadd.f32 %v4548, %v4636
      %4638 = vmatmul.bf16.gmra.mxu0 %v3575
      %v4639 = vpop.f32.mrf.mxu0
      %v4640 = vadd.f32 %v4551, %v4639
      %v4641 = vpop.f32.mrf.mxu0
      %v4642 = vadd.f32 %v4553, %v4641
      %4643 = vmatmul.bf16.gmra.mxu0 %v3578
      %v4644 = vpop.f32.mrf.mxu0
      %v4645 = vadd.f32 %v4556, %v4644
      %v4646 = vpop.f32.mrf.mxu0
      %v4647 = vadd.f32 %v4558, %v4646
      %4648 = vmatmul.bf16.gmra.mxu0 %v3581
      %v4649 = vpop.f32.mrf.mxu0
      %v4650 = vadd.f32 %v4561, %v4649
      %v4651 = vpop.f32.mrf.mxu0
      %v4652 = vadd.f32 %v4563, %v4651
      %4653 = vmatmul.bf16.gmra.mxu0 %v3584
      %v4654 = vpop.f32.mrf.mxu0
      %v4655 = vadd.f32 %v4566, %v4654
      %v4656 = vpop.f32.mrf.mxu0
      %v4657 = vadd.f32 %v4568, %v4656
      %4658 = vmatmul.bf16.gmra.mxu0 %v3587
      %v4659 = vpop.f32.mrf.mxu0
      %v4660 = vadd.f32 %v4571, %v4659
      %v4661 = vpop.f32.mrf.mxu0
      %v4662 = vadd.f32 %v4573, %v4661
      %4663 = vmatmul.bf16.gmra.mxu0 %v3590
      %v4664 = vpop.f32.mrf.mxu0
      %v4665 = vadd.f32 %v4576, %v4664
      %v4666 = vpop.f32.mrf.mxu0
      %v4667 = vadd.f32 %v4578, %v4666
      %4668 = vmatmul.bf16.gmra.mxu0 %v3593
      %v4669 = vpop.f32.mrf.mxu0
      %v4670 = vadd.f32 %v4581, %v4669
      %v4671 = vpop.f32.mrf.mxu0
      %v4672 = vadd.f32 %v4583, %v4671
      %4673 = vmatmul.bf16.gmra.mxu0 %v3596
      %v4674 = vpop.f32.mrf.mxu0
      %v4675 = vadd.f32 %v4586, %v4674
      %v4676 = vpop.f32.mrf.mxu0
      %v4677 = vadd.f32 %v4588, %v4676
      %4678 = vmatmul.bf16.gmra.mxu0 %v3599
      %v4679 = vpop.f32.mrf.mxu0
      %v4680 = vadd.f32 %v4591, %v4679
      %v4681 = vpop.f32.mrf.mxu0
      %v4682 = vadd.f32 %v4593, %v4681
      %4683 = vmatmul.bf16.gmra.mxu0 %v3602
      %v4684 = vpop.f32.mrf.mxu0
      %v4685 = vadd.f32 %v4596, %v4684
      %v4686 = vpop.f32.mrf.mxu0
      %v4687 = vadd.f32 %v4598, %v4686
      %4688 = vmatmul.bf16.gmra.mxu0 %v3605
      %v4689 = vpop.f32.mrf.mxu0
      %v4690 = vadd.f32 %v4601, %v4689
      %v4691 = vpop.f32.mrf.mxu0
      %v4692 = vadd.f32 %v4603, %v4691
      %4693 = vmatmul.bf16.gmra.mxu0 %v3608
      %v4694 = vpop.f32.mrf.mxu0
      %v4695 = vadd.f32 %v4606, %v4694
      %v4696 = vpop.f32.mrf.mxu0
      %v4697 = vadd.f32 %v4608, %v4696
      %4698 = vmatmul.bf16.gmra.mxu0 %v3611
      %v4699 = vpop.f32.mrf.mxu0
      %v4700 = vadd.f32 %v4611, %v4699
      %v4701 = vpop.f32.mrf.mxu0
      %v4702 = vadd.f32 %v4613, %v4701
      %4703 = vmatmul.bf16.gmra.mxu0 %v3614
      %v4704 = vpop.f32.mrf.mxu0
      %v4705 = vadd.f32 %v4616, %v4704
      %v4706 = vpop.f32.mrf.mxu0
      %v4707 = vadd.f32 %v4618, %v4706
      %4708 = vdwg.mxu0
      %v4709 = vld [vmem:[#allocation2] sm:$0xff]
      %v4710 = vld [vmem:[#allocation2 + $0x8] sm:$0xff]
      %v4711 = vld [vmem:[#allocation2 + $0x10] sm:$0xff]
      %v4712 = vld [vmem:[#allocation2 + $0x18] sm:$0xff]
      %v4713 = vld [vmem:[#allocation2 + $0x20] sm:$0xff]
      %v4714 = vld [vmem:[#allocation2 + $0x28] sm:$0xff]
      %v4715 = vld [vmem:[#allocation2 + $0x30] sm:$0xff]
      %v4716 = vld [vmem:[#allocation2 + $0x38] sm:$0xff]
      %v4717 = vld [vmem:[#allocation2 + $0x40] sm:$0xff]
      %v4718 = vld [vmem:[#allocation2 + $0x48] sm:$0xff]
      %v4719 = vld [vmem:[#allocation2 + $0x50] sm:$0xff]
      %v4720 = vld [vmem:[#allocation2 + $0x58] sm:$0xff]
      %v4721 = vld [vmem:[#allocation2 + $0x60] sm:$0xff]
      %v4722 = vld [vmem:[#allocation2 + $0x68] sm:$0xff]
      %v4723 = vld [vmem:[#allocation2 + $0x70] sm:$0xff]
      %v4724 = vld [vmem:[#allocation2 + $0x78] sm:$0xff]
      %v4725 = vld [vmem:[#allocation2 + $0x80] sm:$0xff]
      %v4726 = vld [vmem:[#allocation2 + $0x88] sm:$0xff]
      %v4727 = vld [vmem:[#allocation2 + $0x90] sm:$0xff]
      %v4728 = vld [vmem:[#allocation2 + $0x98] sm:$0xff]
      %v4729 = vld [vmem:[#allocation2 + $0xa0] sm:$0xff]
      %v4730 = vld [vmem:[#allocation2 + $0xa8] sm:$0xff]
      %v4731 = vld [vmem:[#allocation2 + $0xb0] sm:$0xff]
      %v4732 = vld [vmem:[#allocation2 + $0xb8] sm:$0xff]
      %v4733 = vld [vmem:[#allocation2 + $0xc0] sm:$0xff]
      %v4734 = vld [vmem:[#allocation2 + $0xc8] sm:$0xff]
      %v4735 = vld [vmem:[#allocation2 + $0xd0] sm:$0xff]
      %v4736 = vld [vmem:[#allocation2 + $0xd8] sm:$0xff]
      %v4737 = vld [vmem:[#allocation2 + $0xe0] sm:$0xff]
      %v4738 = vld [vmem:[#allocation2 + $0xe8] sm:$0xff]
      %v4739 = vld [vmem:[#allocation2 + $0xf0] sm:$0xff]
      %v4740 = vld [vmem:[#allocation2 + $0xf8] sm:$0xff]
      %v4741 = vadd.f32 %v4709, %v4630
      %v4742 = vadd.f32 %v4710, %v4632
      %v4743 = vadd.f32 %v4711, %v4635
      %v4744 = vadd.f32 %v4712, %v4637
      %v4745 = vadd.f32 %v4713, %v4640
      %v4746 = vadd.f32 %v4714, %v4642
      %v4747 = vadd.f32 %v4715, %v4645
      %v4748 = vadd.f32 %v4716, %v4647
      %v4749 = vadd.f32 %v4717, %v4650
      %v4750 = vadd.f32 %v4718, %v4652
      %v4751 = vadd.f32 %v4719, %v4655
      %v4752 = vadd.f32 %v4720, %v4657
      %v4753 = vadd.f32 %v4721, %v4660
      %v4754 = vadd.f32 %v4722, %v4662
      %v4755 = vadd.f32 %v4723, %v4665
      %v4756 = vadd.f32 %v4724, %v4667
      %v4757 = vadd.f32 %v4725, %v4670
      %v4758 = vadd.f32 %v4726, %v4672
      %v4759 = vadd.f32 %v4727, %v4675
      %v4760 = vadd.f32 %v4728, %v4677
      %v4761 = vadd.f32 %v4729, %v4680
      %v4762 = vadd.f32 %v4730, %v4682
      %v4763 = vadd.f32 %v4731, %v4685
      %v4764 = vadd.f32 %v4732, %v4687
      %v4765 = vadd.f32 %v4733, %v4690
      %v4766 = vadd.f32 %v4734, %v4692
      %v4767 = vadd.f32 %v4735, %v4695
      %v4768 = vadd.f32 %v4736, %v4697
      %v4769 = vadd.f32 %v4737, %v4700
      %v4770 = vadd.f32 %v4738, %v4702
      %v4771 = vadd.f32 %v4739, %v4705
      %v4772 = vadd.f32 %v4740, %v4707
      %4773 = vst [vmem:[#allocation2] sm:$0xff] %v4741
      %4774 = vst [vmem:[#allocation2 + $0x8] sm:$0xff] %v4742
      %4775 = vst [vmem:[#allocation2 + $0x10] sm:$0xff] %v4743
      %4776 = vst [vmem:[#allocation2 + $0x18] sm:$0xff] %v4744
      %4777 = vst [vmem:[#allocation2 + $0x20] sm:$0xff] %v4745
      %4778 = vst [vmem:[#allocation2 + $0x28] sm:$0xff] %v4746
      %4779 = vst [vmem:[#allocation2 + $0x30] sm:$0xff] %v4747
      %4780 = vst [vmem:[#allocation2 + $0x38] sm:$0xff] %v4748
      %4781 = vst [vmem:[#allocation2 + $0x40] sm:$0xff] %v4749
      %4782 = vst [vmem:[#allocation2 + $0x48] sm:$0xff] %v4750
      %4783 = vst [vmem:[#allocation2 + $0x50] sm:$0xff] %v4751
      %4784 = vst [vmem:[#allocation2 + $0x58] sm:$0xff] %v4752
      %4785 = vst [vmem:[#allocation2 + $0x60] sm:$0xff] %v4753
      %4786 = vst [vmem:[#allocation2 + $0x68] sm:$0xff] %v4754
      %4787 = vst [vmem:[#allocation2 + $0x70] sm:$0xff] %v4755
      %4788 = vst [vmem:[#allocation2 + $0x78] sm:$0xff] %v4756
      %4789 = vst [vmem:[#allocation2 + $0x80] sm:$0xff] %v4757
      %4790 = vst [vmem:[#allocation2 + $0x88] sm:$0xff] %v4758
      %4791 = vst [vmem:[#allocation2 + $0x90] sm:$0xff] %v4759
      %4792 = vst [vmem:[#allocation2 + $0x98] sm:$0xff] %v4760
      %4793 = vst [vmem:[#allocation2 + $0xa0] sm:$0xff] %v4761
      %4794 = vst [vmem:[#allocation2 + $0xa8] sm:$0xff] %v4762
      %4795 = vst [vmem:[#allocation2 + $0xb0] sm:$0xff] %v4763
      %4796 = vst [vmem:[#allocation2 + $0xb8] sm:$0xff] %v4764
      %4797 = vst [vmem:[#allocation2 + $0xc0] sm:$0xff] %v4765
      %4798 = vst [vmem:[#allocation2 + $0xc8] sm:$0xff] %v4766
      %4799 = vst [vmem:[#allocation2 + $0xd0] sm:$0xff] %v4767
      %4800 = vst [vmem:[#allocation2 + $0xd8] sm:$0xff] %v4768
      %4801 = vst [vmem:[#allocation2 + $0xe0] sm:$0xff] %v4769
      %4802 = vst [vmem:[#allocation2 + $0xe8] sm:$0xff] %v4770
      %4803 = vst [vmem:[#allocation2 + $0xf0] sm:$0xff] %v4771
      %4804 = vst [vmem:[#allocation2 + $0xf8] sm:$0xff] %v4772
      %v4805 = vld [vmem:[%s307] sm:$0xe]
      %v4806 = vld [vmem:[%s307 + $0x4] sm:$0xf]
      %v4807 = vld [vmem:[%s307 + $0x8] sm:$0x3]
      %v4808 = vld [vmem:[%s307 + $0xc] sm:$0xe]
      %v4809 = vld [vmem:[%s307 + $0x10] sm:$0xf]
      %v4810 = vld [vmem:[%s307 + $0x14] sm:$0x3]
      %v4811 = vld [vmem:[%s307 + $0x18] sm:$0xe]
      %v4812 = vld [vmem:[%s307 + $0x1c] sm:$0xf]
      %v4813 = vld [vmem:[%s307 + $0x20] sm:$0x3]
      %v4814 = vld [vmem:[%s307 + $0x24] sm:$0xe]
      %v4815 = vld [vmem:[%s307 + $0x28] sm:$0xf]
      %v4816 = vld [vmem:[%s307 + $0x2c] sm:$0x3]
      %v4817 = vld [vmem:[%s307 + $0x30] sm:$0xe]
      %v4818 = vld [vmem:[%s307 + $0x34] sm:$0xf]
      %v4819 = vld [vmem:[%s307 + $0x38] sm:$0x3]
      %v4820 = vld [vmem:[%s307 + $0x3c] sm:$0xe]
      %v4821 = vld [vmem:[%s307 + $0x40] sm:$0xf]
      %v4822 = vld [vmem:[%s307 + $0x44] sm:$0x3]
      %v4823 = vld [vmem:[%s307 + $0x48] sm:$0xe]
      %v4824 = vld [vmem:[%s307 + $0x4c] sm:$0xf]
      %v4825 = vld [vmem:[%s307 + $0x50] sm:$0x3]
      %v4826 = vld [vmem:[%s307 + $0x54] sm:$0xe]
      %v4827 = vld [vmem:[%s307 + $0x58] sm:$0xf]
      %v4828 = vld [vmem:[%s307 + $0x5c] sm:$0x3]
      %v4829 = vld [vmem:[%s307 + $0x60] sm:$0xe]
      %v4830 = vld [vmem:[%s307 + $0x64] sm:$0xf]
      %v4831 = vld [vmem:[%s307 + $0x68] sm:$0x3]
      %v4832 = vld [vmem:[%s307 + $0x6c] sm:$0xe]
      %v4833 = vld [vmem:[%s307 + $0x70] sm:$0xf]
      %v4834 = vld [vmem:[%s307 + $0x74] sm:$0x3]
      %v4835 = vld [vmem:[%s307 + $0x78] sm:$0xe]
      %v4836 = vld [vmem:[%s307 + $0x7c] sm:$0xf]
      %v4837 = vld [vmem:[%s307 + $0x80] sm:$0x3]
      %v4838 = vld [vmem:[%s307 + $0x84] sm:$0xe]
      %v4839 = vld [vmem:[%s307 + $0x88] sm:$0xf]
      %v4840 = vld [vmem:[%s307 + $0x8c] sm:$0x3]
      %v4841 = vld [vmem:[%s307 + $0x90] sm:$0xe]
      %v4842 = vld [vmem:[%s307 + $0x94] sm:$0xf]
      %v4843 = vld [vmem:[%s307 + $0x98] sm:$0x3]
      %v4844 = vld [vmem:[%s307 + $0x9c] sm:$0xe]
      %v4845 = vld [vmem:[%s307 + $0xa0] sm:$0xf]
      %v4846 = vld [vmem:[%s307 + $0xa4] sm:$0x3]
      %v4847 = vld [vmem:[%s307 + $0xa8] sm:$0xe]
      %v4848 = vld [vmem:[%s307 + $0xac] sm:$0xf]
      %v4849 = vld [vmem:[%s307 + $0xb0] sm:$0x3]
      %v4850 = vld [vmem:[%s307 + $0xb4] sm:$0xe]
      %v4851 = vld [vmem:[%s307 + $0xb8] sm:$0xf]
      %v4852 = vld [vmem:[%s307 + $0xbc] sm:$0x3]
      %v4853 = vld [vmem:[%s307 + $0xc0] sm:$0xe]
      %v4854 = vld [vmem:[%s307 + $0xc4] sm:$0xf]
      %v4855 = vld [vmem:[%s307 + $0xc8] sm:$0x3]
      %v4856 = vld [vmem:[%s307 + $0xcc] sm:$0xe]
      %v4857 = vld [vmem:[%s307 + $0xd0] sm:$0xf]
      %v4858 = vld [vmem:[%s307 + $0xd4] sm:$0x3]
      %v4859 = vld [vmem:[%s307 + $0xd8] sm:$0xe]
      %v4860 = vld [vmem:[%s307 + $0xdc] sm:$0xf]
      %v4861 = vld [vmem:[%s307 + $0xe0] sm:$0x3]
      %v4862 = vld [vmem:[%s307 + $0xe4] sm:$0xe]
      %v4863 = vld [vmem:[%s307 + $0xe8] sm:$0xf]
      %v4864 = vld [vmem:[%s307 + $0xec] sm:$0x3]
      %v4865 = vld [vmem:[%s307 + $0xf0] sm:$0xe]
      %v4866 = vld [vmem:[%s307 + $0xf4] sm:$0xf]
      %v4867 = vld [vmem:[%s307 + $0xf8] sm:$0x3]
      %v4868 = vld [vmem:[%s307 + $0xfc] sm:$0xe]
      %v4869 = vld [vmem:[%s307 + $0x100] sm:$0xf]
      %v4870 = vld [vmem:[%s307 + $0x104] sm:$0x3]
      %v4919 = vunpack.c.l.b16 %v4805
      %v4920 = vunpack.c.l.b16 %v4806
      %v4921 = vunpack.c.l.b16 %v4807
      %v4922 = vunpack.c.l.b16 %v4808
      %v4923 = vunpack.c.l.b16 %v4809
      %v4924 = vunpack.c.l.b16 %v4810
      %v4925 = vunpack.c.l.b16 %v4811
      %v4926 = vunpack.c.l.b16 %v4812
      %v4927 = vunpack.c.l.b16 %v4813
      %v4928 = vunpack.c.l.b16 %v4814
      %v4929 = vunpack.c.l.b16 %v4815
      %v4930 = vunpack.c.l.b16 %v4816
      %v4931 = vunpack.c.l.b16 %v4817
      %v4932 = vunpack.c.l.b16 %v4818
      %v4933 = vunpack.c.l.b16 %v4819
      %v4934 = vunpack.c.l.b16 %v4820
      %v4935 = vunpack.c.l.b16 %v4821
      %v4936 = vunpack.c.l.b16 %v4822
      %v4937 = vunpack.c.l.b16 %v4823
      %v4938 = vunpack.c.l.b16 %v4824
      %v4939 = vunpack.c.l.b16 %v4825
      %v4940 = vunpack.c.l.b16 %v4826
      %v4941 = vunpack.c.l.b16 %v4827
      %v4942 = vunpack.c.l.b16 %v4828
      %v4943 = vunpack.c.l.b16 %v4829
      %v4944 = vunpack.c.l.b16 %v4830
      %v4945 = vunpack.c.l.b16 %v4831
      %v4946 = vunpack.c.l.b16 %v4832
      %v4947 = vunpack.c.l.b16 %v4833
      %v4948 = vunpack.c.l.b16 %v4834
      %v4949 = vunpack.c.l.b16 %v4835
      %v4950 = vunpack.c.l.b16 %v4836
      %v4951 = vunpack.c.l.b16 %v4837
      %v4952 = vunpack.c.l.b16 %v4838
      %v4953 = vunpack.c.l.b16 %v4839
      %v4954 = vunpack.c.l.b16 %v4840
      %v4955 = vunpack.c.l.b16 %v4841
      %v4956 = vunpack.c.l.b16 %v4842
      %v4957 = vunpack.c.l.b16 %v4843
      %v4958 = vunpack.c.l.b16 %v4844
      %v4959 = vunpack.c.l.b16 %v4845
      %v4960 = vunpack.c.l.b16 %v4846
      %v4961 = vunpack.c.l.b16 %v4847
      %v4962 = vunpack.c.l.b16 %v4848
      %v4963 = vunpack.c.l.b16 %v4849
      %v4964 = vunpack.c.l.b16 %v4850
      %v4965 = vunpack.c.l.b16 %v4851
      %v4966 = vunpack.c.l.b16 %v4852
      %v4967 = vpack.c.b16 %v4920, %v4919
      %v4968 = vpack.c.b16 %v4921, %v4921
      %v4969 = vpack.c.b16 %v4923, %v4922
      %v4970 = vpack.c.b16 %v4924, %v4924
      %v4971 = vpack.c.b16 %v4926, %v4925
      %v4972 = vpack.c.b16 %v4927, %v4927
      %v4973 = vpack.c.b16 %v4929, %v4928
      %v4974 = vpack.c.b16 %v4930, %v4930
      %v4975 = vpack.c.b16 %v4932, %v4931
      %v4976 = vpack.c.b16 %v4933, %v4933
      %v4977 = vpack.c.b16 %v4935, %v4934
      %v4978 = vpack.c.b16 %v4936, %v4936
      %v4979 = vpack.c.b16 %v4938, %v4937
      %v4980 = vpack.c.b16 %v4939, %v4939
      %v4981 = vpack.c.b16 %v4941, %v4940
      %v4982 = vpack.c.b16 %v4942, %v4942
      %v4983 = vpack.c.b16 %v4944, %v4943
      %v4984 = vpack.c.b16 %v4945, %v4945
      %v4985 = vpack.c.b16 %v4947, %v4946
      %v4986 = vpack.c.b16 %v4948, %v4948
      %v4987 = vpack.c.b16 %v4950, %v4949
      %v4988 = vpack.c.b16 %v4951, %v4951
      %v4989 = vpack.c.b16 %v4953, %v4952
      %v4990 = vpack.c.b16 %v4954, %v4954
      %v4991 = vpack.c.b16 %v4956, %v4955
      %v4992 = vpack.c.b16 %v4957, %v4957
      %v4993 = vpack.c.b16 %v4959, %v4958
      %v4994 = vpack.c.b16 %v4960, %v4960
      %v4995 = vpack.c.b16 %v4962, %v4961
      %v4996 = vpack.c.b16 %v4963, %v4963
      %v4997 = vpack.c.b16 %v4965, %v4964
      %v4998 = vpack.c.b16 %v4966, %v4966
      %v5002 = vunpack.c.l.b16 %v4853
      %v5003 = vunpack.c.l.b16 %v4854
      %v5004 = vunpack.c.l.b16 %v4855
      %v5005 = vpack.c.b16 %v5003, %v5002
      %v5006 = vpack.c.b16 %v5004, %v5004
      %v5010 = vunpack.c.l.b16 %v4856
      %v5011 = vunpack.c.l.b16 %v4857
      %v5012 = vunpack.c.l.b16 %v4858
      %v5013 = vpack.c.b16 %v5011, %v5010
      %v5014 = vpack.c.b16 %v5012, %v5012
      %v5018 = vunpack.c.l.b16 %v4859
      %v5019 = vunpack.c.l.b16 %v4860
      %v5020 = vunpack.c.l.b16 %v4861
      %v5021 = vpack.c.b16 %v5019, %v5018
      %v5022 = vpack.c.b16 %v5020, %v5020
      %v5026 = vunpack.c.l.b16 %v4862
      %v5027 = vunpack.c.l.b16 %v4863
      %v5028 = vunpack.c.l.b16 %v4864
      %v5029 = vpack.c.b16 %v5027, %v5026
      %v5030 = vpack.c.b16 %v5028, %v5028
      %v5034 = vunpack.c.l.b16 %v4865
      %v5035 = vunpack.c.l.b16 %v4866
      %v5036 = vunpack.c.l.b16 %v4867
      %v5037 = vpack.c.b16 %v5035, %v5034
      %v5038 = vpack.c.b16 %v5036, %v5036
      %v5042 = vunpack.c.l.b16 %v4868
      %v5043 = vunpack.c.l.b16 %v4869
      %v5044 = vunpack.c.l.b16 %v4870
      %v5045 = vpack.c.b16 %v5043, %v5042
      %v5046 = vpack.c.b16 %v5044, %v5044
      %vm5047 = vsmask.f32 6400
      %v5049 = vshrl.u32 %v4967, 16
      %v5051 = vrot.slane %v5049, 1
      %v5052 = vshll.u32 %v4967, 16
      %v5054 = vrot.slane %v5052, 2
      %v5055 = vor.u32 %v5051, %v5054
      %v5057 = vshrl.u32 %v4968, 16
      %v5059 = vrot.slane %v5057, 1
      %v5060 = vshll.u32 %v4968, 16
      %v5062 = vrot.slane %v5060, 2
      %v5063 = vor.u32 %v5059, %v5062
      %v5064 = vsel %vm5047, %v5055, %v5063
      %v5066 = vshrl.u32 %v4969, 16
      %v5068 = vrot.slane %v5066, 1
      %v5069 = vshll.u32 %v4969, 16
      %v5071 = vrot.slane %v5069, 2
      %v5072 = vor.u32 %v5068, %v5071
      %v5074 = vshrl.u32 %v4970, 16
      %v5076 = vrot.slane %v5074, 1
      %v5077 = vshll.u32 %v4970, 16
      %v5079 = vrot.slane %v5077, 2
      %v5080 = vor.u32 %v5076, %v5079
      %v5081 = vsel %vm5047, %v5072, %v5080
      %v5083 = vshrl.u32 %v4971, 16
      %v5085 = vrot.slane %v5083, 1
      %v5086 = vshll.u32 %v4971, 16
      %v5088 = vrot.slane %v5086, 2
      %v5089 = vor.u32 %v5085, %v5088
      %v5091 = vshrl.u32 %v4972, 16
      %v5093 = vrot.slane %v5091, 1
      %v5094 = vshll.u32 %v4972, 16
      %v5096 = vrot.slane %v5094, 2
      %v5097 = vor.u32 %v5093, %v5096
      %v5098 = vsel %vm5047, %v5089, %v5097
      %v5100 = vshrl.u32 %v4973, 16
      %v5102 = vrot.slane %v5100, 1
      %v5103 = vshll.u32 %v4973, 16
      %v5105 = vrot.slane %v5103, 2
      %v5106 = vor.u32 %v5102, %v5105
      %v5108 = vshrl.u32 %v4974, 16
      %v5110 = vrot.slane %v5108, 1
      %v5111 = vshll.u32 %v4974, 16
      %v5113 = vrot.slane %v5111, 2
      %v5114 = vor.u32 %v5110, %v5113
      %v5115 = vsel %vm5047, %v5106, %v5114
      %v5117 = vshrl.u32 %v4975, 16
      %v5119 = vrot.slane %v5117, 1
      %v5120 = vshll.u32 %v4975, 16
      %v5122 = vrot.slane %v5120, 2
      %v5123 = vor.u32 %v5119, %v5122
      %v5125 = vshrl.u32 %v4976, 16
      %v5127 = vrot.slane %v5125, 1
      %v5128 = vshll.u32 %v4976, 16
      %v5130 = vrot.slane %v5128, 2
      %v5131 = vor.u32 %v5127, %v5130
      %v5132 = vsel %vm5047, %v5123, %v5131
      %v5134 = vshrl.u32 %v4977, 16
      %v5136 = vrot.slane %v5134, 1
      %v5137 = vshll.u32 %v4977, 16
      %v5139 = vrot.slane %v5137, 2
      %v5140 = vor.u32 %v5136, %v5139
      %v5142 = vshrl.u32 %v4978, 16
      %v5144 = vrot.slane %v5142, 1
      %v5145 = vshll.u32 %v4978, 16
      %v5147 = vrot.slane %v5145, 2
      %v5148 = vor.u32 %v5144, %v5147
      %v5149 = vsel %vm5047, %v5140, %v5148
      %v5151 = vshrl.u32 %v4979, 16
      %v5153 = vrot.slane %v5151, 1
      %v5154 = vshll.u32 %v4979, 16
      %v5156 = vrot.slane %v5154, 2
      %v5157 = vor.u32 %v5153, %v5156
      %v5159 = vshrl.u32 %v4980, 16
      %v5161 = vrot.slane %v5159, 1
      %v5162 = vshll.u32 %v4980, 16
      %v5164 = vrot.slane %v5162, 2
      %v5165 = vor.u32 %v5161, %v5164
      %v5166 = vsel %vm5047, %v5157, %v5165
      %v5168 = vshrl.u32 %v4981, 16
      %v5170 = vrot.slane %v5168, 1
      %v5171 = vshll.u32 %v4981, 16
      %v5173 = vrot.slane %v5171, 2
      %v5174 = vor.u32 %v5170, %v5173
      %v5176 = vshrl.u32 %v4982, 16
      %v5178 = vrot.slane %v5176, 1
      %v5179 = vshll.u32 %v4982, 16
      %v5181 = vrot.slane %v5179, 2
      %v5182 = vor.u32 %v5178, %v5181
      %v5183 = vsel %vm5047, %v5174, %v5182
      %v5185 = vshrl.u32 %v4983, 16
      %v5187 = vrot.slane %v5185, 1
      %v5188 = vshll.u32 %v4983, 16
      %v5190 = vrot.slane %v5188, 2
      %v5191 = vor.u32 %v5187, %v5190
      %v5193 = vshrl.u32 %v4984, 16
      %v5195 = vrot.slane %v5193, 1
      %v5196 = vshll.u32 %v4984, 16
      %v5198 = vrot.slane %v5196, 2
      %v5199 = vor.u32 %v5195, %v5198
      %v5200 = vsel %vm5047, %v5191, %v5199
      %v5202 = vshrl.u32 %v4985, 16
      %v5204 = vrot.slane %v5202, 1
      %v5205 = vshll.u32 %v4985, 16
      %v5207 = vrot.slane %v5205, 2
      %v5208 = vor.u32 %v5204, %v5207
      %v5210 = vshrl.u32 %v4986, 16
      %v5212 = vrot.slane %v5210, 1
      %v5213 = vshll.u32 %v4986, 16
      %v5215 = vrot.slane %v5213, 2
      %v5216 = vor.u32 %v5212, %v5215
      %v5217 = vsel %vm5047, %v5208, %v5216
      %v5219 = vshrl.u32 %v4987, 16
      %v5221 = vrot.slane %v5219, 1
      %v5222 = vshll.u32 %v4987, 16
      %v5224 = vrot.slane %v5222, 2
      %v5225 = vor.u32 %v5221, %v5224
      %v5227 = vshrl.u32 %v4988, 16
      %v5229 = vrot.slane %v5227, 1
      %v5230 = vshll.u32 %v4988, 16
      %v5232 = vrot.slane %v5230, 2
      %v5233 = vor.u32 %v5229, %v5232
      %v5234 = vsel %vm5047, %v5225, %v5233
      %v5236 = vshrl.u32 %v4989, 16
      %v5238 = vrot.slane %v5236, 1
      %v5239 = vshll.u32 %v4989, 16
      %v5241 = vrot.slane %v5239, 2
      %v5242 = vor.u32 %v5238, %v5241
      %v5244 = vshrl.u32 %v4990, 16
      %v5246 = vrot.slane %v5244, 1
      %v5247 = vshll.u32 %v4990, 16
      %v5249 = vrot.slane %v5247, 2
      %v5250 = vor.u32 %v5246, %v5249
      %v5251 = vsel %vm5047, %v5242, %v5250
      %v5253 = vshrl.u32 %v4991, 16
      %v5255 = vrot.slane %v5253, 1
      %v5256 = vshll.u32 %v4991, 16
      %v5258 = vrot.slane %v5256, 2
      %v5259 = vor.u32 %v5255, %v5258
      %v5261 = vshrl.u32 %v4992, 16
      %v5263 = vrot.slane %v5261, 1
      %v5264 = vshll.u32 %v4992, 16
      %v5266 = vrot.slane %v5264, 2
      %v5267 = vor.u32 %v5263, %v5266
      %v5268 = vsel %vm5047, %v5259, %v5267
      %v5270 = vshrl.u32 %v4993, 16
      %v5272 = vrot.slane %v5270, 1
      %v5273 = vshll.u32 %v4993, 16
      %v5275 = vrot.slane %v5273, 2
      %v5276 = vor.u32 %v5272, %v5275
      %v5278 = vshrl.u32 %v4994, 16
      %v5280 = vrot.slane %v5278, 1
      %v5281 = vshll.u32 %v4994, 16
      %v5283 = vrot.slane %v5281, 2
      %v5284 = vor.u32 %v5280, %v5283
      %v5285 = vsel %vm5047, %v5276, %v5284
      %v5287 = vshrl.u32 %v4995, 16
      %v5289 = vrot.slane %v5287, 1
      %v5290 = vshll.u32 %v4995, 16
      %v5292 = vrot.slane %v5290, 2
      %v5293 = vor.u32 %v5289, %v5292
      %v5295 = vshrl.u32 %v4996, 16
      %v5297 = vrot.slane %v5295, 1
      %v5298 = vshll.u32 %v4996, 16
      %v5300 = vrot.slane %v5298, 2
      %v5301 = vor.u32 %v5297, %v5300
      %v5302 = vsel %vm5047, %v5293, %v5301
      %v5304 = vshrl.u32 %v4997, 16
      %v5306 = vrot.slane %v5304, 1
      %v5307 = vshll.u32 %v4997, 16
      %v5309 = vrot.slane %v5307, 2
      %v5310 = vor.u32 %v5306, %v5309
      %v5312 = vshrl.u32 %v4998, 16
      %v5314 = vrot.slane %v5312, 1
      %v5315 = vshll.u32 %v4998, 16
      %v5317 = vrot.slane %v5315, 2
      %v5318 = vor.u32 %v5314, %v5317
      %v5319 = vsel %vm5047, %v5310, %v5318
      %v5321 = vshrl.u32 %v5005, 16
      %v5323 = vrot.slane %v5321, 1
      %v5324 = vshll.u32 %v5005, 16
      %v5326 = vrot.slane %v5324, 2
      %v5327 = vor.u32 %v5323, %v5326
      %v5329 = vshrl.u32 %v5006, 16
      %v5331 = vrot.slane %v5329, 1
      %v5332 = vshll.u32 %v5006, 16
      %v5334 = vrot.slane %v5332, 2
      %v5335 = vor.u32 %v5331, %v5334
      %v5336 = vsel %vm5047, %v5327, %v5335
      %v5338 = vshrl.u32 %v5013, 16
      %v5340 = vrot.slane %v5338, 1
      %v5341 = vshll.u32 %v5013, 16
      %v5343 = vrot.slane %v5341, 2
      %v5344 = vor.u32 %v5340, %v5343
      %v5346 = vshrl.u32 %v5014, 16
      %v5348 = vrot.slane %v5346, 1
      %v5349 = vshll.u32 %v5014, 16
      %v5351 = vrot.slane %v5349, 2
      %v5352 = vor.u32 %v5348, %v5351
      %v5353 = vsel %vm5047, %v5344, %v5352
      %v5355 = vshrl.u32 %v5021, 16
      %v5357 = vrot.slane %v5355, 1
      %v5358 = vshll.u32 %v5021, 16
      %v5360 = vrot.slane %v5358, 2
      %v5361 = vor.u32 %v5357, %v5360
      %v5363 = vshrl.u32 %v5022, 16
      %v5365 = vrot.slane %v5363, 1
      %v5366 = vshll.u32 %v5022, 16
      %v5368 = vrot.slane %v5366, 2
      %v5369 = vor.u32 %v5365, %v5368
      %v5370 = vsel %vm5047, %v5361, %v5369
      %v5372 = vshrl.u32 %v5029, 16
      %v5374 = vrot.slane %v5372, 1
      %v5375 = vshll.u32 %v5029, 16
      %v5377 = vrot.slane %v5375, 2
      %v5378 = vor.u32 %v5374, %v5377
      %v5380 = vshrl.u32 %v5030, 16
      %v5382 = vrot.slane %v5380, 1
      %v5383 = vshll.u32 %v5030, 16
      %v5385 = vrot.slane %v5383, 2
      %v5386 = vor.u32 %v5382, %v5385
      %v5387 = vsel %vm5047, %v5378, %v5386
      %v5389 = vshrl.u32 %v5037, 16
      %v5391 = vrot.slane %v5389, 1
      %v5392 = vshll.u32 %v5037, 16
      %v5394 = vrot.slane %v5392, 2
      %v5395 = vor.u32 %v5391, %v5394
      %v5397 = vshrl.u32 %v5038, 16
      %v5399 = vrot.slane %v5397, 1
      %v5400 = vshll.u32 %v5038, 16
      %v5402 = vrot.slane %v5400, 2
      %v5403 = vor.u32 %v5399, %v5402
      %v5404 = vsel %vm5047, %v5395, %v5403
      %v5406 = vshrl.u32 %v5045, 16
      %v5408 = vrot.slane %v5406, 1
      %v5409 = vshll.u32 %v5045, 16
      %v5411 = vrot.slane %v5409, 2
      %v5412 = vor.u32 %v5408, %v5411
      %v5414 = vshrl.u32 %v5046, 16
      %v5416 = vrot.slane %v5414, 1
      %v5417 = vshll.u32 %v5046, 16
      %v5419 = vrot.slane %v5417, 2
      %v5420 = vor.u32 %v5416, %v5419
      %v5421 = vsel %vm5047, %v5412, %v5420
      %s5444 = scalar_lea.vmem %s2, 1344
      %v5445 = vld [vmem:[%s5444] sm:$0xf]
      %v5446 = vld [vmem:[%s5444 + $0x4] sm:$0xf]
      %v5447 = vld [vmem:[%s5444 + $0x8] sm:$0xf]
      %v5448 = vld [vmem:[%s5444 + $0xc] sm:$0xf]
      %v5449 = vld [vmem:[%s5444 + $0x10] sm:$0xf]
      %v5450 = vld [vmem:[%s5444 + $0x14] sm:$0xf]
      %v5451 = vld [vmem:[%s5444 + $0x18] sm:$0xf]
      %v5452 = vld [vmem:[%s5444 + $0x1c] sm:$0xf]
      %v5453 = vld [vmem:[%s5444 + $0x20] sm:$0xf]
      %v5454 = vld [vmem:[%s5444 + $0x24] sm:$0xf]
      %v5455 = vld [vmem:[%s5444 + $0x28] sm:$0xf]
      %v5456 = vld [vmem:[%s5444 + $0x2c] sm:$0xf]
      %v5457 = vld [vmem:[%s5444 + $0x30] sm:$0xf]
      %v5458 = vld [vmem:[%s5444 + $0x34] sm:$0xf]
      %v5459 = vld [vmem:[%s5444 + $0x38] sm:$0xf]
      %v5460 = vld [vmem:[%s5444 + $0x3c] sm:$0xf]
      %v5461 = vld [vmem:[%s5444 + $0x40] sm:$0xf]
      %v5462 = vld [vmem:[%s5444 + $0x44] sm:$0xf]
      %v5463 = vld [vmem:[%s5444 + $0x48] sm:$0xf]
      %v5464 = vld [vmem:[%s5444 + $0x4c] sm:$0xf]
      %v5465 = vld [vmem:[%s5444 + $0x50] sm:$0xf]
      %v5466 = vld [vmem:[%s5444 + $0x54] sm:$0xf]
      %v5467 = vld [vmem:[%s5444 + $0x58] sm:$0xf]
      %v5468 = vld [vmem:[%s5444 + $0x5c] sm:$0xf]
      %v5469 = vld [vmem:[%s5444 + $0x60] sm:$0xf]
      %v5470 = vld [vmem:[%s5444 + $0x64] sm:$0xf]
      %v5471 = vld [vmem:[%s5444 + $0x68] sm:$0xf]
      %v5472 = vld [vmem:[%s5444 + $0x6c] sm:$0xf]
      %v5473 = vld [vmem:[%s5444 + $0x70] sm:$0xf]
      %v5474 = vld [vmem:[%s5444 + $0x74] sm:$0xf]
      %v5475 = vld [vmem:[%s5444 + $0x78] sm:$0xf]
      %v5476 = vld [vmem:[%s5444 + $0x7c] sm:$0xf]
      %v5477 = vld [vmem:[%s5444 + $0x80] sm:$0xf]
      %v5478 = vld [vmem:[%s5444 + $0x84] sm:$0xf]
      %v5479 = vld [vmem:[%s5444 + $0x88] sm:$0xf]
      %v5480 = vld [vmem:[%s5444 + $0x8c] sm:$0xf]
      %v5481 = vld [vmem:[%s5444 + $0x90] sm:$0xf]
      %v5482 = vld [vmem:[%s5444 + $0x94] sm:$0xf]
      %v5483 = vld [vmem:[%s5444 + $0x98] sm:$0xf]
      %v5484 = vld [vmem:[%s5444 + $0x9c] sm:$0xf]
      %v5485 = vld [vmem:[%s5444 + $0xa0] sm:$0xf]
      %v5486 = vld [vmem:[%s5444 + $0xa4] sm:$0xf]
      %v5487 = vld [vmem:[%s5444 + $0xa8] sm:$0xf]
      %v5488 = vld [vmem:[%s5444 + $0xac] sm:$0xf]
      %v5489 = vld [vmem:[%s5444 + $0xb0] sm:$0xf]
      %v5490 = vld [vmem:[%s5444 + $0xb4] sm:$0xf]
      %v5491 = vld [vmem:[%s5444 + $0xb8] sm:$0xf]
      %v5492 = vld [vmem:[%s5444 + $0xbc] sm:$0xf]
      %v5493 = vld [vmem:[%s5444 + $0xc0] sm:$0xf]
      %v5494 = vld [vmem:[%s5444 + $0xc4] sm:$0xf]
      %v5495 = vld [vmem:[%s5444 + $0xc8] sm:$0xf]
      %v5496 = vld [vmem:[%s5444 + $0xcc] sm:$0xf]
      %v5497 = vld [vmem:[%s5444 + $0xd0] sm:$0xf]
      %v5498 = vld [vmem:[%s5444 + $0xd4] sm:$0xf]
      %v5499 = vld [vmem:[%s5444 + $0xd8] sm:$0xf]
      %v5500 = vld [vmem:[%s5444 + $0xdc] sm:$0xf]
      %v5501 = vld [vmem:[%s5444 + $0xe0] sm:$0xf]
      %v5502 = vld [vmem:[%s5444 + $0xe4] sm:$0xf]
      %v5503 = vld [vmem:[%s5444 + $0xe8] sm:$0xf]
      %v5504 = vld [vmem:[%s5444 + $0xec] sm:$0xf]
      %v5505 = vld [vmem:[%s5444 + $0xf0] sm:$0xf]
      %v5506 = vld [vmem:[%s5444 + $0xf4] sm:$0xf]
      %v5507 = vld [vmem:[%s5444 + $0xf8] sm:$0xf]
      %v5508 = vld [vmem:[%s5444 + $0xfc] sm:$0xf]
      %v5509 = vld [vmem:[%s5444 + $0x100] sm:$0xf]
      %v5510 = vld [vmem:[%s5444 + $0x104] sm:$0xf]
      %v5511 = vld [vmem:[%s5444 + $0x108] sm:$0xf]
      %v5512 = vld [vmem:[%s5444 + $0x10c] sm:$0xf]
      %v5513 = vld [vmem:[%s5444 + $0x110] sm:$0xf]
      %v5514 = vld [vmem:[%s5444 + $0x114] sm:$0xf]
      %v5515 = vld [vmem:[%s5444 + $0x118] sm:$0xf]
      %v5516 = vld [vmem:[%s5444 + $0x11c] sm:$0xf]
      %v5517 = vld [vmem:[%s5444 + $0x120] sm:$0xf]
      %v5518 = vld [vmem:[%s5444 + $0x124] sm:$0xf]
      %v5519 = vld [vmem:[%s5444 + $0x128] sm:$0xf]
      %v5520 = vld [vmem:[%s5444 + $0x12c] sm:$0xf]
      %v5521 = vld [vmem:[%s5444 + $0x130] sm:$0xf]
      %v5522 = vld [vmem:[%s5444 + $0x134] sm:$0xf]
      %v5523 = vld [vmem:[%s5444 + $0x138] sm:$0xf]
      %v5524 = vld [vmem:[%s5444 + $0x13c] sm:$0xf]
      %v5525 = vld [vmem:[%s5444 + $0x140] sm:$0xf]
      %v5526 = vld [vmem:[%s5444 + $0x144] sm:$0xf]
      %v5527 = vld [vmem:[%s5444 + $0x148] sm:$0xf]
      %v5528 = vld [vmem:[%s5444 + $0x14c] sm:$0xf]
      %v5529 = vld [vmem:[%s5444 + $0x150] sm:$0xf]
      %v5530 = vld [vmem:[%s5444 + $0x154] sm:$0xf]
      %v5531 = vld [vmem:[%s5444 + $0x158] sm:$0xf]
      %v5532 = vld [vmem:[%s5444 + $0x15c] sm:$0xf]
      %v5533 = vld [vmem:[%s5444 + $0x160] sm:$0xf]
      %v5534 = vld [vmem:[%s5444 + $0x164] sm:$0xf]
      %v5535 = vld [vmem:[%s5444 + $0x168] sm:$0xf]
      %v5536 = vld [vmem:[%s5444 + $0x16c] sm:$0xf]
      %v5537 = vld [vmem:[%s5444 + $0x170] sm:$0xf]
      %v5538 = vld [vmem:[%s5444 + $0x174] sm:$0xf]
      %v5539 = vld [vmem:[%s5444 + $0x178] sm:$0xf]
      %v5540 = vld [vmem:[%s5444 + $0x17c] sm:$0xf]
      %v5541 = vld [vmem:[%s5444 + $0x180] sm:$0xf]
      %v5542 = vld [vmem:[%s5444 + $0x184] sm:$0xf]
      %v5543 = vld [vmem:[%s5444 + $0x188] sm:$0xf]
      %v5544 = vld [vmem:[%s5444 + $0x18c] sm:$0xf]
      %v5545 = vld [vmem:[%s5444 + $0x190] sm:$0xf]
      %v5546 = vld [vmem:[%s5444 + $0x194] sm:$0xf]
      %v5547 = vld [vmem:[%s5444 + $0x198] sm:$0xf]
      %v5548 = vld [vmem:[%s5444 + $0x19c] sm:$0xf]
      %v5549 = vld [vmem:[%s5444 + $0x1a0] sm:$0xf]
      %v5550 = vld [vmem:[%s5444 + $0x1a4] sm:$0xf]
      %v5551 = vld [vmem:[%s5444 + $0x1a8] sm:$0xf]
      %v5552 = vld [vmem:[%s5444 + $0x1ac] sm:$0xf]
      %v5553 = vld [vmem:[%s5444 + $0x1b0] sm:$0xf]
      %v5554 = vld [vmem:[%s5444 + $0x1b4] sm:$0xf]
      %v5555 = vld [vmem:[%s5444 + $0x1b8] sm:$0xf]
      %v5556 = vld [vmem:[%s5444 + $0x1bc] sm:$0xf]
      %v5669 = vunpack.c.l.b16 %v5445
      %v5670 = vunpack.c.l.b16 %v5446
      %v5671 = vunpack.c.l.b16 %v5447
      %v5672 = vunpack.c.l.b16 %v5448
      %v5673 = vunpack.c.l.b16 %v5449
      %v5674 = vunpack.c.l.b16 %v5450
      %v5675 = vunpack.c.l.b16 %v5451
      %v5676 = vunpack.c.l.b16 %v5452
      %v5677 = vunpack.c.l.b16 %v5453
      %v5678 = vunpack.c.l.b16 %v5454
      %v5679 = vunpack.c.l.b16 %v5455
      %v5680 = vunpack.c.l.b16 %v5456
      %v5681 = vunpack.c.l.b16 %v5457
      %v5682 = vunpack.c.l.b16 %v5458
      %v5683 = vunpack.c.l.b16 %v5459
      %v5684 = vunpack.c.l.b16 %v5460
      %v5685 = vunpack.c.l.b16 %v5461
      %v5686 = vunpack.c.l.b16 %v5462
      %v5687 = vunpack.c.l.b16 %v5463
      %v5688 = vunpack.c.l.b16 %v5464
      %v5689 = vunpack.c.l.b16 %v5465
      %v5690 = vunpack.c.l.b16 %v5466
      %v5691 = vunpack.c.l.b16 %v5467
      %v5692 = vunpack.c.l.b16 %v5468
      %v5693 = vunpack.c.l.b16 %v5469
      %v5694 = vunpack.c.l.b16 %v5470
      %v5695 = vunpack.c.l.b16 %v5471
      %v5696 = vunpack.c.l.b16 %v5472
      %v5697 = vunpack.c.l.b16 %v5473
      %v5698 = vunpack.c.l.b16 %v5474
      %v5699 = vunpack.c.l.b16 %v5475
      %v5700 = vunpack.c.l.b16 %v5476
      %v5701 = vunpack.c.l.b16 %v5477
      %v5702 = vunpack.c.l.b16 %v5478
      %v5703 = vunpack.c.l.b16 %v5479
      %v5704 = vunpack.c.l.b16 %v5480
      %v5705 = vunpack.c.l.b16 %v5481
      %v5706 = vunpack.c.l.b16 %v5482
      %v5707 = vunpack.c.l.b16 %v5483
      %v5708 = vunpack.c.l.b16 %v5484
      %v5709 = vunpack.c.l.b16 %v5485
      %v5710 = vunpack.c.l.b16 %v5486
      %v5711 = vunpack.c.l.b16 %v5487
      %v5712 = vunpack.c.l.b16 %v5488
      %v5713 = vunpack.c.l.b16 %v5489
      %v5714 = vunpack.c.l.b16 %v5490
      %v5715 = vunpack.c.l.b16 %v5491
      %v5716 = vunpack.c.l.b16 %v5492
      %v5717 = vunpack.c.l.b16 %v5493
      %v5718 = vunpack.c.l.b16 %v5494
      %v5719 = vunpack.c.l.b16 %v5495
      %v5720 = vunpack.c.l.b16 %v5496
      %v5721 = vunpack.c.l.b16 %v5497
      %v5722 = vunpack.c.l.b16 %v5498
      %v5723 = vunpack.c.l.b16 %v5499
      %v5724 = vunpack.c.l.b16 %v5500
      %v5725 = vunpack.c.l.b16 %v5501
      %v5726 = vunpack.c.l.b16 %v5502
      %v5727 = vunpack.c.l.b16 %v5503
      %v5728 = vunpack.c.l.b16 %v5504
      %v5729 = vunpack.c.l.b16 %v5505
      %v5730 = vunpack.c.l.b16 %v5506
      %v5731 = vunpack.c.l.b16 %v5507
      %v5732 = vunpack.c.l.b16 %v5508
      %v5733 = vunpack.c.l.b16 %v5509
      %v5734 = vunpack.c.l.b16 %v5510
      %v5735 = vunpack.c.l.b16 %v5511
      %v5736 = vunpack.c.l.b16 %v5512
      %v5737 = vunpack.c.l.b16 %v5513
      %v5738 = vunpack.c.l.b16 %v5514
      %v5739 = vunpack.c.l.b16 %v5515
      %v5740 = vunpack.c.l.b16 %v5516
      %v5741 = vunpack.c.l.b16 %v5517
      %v5742 = vunpack.c.l.b16 %v5518
      %v5743 = vunpack.c.l.b16 %v5519
      %v5744 = vunpack.c.l.b16 %v5520
      %v5745 = vunpack.c.l.b16 %v5521
      %v5746 = vunpack.c.l.b16 %v5522
      %v5747 = vunpack.c.l.b16 %v5523
      %v5748 = vunpack.c.l.b16 %v5524
      %v5749 = vunpack.c.l.b16 %v5525
      %v5750 = vunpack.c.l.b16 %v5526
      %v5751 = vunpack.c.l.b16 %v5527
      %v5752 = vunpack.c.l.b16 %v5528
      %v5753 = vunpack.c.l.b16 %v5529
      %v5754 = vunpack.c.l.b16 %v5530
      %v5755 = vunpack.c.l.b16 %v5531
      %v5756 = vunpack.c.l.b16 %v5532
      %v5757 = vunpack.c.l.b16 %v5533
      %v5758 = vunpack.c.l.b16 %v5534
      %v5759 = vunpack.c.l.b16 %v5535
      %v5760 = vunpack.c.l.b16 %v5536
      %v5761 = vunpack.c.l.b16 %v5537
      %v5762 = vunpack.c.l.b16 %v5538
      %v5763 = vunpack.c.l.b16 %v5539
      %v5764 = vunpack.c.l.b16 %v5540
      %v5765 = vunpack.c.l.b16 %v5541
      %v5766 = vunpack.c.l.b16 %v5542
      %v5767 = vunpack.c.l.b16 %v5543
      %v5768 = vunpack.c.l.b16 %v5544
      %v5769 = vunpack.c.l.b16 %v5545
      %v5770 = vunpack.c.l.b16 %v5546
      %v5771 = vunpack.c.l.b16 %v5547
      %v5772 = vunpack.c.l.b16 %v5548
      %v5773 = vunpack.c.l.b16 %v5549
      %v5774 = vunpack.c.l.b16 %v5550
      %v5775 = vunpack.c.l.b16 %v5551
      %v5776 = vunpack.c.l.b16 %v5552
      %v5777 = vunpack.c.l.b16 %v5553
      %v5778 = vunpack.c.l.b16 %v5554
      %v5779 = vunpack.c.l.b16 %v5555
      %v5780 = vunpack.c.l.b16 %v5556
      %v5781 = vpack.c.b16 %v5670, %v5669
      %v5782 = vpack.c.b16 %v5672, %v5671
      %v5783 = vpack.c.b16 %v5674, %v5673
      %v5784 = vpack.c.b16 %v5676, %v5675
      %v5785 = vpack.c.b16 %v5678, %v5677
      %v5786 = vpack.c.b16 %v5680, %v5679
      %v5787 = vpack.c.b16 %v5682, %v5681
      %v5788 = vpack.c.b16 %v5684, %v5683
      %v5789 = vpack.c.b16 %v5686, %v5685
      %v5790 = vpack.c.b16 %v5688, %v5687
      %v5791 = vpack.c.b16 %v5690, %v5689
      %v5792 = vpack.c.b16 %v5692, %v5691
      %v5793 = vpack.c.b16 %v5694, %v5693
      %v5794 = vpack.c.b16 %v5696, %v5695
      %v5795 = vpack.c.b16 %v5698, %v5697
      %v5796 = vpack.c.b16 %v5700, %v5699
      %v5797 = vpack.c.b16 %v5702, %v5701
      %v5798 = vpack.c.b16 %v5704, %v5703
      %v5799 = vpack.c.b16 %v5706, %v5705
      %v5800 = vpack.c.b16 %v5708, %v5707
      %v5801 = vpack.c.b16 %v5710, %v5709
      %v5802 = vpack.c.b16 %v5712, %v5711
      %v5803 = vpack.c.b16 %v5714, %v5713
      %v5804 = vpack.c.b16 %v5716, %v5715
      %v5805 = vpack.c.b16 %v5718, %v5717
      %v5806 = vpack.c.b16 %v5720, %v5719
      %v5807 = vpack.c.b16 %v5722, %v5721
      %v5808 = vpack.c.b16 %v5724, %v5723
      %v5809 = vpack.c.b16 %v5726, %v5725
      %v5810 = vpack.c.b16 %v5728, %v5727
      %v5811 = vpack.c.b16 %v5730, %v5729
      %v5812 = vpack.c.b16 %v5732, %v5731
      %v5813 = vpack.c.b16 %v5734, %v5733
      %v5814 = vpack.c.b16 %v5736, %v5735
      %v5815 = vpack.c.b16 %v5738, %v5737
      %v5816 = vpack.c.b16 %v5740, %v5739
      %v5817 = vpack.c.b16 %v5742, %v5741
      %v5818 = vpack.c.b16 %v5744, %v5743
      %v5819 = vpack.c.b16 %v5746, %v5745
      %v5820 = vpack.c.b16 %v5748, %v5747
      %v5821 = vpack.c.b16 %v5750, %v5749
      %v5822 = vpack.c.b16 %v5752, %v5751
      %v5823 = vpack.c.b16 %v5754, %v5753
      %v5824 = vpack.c.b16 %v5756, %v5755
      %v5825 = vpack.c.b16 %v5758, %v5757
      %v5826 = vpack.c.b16 %v5760, %v5759
      %v5827 = vpack.c.b16 %v5762, %v5761
      %v5828 = vpack.c.b16 %v5764, %v5763
      %v5829 = vpack.c.b16 %v5766, %v5765
      %v5830 = vpack.c.b16 %v5768, %v5767
      %v5831 = vpack.c.b16 %v5770, %v5769
      %v5832 = vpack.c.b16 %v5772, %v5771
      %v5833 = vpack.c.b16 %v5774, %v5773
      %v5834 = vpack.c.b16 %v5776, %v5775
      %v5835 = vpack.c.b16 %v5778, %v5777
      %v5836 = vpack.c.b16 %v5780, %v5779
      %5893 = vmatpush.bf16.msra.mxu0 %v5788
      %5894 = vmatpush.bf16.msra.mxu0 %v5787
      %5895 = vmatpush.bf16.msra.mxu0 %v5786
      %5896 = vmatpush.bf16.msra.mxu0 %v5785
      %5897 = vmatpush.bf16.msra.mxu0 %v5784
      %5898 = vmatpush.bf16.msra.mxu0 %v5783
      %5899 = vmatpush.bf16.msra.mxu0 %v5782
      %5900 = vmatpush.bf16.msra.mxu0 %v5781
      %5901 = vmatmul.bf16.gmra.mxu0 %v5064
      %v5902 = vpop.f32.mrf.mxu0
      %v5903 = vadd.f32 0.0, %v5902
      %v5904 = vpop.f32.mrf.mxu0
      %v5905 = vadd.f32 0.0, %v5904
      %5906 = vmatmul.bf16.gmra.mxu0 %v5081
      %v5907 = vpop.f32.mrf.mxu0
      %v5908 = vadd.f32 0.0, %v5907
      %v5909 = vpop.f32.mrf.mxu0
      %v5910 = vadd.f32 0.0, %v5909
      %5911 = vmatmul.bf16.gmra.mxu0 %v5098
      %v5912 = vpop.f32.mrf.mxu0
      %v5913 = vadd.f32 0.0, %v5912
      %v5914 = vpop.f32.mrf.mxu0
      %v5915 = vadd.f32 0.0, %v5914
      %5916 = vmatmul.bf16.gmra.mxu0 %v5115
      %v5917 = vpop.f32.mrf.mxu0
      %v5918 = vadd.f32 0.0, %v5917
      %v5919 = vpop.f32.mrf.mxu0
      %v5920 = vadd.f32 0.0, %v5919
      %5921 = vmatmul.bf16.gmra.mxu0 %v5132
      %v5922 = vpop.f32.mrf.mxu0
      %v5923 = vadd.f32 0.0, %v5922
      %v5924 = vpop.f32.mrf.mxu0
      %v5925 = vadd.f32 0.0, %v5924
      %5926 = vmatmul.bf16.gmra.mxu0 %v5149
      %v5927 = vpop.f32.mrf.mxu0
      %v5928 = vadd.f32 0.0, %v5927
      %v5929 = vpop.f32.mrf.mxu0
      %v5930 = vadd.f32 0.0, %v5929
      %5931 = vmatmul.bf16.gmra.mxu0 %v5166
      %v5932 = vpop.f32.mrf.mxu0
      %v5933 = vadd.f32 0.0, %v5932
      %v5934 = vpop.f32.mrf.mxu0
      %v5935 = vadd.f32 0.0, %v5934
      %5936 = vmatmul.bf16.gmra.mxu0 %v5183
      %v5937 = vpop.f32.mrf.mxu0
      %v5938 = vadd.f32 0.0, %v5937
      %v5939 = vpop.f32.mrf.mxu0
      %v5940 = vadd.f32 0.0, %v5939
      %5941 = vmatmul.bf16.gmra.mxu0 %v5200
      %v5942 = vpop.f32.mrf.mxu0
      %v5943 = vadd.f32 0.0, %v5942
      %v5944 = vpop.f32.mrf.mxu0
      %v5945 = vadd.f32 0.0, %v5944
      %5946 = vmatmul.bf16.gmra.mxu0 %v5217
      %v5947 = vpop.f32.mrf.mxu0
      %v5948 = vadd.f32 0.0, %v5947
      %v5949 = vpop.f32.mrf.mxu0
      %v5950 = vadd.f32 0.0, %v5949
      %5951 = vmatmul.bf16.gmra.mxu0 %v5234
      %v5952 = vpop.f32.mrf.mxu0
      %v5953 = vadd.f32 0.0, %v5952
      %v5954 = vpop.f32.mrf.mxu0
      %v5955 = vadd.f32 0.0, %v5954
      %5956 = vmatmul.bf16.gmra.mxu0 %v5251
      %v5957 = vpop.f32.mrf.mxu0
      %v5958 = vadd.f32 0.0, %v5957
      %v5959 = vpop.f32.mrf.mxu0
      %v5960 = vadd.f32 0.0, %v5959
      %5961 = vmatmul.bf16.gmra.mxu0 %v5268
      %v5962 = vpop.f32.mrf.mxu0
      %v5963 = vadd.f32 0.0, %v5962
      %v5964 = vpop.f32.mrf.mxu0
      %v5965 = vadd.f32 0.0, %v5964
      %5966 = vmatmul.bf16.gmra.mxu0 %v5285
      %v5967 = vpop.f32.mrf.mxu0
      %v5968 = vadd.f32 0.0, %v5967
      %v5969 = vpop.f32.mrf.mxu0
      %v5970 = vadd.f32 0.0, %v5969
      %5971 = vmatmul.bf16.gmra.mxu0 %v5302
      %v5972 = vpop.f32.mrf.mxu0
      %v5973 = vadd.f32 0.0, %v5972
      %v5974 = vpop.f32.mrf.mxu0
      %v5975 = vadd.f32 0.0, %v5974
      %5976 = vmatmul.bf16.gmra.mxu0 %v5319
      %v5977 = vpop.f32.mrf.mxu0
      %v5978 = vadd.f32 0.0, %v5977
      %v5979 = vpop.f32.mrf.mxu0
      %v5980 = vadd.f32 0.0, %v5979
      %5981 = vdwg.mxu0
      %5982 = vmatpush.bf16.msra.mxu0 %v5796
      %5983 = vmatpush.bf16.msra.mxu0 %v5795
      %5984 = vmatpush.bf16.msra.mxu0 %v5794
      %5985 = vmatpush.bf16.msra.mxu0 %v5793
      %5986 = vmatpush.bf16.msra.mxu0 %v5792
      %5987 = vmatpush.bf16.msra.mxu0 %v5791
      %5988 = vmatpush.bf16.msra.mxu0 %v5790
      %5989 = vmatpush.bf16.msra.mxu0 %v5789
      %5990 = vmatmul.bf16.gmra.mxu0 %v5081
      %v5991 = vpop.f32.mrf.mxu0
      %v5992 = vadd.f32 %v5903, %v5991
      %v5993 = vpop.f32.mrf.mxu0
      %v5994 = vadd.f32 %v5905, %v5993
      %5995 = vmatmul.bf16.gmra.mxu0 %v5098
      %v5996 = vpop.f32.mrf.mxu0
      %v5997 = vadd.f32 %v5908, %v5996
      %v5998 = vpop.f32.mrf.mxu0
      %v5999 = vadd.f32 %v5910, %v5998
      %6000 = vmatmul.bf16.gmra.mxu0 %v5115
      %v6001 = vpop.f32.mrf.mxu0
      %v6002 = vadd.f32 %v5913, %v6001
      %v6003 = vpop.f32.mrf.mxu0
      %v6004 = vadd.f32 %v5915, %v6003
      %6005 = vmatmul.bf16.gmra.mxu0 %v5132
      %v6006 = vpop.f32.mrf.mxu0
      %v6007 = vadd.f32 %v5918, %v6006
      %v6008 = vpop.f32.mrf.mxu0
      %v6009 = vadd.f32 %v5920, %v6008
      %6010 = vmatmul.bf16.gmra.mxu0 %v5149
      %v6011 = vpop.f32.mrf.mxu0
      %v6012 = vadd.f32 %v5923, %v6011
      %v6013 = vpop.f32.mrf.mxu0
      %v6014 = vadd.f32 %v5925, %v6013
      %6015 = vmatmul.bf16.gmra.mxu0 %v5166
      %v6016 = vpop.f32.mrf.mxu0
      %v6017 = vadd.f32 %v5928, %v6016
      %v6018 = vpop.f32.mrf.mxu0
      %v6019 = vadd.f32 %v5930, %v6018
      %6020 = vmatmul.bf16.gmra.mxu0 %v5183
      %v6021 = vpop.f32.mrf.mxu0
      %v6022 = vadd.f32 %v5933, %v6021
      %v6023 = vpop.f32.mrf.mxu0
      %v6024 = vadd.f32 %v5935, %v6023
      %6025 = vmatmul.bf16.gmra.mxu0 %v5200
      %v6026 = vpop.f32.mrf.mxu0
      %v6027 = vadd.f32 %v5938, %v6026
      %v6028 = vpop.f32.mrf.mxu0
      %v6029 = vadd.f32 %v5940, %v6028
      %6030 = vmatmul.bf16.gmra.mxu0 %v5217
      %v6031 = vpop.f32.mrf.mxu0
      %v6032 = vadd.f32 %v5943, %v6031
      %v6033 = vpop.f32.mrf.mxu0
      %v6034 = vadd.f32 %v5945, %v6033
      %6035 = vmatmul.bf16.gmra.mxu0 %v5234
      %v6036 = vpop.f32.mrf.mxu0
      %v6037 = vadd.f32 %v5948, %v6036
      %v6038 = vpop.f32.mrf.mxu0
      %v6039 = vadd.f32 %v5950, %v6038
      %6040 = vmatmul.bf16.gmra.mxu0 %v5251
      %v6041 = vpop.f32.mrf.mxu0
      %v6042 = vadd.f32 %v5953, %v6041
      %v6043 = vpop.f32.mrf.mxu0
      %v6044 = vadd.f32 %v5955, %v6043
      %6045 = vmatmul.bf16.gmra.mxu0 %v5268
      %v6046 = vpop.f32.mrf.mxu0
      %v6047 = vadd.f32 %v5958, %v6046
      %v6048 = vpop.f32.mrf.mxu0
      %v6049 = vadd.f32 %v5960, %v6048
      %6050 = vmatmul.bf16.gmra.mxu0 %v5285
      %v6051 = vpop.f32.mrf.mxu0
      %v6052 = vadd.f32 %v5963, %v6051
      %v6053 = vpop.f32.mrf.mxu0
      %v6054 = vadd.f32 %v5965, %v6053
      %6055 = vmatmul.bf16.gmra.mxu0 %v5302
      %v6056 = vpop.f32.mrf.mxu0
      %v6057 = vadd.f32 %v5968, %v6056
      %v6058 = vpop.f32.mrf.mxu0
      %v6059 = vadd.f32 %v5970, %v6058
      %6060 = vmatmul.bf16.gmra.mxu0 %v5319
      %v6061 = vpop.f32.mrf.mxu0
      %v6062 = vadd.f32 %v5973, %v6061
      %v6063 = vpop.f32.mrf.mxu0
      %v6064 = vadd.f32 %v5975, %v6063
      %6065 = vmatmul.bf16.gmra.mxu0 %v5336
      %v6066 = vpop.f32.mrf.mxu0
      %v6067 = vadd.f32 %v5978, %v6066
      %v6068 = vpop.f32.mrf.mxu0
      %v6069 = vadd.f32 %v5980, %v6068
      %6070 = vdwg.mxu0
      %6071 = vmatpush.bf16.msra.mxu0 %v5804
      %6072 = vmatpush.bf16.msra.mxu0 %v5803
      %6073 = vmatpush.bf16.msra.mxu0 %v5802
      %6074 = vmatpush.bf16.msra.mxu0 %v5801
      %6075 = vmatpush.bf16.msra.mxu0 %v5800
      %6076 = vmatpush.bf16.msra.mxu0 %v5799
      %6077 = vmatpush.bf16.msra.mxu0 %v5798
      %6078 = vmatpush.bf16.msra.mxu0 %v5797
      %6079 = vmatmul.bf16.gmra.mxu0 %v5098
      %v6080 = vpop.f32.mrf.mxu0
      %v6081 = vadd.f32 %v5992, %v6080
      %v6082 = vpop.f32.mrf.mxu0
      %v6083 = vadd.f32 %v5994, %v6082
      %6084 = vmatmul.bf16.gmra.mxu0 %v5115
      %v6085 = vpop.f32.mrf.mxu0
      %v6086 = vadd.f32 %v5997, %v6085
      %v6087 = vpop.f32.mrf.mxu0
      %v6088 = vadd.f32 %v5999, %v6087
      %6089 = vmatmul.bf16.gmra.mxu0 %v5132
      %v6090 = vpop.f32.mrf.mxu0
      %v6091 = vadd.f32 %v6002, %v6090
      %v6092 = vpop.f32.mrf.mxu0
      %v6093 = vadd.f32 %v6004, %v6092
      %6094 = vmatmul.bf16.gmra.mxu0 %v5149
      %v6095 = vpop.f32.mrf.mxu0
      %v6096 = vadd.f32 %v6007, %v6095
      %v6097 = vpop.f32.mrf.mxu0
      %v6098 = vadd.f32 %v6009, %v6097
      %6099 = vmatmul.bf16.gmra.mxu0 %v5166
      %v6100 = vpop.f32.mrf.mxu0
      %v6101 = vadd.f32 %v6012, %v6100
      %v6102 = vpop.f32.mrf.mxu0
      %v6103 = vadd.f32 %v6014, %v6102
      %6104 = vmatmul.bf16.gmra.mxu0 %v5183
      %v6105 = vpop.f32.mrf.mxu0
      %v6106 = vadd.f32 %v6017, %v6105
      %v6107 = vpop.f32.mrf.mxu0
      %v6108 = vadd.f32 %v6019, %v6107
      %6109 = vmatmul.bf16.gmra.mxu0 %v5200
      %v6110 = vpop.f32.mrf.mxu0
      %v6111 = vadd.f32 %v6022, %v6110
      %v6112 = vpop.f32.mrf.mxu0
      %v6113 = vadd.f32 %v6024, %v6112
      %6114 = vmatmul.bf16.gmra.mxu0 %v5217
      %v6115 = vpop.f32.mrf.mxu0
      %v6116 = vadd.f32 %v6027, %v6115
      %v6117 = vpop.f32.mrf.mxu0
      %v6118 = vadd.f32 %v6029, %v6117
      %6119 = vmatmul.bf16.gmra.mxu0 %v5234
      %v6120 = vpop.f32.mrf.mxu0
      %v6121 = vadd.f32 %v6032, %v6120
      %v6122 = vpop.f32.mrf.mxu0
      %v6123 = vadd.f32 %v6034, %v6122
      %6124 = vmatmul.bf16.gmra.mxu0 %v5251
      %v6125 = vpop.f32.mrf.mxu0
      %v6126 = vadd.f32 %v6037, %v6125
      %v6127 = vpop.f32.mrf.mxu0
      %v6128 = vadd.f32 %v6039, %v6127
      %6129 = vmatmul.bf16.gmra.mxu0 %v5268
      %v6130 = vpop.f32.mrf.mxu0
      %v6131 = vadd.f32 %v6042, %v6130
      %v6132 = vpop.f32.mrf.mxu0
      %v6133 = vadd.f32 %v6044, %v6132
      %6134 = vmatmul.bf16.gmra.mxu0 %v5285
      %v6135 = vpop.f32.mrf.mxu0
      %v6136 = vadd.f32 %v6047, %v6135
      %v6137 = vpop.f32.mrf.mxu0
      %v6138 = vadd.f32 %v6049, %v6137
      %6139 = vmatmul.bf16.gmra.mxu0 %v5302
      %v6140 = vpop.f32.mrf.mxu0
      %v6141 = vadd.f32 %v6052, %v6140
      %v6142 = vpop.f32.mrf.mxu0
      %v6143 = vadd.f32 %v6054, %v6142
      %6144 = vmatmul.bf16.gmra.mxu0 %v5319
      %v6145 = vpop.f32.mrf.mxu0
      %v6146 = vadd.f32 %v6057, %v6145
      %v6147 = vpop.f32.mrf.mxu0
      %v6148 = vadd.f32 %v6059, %v6147
      %6149 = vmatmul.bf16.gmra.mxu0 %v5336
      %v6150 = vpop.f32.mrf.mxu0
      %v6151 = vadd.f32 %v6062, %v6150
      %v6152 = vpop.f32.mrf.mxu0
      %v6153 = vadd.f32 %v6064, %v6152
      %6154 = vmatmul.bf16.gmra.mxu0 %v5353
      %v6155 = vpop.f32.mrf.mxu0
      %v6156 = vadd.f32 %v6067, %v6155
      %v6157 = vpop.f32.mrf.mxu0
      %v6158 = vadd.f32 %v6069, %v6157
      %6159 = vdwg.mxu0
      %6160 = vmatpush.bf16.msra.mxu0 %v5812
      %6161 = vmatpush.bf16.msra.mxu0 %v5811
      %6162 = vmatpush.bf16.msra.mxu0 %v5810
      %6163 = vmatpush.bf16.msra.mxu0 %v5809
      %6164 = vmatpush.bf16.msra.mxu0 %v5808
      %6165 = vmatpush.bf16.msra.mxu0 %v5807
      %6166 = vmatpush.bf16.msra.mxu0 %v5806
      %6167 = vmatpush.bf16.msra.mxu0 %v5805
      %6168 = vmatmul.bf16.gmra.mxu0 %v5115
      %v6169 = vpop.f32.mrf.mxu0
      %v6170 = vadd.f32 %v6081, %v6169
      %v6171 = vpop.f32.mrf.mxu0
      %v6172 = vadd.f32 %v6083, %v6171
      %6173 = vmatmul.bf16.gmra.mxu0 %v5132
      %v6174 = vpop.f32.mrf.mxu0
      %v6175 = vadd.f32 %v6086, %v6174
      %v6176 = vpop.f32.mrf.mxu0
      %v6177 = vadd.f32 %v6088, %v6176
      %6178 = vmatmul.bf16.gmra.mxu0 %v5149
      %v6179 = vpop.f32.mrf.mxu0
      %v6180 = vadd.f32 %v6091, %v6179
      %v6181 = vpop.f32.mrf.mxu0
      %v6182 = vadd.f32 %v6093, %v6181
      %6183 = vmatmul.bf16.gmra.mxu0 %v5166
      %v6184 = vpop.f32.mrf.mxu0
      %v6185 = vadd.f32 %v6096, %v6184
      %v6186 = vpop.f32.mrf.mxu0
      %v6187 = vadd.f32 %v6098, %v6186
      %6188 = vmatmul.bf16.gmra.mxu0 %v5183
      %v6189 = vpop.f32.mrf.mxu0
      %v6190 = vadd.f32 %v6101, %v6189
      %v6191 = vpop.f32.mrf.mxu0
      %v6192 = vadd.f32 %v6103, %v6191
      %6193 = vmatmul.bf16.gmra.mxu0 %v5200
      %v6194 = vpop.f32.mrf.mxu0
      %v6195 = vadd.f32 %v6106, %v6194
      %v6196 = vpop.f32.mrf.mxu0
      %v6197 = vadd.f32 %v6108, %v6196
      %6198 = vmatmul.bf16.gmra.mxu0 %v5217
      %v6199 = vpop.f32.mrf.mxu0
      %v6200 = vadd.f32 %v6111, %v6199
      %v6201 = vpop.f32.mrf.mxu0
      %v6202 = vadd.f32 %v6113, %v6201
      %6203 = vmatmul.bf16.gmra.mxu0 %v5234
      %v6204 = vpop.f32.mrf.mxu0
      %v6205 = vadd.f32 %v6116, %v6204
      %v6206 = vpop.f32.mrf.mxu0
      %v6207 = vadd.f32 %v6118, %v6206
      %6208 = vmatmul.bf16.gmra.mxu0 %v5251
      %v6209 = vpop.f32.mrf.mxu0
      %v6210 = vadd.f32 %v6121, %v6209
      %v6211 = vpop.f32.mrf.mxu0
      %v6212 = vadd.f32 %v6123, %v6211
      %6213 = vmatmul.bf16.gmra.mxu0 %v5268
      %v6214 = vpop.f32.mrf.mxu0
      %v6215 = vadd.f32 %v6126, %v6214
      %v6216 = vpop.f32.mrf.mxu0
      %v6217 = vadd.f32 %v6128, %v6216
      %6218 = vmatmul.bf16.gmra.mxu0 %v5285
      %v6219 = vpop.f32.mrf.mxu0
      %v6220 = vadd.f32 %v6131, %v6219
      %v6221 = vpop.f32.mrf.mxu0
      %v6222 = vadd.f32 %v6133, %v6221
      %6223 = vmatmul.bf16.gmra.mxu0 %v5302
      %v6224 = vpop.f32.mrf.mxu0
      %v6225 = vadd.f32 %v6136, %v6224
      %v6226 = vpop.f32.mrf.mxu0
      %v6227 = vadd.f32 %v6138, %v6226
      %6228 = vmatmul.bf16.gmra.mxu0 %v5319
      %v6229 = vpop.f32.mrf.mxu0
      %v6230 = vadd.f32 %v6141, %v6229
      %v6231 = vpop.f32.mrf.mxu0
      %v6232 = vadd.f32 %v6143, %v6231
      %6233 = vmatmul.bf16.gmra.mxu0 %v5336
      %v6234 = vpop.f32.mrf.mxu0
      %v6235 = vadd.f32 %v6146, %v6234
      %v6236 = vpop.f32.mrf.mxu0
      %v6237 = vadd.f32 %v6148, %v6236
      %6238 = vmatmul.bf16.gmra.mxu0 %v5353
      %v6239 = vpop.f32.mrf.mxu0
      %v6240 = vadd.f32 %v6151, %v6239
      %v6241 = vpop.f32.mrf.mxu0
      %v6242 = vadd.f32 %v6153, %v6241
      %6243 = vmatmul.bf16.gmra.mxu0 %v5370
      %v6244 = vpop.f32.mrf.mxu0
      %v6245 = vadd.f32 %v6156, %v6244
      %v6246 = vpop.f32.mrf.mxu0
      %v6247 = vadd.f32 %v6158, %v6246
      %6248 = vdwg.mxu0
      %6249 = vmatpush.bf16.msra.mxu0 %v5820
      %6250 = vmatpush.bf16.msra.mxu0 %v5819
      %6251 = vmatpush.bf16.msra.mxu0 %v5818
      %6252 = vmatpush.bf16.msra.mxu0 %v5817
      %6253 = vmatpush.bf16.msra.mxu0 %v5816
      %6254 = vmatpush.bf16.msra.mxu0 %v5815
      %6255 = vmatpush.bf16.msra.mxu0 %v5814
      %6256 = vmatpush.bf16.msra.mxu0 %v5813
      %6257 = vmatmul.bf16.gmra.mxu0 %v5132
      %v6258 = vpop.f32.mrf.mxu0
      %v6259 = vadd.f32 %v6170, %v6258
      %v6260 = vpop.f32.mrf.mxu0
      %v6261 = vadd.f32 %v6172, %v6260
      %6262 = vmatmul.bf16.gmra.mxu0 %v5149
      %v6263 = vpop.f32.mrf.mxu0
      %v6264 = vadd.f32 %v6175, %v6263
      %v6265 = vpop.f32.mrf.mxu0
      %v6266 = vadd.f32 %v6177, %v6265
      %6267 = vmatmul.bf16.gmra.mxu0 %v5166
      %v6268 = vpop.f32.mrf.mxu0
      %v6269 = vadd.f32 %v6180, %v6268
      %v6270 = vpop.f32.mrf.mxu0
      %v6271 = vadd.f32 %v6182, %v6270
      %6272 = vmatmul.bf16.gmra.mxu0 %v5183
      %v6273 = vpop.f32.mrf.mxu0
      %v6274 = vadd.f32 %v6185, %v6273
      %v6275 = vpop.f32.mrf.mxu0
      %v6276 = vadd.f32 %v6187, %v6275
      %6277 = vmatmul.bf16.gmra.mxu0 %v5200
      %v6278 = vpop.f32.mrf.mxu0
      %v6279 = vadd.f32 %v6190, %v6278
      %v6280 = vpop.f32.mrf.mxu0
      %v6281 = vadd.f32 %v6192, %v6280
      %6282 = vmatmul.bf16.gmra.mxu0 %v5217
      %v6283 = vpop.f32.mrf.mxu0
      %v6284 = vadd.f32 %v6195, %v6283
      %v6285 = vpop.f32.mrf.mxu0
      %v6286 = vadd.f32 %v6197, %v6285
      %6287 = vmatmul.bf16.gmra.mxu0 %v5234
      %v6288 = vpop.f32.mrf.mxu0
      %v6289 = vadd.f32 %v6200, %v6288
      %v6290 = vpop.f32.mrf.mxu0
      %v6291 = vadd.f32 %v6202, %v6290
      %6292 = vmatmul.bf16.gmra.mxu0 %v5251
      %v6293 = vpop.f32.mrf.mxu0
      %v6294 = vadd.f32 %v6205, %v6293
      %v6295 = vpop.f32.mrf.mxu0
      %v6296 = vadd.f32 %v6207, %v6295
      %6297 = vmatmul.bf16.gmra.mxu0 %v5268
      %v6298 = vpop.f32.mrf.mxu0
      %v6299 = vadd.f32 %v6210, %v6298
      %v6300 = vpop.f32.mrf.mxu0
      %v6301 = vadd.f32 %v6212, %v6300
      %6302 = vmatmul.bf16.gmra.mxu0 %v5285
      %v6303 = vpop.f32.mrf.mxu0
      %v6304 = vadd.f32 %v6215, %v6303
      %v6305 = vpop.f32.mrf.mxu0
      %v6306 = vadd.f32 %v6217, %v6305
      %6307 = vmatmul.bf16.gmra.mxu0 %v5302
      %v6308 = vpop.f32.mrf.mxu0
      %v6309 = vadd.f32 %v6220, %v6308
      %v6310 = vpop.f32.mrf.mxu0
      %v6311 = vadd.f32 %v6222, %v6310
      %6312 = vmatmul.bf16.gmra.mxu0 %v5319
      %v6313 = vpop.f32.mrf.mxu0
      %v6314 = vadd.f32 %v6225, %v6313
      %v6315 = vpop.f32.mrf.mxu0
      %v6316 = vadd.f32 %v6227, %v6315
      %6317 = vmatmul.bf16.gmra.mxu0 %v5336
      %v6318 = vpop.f32.mrf.mxu0
      %v6319 = vadd.f32 %v6230, %v6318
      %v6320 = vpop.f32.mrf.mxu0
      %v6321 = vadd.f32 %v6232, %v6320
      %6322 = vmatmul.bf16.gmra.mxu0 %v5353
      %v6323 = vpop.f32.mrf.mxu0
      %v6324 = vadd.f32 %v6235, %v6323
      %v6325 = vpop.f32.mrf.mxu0
      %v6326 = vadd.f32 %v6237, %v6325
      %6327 = vmatmul.bf16.gmra.mxu0 %v5370
      %v6328 = vpop.f32.mrf.mxu0
      %v6329 = vadd.f32 %v6240, %v6328
      %v6330 = vpop.f32.mrf.mxu0
      %v6331 = vadd.f32 %v6242, %v6330
      %6332 = vmatmul.bf16.gmra.mxu0 %v5387
      %v6333 = vpop.f32.mrf.mxu0
      %v6334 = vadd.f32 %v6245, %v6333
      %v6335 = vpop.f32.mrf.mxu0
      %v6336 = vadd.f32 %v6247, %v6335
      %6337 = vdwg.mxu0
      %6338 = vmatpush.bf16.msra.mxu0 %v5828
      %6339 = vmatpush.bf16.msra.mxu0 %v5827
      %6340 = vmatpush.bf16.msra.mxu0 %v5826
      %6341 = vmatpush.bf16.msra.mxu0 %v5825
      %6342 = vmatpush.bf16.msra.mxu0 %v5824
      %6343 = vmatpush.bf16.msra.mxu0 %v5823
      %6344 = vmatpush.bf16.msra.mxu0 %v5822
      %6345 = vmatpush.bf16.msra.mxu0 %v5821
      %6346 = vmatmul.bf16.gmra.mxu0 %v5149
      %v6347 = vpop.f32.mrf.mxu0
      %v6348 = vadd.f32 %v6259, %v6347
      %v6349 = vpop.f32.mrf.mxu0
      %v6350 = vadd.f32 %v6261, %v6349
      %6351 = vmatmul.bf16.gmra.mxu0 %v5166
      %v6352 = vpop.f32.mrf.mxu0
      %v6353 = vadd.f32 %v6264, %v6352
      %v6354 = vpop.f32.mrf.mxu0
      %v6355 = vadd.f32 %v6266, %v6354
      %6356 = vmatmul.bf16.gmra.mxu0 %v5183
      %v6357 = vpop.f32.mrf.mxu0
      %v6358 = vadd.f32 %v6269, %v6357
      %v6359 = vpop.f32.mrf.mxu0
      %v6360 = vadd.f32 %v6271, %v6359
      %6361 = vmatmul.bf16.gmra.mxu0 %v5200
      %v6362 = vpop.f32.mrf.mxu0
      %v6363 = vadd.f32 %v6274, %v6362
      %v6364 = vpop.f32.mrf.mxu0
      %v6365 = vadd.f32 %v6276, %v6364
      %6366 = vmatmul.bf16.gmra.mxu0 %v5217
      %v6367 = vpop.f32.mrf.mxu0
      %v6368 = vadd.f32 %v6279, %v6367
      %v6369 = vpop.f32.mrf.mxu0
      %v6370 = vadd.f32 %v6281, %v6369
      %6371 = vmatmul.bf16.gmra.mxu0 %v5234
      %v6372 = vpop.f32.mrf.mxu0
      %v6373 = vadd.f32 %v6284, %v6372
      %v6374 = vpop.f32.mrf.mxu0
      %v6375 = vadd.f32 %v6286, %v6374
      %6376 = vmatmul.bf16.gmra.mxu0 %v5251
      %v6377 = vpop.f32.mrf.mxu0
      %v6378 = vadd.f32 %v6289, %v6377
      %v6379 = vpop.f32.mrf.mxu0
      %v6380 = vadd.f32 %v6291, %v6379
      %6381 = vmatmul.bf16.gmra.mxu0 %v5268
      %v6382 = vpop.f32.mrf.mxu0
      %v6383 = vadd.f32 %v6294, %v6382
      %v6384 = vpop.f32.mrf.mxu0
      %v6385 = vadd.f32 %v6296, %v6384
      %6386 = vmatmul.bf16.gmra.mxu0 %v5285
      %v6387 = vpop.f32.mrf.mxu0
      %v6388 = vadd.f32 %v6299, %v6387
      %v6389 = vpop.f32.mrf.mxu0
      %v6390 = vadd.f32 %v6301, %v6389
      %6391 = vmatmul.bf16.gmra.mxu0 %v5302
      %v6392 = vpop.f32.mrf.mxu0
      %v6393 = vadd.f32 %v6304, %v6392
      %v6394 = vpop.f32.mrf.mxu0
      %v6395 = vadd.f32 %v6306, %v6394
      %6396 = vmatmul.bf16.gmra.mxu0 %v5319
      %v6397 = vpop.f32.mrf.mxu0
      %v6398 = vadd.f32 %v6309, %v6397
      %v6399 = vpop.f32.mrf.mxu0
      %v6400 = vadd.f32 %v6311, %v6399
      %6401 = vmatmul.bf16.gmra.mxu0 %v5336
      %v6402 = vpop.f32.mrf.mxu0
      %v6403 = vadd.f32 %v6314, %v6402
      %v6404 = vpop.f32.mrf.mxu0
      %v6405 = vadd.f32 %v6316, %v6404
      %6406 = vmatmul.bf16.gmra.mxu0 %v5353
      %v6407 = vpop.f32.mrf.mxu0
      %v6408 = vadd.f32 %v6319, %v6407
      %v6409 = vpop.f32.mrf.mxu0
      %v6410 = vadd.f32 %v6321, %v6409
      %6411 = vmatmul.bf16.gmra.mxu0 %v5370
      %v6412 = vpop.f32.mrf.mxu0
      %v6413 = vadd.f32 %v6324, %v6412
      %v6414 = vpop.f32.mrf.mxu0
      %v6415 = vadd.f32 %v6326, %v6414
      %6416 = vmatmul.bf16.gmra.mxu0 %v5387
      %v6417 = vpop.f32.mrf.mxu0
      %v6418 = vadd.f32 %v6329, %v6417
      %v6419 = vpop.f32.mrf.mxu0
      %v6420 = vadd.f32 %v6331, %v6419
      %6421 = vmatmul.bf16.gmra.mxu0 %v5404
      %v6422 = vpop.f32.mrf.mxu0
      %v6423 = vadd.f32 %v6334, %v6422
      %v6424 = vpop.f32.mrf.mxu0
      %v6425 = vadd.f32 %v6336, %v6424
      %6426 = vdwg.mxu0
      %6427 = vmatpush.bf16.msra.mxu0 %v5836
      %6428 = vmatpush.bf16.msra.mxu0 %v5835
      %6429 = vmatpush.bf16.msra.mxu0 %v5834
      %6430 = vmatpush.bf16.msra.mxu0 %v5833
      %6431 = vmatpush.bf16.msra.mxu0 %v5832
      %6432 = vmatpush.bf16.msra.mxu0 %v5831
      %6433 = vmatpush.bf16.msra.mxu0 %v5830
      %6434 = vmatpush.bf16.msra.mxu0 %v5829
      %6435 = vmatmul.bf16.gmra.mxu0 %v5166
      %v6436 = vpop.f32.mrf.mxu0
      %v6437 = vadd.f32 %v6348, %v6436
      %v6438 = vpop.f32.mrf.mxu0
      %v6439 = vadd.f32 %v6350, %v6438
      %6440 = vmatmul.bf16.gmra.mxu0 %v5183
      %v6441 = vpop.f32.mrf.mxu0
      %v6442 = vadd.f32 %v6353, %v6441
      %v6443 = vpop.f32.mrf.mxu0
      %v6444 = vadd.f32 %v6355, %v6443
      %6445 = vmatmul.bf16.gmra.mxu0 %v5200
      %v6446 = vpop.f32.mrf.mxu0
      %v6447 = vadd.f32 %v6358, %v6446
      %v6448 = vpop.f32.mrf.mxu0
      %v6449 = vadd.f32 %v6360, %v6448
      %6450 = vmatmul.bf16.gmra.mxu0 %v5217
      %v6451 = vpop.f32.mrf.mxu0
      %v6452 = vadd.f32 %v6363, %v6451
      %v6453 = vpop.f32.mrf.mxu0
      %v6454 = vadd.f32 %v6365, %v6453
      %6455 = vmatmul.bf16.gmra.mxu0 %v5234
      %v6456 = vpop.f32.mrf.mxu0
      %v6457 = vadd.f32 %v6368, %v6456
      %v6458 = vpop.f32.mrf.mxu0
      %v6459 = vadd.f32 %v6370, %v6458
      %6460 = vmatmul.bf16.gmra.mxu0 %v5251
      %v6461 = vpop.f32.mrf.mxu0
      %v6462 = vadd.f32 %v6373, %v6461
      %v6463 = vpop.f32.mrf.mxu0
      %v6464 = vadd.f32 %v6375, %v6463
      %6465 = vmatmul.bf16.gmra.mxu0 %v5268
      %v6466 = vpop.f32.mrf.mxu0
      %v6467 = vadd.f32 %v6378, %v6466
      %v6468 = vpop.f32.mrf.mxu0
      %v6469 = vadd.f32 %v6380, %v6468
      %6470 = vmatmul.bf16.gmra.mxu0 %v5285
      %v6471 = vpop.f32.mrf.mxu0
      %v6472 = vadd.f32 %v6383, %v6471
      %v6473 = vpop.f32.mrf.mxu0
      %v6474 = vadd.f32 %v6385, %v6473
      %6475 = vmatmul.bf16.gmra.mxu0 %v5302
      %v6476 = vpop.f32.mrf.mxu0
      %v6477 = vadd.f32 %v6388, %v6476
      %v6478 = vpop.f32.mrf.mxu0
      %v6479 = vadd.f32 %v6390, %v6478
      %6480 = vmatmul.bf16.gmra.mxu0 %v5319
      %v6481 = vpop.f32.mrf.mxu0
      %v6482 = vadd.f32 %v6393, %v6481
      %v6483 = vpop.f32.mrf.mxu0
      %v6484 = vadd.f32 %v6395, %v6483
      %6485 = vmatmul.bf16.gmra.mxu0 %v5336
      %v6486 = vpop.f32.mrf.mxu0
      %v6487 = vadd.f32 %v6398, %v6486
      %v6488 = vpop.f32.mrf.mxu0
      %v6489 = vadd.f32 %v6400, %v6488
      %6490 = vmatmul.bf16.gmra.mxu0 %v5353
      %v6491 = vpop.f32.mrf.mxu0
      %v6492 = vadd.f32 %v6403, %v6491
      %v6493 = vpop.f32.mrf.mxu0
      %v6494 = vadd.f32 %v6405, %v6493
      %6495 = vmatmul.bf16.gmra.mxu0 %v5370
      %v6496 = vpop.f32.mrf.mxu0
      %v6497 = vadd.f32 %v6408, %v6496
      %v6498 = vpop.f32.mrf.mxu0
      %v6499 = vadd.f32 %v6410, %v6498
      %6500 = vmatmul.bf16.gmra.mxu0 %v5387
      %v6501 = vpop.f32.mrf.mxu0
      %v6502 = vadd.f32 %v6413, %v6501
      %v6503 = vpop.f32.mrf.mxu0
      %v6504 = vadd.f32 %v6415, %v6503
      %6505 = vmatmul.bf16.gmra.mxu0 %v5404
      %v6506 = vpop.f32.mrf.mxu0
      %v6507 = vadd.f32 %v6418, %v6506
      %v6508 = vpop.f32.mrf.mxu0
      %v6509 = vadd.f32 %v6420, %v6508
      %6510 = vmatmul.bf16.gmra.mxu0 %v5421
      %v6511 = vpop.f32.mrf.mxu0
      %v6512 = vadd.f32 %v6423, %v6511
      %v6513 = vpop.f32.mrf.mxu0
      %v6514 = vadd.f32 %v6425, %v6513
      %6515 = vdwg.mxu0
      %v6516 = vld [vmem:[#allocation2] sm:$0xff]
      %v6517 = vld [vmem:[#allocation2 + $0x8] sm:$0xff]
      %v6518 = vld [vmem:[#allocation2 + $0x10] sm:$0xff]
      %v6519 = vld [vmem:[#allocation2 + $0x18] sm:$0xff]
      %v6520 = vld [vmem:[#allocation2 + $0x20] sm:$0xff]
      %v6521 = vld [vmem:[#allocation2 + $0x28] sm:$0xff]
      %v6522 = vld [vmem:[#allocation2 + $0x30] sm:$0xff]
      %v6523 = vld [vmem:[#allocation2 + $0x38] sm:$0xff]
      %v6524 = vld [vmem:[#allocation2 + $0x40] sm:$0xff]
      %v6525 = vld [vmem:[#allocation2 + $0x48] sm:$0xff]
      %v6526 = vld [vmem:[#allocation2 + $0x50] sm:$0xff]
      %v6527 = vld [vmem:[#allocation2 + $0x58] sm:$0xff]
      %v6528 = vld [vmem:[#allocation2 + $0x60] sm:$0xff]
      %v6529 = vld [vmem:[#allocation2 + $0x68] sm:$0xff]
      %v6530 = vld [vmem:[#allocation2 + $0x70] sm:$0xff]
      %v6531 = vld [vmem:[#allocation2 + $0x78] sm:$0xff]
      %v6532 = vld [vmem:[#allocation2 + $0x80] sm:$0xff]
      %v6533 = vld [vmem:[#allocation2 + $0x88] sm:$0xff]
      %v6534 = vld [vmem:[#allocation2 + $0x90] sm:$0xff]
      %v6535 = vld [vmem:[#allocation2 + $0x98] sm:$0xff]
      %v6536 = vld [vmem:[#allocation2 + $0xa0] sm:$0xff]
      %v6537 = vld [vmem:[#allocation2 + $0xa8] sm:$0xff]
      %v6538 = vld [vmem:[#allocation2 + $0xb0] sm:$0xff]
      %v6539 = vld [vmem:[#allocation2 + $0xb8] sm:$0xff]
      %v6540 = vld [vmem:[#allocation2 + $0xc0] sm:$0xff]
      %v6541 = vld [vmem:[#allocation2 + $0xc8] sm:$0xff]
      %v6542 = vld [vmem:[#allocation2 + $0xd0] sm:$0xff]
      %v6543 = vld [vmem:[#allocation2 + $0xd8] sm:$0xff]
      %v6544 = vld [vmem:[#allocation2 + $0xe0] sm:$0xff]
      %v6545 = vld [vmem:[#allocation2 + $0xe8] sm:$0xff]
      %v6546 = vld [vmem:[#allocation2 + $0xf0] sm:$0xff]
      %v6547 = vld [vmem:[#allocation2 + $0xf8] sm:$0xff]
      %v6548 = vadd.f32 %v6516, %v6437
      %v6549 = vadd.f32 %v6517, %v6439
      %v6550 = vadd.f32 %v6518, %v6442
      %v6551 = vadd.f32 %v6519, %v6444
      %v6552 = vadd.f32 %v6520, %v6447
      %v6553 = vadd.f32 %v6521, %v6449
      %v6554 = vadd.f32 %v6522, %v6452
      %v6555 = vadd.f32 %v6523, %v6454
      %v6556 = vadd.f32 %v6524, %v6457
      %v6557 = vadd.f32 %v6525, %v6459
      %v6558 = vadd.f32 %v6526, %v6462
      %v6559 = vadd.f32 %v6527, %v6464
      %v6560 = vadd.f32 %v6528, %v6467
      %v6561 = vadd.f32 %v6529, %v6469
      %v6562 = vadd.f32 %v6530, %v6472
      %v6563 = vadd.f32 %v6531, %v6474
      %v6564 = vadd.f32 %v6532, %v6477
      %v6565 = vadd.f32 %v6533, %v6479
      %v6566 = vadd.f32 %v6534, %v6482
      %v6567 = vadd.f32 %v6535, %v6484
      %v6568 = vadd.f32 %v6536, %v6487
      %v6569 = vadd.f32 %v6537, %v6489
      %v6570 = vadd.f32 %v6538, %v6492
      %v6571 = vadd.f32 %v6539, %v6494
      %v6572 = vadd.f32 %v6540, %v6497
      %v6573 = vadd.f32 %v6541, %v6499
      %v6574 = vadd.f32 %v6542, %v6502
      %v6575 = vadd.f32 %v6543, %v6504
      %v6576 = vadd.f32 %v6544, %v6507
      %v6577 = vadd.f32 %v6545, %v6509
      %v6578 = vadd.f32 %v6546, %v6512
      %v6579 = vadd.f32 %v6547, %v6514
      %6580 = vst [vmem:[#allocation2] sm:$0xff] %v6548
      %6581 = vst [vmem:[#allocation2 + $0x8] sm:$0xff] %v6549
      %6582 = vst [vmem:[#allocation2 + $0x10] sm:$0xff] %v6550
      %6583 = vst [vmem:[#allocation2 + $0x18] sm:$0xff] %v6551
      %6584 = vst [vmem:[#allocation2 + $0x20] sm:$0xff] %v6552
      %6585 = vst [vmem:[#allocation2 + $0x28] sm:$0xff] %v6553
      %6586 = vst [vmem:[#allocation2 + $0x30] sm:$0xff] %v6554
      %6587 = vst [vmem:[#allocation2 + $0x38] sm:$0xff] %v6555
      %6588 = vst [vmem:[#allocation2 + $0x40] sm:$0xff] %v6556
      %6589 = vst [vmem:[#allocation2 + $0x48] sm:$0xff] %v6557
      %6590 = vst [vmem:[#allocation2 + $0x50] sm:$0xff] %v6558
      %6591 = vst [vmem:[#allocation2 + $0x58] sm:$0xff] %v6559
      %6592 = vst [vmem:[#allocation2 + $0x60] sm:$0xff] %v6560
      %6593 = vst [vmem:[#allocation2 + $0x68] sm:$0xff] %v6561
      %6594 = vst [vmem:[#allocation2 + $0x70] sm:$0xff] %v6562
      %6595 = vst [vmem:[#allocation2 + $0x78] sm:$0xff] %v6563
      %6596 = vst [vmem:[#allocation2 + $0x80] sm:$0xff] %v6564
      %6597 = vst [vmem:[#allocation2 + $0x88] sm:$0xff] %v6565
      %6598 = vst [vmem:[#allocation2 + $0x90] sm:$0xff] %v6566
      %6599 = vst [vmem:[#allocation2 + $0x98] sm:$0xff] %v6567
      %6600 = vst [vmem:[#allocation2 + $0xa0] sm:$0xff] %v6568
      %6601 = vst [vmem:[#allocation2 + $0xa8] sm:$0xff] %v6569
      %6602 = vst [vmem:[#allocation2 + $0xb0] sm:$0xff] %v6570
      %6603 = vst [vmem:[#allocation2 + $0xb8] sm:$0xff] %v6571
      %6604 = vst [vmem:[#allocation2 + $0xc0] sm:$0xff] %v6572
      %6605 = vst [vmem:[#allocation2 + $0xc8] sm:$0xff] %v6573
      %6606 = vst [vmem:[#allocation2 + $0xd0] sm:$0xff] %v6574
      %6607 = vst [vmem:[#allocation2 + $0xd8] sm:$0xff] %v6575
      %6608 = vst [vmem:[#allocation2 + $0xe0] sm:$0xff] %v6576
      %6609 = vst [vmem:[#allocation2 + $0xe8] sm:$0xff] %v6577
      %6610 = vst [vmem:[#allocation2 + $0xf0] sm:$0xff] %v6578
      %6611 = vst [vmem:[#allocation2 + $0xf8] sm:$0xff] %v6579
      %v6612 = vld [vmem:[%s307] sm:$0xc]
      %v6613 = vld [vmem:[%s307 + $0x4] sm:$0xf]
      %v6614 = vld [vmem:[%s307 + $0x8] sm:$0x3]
      %v6615 = vld [vmem:[%s307 + $0xc] sm:$0xc]
      %v6616 = vld [vmem:[%s307 + $0x10] sm:$0xf]
      %v6617 = vld [vmem:[%s307 + $0x14] sm:$0x3]
      %v6618 = vld [vmem:[%s307 + $0x18] sm:$0xc]
      %v6619 = vld [vmem:[%s307 + $0x1c] sm:$0xf]
      %v6620 = vld [vmem:[%s307 + $0x20] sm:$0x3]
      %v6621 = vld [vmem:[%s307 + $0x24] sm:$0xc]
      %v6622 = vld [vmem:[%s307 + $0x28] sm:$0xf]
      %v6623 = vld [vmem:[%s307 + $0x2c] sm:$0x3]
      %v6624 = vld [vmem:[%s307 + $0x30] sm:$0xc]
      %v6625 = vld [vmem:[%s307 + $0x34] sm:$0xf]
      %v6626 = vld [vmem:[%s307 + $0x38] sm:$0x3]
      %v6627 = vld [vmem:[%s307 + $0x3c] sm:$0xc]
      %v6628 = vld [vmem:[%s307 + $0x40] sm:$0xf]
      %v6629 = vld [vmem:[%s307 + $0x44] sm:$0x3]
      %v6630 = vld [vmem:[%s307 + $0x48] sm:$0xc]
      %v6631 = vld [vmem:[%s307 + $0x4c] sm:$0xf]
      %v6632 = vld [vmem:[%s307 + $0x50] sm:$0x3]
      %v6633 = vld [vmem:[%s307 + $0x54] sm:$0xc]
      %v6634 = vld [vmem:[%s307 + $0x58] sm:$0xf]
      %v6635 = vld [vmem:[%s307 + $0x5c] sm:$0x3]
      %v6636 = vld [vmem:[%s307 + $0x60] sm:$0xc]
      %v6637 = vld [vmem:[%s307 + $0x64] sm:$0xf]
      %v6638 = vld [vmem:[%s307 + $0x68] sm:$0x3]
      %v6639 = vld [vmem:[%s307 + $0x6c] sm:$0xc]
      %v6640 = vld [vmem:[%s307 + $0x70] sm:$0xf]
      %v6641 = vld [vmem:[%s307 + $0x74] sm:$0x3]
      %v6642 = vld [vmem:[%s307 + $0x78] sm:$0xc]
      %v6643 = vld [vmem:[%s307 + $0x7c] sm:$0xf]
      %v6644 = vld [vmem:[%s307 + $0x80] sm:$0x3]
      %v6645 = vld [vmem:[%s307 + $0x84] sm:$0xc]
      %v6646 = vld [vmem:[%s307 + $0x88] sm:$0xf]
      %v6647 = vld [vmem:[%s307 + $0x8c] sm:$0x3]
      %v6648 = vld [vmem:[%s307 + $0x90] sm:$0xc]
      %v6649 = vld [vmem:[%s307 + $0x94] sm:$0xf]
      %v6650 = vld [vmem:[%s307 + $0x98] sm:$0x3]
      %v6651 = vld [vmem:[%s307 + $0x9c] sm:$0xc]
      %v6652 = vld [vmem:[%s307 + $0xa0] sm:$0xf]
      %v6653 = vld [vmem:[%s307 + $0xa4] sm:$0x3]
      %v6654 = vld [vmem:[%s307 + $0xa8] sm:$0xc]
      %v6655 = vld [vmem:[%s307 + $0xac] sm:$0xf]
      %v6656 = vld [vmem:[%s307 + $0xb0] sm:$0x3]
      %v6657 = vld [vmem:[%s307 + $0xb4] sm:$0xc]
      %v6658 = vld [vmem:[%s307 + $0xb8] sm:$0xf]
      %v6659 = vld [vmem:[%s307 + $0xbc] sm:$0x3]
      %v6660 = vld [vmem:[%s307 + $0xc0] sm:$0xc]
      %v6661 = vld [vmem:[%s307 + $0xc4] sm:$0xf]
      %v6662 = vld [vmem:[%s307 + $0xc8] sm:$0x3]
      %v6663 = vld [vmem:[%s307 + $0xcc] sm:$0xc]
      %v6664 = vld [vmem:[%s307 + $0xd0] sm:$0xf]
      %v6665 = vld [vmem:[%s307 + $0xd4] sm:$0x3]
      %v6666 = vld [vmem:[%s307 + $0xd8] sm:$0xc]
      %v6667 = vld [vmem:[%s307 + $0xdc] sm:$0xf]
      %v6668 = vld [vmem:[%s307 + $0xe0] sm:$0x3]
      %v6669 = vld [vmem:[%s307 + $0xe4] sm:$0xc]
      %v6670 = vld [vmem:[%s307 + $0xe8] sm:$0xf]
      %v6671 = vld [vmem:[%s307 + $0xec] sm:$0x3]
      %v6672 = vld [vmem:[%s307 + $0xf0] sm:$0xc]
      %v6673 = vld [vmem:[%s307 + $0xf4] sm:$0xf]
      %v6674 = vld [vmem:[%s307 + $0xf8] sm:$0x3]
      %v6675 = vld [vmem:[%s307 + $0xfc] sm:$0xc]
      %v6676 = vld [vmem:[%s307 + $0x100] sm:$0xf]
      %v6677 = vld [vmem:[%s307 + $0x104] sm:$0x3]
      %v6726 = vunpack.c.l.b16 %v6612
      %v6727 = vunpack.c.l.b16 %v6613
      %v6728 = vunpack.c.l.b16 %v6614
      %v6729 = vunpack.c.l.b16 %v6615
      %v6730 = vunpack.c.l.b16 %v6616
      %v6731 = vunpack.c.l.b16 %v6617
      %v6732 = vunpack.c.l.b16 %v6618
      %v6733 = vunpack.c.l.b16 %v6619
      %v6734 = vunpack.c.l.b16 %v6620
      %v6735 = vunpack.c.l.b16 %v6621
      %v6736 = vunpack.c.l.b16 %v6622
      %v6737 = vunpack.c.l.b16 %v6623
      %v6738 = vunpack.c.l.b16 %v6624
      %v6739 = vunpack.c.l.b16 %v6625
      %v6740 = vunpack.c.l.b16 %v6626
      %v6741 = vunpack.c.l.b16 %v6627
      %v6742 = vunpack.c.l.b16 %v6628
      %v6743 = vunpack.c.l.b16 %v6629
      %v6744 = vunpack.c.l.b16 %v6630
      %v6745 = vunpack.c.l.b16 %v6631
      %v6746 = vunpack.c.l.b16 %v6632
      %v6747 = vunpack.c.l.b16 %v6633
      %v6748 = vunpack.c.l.b16 %v6634
      %v6749 = vunpack.c.l.b16 %v6635
      %v6750 = vunpack.c.l.b16 %v6636
      %v6751 = vunpack.c.l.b16 %v6637
      %v6752 = vunpack.c.l.b16 %v6638
      %v6753 = vunpack.c.l.b16 %v6639
      %v6754 = vunpack.c.l.b16 %v6640
      %v6755 = vunpack.c.l.b16 %v6641
      %v6756 = vunpack.c.l.b16 %v6642
      %v6757 = vunpack.c.l.b16 %v6643
      %v6758 = vunpack.c.l.b16 %v6644
      %v6759 = vunpack.c.l.b16 %v6645
      %v6760 = vunpack.c.l.b16 %v6646
      %v6761 = vunpack.c.l.b16 %v6647
      %v6762 = vunpack.c.l.b16 %v6648
      %v6763 = vunpack.c.l.b16 %v6649
      %v6764 = vunpack.c.l.b16 %v6650
      %v6765 = vunpack.c.l.b16 %v6651
      %v6766 = vunpack.c.l.b16 %v6652
      %v6767 = vunpack.c.l.b16 %v6653
      %v6768 = vunpack.c.l.b16 %v6654
      %v6769 = vunpack.c.l.b16 %v6655
      %v6770 = vunpack.c.l.b16 %v6656
      %v6771 = vunpack.c.l.b16 %v6657
      %v6772 = vunpack.c.l.b16 %v6658
      %v6773 = vunpack.c.l.b16 %v6659
      %v6774 = vpack.c.b16 %v6727, %v6726
      %v6775 = vpack.c.b16 %v6728, %v6728
      %v6776 = vpack.c.b16 %v6730, %v6729
      %v6777 = vpack.c.b16 %v6731, %v6731
      %v6778 = vpack.c.b16 %v6733, %v6732
      %v6779 = vpack.c.b16 %v6734, %v6734
      %v6780 = vpack.c.b16 %v6736, %v6735
      %v6781 = vpack.c.b16 %v6737, %v6737
      %v6782 = vpack.c.b16 %v6739, %v6738
      %v6783 = vpack.c.b16 %v6740, %v6740
      %v6784 = vpack.c.b16 %v6742, %v6741
      %v6785 = vpack.c.b16 %v6743, %v6743
      %v6786 = vpack.c.b16 %v6745, %v6744
      %v6787 = vpack.c.b16 %v6746, %v6746
      %v6788 = vpack.c.b16 %v6748, %v6747
      %v6789 = vpack.c.b16 %v6749, %v6749
      %v6790 = vpack.c.b16 %v6751, %v6750
      %v6791 = vpack.c.b16 %v6752, %v6752
      %v6792 = vpack.c.b16 %v6754, %v6753
      %v6793 = vpack.c.b16 %v6755, %v6755
      %v6794 = vpack.c.b16 %v6757, %v6756
      %v6795 = vpack.c.b16 %v6758, %v6758
      %v6796 = vpack.c.b16 %v6760, %v6759
      %v6797 = vpack.c.b16 %v6761, %v6761
      %v6798 = vpack.c.b16 %v6763, %v6762
      %v6799 = vpack.c.b16 %v6764, %v6764
      %v6800 = vpack.c.b16 %v6766, %v6765
      %v6801 = vpack.c.b16 %v6767, %v6767
      %v6802 = vpack.c.b16 %v6769, %v6768
      %v6803 = vpack.c.b16 %v6770, %v6770
      %v6804 = vpack.c.b16 %v6772, %v6771
      %v6805 = vpack.c.b16 %v6773, %v6773
      %v6809 = vunpack.c.l.b16 %v6660
      %v6810 = vunpack.c.l.b16 %v6661
      %v6811 = vunpack.c.l.b16 %v6662
      %v6812 = vpack.c.b16 %v6810, %v6809
      %v6813 = vpack.c.b16 %v6811, %v6811
      %v6817 = vunpack.c.l.b16 %v6663
      %v6818 = vunpack.c.l.b16 %v6664
      %v6819 = vunpack.c.l.b16 %v6665
      %v6820 = vpack.c.b16 %v6818, %v6817
      %v6821 = vpack.c.b16 %v6819, %v6819
      %v6825 = vunpack.c.l.b16 %v6666
      %v6826 = vunpack.c.l.b16 %v6667
      %v6827 = vunpack.c.l.b16 %v6668
      %v6828 = vpack.c.b16 %v6826, %v6825
      %v6829 = vpack.c.b16 %v6827, %v6827
      %v6833 = vunpack.c.l.b16 %v6669
      %v6834 = vunpack.c.l.b16 %v6670
      %v6835 = vunpack.c.l.b16 %v6671
      %v6836 = vpack.c.b16 %v6834, %v6833
      %v6837 = vpack.c.b16 %v6835, %v6835
      %v6841 = vunpack.c.l.b16 %v6672
      %v6842 = vunpack.c.l.b16 %v6673
      %v6843 = vunpack.c.l.b16 %v6674
      %v6844 = vpack.c.b16 %v6842, %v6841
      %v6845 = vpack.c.b16 %v6843, %v6843
      %v6849 = vunpack.c.l.b16 %v6675
      %v6850 = vunpack.c.l.b16 %v6676
      %v6851 = vunpack.c.l.b16 %v6677
      %v6852 = vpack.c.b16 %v6850, %v6849
      %v6853 = vpack.c.b16 %v6851, %v6851
      %vm6854 = vcmask 1045504
      %v6855 = vrot.slane %v6774, 2
      %v6856 = vrot.slane %v6775, 2
      %v6857 = vsel %vm6854, %v6855, %v6856
      %v6858 = vrot.slane %v6776, 2
      %v6859 = vrot.slane %v6777, 2
      %v6860 = vsel %vm6854, %v6858, %v6859
      %v6861 = vrot.slane %v6778, 2
      %v6862 = vrot.slane %v6779, 2
      %v6863 = vsel %vm6854, %v6861, %v6862
      %v6864 = vrot.slane %v6780, 2
      %v6865 = vrot.slane %v6781, 2
      %v6866 = vsel %vm6854, %v6864, %v6865
      %v6867 = vrot.slane %v6782, 2
      %v6868 = vrot.slane %v6783, 2
      %v6869 = vsel %vm6854, %v6867, %v6868
      %v6870 = vrot.slane %v6784, 2
      %v6871 = vrot.slane %v6785, 2
      %v6872 = vsel %vm6854, %v6870, %v6871
      %v6873 = vrot.slane %v6786, 2
      %v6874 = vrot.slane %v6787, 2
      %v6875 = vsel %vm6854, %v6873, %v6874
      %v6876 = vrot.slane %v6788, 2
      %v6877 = vrot.slane %v6789, 2
      %v6878 = vsel %vm6854, %v6876, %v6877
      %v6879 = vrot.slane %v6790, 2
      %v6880 = vrot.slane %v6791, 2
      %v6881 = vsel %vm6854, %v6879, %v6880
      %v6882 = vrot.slane %v6792, 2
      %v6883 = vrot.slane %v6793, 2
      %v6884 = vsel %vm6854, %v6882, %v6883
      %v6885 = vrot.slane %v6794, 2
      %v6886 = vrot.slane %v6795, 2
      %v6887 = vsel %vm6854, %v6885, %v6886
      %v6888 = vrot.slane %v6796, 2
      %v6889 = vrot.slane %v6797, 2
      %v6890 = vsel %vm6854, %v6888, %v6889
      %v6891 = vrot.slane %v6798, 2
      %v6892 = vrot.slane %v6799, 2
      %v6893 = vsel %vm6854, %v6891, %v6892
      %v6894 = vrot.slane %v6800, 2
      %v6895 = vrot.slane %v6801, 2
      %v6896 = vsel %vm6854, %v6894, %v6895
      %v6897 = vrot.slane %v6802, 2
      %v6898 = vrot.slane %v6803, 2
      %v6899 = vsel %vm6854, %v6897, %v6898
      %v6900 = vrot.slane %v6804, 2
      %v6901 = vrot.slane %v6805, 2
      %v6902 = vsel %vm6854, %v6900, %v6901
      %v6903 = vrot.slane %v6812, 2
      %v6904 = vrot.slane %v6813, 2
      %v6905 = vsel %vm6854, %v6903, %v6904
      %v6906 = vrot.slane %v6820, 2
      %v6907 = vrot.slane %v6821, 2
      %v6908 = vsel %vm6854, %v6906, %v6907
      %v6909 = vrot.slane %v6828, 2
      %v6910 = vrot.slane %v6829, 2
      %v6911 = vsel %vm6854, %v6909, %v6910
      %v6912 = vrot.slane %v6836, 2
      %v6913 = vrot.slane %v6837, 2
      %v6914 = vsel %vm6854, %v6912, %v6913
      %v6915 = vrot.slane %v6844, 2
      %v6916 = vrot.slane %v6845, 2
      %v6917 = vsel %vm6854, %v6915, %v6916
      %v6918 = vrot.slane %v6852, 2
      %v6919 = vrot.slane %v6853, 2
      %v6920 = vsel %vm6854, %v6918, %v6919
      %s6943 = scalar_lea.vmem %s2, 1792
      %v6944 = vld [vmem:[%s6943] sm:$0xf]
      %v6945 = vld [vmem:[%s6943 + $0x4] sm:$0xf]
      %v6946 = vld [vmem:[%s6943 + $0x8] sm:$0xf]
      %v6947 = vld [vmem:[%s6943 + $0xc] sm:$0xf]
      %v6948 = vld [vmem:[%s6943 + $0x10] sm:$0xf]
      %v6949 = vld [vmem:[%s6943 + $0x14] sm:$0xf]
      %v6950 = vld [vmem:[%s6943 + $0x18] sm:$0xf]
      %v6951 = vld [vmem:[%s6943 + $0x1c] sm:$0xf]
      %v6952 = vld [vmem:[%s6943 + $0x20] sm:$0xf]
      %v6953 = vld [vmem:[%s6943 + $0x24] sm:$0xf]
      %v6954 = vld [vmem:[%s6943 + $0x28] sm:$0xf]
      %v6955 = vld [vmem:[%s6943 + $0x2c] sm:$0xf]
      %v6956 = vld [vmem:[%s6943 + $0x30] sm:$0xf]
      %v6957 = vld [vmem:[%s6943 + $0x34] sm:$0xf]
      %v6958 = vld [vmem:[%s6943 + $0x38] sm:$0xf]
      %v6959 = vld [vmem:[%s6943 + $0x3c] sm:$0xf]
      %v6960 = vld [vmem:[%s6943 + $0x40] sm:$0xf]
      %v6961 = vld [vmem:[%s6943 + $0x44] sm:$0xf]
      %v6962 = vld [vmem:[%s6943 + $0x48] sm:$0xf]
      %v6963 = vld [vmem:[%s6943 + $0x4c] sm:$0xf]
      %v6964 = vld [vmem:[%s6943 + $0x50] sm:$0xf]
      %v6965 = vld [vmem:[%s6943 + $0x54] sm:$0xf]
      %v6966 = vld [vmem:[%s6943 + $0x58] sm:$0xf]
      %v6967 = vld [vmem:[%s6943 + $0x5c] sm:$0xf]
      %v6968 = vld [vmem:[%s6943 + $0x60] sm:$0xf]
      %v6969 = vld [vmem:[%s6943 + $0x64] sm:$0xf]
      %v6970 = vld [vmem:[%s6943 + $0x68] sm:$0xf]
      %v6971 = vld [vmem:[%s6943 + $0x6c] sm:$0xf]
      %v6972 = vld [vmem:[%s6943 + $0x70] sm:$0xf]
      %v6973 = vld [vmem:[%s6943 + $0x74] sm:$0xf]
      %v6974 = vld [vmem:[%s6943 + $0x78] sm:$0xf]
      %v6975 = vld [vmem:[%s6943 + $0x7c] sm:$0xf]
      %v6976 = vld [vmem:[%s6943 + $0x80] sm:$0xf]
      %v6977 = vld [vmem:[%s6943 + $0x84] sm:$0xf]
      %v6978 = vld [vmem:[%s6943 + $0x88] sm:$0xf]
      %v6979 = vld [vmem:[%s6943 + $0x8c] sm:$0xf]
      %v6980 = vld [vmem:[%s6943 + $0x90] sm:$0xf]
      %v6981 = vld [vmem:[%s6943 + $0x94] sm:$0xf]
      %v6982 = vld [vmem:[%s6943 + $0x98] sm:$0xf]
      %v6983 = vld [vmem:[%s6943 + $0x9c] sm:$0xf]
      %v6984 = vld [vmem:[%s6943 + $0xa0] sm:$0xf]
      %v6985 = vld [vmem:[%s6943 + $0xa4] sm:$0xf]
      %v6986 = vld [vmem:[%s6943 + $0xa8] sm:$0xf]
      %v6987 = vld [vmem:[%s6943 + $0xac] sm:$0xf]
      %v6988 = vld [vmem:[%s6943 + $0xb0] sm:$0xf]
      %v6989 = vld [vmem:[%s6943 + $0xb4] sm:$0xf]
      %v6990 = vld [vmem:[%s6943 + $0xb8] sm:$0xf]
      %v6991 = vld [vmem:[%s6943 + $0xbc] sm:$0xf]
      %v6992 = vld [vmem:[%s6943 + $0xc0] sm:$0xf]
      %v6993 = vld [vmem:[%s6943 + $0xc4] sm:$0xf]
      %v6994 = vld [vmem:[%s6943 + $0xc8] sm:$0xf]
      %v6995 = vld [vmem:[%s6943 + $0xcc] sm:$0xf]
      %v6996 = vld [vmem:[%s6943 + $0xd0] sm:$0xf]
      %v6997 = vld [vmem:[%s6943 + $0xd4] sm:$0xf]
      %v6998 = vld [vmem:[%s6943 + $0xd8] sm:$0xf]
      %v6999 = vld [vmem:[%s6943 + $0xdc] sm:$0xf]
      %v7000 = vld [vmem:[%s6943 + $0xe0] sm:$0xf]
      %v7001 = vld [vmem:[%s6943 + $0xe4] sm:$0xf]
      %v7002 = vld [vmem:[%s6943 + $0xe8] sm:$0xf]
      %v7003 = vld [vmem:[%s6943 + $0xec] sm:$0xf]
      %v7004 = vld [vmem:[%s6943 + $0xf0] sm:$0xf]
      %v7005 = vld [vmem:[%s6943 + $0xf4] sm:$0xf]
      %v7006 = vld [vmem:[%s6943 + $0xf8] sm:$0xf]
      %v7007 = vld [vmem:[%s6943 + $0xfc] sm:$0xf]
      %v7008 = vld [vmem:[%s6943 + $0x100] sm:$0xf]
      %v7009 = vld [vmem:[%s6943 + $0x104] sm:$0xf]
      %v7010 = vld [vmem:[%s6943 + $0x108] sm:$0xf]
      %v7011 = vld [vmem:[%s6943 + $0x10c] sm:$0xf]
      %v7012 = vld [vmem:[%s6943 + $0x110] sm:$0xf]
      %v7013 = vld [vmem:[%s6943 + $0x114] sm:$0xf]
      %v7014 = vld [vmem:[%s6943 + $0x118] sm:$0xf]
      %v7015 = vld [vmem:[%s6943 + $0x11c] sm:$0xf]
      %v7016 = vld [vmem:[%s6943 + $0x120] sm:$0xf]
      %v7017 = vld [vmem:[%s6943 + $0x124] sm:$0xf]
      %v7018 = vld [vmem:[%s6943 + $0x128] sm:$0xf]
      %v7019 = vld [vmem:[%s6943 + $0x12c] sm:$0xf]
      %v7020 = vld [vmem:[%s6943 + $0x130] sm:$0xf]
      %v7021 = vld [vmem:[%s6943 + $0x134] sm:$0xf]
      %v7022 = vld [vmem:[%s6943 + $0x138] sm:$0xf]
      %v7023 = vld [vmem:[%s6943 + $0x13c] sm:$0xf]
      %v7024 = vld [vmem:[%s6943 + $0x140] sm:$0xf]
      %v7025 = vld [vmem:[%s6943 + $0x144] sm:$0xf]
      %v7026 = vld [vmem:[%s6943 + $0x148] sm:$0xf]
      %v7027 = vld [vmem:[%s6943 + $0x14c] sm:$0xf]
      %v7028 = vld [vmem:[%s6943 + $0x150] sm:$0xf]
      %v7029 = vld [vmem:[%s6943 + $0x154] sm:$0xf]
      %v7030 = vld [vmem:[%s6943 + $0x158] sm:$0xf]
      %v7031 = vld [vmem:[%s6943 + $0x15c] sm:$0xf]
      %v7032 = vld [vmem:[%s6943 + $0x160] sm:$0xf]
      %v7033 = vld [vmem:[%s6943 + $0x164] sm:$0xf]
      %v7034 = vld [vmem:[%s6943 + $0x168] sm:$0xf]
      %v7035 = vld [vmem:[%s6943 + $0x16c] sm:$0xf]
      %v7036 = vld [vmem:[%s6943 + $0x170] sm:$0xf]
      %v7037 = vld [vmem:[%s6943 + $0x174] sm:$0xf]
      %v7038 = vld [vmem:[%s6943 + $0x178] sm:$0xf]
      %v7039 = vld [vmem:[%s6943 + $0x17c] sm:$0xf]
      %v7040 = vld [vmem:[%s6943 + $0x180] sm:$0xf]
      %v7041 = vld [vmem:[%s6943 + $0x184] sm:$0xf]
      %v7042 = vld [vmem:[%s6943 + $0x188] sm:$0xf]
      %v7043 = vld [vmem:[%s6943 + $0x18c] sm:$0xf]
      %v7044 = vld [vmem:[%s6943 + $0x190] sm:$0xf]
      %v7045 = vld [vmem:[%s6943 + $0x194] sm:$0xf]
      %v7046 = vld [vmem:[%s6943 + $0x198] sm:$0xf]
      %v7047 = vld [vmem:[%s6943 + $0x19c] sm:$0xf]
      %v7048 = vld [vmem:[%s6943 + $0x1a0] sm:$0xf]
      %v7049 = vld [vmem:[%s6943 + $0x1a4] sm:$0xf]
      %v7050 = vld [vmem:[%s6943 + $0x1a8] sm:$0xf]
      %v7051 = vld [vmem:[%s6943 + $0x1ac] sm:$0xf]
      %v7052 = vld [vmem:[%s6943 + $0x1b0] sm:$0xf]
      %v7053 = vld [vmem:[%s6943 + $0x1b4] sm:$0xf]
      %v7054 = vld [vmem:[%s6943 + $0x1b8] sm:$0xf]
      %v7055 = vld [vmem:[%s6943 + $0x1bc] sm:$0xf]
      %v7168 = vunpack.c.l.b16 %v6944
      %v7169 = vunpack.c.l.b16 %v6945
      %v7170 = vunpack.c.l.b16 %v6946
      %v7171 = vunpack.c.l.b16 %v6947
      %v7172 = vunpack.c.l.b16 %v6948
      %v7173 = vunpack.c.l.b16 %v6949
      %v7174 = vunpack.c.l.b16 %v6950
      %v7175 = vunpack.c.l.b16 %v6951
      %v7176 = vunpack.c.l.b16 %v6952
      %v7177 = vunpack.c.l.b16 %v6953
      %v7178 = vunpack.c.l.b16 %v6954
      %v7179 = vunpack.c.l.b16 %v6955
      %v7180 = vunpack.c.l.b16 %v6956
      %v7181 = vunpack.c.l.b16 %v6957
      %v7182 = vunpack.c.l.b16 %v6958
      %v7183 = vunpack.c.l.b16 %v6959
      %v7184 = vunpack.c.l.b16 %v6960
      %v7185 = vunpack.c.l.b16 %v6961
      %v7186 = vunpack.c.l.b16 %v6962
      %v7187 = vunpack.c.l.b16 %v6963
      %v7188 = vunpack.c.l.b16 %v6964
      %v7189 = vunpack.c.l.b16 %v6965
      %v7190 = vunpack.c.l.b16 %v6966
      %v7191 = vunpack.c.l.b16 %v6967
      %v7192 = vunpack.c.l.b16 %v6968
      %v7193 = vunpack.c.l.b16 %v6969
      %v7194 = vunpack.c.l.b16 %v6970
      %v7195 = vunpack.c.l.b16 %v6971
      %v7196 = vunpack.c.l.b16 %v6972
      %v7197 = vunpack.c.l.b16 %v6973
      %v7198 = vunpack.c.l.b16 %v6974
      %v7199 = vunpack.c.l.b16 %v6975
      %v7200 = vunpack.c.l.b16 %v6976
      %v7201 = vunpack.c.l.b16 %v6977
      %v7202 = vunpack.c.l.b16 %v6978
      %v7203 = vunpack.c.l.b16 %v6979
      %v7204 = vunpack.c.l.b16 %v6980
      %v7205 = vunpack.c.l.b16 %v6981
      %v7206 = vunpack.c.l.b16 %v6982
      %v7207 = vunpack.c.l.b16 %v6983
      %v7208 = vunpack.c.l.b16 %v6984
      %v7209 = vunpack.c.l.b16 %v6985
      %v7210 = vunpack.c.l.b16 %v6986
      %v7211 = vunpack.c.l.b16 %v6987
      %v7212 = vunpack.c.l.b16 %v6988
      %v7213 = vunpack.c.l.b16 %v6989
      %v7214 = vunpack.c.l.b16 %v6990
      %v7215 = vunpack.c.l.b16 %v6991
      %v7216 = vunpack.c.l.b16 %v6992
      %v7217 = vunpack.c.l.b16 %v6993
      %v7218 = vunpack.c.l.b16 %v6994
      %v7219 = vunpack.c.l.b16 %v6995
      %v7220 = vunpack.c.l.b16 %v6996
      %v7221 = vunpack.c.l.b16 %v6997
      %v7222 = vunpack.c.l.b16 %v6998
      %v7223 = vunpack.c.l.b16 %v6999
      %v7224 = vunpack.c.l.b16 %v7000
      %v7225 = vunpack.c.l.b16 %v7001
      %v7226 = vunpack.c.l.b16 %v7002
      %v7227 = vunpack.c.l.b16 %v7003
      %v7228 = vunpack.c.l.b16 %v7004
      %v7229 = vunpack.c.l.b16 %v7005
      %v7230 = vunpack.c.l.b16 %v7006
      %v7231 = vunpack.c.l.b16 %v7007
      %v7232 = vunpack.c.l.b16 %v7008
      %v7233 = vunpack.c.l.b16 %v7009
      %v7234 = vunpack.c.l.b16 %v7010
      %v7235 = vunpack.c.l.b16 %v7011
      %v7236 = vunpack.c.l.b16 %v7012
      %v7237 = vunpack.c.l.b16 %v7013
      %v7238 = vunpack.c.l.b16 %v7014
      %v7239 = vunpack.c.l.b16 %v7015
      %v7240 = vunpack.c.l.b16 %v7016
      %v7241 = vunpack.c.l.b16 %v7017
      %v7242 = vunpack.c.l.b16 %v7018
      %v7243 = vunpack.c.l.b16 %v7019
      %v7244 = vunpack.c.l.b16 %v7020
      %v7245 = vunpack.c.l.b16 %v7021
      %v7246 = vunpack.c.l.b16 %v7022
      %v7247 = vunpack.c.l.b16 %v7023
      %v7248 = vunpack.c.l.b16 %v7024
      %v7249 = vunpack.c.l.b16 %v7025
      %v7250 = vunpack.c.l.b16 %v7026
      %v7251 = vunpack.c.l.b16 %v7027
      %v7252 = vunpack.c.l.b16 %v7028
      %v7253 = vunpack.c.l.b16 %v7029
      %v7254 = vunpack.c.l.b16 %v7030
      %v7255 = vunpack.c.l.b16 %v7031
      %v7256 = vunpack.c.l.b16 %v7032
      %v7257 = vunpack.c.l.b16 %v7033
      %v7258 = vunpack.c.l.b16 %v7034
      %v7259 = vunpack.c.l.b16 %v7035
      %v7260 = vunpack.c.l.b16 %v7036
      %v7261 = vunpack.c.l.b16 %v7037
      %v7262 = vunpack.c.l.b16 %v7038
      %v7263 = vunpack.c.l.b16 %v7039
      %v7264 = vunpack.c.l.b16 %v7040
      %v7265 = vunpack.c.l.b16 %v7041
      %v7266 = vunpack.c.l.b16 %v7042
      %v7267 = vunpack.c.l.b16 %v7043
      %v7268 = vunpack.c.l.b16 %v7044
      %v7269 = vunpack.c.l.b16 %v7045
      %v7270 = vunpack.c.l.b16 %v7046
      %v7271 = vunpack.c.l.b16 %v7047
      %v7272 = vunpack.c.l.b16 %v7048
      %v7273 = vunpack.c.l.b16 %v7049
      %v7274 = vunpack.c.l.b16 %v7050
      %v7275 = vunpack.c.l.b16 %v7051
      %v7276 = vunpack.c.l.b16 %v7052
      %v7277 = vunpack.c.l.b16 %v7053
      %v7278 = vunpack.c.l.b16 %v7054
      %v7279 = vunpack.c.l.b16 %v7055
      %v7280 = vpack.c.b16 %v7169, %v7168
      %v7281 = vpack.c.b16 %v7171, %v7170
      %v7282 = vpack.c.b16 %v7173, %v7172
      %v7283 = vpack.c.b16 %v7175, %v7174
      %v7284 = vpack.c.b16 %v7177, %v7176
      %v7285 = vpack.c.b16 %v7179, %v7178
      %v7286 = vpack.c.b16 %v7181, %v7180
      %v7287 = vpack.c.b16 %v7183, %v7182
      %v7288 = vpack.c.b16 %v7185, %v7184
      %v7289 = vpack.c.b16 %v7187, %v7186
      %v7290 = vpack.c.b16 %v7189, %v7188
      %v7291 = vpack.c.b16 %v7191, %v7190
      %v7292 = vpack.c.b16 %v7193, %v7192
      %v7293 = vpack.c.b16 %v7195, %v7194
      %v7294 = vpack.c.b16 %v7197, %v7196
      %v7295 = vpack.c.b16 %v7199, %v7198
      %v7296 = vpack.c.b16 %v7201, %v7200
      %v7297 = vpack.c.b16 %v7203, %v7202
      %v7298 = vpack.c.b16 %v7205, %v7204
      %v7299 = vpack.c.b16 %v7207, %v7206
      %v7300 = vpack.c.b16 %v7209, %v7208
      %v7301 = vpack.c.b16 %v7211, %v7210
      %v7302 = vpack.c.b16 %v7213, %v7212
      %v7303 = vpack.c.b16 %v7215, %v7214
      %v7304 = vpack.c.b16 %v7217, %v7216
      %v7305 = vpack.c.b16 %v7219, %v7218
      %v7306 = vpack.c.b16 %v7221, %v7220
      %v7307 = vpack.c.b16 %v7223, %v7222
      %v7308 = vpack.c.b16 %v7225, %v7224
      %v7309 = vpack.c.b16 %v7227, %v7226
      %v7310 = vpack.c.b16 %v7229, %v7228
      %v7311 = vpack.c.b16 %v7231, %v7230
      %v7312 = vpack.c.b16 %v7233, %v7232
      %v7313 = vpack.c.b16 %v7235, %v7234
      %v7314 = vpack.c.b16 %v7237, %v7236
      %v7315 = vpack.c.b16 %v7239, %v7238
      %v7316 = vpack.c.b16 %v7241, %v7240
      %v7317 = vpack.c.b16 %v7243, %v7242
      %v7318 = vpack.c.b16 %v7245, %v7244
      %v7319 = vpack.c.b16 %v7247, %v7246
      %v7320 = vpack.c.b16 %v7249, %v7248
      %v7321 = vpack.c.b16 %v7251, %v7250
      %v7322 = vpack.c.b16 %v7253, %v7252
      %v7323 = vpack.c.b16 %v7255, %v7254
      %v7324 = vpack.c.b16 %v7257, %v7256
      %v7325 = vpack.c.b16 %v7259, %v7258
      %v7326 = vpack.c.b16 %v7261, %v7260
      %v7327 = vpack.c.b16 %v7263, %v7262
      %v7328 = vpack.c.b16 %v7265, %v7264
      %v7329 = vpack.c.b16 %v7267, %v7266
      %v7330 = vpack.c.b16 %v7269, %v7268
      %v7331 = vpack.c.b16 %v7271, %v7270
      %v7332 = vpack.c.b16 %v7273, %v7272
      %v7333 = vpack.c.b16 %v7275, %v7274
      %v7334 = vpack.c.b16 %v7277, %v7276
      %v7335 = vpack.c.b16 %v7279, %v7278
      %7392 = vmatpush.bf16.msra.mxu0 %v7287
      %7393 = vmatpush.bf16.msra.mxu0 %v7286
      %7394 = vmatpush.bf16.msra.mxu0 %v7285
      %7395 = vmatpush.bf16.msra.mxu0 %v7284
      %7396 = vmatpush.bf16.msra.mxu0 %v7283
      %7397 = vmatpush.bf16.msra.mxu0 %v7282
      %7398 = vmatpush.bf16.msra.mxu0 %v7281
      %7399 = vmatpush.bf16.msra.mxu0 %v7280
      %7400 = vmatmul.bf16.gmra.mxu0 %v6857
      %v7401 = vpop.f32.mrf.mxu0
      %v7402 = vadd.f32 0.0, %v7401
      %v7403 = vpop.f32.mrf.mxu0
      %v7404 = vadd.f32 0.0, %v7403
      %7405 = vmatmul.bf16.gmra.mxu0 %v6860
      %v7406 = vpop.f32.mrf.mxu0
      %v7407 = vadd.f32 0.0, %v7406
      %v7408 = vpop.f32.mrf.mxu0
      %v7409 = vadd.f32 0.0, %v7408
      %7410 = vmatmul.bf16.gmra.mxu0 %v6863
      %v7411 = vpop.f32.mrf.mxu0
      %v7412 = vadd.f32 0.0, %v7411
      %v7413 = vpop.f32.mrf.mxu0
      %v7414 = vadd.f32 0.0, %v7413
      %7415 = vmatmul.bf16.gmra.mxu0 %v6866
      %v7416 = vpop.f32.mrf.mxu0
      %v7417 = vadd.f32 0.0, %v7416
      %v7418 = vpop.f32.mrf.mxu0
      %v7419 = vadd.f32 0.0, %v7418
      %7420 = vmatmul.bf16.gmra.mxu0 %v6869
      %v7421 = vpop.f32.mrf.mxu0
      %v7422 = vadd.f32 0.0, %v7421
      %v7423 = vpop.f32.mrf.mxu0
      %v7424 = vadd.f32 0.0, %v7423
      %7425 = vmatmul.bf16.gmra.mxu0 %v6872
      %v7426 = vpop.f32.mrf.mxu0
      %v7427 = vadd.f32 0.0, %v7426
      %v7428 = vpop.f32.mrf.mxu0
      %v7429 = vadd.f32 0.0, %v7428
      %7430 = vmatmul.bf16.gmra.mxu0 %v6875
      %v7431 = vpop.f32.mrf.mxu0
      %v7432 = vadd.f32 0.0, %v7431
      %v7433 = vpop.f32.mrf.mxu0
      %v7434 = vadd.f32 0.0, %v7433
      %7435 = vmatmul.bf16.gmra.mxu0 %v6878
      %v7436 = vpop.f32.mrf.mxu0
      %v7437 = vadd.f32 0.0, %v7436
      %v7438 = vpop.f32.mrf.mxu0
      %v7439 = vadd.f32 0.0, %v7438
      %7440 = vmatmul.bf16.gmra.mxu0 %v6881
      %v7441 = vpop.f32.mrf.mxu0
      %v7442 = vadd.f32 0.0, %v7441
      %v7443 = vpop.f32.mrf.mxu0
      %v7444 = vadd.f32 0.0, %v7443
      %7445 = vmatmul.bf16.gmra.mxu0 %v6884
      %v7446 = vpop.f32.mrf.mxu0
      %v7447 = vadd.f32 0.0, %v7446
      %v7448 = vpop.f32.mrf.mxu0
      %v7449 = vadd.f32 0.0, %v7448
      %7450 = vmatmul.bf16.gmra.mxu0 %v6887
      %v7451 = vpop.f32.mrf.mxu0
      %v7452 = vadd.f32 0.0, %v7451
      %v7453 = vpop.f32.mrf.mxu0
      %v7454 = vadd.f32 0.0, %v7453
      %7455 = vmatmul.bf16.gmra.mxu0 %v6890
      %v7456 = vpop.f32.mrf.mxu0
      %v7457 = vadd.f32 0.0, %v7456
      %v7458 = vpop.f32.mrf.mxu0
      %v7459 = vadd.f32 0.0, %v7458
      %7460 = vmatmul.bf16.gmra.mxu0 %v6893
      %v7461 = vpop.f32.mrf.mxu0
      %v7462 = vadd.f32 0.0, %v7461
      %v7463 = vpop.f32.mrf.mxu0
      %v7464 = vadd.f32 0.0, %v7463
      %7465 = vmatmul.bf16.gmra.mxu0 %v6896
      %v7466 = vpop.f32.mrf.mxu0
      %v7467 = vadd.f32 0.0, %v7466
      %v7468 = vpop.f32.mrf.mxu0
      %v7469 = vadd.f32 0.0, %v7468
      %7470 = vmatmul.bf16.gmra.mxu0 %v6899
      %v7471 = vpop.f32.mrf.mxu0
      %v7472 = vadd.f32 0.0, %v7471
      %v7473 = vpop.f32.mrf.mxu0
      %v7474 = vadd.f32 0.0, %v7473
      %7475 = vmatmul.bf16.gmra.mxu0 %v6902
      %v7476 = vpop.f32.mrf.mxu0
      %v7477 = vadd.f32 0.0, %v7476
      %v7478 = vpop.f32.mrf.mxu0
      %v7479 = vadd.f32 0.0, %v7478
      %7480 = vdwg.mxu0
      %7481 = vmatpush.bf16.msra.mxu0 %v7295
      %7482 = vmatpush.bf16.msra.mxu0 %v7294
      %7483 = vmatpush.bf16.msra.mxu0 %v7293
      %7484 = vmatpush.bf16.msra.mxu0 %v7292
      %7485 = vmatpush.bf16.msra.mxu0 %v7291
      %7486 = vmatpush.bf16.msra.mxu0 %v7290
      %7487 = vmatpush.bf16.msra.mxu0 %v7289
      %7488 = vmatpush.bf16.msra.mxu0 %v7288
      %7489 = vmatmul.bf16.gmra.mxu0 %v6860
      %v7490 = vpop.f32.mrf.mxu0
      %v7491 = vadd.f32 %v7402, %v7490
      %v7492 = vpop.f32.mrf.mxu0
      %v7493 = vadd.f32 %v7404, %v7492
      %7494 = vmatmul.bf16.gmra.mxu0 %v6863
      %v7495 = vpop.f32.mrf.mxu0
      %v7496 = vadd.f32 %v7407, %v7495
      %v7497 = vpop.f32.mrf.mxu0
      %v7498 = vadd.f32 %v7409, %v7497
      %7499 = vmatmul.bf16.gmra.mxu0 %v6866
      %v7500 = vpop.f32.mrf.mxu0
      %v7501 = vadd.f32 %v7412, %v7500
      %v7502 = vpop.f32.mrf.mxu0
      %v7503 = vadd.f32 %v7414, %v7502
      %7504 = vmatmul.bf16.gmra.mxu0 %v6869
      %v7505 = vpop.f32.mrf.mxu0
      %v7506 = vadd.f32 %v7417, %v7505
      %v7507 = vpop.f32.mrf.mxu0
      %v7508 = vadd.f32 %v7419, %v7507
      %7509 = vmatmul.bf16.gmra.mxu0 %v6872
      %v7510 = vpop.f32.mrf.mxu0
      %v7511 = vadd.f32 %v7422, %v7510
      %v7512 = vpop.f32.mrf.mxu0
      %v7513 = vadd.f32 %v7424, %v7512
      %7514 = vmatmul.bf16.gmra.mxu0 %v6875
      %v7515 = vpop.f32.mrf.mxu0
      %v7516 = vadd.f32 %v7427, %v7515
      %v7517 = vpop.f32.mrf.mxu0
      %v7518 = vadd.f32 %v7429, %v7517
      %7519 = vmatmul.bf16.gmra.mxu0 %v6878
      %v7520 = vpop.f32.mrf.mxu0
      %v7521 = vadd.f32 %v7432, %v7520
      %v7522 = vpop.f32.mrf.mxu0
      %v7523 = vadd.f32 %v7434, %v7522
      %7524 = vmatmul.bf16.gmra.mxu0 %v6881
      %v7525 = vpop.f32.mrf.mxu0
      %v7526 = vadd.f32 %v7437, %v7525
      %v7527 = vpop.f32.mrf.mxu0
      %v7528 = vadd.f32 %v7439, %v7527
      %7529 = vmatmul.bf16.gmra.mxu0 %v6884
      %v7530 = vpop.f32.mrf.mxu0
      %v7531 = vadd.f32 %v7442, %v7530
      %v7532 = vpop.f32.mrf.mxu0
      %v7533 = vadd.f32 %v7444, %v7532
      %7534 = vmatmul.bf16.gmra.mxu0 %v6887
      %v7535 = vpop.f32.mrf.mxu0
      %v7536 = vadd.f32 %v7447, %v7535
      %v7537 = vpop.f32.mrf.mxu0
      %v7538 = vadd.f32 %v7449, %v7537
      %7539 = vmatmul.bf16.gmra.mxu0 %v6890
      %v7540 = vpop.f32.mrf.mxu0
      %v7541 = vadd.f32 %v7452, %v7540
      %v7542 = vpop.f32.mrf.mxu0
      %v7543 = vadd.f32 %v7454, %v7542
      %7544 = vmatmul.bf16.gmra.mxu0 %v6893
      %v7545 = vpop.f32.mrf.mxu0
      %v7546 = vadd.f32 %v7457, %v7545
      %v7547 = vpop.f32.mrf.mxu0
      %v7548 = vadd.f32 %v7459, %v7547
      %7549 = vmatmul.bf16.gmra.mxu0 %v6896
      %v7550 = vpop.f32.mrf.mxu0
      %v7551 = vadd.f32 %v7462, %v7550
      %v7552 = vpop.f32.mrf.mxu0
      %v7553 = vadd.f32 %v7464, %v7552
      %7554 = vmatmul.bf16.gmra.mxu0 %v6899
      %v7555 = vpop.f32.mrf.mxu0
      %v7556 = vadd.f32 %v7467, %v7555
      %v7557 = vpop.f32.mrf.mxu0
      %v7558 = vadd.f32 %v7469, %v7557
      %7559 = vmatmul.bf16.gmra.mxu0 %v6902
      %v7560 = vpop.f32.mrf.mxu0
      %v7561 = vadd.f32 %v7472, %v7560
      %v7562 = vpop.f32.mrf.mxu0
      %v7563 = vadd.f32 %v7474, %v7562
      %7564 = vmatmul.bf16.gmra.mxu0 %v6905
      %v7565 = vpop.f32.mrf.mxu0
      %v7566 = vadd.f32 %v7477, %v7565
      %v7567 = vpop.f32.mrf.mxu0
      %v7568 = vadd.f32 %v7479, %v7567
      %7569 = vdwg.mxu0
      %7570 = vmatpush.bf16.msra.mxu0 %v7303
      %7571 = vmatpush.bf16.msra.mxu0 %v7302
      %7572 = vmatpush.bf16.msra.mxu0 %v7301
      %7573 = vmatpush.bf16.msra.mxu0 %v7300
      %7574 = vmatpush.bf16.msra.mxu0 %v7299
      %7575 = vmatpush.bf16.msra.mxu0 %v7298
      %7576 = vmatpush.bf16.msra.mxu0 %v7297
      %7577 = vmatpush.bf16.msra.mxu0 %v7296
      %7578 = vmatmul.bf16.gmra.mxu0 %v6863
      %v7579 = vpop.f32.mrf.mxu0
      %v7580 = vadd.f32 %v7491, %v7579
      %v7581 = vpop.f32.mrf.mxu0
      %v7582 = vadd.f32 %v7493, %v7581
      %7583 = vmatmul.bf16.gmra.mxu0 %v6866
      %v7584 = vpop.f32.mrf.mxu0
      %v7585 = vadd.f32 %v7496, %v7584
      %v7586 = vpop.f32.mrf.mxu0
      %v7587 = vadd.f32 %v7498, %v7586
      %7588 = vmatmul.bf16.gmra.mxu0 %v6869
      %v7589 = vpop.f32.mrf.mxu0
      %v7590 = vadd.f32 %v7501, %v7589
      %v7591 = vpop.f32.mrf.mxu0
      %v7592 = vadd.f32 %v7503, %v7591
      %7593 = vmatmul.bf16.gmra.mxu0 %v6872
      %v7594 = vpop.f32.mrf.mxu0
      %v7595 = vadd.f32 %v7506, %v7594
      %v7596 = vpop.f32.mrf.mxu0
      %v7597 = vadd.f32 %v7508, %v7596
      %7598 = vmatmul.bf16.gmra.mxu0 %v6875
      %v7599 = vpop.f32.mrf.mxu0
      %v7600 = vadd.f32 %v7511, %v7599
      %v7601 = vpop.f32.mrf.mxu0
      %v7602 = vadd.f32 %v7513, %v7601
      %7603 = vmatmul.bf16.gmra.mxu0 %v6878
      %v7604 = vpop.f32.mrf.mxu0
      %v7605 = vadd.f32 %v7516, %v7604
      %v7606 = vpop.f32.mrf.mxu0
      %v7607 = vadd.f32 %v7518, %v7606
      %7608 = vmatmul.bf16.gmra.mxu0 %v6881
      %v7609 = vpop.f32.mrf.mxu0
      %v7610 = vadd.f32 %v7521, %v7609
      %v7611 = vpop.f32.mrf.mxu0
      %v7612 = vadd.f32 %v7523, %v7611
      %7613 = vmatmul.bf16.gmra.mxu0 %v6884
      %v7614 = vpop.f32.mrf.mxu0
      %v7615 = vadd.f32 %v7526, %v7614
      %v7616 = vpop.f32.mrf.mxu0
      %v7617 = vadd.f32 %v7528, %v7616
      %7618 = vmatmul.bf16.gmra.mxu0 %v6887
      %v7619 = vpop.f32.mrf.mxu0
      %v7620 = vadd.f32 %v7531, %v7619
      %v7621 = vpop.f32.mrf.mxu0
      %v7622 = vadd.f32 %v7533, %v7621
      %7623 = vmatmul.bf16.gmra.mxu0 %v6890
      %v7624 = vpop.f32.mrf.mxu0
      %v7625 = vadd.f32 %v7536, %v7624
      %v7626 = vpop.f32.mrf.mxu0
      %v7627 = vadd.f32 %v7538, %v7626
      %7628 = vmatmul.bf16.gmra.mxu0 %v6893
      %v7629 = vpop.f32.mrf.mxu0
      %v7630 = vadd.f32 %v7541, %v7629
      %v7631 = vpop.f32.mrf.mxu0
      %v7632 = vadd.f32 %v7543, %v7631
      %7633 = vmatmul.bf16.gmra.mxu0 %v6896
      %v7634 = vpop.f32.mrf.mxu0
      %v7635 = vadd.f32 %v7546, %v7634
      %v7636 = vpop.f32.mrf.mxu0
      %v7637 = vadd.f32 %v7548, %v7636
      %7638 = vmatmul.bf16.gmra.mxu0 %v6899
      %v7639 = vpop.f32.mrf.mxu0
      %v7640 = vadd.f32 %v7551, %v7639
      %v7641 = vpop.f32.mrf.mxu0
      %v7642 = vadd.f32 %v7553, %v7641
      %7643 = vmatmul.bf16.gmra.mxu0 %v6902
      %v7644 = vpop.f32.mrf.mxu0
      %v7645 = vadd.f32 %v7556, %v7644
      %v7646 = vpop.f32.mrf.mxu0
      %v7647 = vadd.f32 %v7558, %v7646
      %7648 = vmatmul.bf16.gmra.mxu0 %v6905
      %v7649 = vpop.f32.mrf.mxu0
      %v7650 = vadd.f32 %v7561, %v7649
      %v7651 = vpop.f32.mrf.mxu0
      %v7652 = vadd.f32 %v7563, %v7651
      %7653 = vmatmul.bf16.gmra.mxu0 %v6908
      %v7654 = vpop.f32.mrf.mxu0
      %v7655 = vadd.f32 %v7566, %v7654
      %v7656 = vpop.f32.mrf.mxu0
      %v7657 = vadd.f32 %v7568, %v7656
      %7658 = vdwg.mxu0
      %7659 = vmatpush.bf16.msra.mxu0 %v7311
      %7660 = vmatpush.bf16.msra.mxu0 %v7310
      %7661 = vmatpush.bf16.msra.mxu0 %v7309
      %7662 = vmatpush.bf16.msra.mxu0 %v7308
      %7663 = vmatpush.bf16.msra.mxu0 %v7307
      %7664 = vmatpush.bf16.msra.mxu0 %v7306
      %7665 = vmatpush.bf16.msra.mxu0 %v7305
      %7666 = vmatpush.bf16.msra.mxu0 %v7304
      %7667 = vmatmul.bf16.gmra.mxu0 %v6866
      %v7668 = vpop.f32.mrf.mxu0
      %v7669 = vadd.f32 %v7580, %v7668
      %v7670 = vpop.f32.mrf.mxu0
      %v7671 = vadd.f32 %v7582, %v7670
      %7672 = vmatmul.bf16.gmra.mxu0 %v6869
      %v7673 = vpop.f32.mrf.mxu0
      %v7674 = vadd.f32 %v7585, %v7673
      %v7675 = vpop.f32.mrf.mxu0
      %v7676 = vadd.f32 %v7587, %v7675
      %7677 = vmatmul.bf16.gmra.mxu0 %v6872
      %v7678 = vpop.f32.mrf.mxu0
      %v7679 = vadd.f32 %v7590, %v7678
      %v7680 = vpop.f32.mrf.mxu0
      %v7681 = vadd.f32 %v7592, %v7680
      %7682 = vmatmul.bf16.gmra.mxu0 %v6875
      %v7683 = vpop.f32.mrf.mxu0
      %v7684 = vadd.f32 %v7595, %v7683
      %v7685 = vpop.f32.mrf.mxu0
      %v7686 = vadd.f32 %v7597, %v7685
      %7687 = vmatmul.bf16.gmra.mxu0 %v6878
      %v7688 = vpop.f32.mrf.mxu0
      %v7689 = vadd.f32 %v7600, %v7688
      %v7690 = vpop.f32.mrf.mxu0
      %v7691 = vadd.f32 %v7602, %v7690
      %7692 = vmatmul.bf16.gmra.mxu0 %v6881
      %v7693 = vpop.f32.mrf.mxu0
      %v7694 = vadd.f32 %v7605, %v7693
      %v7695 = vpop.f32.mrf.mxu0
      %v7696 = vadd.f32 %v7607, %v7695
      %7697 = vmatmul.bf16.gmra.mxu0 %v6884
      %v7698 = vpop.f32.mrf.mxu0
      %v7699 = vadd.f32 %v7610, %v7698
      %v7700 = vpop.f32.mrf.mxu0
      %v7701 = vadd.f32 %v7612, %v7700
      %7702 = vmatmul.bf16.gmra.mxu0 %v6887
      %v7703 = vpop.f32.mrf.mxu0
      %v7704 = vadd.f32 %v7615, %v7703
      %v7705 = vpop.f32.mrf.mxu0
      %v7706 = vadd.f32 %v7617, %v7705
      %7707 = vmatmul.bf16.gmra.mxu0 %v6890
      %v7708 = vpop.f32.mrf.mxu0
      %v7709 = vadd.f32 %v7620, %v7708
      %v7710 = vpop.f32.mrf.mxu0
      %v7711 = vadd.f32 %v7622, %v7710
      %7712 = vmatmul.bf16.gmra.mxu0 %v6893
      %v7713 = vpop.f32.mrf.mxu0
      %v7714 = vadd.f32 %v7625, %v7713
      %v7715 = vpop.f32.mrf.mxu0
      %v7716 = vadd.f32 %v7627, %v7715
      %7717 = vmatmul.bf16.gmra.mxu0 %v6896
      %v7718 = vpop.f32.mrf.mxu0
      %v7719 = vadd.f32 %v7630, %v7718
      %v7720 = vpop.f32.mrf.mxu0
      %v7721 = vadd.f32 %v7632, %v7720
      %7722 = vmatmul.bf16.gmra.mxu0 %v6899
      %v7723 = vpop.f32.mrf.mxu0
      %v7724 = vadd.f32 %v7635, %v7723
      %v7725 = vpop.f32.mrf.mxu0
      %v7726 = vadd.f32 %v7637, %v7725
      %7727 = vmatmul.bf16.gmra.mxu0 %v6902
      %v7728 = vpop.f32.mrf.mxu0
      %v7729 = vadd.f32 %v7640, %v7728
      %v7730 = vpop.f32.mrf.mxu0
      %v7731 = vadd.f32 %v7642, %v7730
      %7732 = vmatmul.bf16.gmra.mxu0 %v6905
      %v7733 = vpop.f32.mrf.mxu0
      %v7734 = vadd.f32 %v7645, %v7733
      %v7735 = vpop.f32.mrf.mxu0
      %v7736 = vadd.f32 %v7647, %v7735
      %7737 = vmatmul.bf16.gmra.mxu0 %v6908
      %v7738 = vpop.f32.mrf.mxu0
      %v7739 = vadd.f32 %v7650, %v7738
      %v7740 = vpop.f32.mrf.mxu0
      %v7741 = vadd.f32 %v7652, %v7740
      %7742 = vmatmul.bf16.gmra.mxu0 %v6911
      %v7743 = vpop.f32.mrf.mxu0
      %v7744 = vadd.f32 %v7655, %v7743
      %v7745 = vpop.f32.mrf.mxu0
      %v7746 = vadd.f32 %v7657, %v7745
      %7747 = vdwg.mxu0
      %7748 = vmatpush.bf16.msra.mxu0 %v7319
      %7749 = vmatpush.bf16.msra.mxu0 %v7318
      %7750 = vmatpush.bf16.msra.mxu0 %v7317
      %7751 = vmatpush.bf16.msra.mxu0 %v7316
      %7752 = vmatpush.bf16.msra.mxu0 %v7315
      %7753 = vmatpush.bf16.msra.mxu0 %v7314
      %7754 = vmatpush.bf16.msra.mxu0 %v7313
      %7755 = vmatpush.bf16.msra.mxu0 %v7312
      %7756 = vmatmul.bf16.gmra.mxu0 %v6869
      %v7757 = vpop.f32.mrf.mxu0
      %v7758 = vadd.f32 %v7669, %v7757
      %v7759 = vpop.f32.mrf.mxu0
      %v7760 = vadd.f32 %v7671, %v7759
      %7761 = vmatmul.bf16.gmra.mxu0 %v6872
      %v7762 = vpop.f32.mrf.mxu0
      %v7763 = vadd.f32 %v7674, %v7762
      %v7764 = vpop.f32.mrf.mxu0
      %v7765 = vadd.f32 %v7676, %v7764
      %7766 = vmatmul.bf16.gmra.mxu0 %v6875
      %v7767 = vpop.f32.mrf.mxu0
      %v7768 = vadd.f32 %v7679, %v7767
      %v7769 = vpop.f32.mrf.mxu0
      %v7770 = vadd.f32 %v7681, %v7769
      %7771 = vmatmul.bf16.gmra.mxu0 %v6878
      %v7772 = vpop.f32.mrf.mxu0
      %v7773 = vadd.f32 %v7684, %v7772
      %v7774 = vpop.f32.mrf.mxu0
      %v7775 = vadd.f32 %v7686, %v7774
      %7776 = vmatmul.bf16.gmra.mxu0 %v6881
      %v7777 = vpop.f32.mrf.mxu0
      %v7778 = vadd.f32 %v7689, %v7777
      %v7779 = vpop.f32.mrf.mxu0
      %v7780 = vadd.f32 %v7691, %v7779
      %7781 = vmatmul.bf16.gmra.mxu0 %v6884
      %v7782 = vpop.f32.mrf.mxu0
      %v7783 = vadd.f32 %v7694, %v7782
      %v7784 = vpop.f32.mrf.mxu0
      %v7785 = vadd.f32 %v7696, %v7784
      %7786 = vmatmul.bf16.gmra.mxu0 %v6887
      %v7787 = vpop.f32.mrf.mxu0
      %v7788 = vadd.f32 %v7699, %v7787
      %v7789 = vpop.f32.mrf.mxu0
      %v7790 = vadd.f32 %v7701, %v7789
      %7791 = vmatmul.bf16.gmra.mxu0 %v6890
      %v7792 = vpop.f32.mrf.mxu0
      %v7793 = vadd.f32 %v7704, %v7792
      %v7794 = vpop.f32.mrf.mxu0
      %v7795 = vadd.f32 %v7706, %v7794
      %7796 = vmatmul.bf16.gmra.mxu0 %v6893
      %v7797 = vpop.f32.mrf.mxu0
      %v7798 = vadd.f32 %v7709, %v7797
      %v7799 = vpop.f32.mrf.mxu0
      %v7800 = vadd.f32 %v7711, %v7799
      %7801 = vmatmul.bf16.gmra.mxu0 %v6896
      %v7802 = vpop.f32.mrf.mxu0
      %v7803 = vadd.f32 %v7714, %v7802
      %v7804 = vpop.f32.mrf.mxu0
      %v7805 = vadd.f32 %v7716, %v7804
      %7806 = vmatmul.bf16.gmra.mxu0 %v6899
      %v7807 = vpop.f32.mrf.mxu0
      %v7808 = vadd.f32 %v7719, %v7807
      %v7809 = vpop.f32.mrf.mxu0
      %v7810 = vadd.f32 %v7721, %v7809
      %7811 = vmatmul.bf16.gmra.mxu0 %v6902
      %v7812 = vpop.f32.mrf.mxu0
      %v7813 = vadd.f32 %v7724, %v7812
      %v7814 = vpop.f32.mrf.mxu0
      %v7815 = vadd.f32 %v7726, %v7814
      %7816 = vmatmul.bf16.gmra.mxu0 %v6905
      %v7817 = vpop.f32.mrf.mxu0
      %v7818 = vadd.f32 %v7729, %v7817
      %v7819 = vpop.f32.mrf.mxu0
      %v7820 = vadd.f32 %v7731, %v7819
      %7821 = vmatmul.bf16.gmra.mxu0 %v6908
      %v7822 = vpop.f32.mrf.mxu0
      %v7823 = vadd.f32 %v7734, %v7822
      %v7824 = vpop.f32.mrf.mxu0
      %v7825 = vadd.f32 %v7736, %v7824
      %7826 = vmatmul.bf16.gmra.mxu0 %v6911
      %v7827 = vpop.f32.mrf.mxu0
      %v7828 = vadd.f32 %v7739, %v7827
      %v7829 = vpop.f32.mrf.mxu0
      %v7830 = vadd.f32 %v7741, %v7829
      %7831 = vmatmul.bf16.gmra.mxu0 %v6914
      %v7832 = vpop.f32.mrf.mxu0
      %v7833 = vadd.f32 %v7744, %v7832
      %v7834 = vpop.f32.mrf.mxu0
      %v7835 = vadd.f32 %v7746, %v7834
      %7836 = vdwg.mxu0
      %7837 = vmatpush.bf16.msra.mxu0 %v7327
      %7838 = vmatpush.bf16.msra.mxu0 %v7326
      %7839 = vmatpush.bf16.msra.mxu0 %v7325
      %7840 = vmatpush.bf16.msra.mxu0 %v7324
      %7841 = vmatpush.bf16.msra.mxu0 %v7323
      %7842 = vmatpush.bf16.msra.mxu0 %v7322
      %7843 = vmatpush.bf16.msra.mxu0 %v7321
      %7844 = vmatpush.bf16.msra.mxu0 %v7320
      %7845 = vmatmul.bf16.gmra.mxu0 %v6872
      %v7846 = vpop.f32.mrf.mxu0
      %v7847 = vadd.f32 %v7758, %v7846
      %v7848 = vpop.f32.mrf.mxu0
      %v7849 = vadd.f32 %v7760, %v7848
      %7850 = vmatmul.bf16.gmra.mxu0 %v6875
      %v7851 = vpop.f32.mrf.mxu0
      %v7852 = vadd.f32 %v7763, %v7851
      %v7853 = vpop.f32.mrf.mxu0
      %v7854 = vadd.f32 %v7765, %v7853
      %7855 = vmatmul.bf16.gmra.mxu0 %v6878
      %v7856 = vpop.f32.mrf.mxu0
      %v7857 = vadd.f32 %v7768, %v7856
      %v7858 = vpop.f32.mrf.mxu0
      %v7859 = vadd.f32 %v7770, %v7858
      %7860 = vmatmul.bf16.gmra.mxu0 %v6881
      %v7861 = vpop.f32.mrf.mxu0
      %v7862 = vadd.f32 %v7773, %v7861
      %v7863 = vpop.f32.mrf.mxu0
      %v7864 = vadd.f32 %v7775, %v7863
      %7865 = vmatmul.bf16.gmra.mxu0 %v6884
      %v7866 = vpop.f32.mrf.mxu0
      %v7867 = vadd.f32 %v7778, %v7866
      %v7868 = vpop.f32.mrf.mxu0
      %v7869 = vadd.f32 %v7780, %v7868
      %7870 = vmatmul.bf16.gmra.mxu0 %v6887
      %v7871 = vpop.f32.mrf.mxu0
      %v7872 = vadd.f32 %v7783, %v7871
      %v7873 = vpop.f32.mrf.mxu0
      %v7874 = vadd.f32 %v7785, %v7873
      %7875 = vmatmul.bf16.gmra.mxu0 %v6890
      %v7876 = vpop.f32.mrf.mxu0
      %v7877 = vadd.f32 %v7788, %v7876
      %v7878 = vpop.f32.mrf.mxu0
      %v7879 = vadd.f32 %v7790, %v7878
      %7880 = vmatmul.bf16.gmra.mxu0 %v6893
      %v7881 = vpop.f32.mrf.mxu0
      %v7882 = vadd.f32 %v7793, %v7881
      %v7883 = vpop.f32.mrf.mxu0
      %v7884 = vadd.f32 %v7795, %v7883
      %7885 = vmatmul.bf16.gmra.mxu0 %v6896
      %v7886 = vpop.f32.mrf.mxu0
      %v7887 = vadd.f32 %v7798, %v7886
      %v7888 = vpop.f32.mrf.mxu0
      %v7889 = vadd.f32 %v7800, %v7888
      %7890 = vmatmul.bf16.gmra.mxu0 %v6899
      %v7891 = vpop.f32.mrf.mxu0
      %v7892 = vadd.f32 %v7803, %v7891
      %v7893 = vpop.f32.mrf.mxu0
      %v7894 = vadd.f32 %v7805, %v7893
      %7895 = vmatmul.bf16.gmra.mxu0 %v6902
      %v7896 = vpop.f32.mrf.mxu0
      %v7897 = vadd.f32 %v7808, %v7896
      %v7898 = vpop.f32.mrf.mxu0
      %v7899 = vadd.f32 %v7810, %v7898
      %7900 = vmatmul.bf16.gmra.mxu0 %v6905
      %v7901 = vpop.f32.mrf.mxu0
      %v7902 = vadd.f32 %v7813, %v7901
      %v7903 = vpop.f32.mrf.mxu0
      %v7904 = vadd.f32 %v7815, %v7903
      %7905 = vmatmul.bf16.gmra.mxu0 %v6908
      %v7906 = vpop.f32.mrf.mxu0
      %v7907 = vadd.f32 %v7818, %v7906
      %v7908 = vpop.f32.mrf.mxu0
      %v7909 = vadd.f32 %v7820, %v7908
      %7910 = vmatmul.bf16.gmra.mxu0 %v6911
      %v7911 = vpop.f32.mrf.mxu0
      %v7912 = vadd.f32 %v7823, %v7911
      %v7913 = vpop.f32.mrf.mxu0
      %v7914 = vadd.f32 %v7825, %v7913
      %7915 = vmatmul.bf16.gmra.mxu0 %v6914
      %v7916 = vpop.f32.mrf.mxu0
      %v7917 = vadd.f32 %v7828, %v7916
      %v7918 = vpop.f32.mrf.mxu0
      %v7919 = vadd.f32 %v7830, %v7918
      %7920 = vmatmul.bf16.gmra.mxu0 %v6917
      %v7921 = vpop.f32.mrf.mxu0
      %v7922 = vadd.f32 %v7833, %v7921
      %v7923 = vpop.f32.mrf.mxu0
      %v7924 = vadd.f32 %v7835, %v7923
      %7925 = vdwg.mxu0
      %7926 = vmatpush.bf16.msra.mxu0 %v7335
      %7927 = vmatpush.bf16.msra.mxu0 %v7334
      %7928 = vmatpush.bf16.msra.mxu0 %v7333
      %7929 = vmatpush.bf16.msra.mxu0 %v7332
      %7930 = vmatpush.bf16.msra.mxu0 %v7331
      %7931 = vmatpush.bf16.msra.mxu0 %v7330
      %7932 = vmatpush.bf16.msra.mxu0 %v7329
      %7933 = vmatpush.bf16.msra.mxu0 %v7328
      %7934 = vmatmul.bf16.gmra.mxu0 %v6875
      %v7935 = vpop.f32.mrf.mxu0
      %v7936 = vadd.f32 %v7847, %v7935
      %v7937 = vpop.f32.mrf.mxu0
      %v7938 = vadd.f32 %v7849, %v7937
      %7939 = vmatmul.bf16.gmra.mxu0 %v6878
      %v7940 = vpop.f32.mrf.mxu0
      %v7941 = vadd.f32 %v7852, %v7940
      %v7942 = vpop.f32.mrf.mxu0
      %v7943 = vadd.f32 %v7854, %v7942
      %7944 = vmatmul.bf16.gmra.mxu0 %v6881
      %v7945 = vpop.f32.mrf.mxu0
      %v7946 = vadd.f32 %v7857, %v7945
      %v7947 = vpop.f32.mrf.mxu0
      %v7948 = vadd.f32 %v7859, %v7947
      %7949 = vmatmul.bf16.gmra.mxu0 %v6884
      %v7950 = vpop.f32.mrf.mxu0
      %v7951 = vadd.f32 %v7862, %v7950
      %v7952 = vpop.f32.mrf.mxu0
      %v7953 = vadd.f32 %v7864, %v7952
      %7954 = vmatmul.bf16.gmra.mxu0 %v6887
      %v7955 = vpop.f32.mrf.mxu0
      %v7956 = vadd.f32 %v7867, %v7955
      %v7957 = vpop.f32.mrf.mxu0
      %v7958 = vadd.f32 %v7869, %v7957
      %7959 = vmatmul.bf16.gmra.mxu0 %v6890
      %v7960 = vpop.f32.mrf.mxu0
      %v7961 = vadd.f32 %v7872, %v7960
      %v7962 = vpop.f32.mrf.mxu0
      %v7963 = vadd.f32 %v7874, %v7962
      %7964 = vmatmul.bf16.gmra.mxu0 %v6893
      %v7965 = vpop.f32.mrf.mxu0
      %v7966 = vadd.f32 %v7877, %v7965
      %v7967 = vpop.f32.mrf.mxu0
      %v7968 = vadd.f32 %v7879, %v7967
      %7969 = vmatmul.bf16.gmra.mxu0 %v6896
      %v7970 = vpop.f32.mrf.mxu0
      %v7971 = vadd.f32 %v7882, %v7970
      %v7972 = vpop.f32.mrf.mxu0
      %v7973 = vadd.f32 %v7884, %v7972
      %7974 = vmatmul.bf16.gmra.mxu0 %v6899
      %v7975 = vpop.f32.mrf.mxu0
      %v7976 = vadd.f32 %v7887, %v7975
      %v7977 = vpop.f32.mrf.mxu0
      %v7978 = vadd.f32 %v7889, %v7977
      %7979 = vmatmul.bf16.gmra.mxu0 %v6902
      %v7980 = vpop.f32.mrf.mxu0
      %v7981 = vadd.f32 %v7892, %v7980
      %v7982 = vpop.f32.mrf.mxu0
      %v7983 = vadd.f32 %v7894, %v7982
      %7984 = vmatmul.bf16.gmra.mxu0 %v6905
      %v7985 = vpop.f32.mrf.mxu0
      %v7986 = vadd.f32 %v7897, %v7985
      %v7987 = vpop.f32.mrf.mxu0
      %v7988 = vadd.f32 %v7899, %v7987
      %7989 = vmatmul.bf16.gmra.mxu0 %v6908
      %v7990 = vpop.f32.mrf.mxu0
      %v7991 = vadd.f32 %v7902, %v7990
      %v7992 = vpop.f32.mrf.mxu0
      %v7993 = vadd.f32 %v7904, %v7992
      %7994 = vmatmul.bf16.gmra.mxu0 %v6911
      %v7995 = vpop.f32.mrf.mxu0
      %v7996 = vadd.f32 %v7907, %v7995
      %v7997 = vpop.f32.mrf.mxu0
      %v7998 = vadd.f32 %v7909, %v7997
      %7999 = vmatmul.bf16.gmra.mxu0 %v6914
      %v8000 = vpop.f32.mrf.mxu0
      %v8001 = vadd.f32 %v7912, %v8000
      %v8002 = vpop.f32.mrf.mxu0
      %v8003 = vadd.f32 %v7914, %v8002
      %8004 = vmatmul.bf16.gmra.mxu0 %v6917
      %v8005 = vpop.f32.mrf.mxu0
      %v8006 = vadd.f32 %v7917, %v8005
      %v8007 = vpop.f32.mrf.mxu0
      %v8008 = vadd.f32 %v7919, %v8007
      %8009 = vmatmul.bf16.gmra.mxu0 %v6920
      %v8010 = vpop.f32.mrf.mxu0
      %v8011 = vadd.f32 %v7922, %v8010
      %v8012 = vpop.f32.mrf.mxu0
      %v8013 = vadd.f32 %v7924, %v8012
      %8014 = vdwg.mxu0
      %v8015 = vld [vmem:[#allocation2] sm:$0xff]
      %v8016 = vld [vmem:[#allocation2 + $0x8] sm:$0xff]
      %v8017 = vld [vmem:[#allocation2 + $0x10] sm:$0xff]
      %v8018 = vld [vmem:[#allocation2 + $0x18] sm:$0xff]
      %v8019 = vld [vmem:[#allocation2 + $0x20] sm:$0xff]
      %v8020 = vld [vmem:[#allocation2 + $0x28] sm:$0xff]
      %v8021 = vld [vmem:[#allocation2 + $0x30] sm:$0xff]
      %v8022 = vld [vmem:[#allocation2 + $0x38] sm:$0xff]
      %v8023 = vld [vmem:[#allocation2 + $0x40] sm:$0xff]
      %v8024 = vld [vmem:[#allocation2 + $0x48] sm:$0xff]
      %v8025 = vld [vmem:[#allocation2 + $0x50] sm:$0xff]
      %v8026 = vld [vmem:[#allocation2 + $0x58] sm:$0xff]
      %v8027 = vld [vmem:[#allocation2 + $0x60] sm:$0xff]
      %v8028 = vld [vmem:[#allocation2 + $0x68] sm:$0xff]
      %v8029 = vld [vmem:[#allocation2 + $0x70] sm:$0xff]
      %v8030 = vld [vmem:[#allocation2 + $0x78] sm:$0xff]
      %v8031 = vld [vmem:[#allocation2 + $0x80] sm:$0xff]
      %v8032 = vld [vmem:[#allocation2 + $0x88] sm:$0xff]
      %v8033 = vld [vmem:[#allocation2 + $0x90] sm:$0xff]
      %v8034 = vld [vmem:[#allocation2 + $0x98] sm:$0xff]
      %v8035 = vld [vmem:[#allocation2 + $0xa0] sm:$0xff]
      %v8036 = vld [vmem:[#allocation2 + $0xa8] sm:$0xff]
      %v8037 = vld [vmem:[#allocation2 + $0xb0] sm:$0xff]
      %v8038 = vld [vmem:[#allocation2 + $0xb8] sm:$0xff]
      %v8039 = vld [vmem:[#allocation2 + $0xc0] sm:$0xff]
      %v8040 = vld [vmem:[#allocation2 + $0xc8] sm:$0xff]
      %v8041 = vld [vmem:[#allocation2 + $0xd0] sm:$0xff]
      %v8042 = vld [vmem:[#allocation2 + $0xd8] sm:$0xff]
      %v8043 = vld [vmem:[#allocation2 + $0xe0] sm:$0xff]
      %v8044 = vld [vmem:[#allocation2 + $0xe8] sm:$0xff]
      %v8045 = vld [vmem:[#allocation2 + $0xf0] sm:$0xff]
      %v8046 = vld [vmem:[#allocation2 + $0xf8] sm:$0xff]
      %v8047 = vadd.f32 %v8015, %v7936
      %v8048 = vadd.f32 %v8016, %v7938
      %v8049 = vadd.f32 %v8017, %v7941
      %v8050 = vadd.f32 %v8018, %v7943
      %v8051 = vadd.f32 %v8019, %v7946
      %v8052 = vadd.f32 %v8020, %v7948
      %v8053 = vadd.f32 %v8021, %v7951
      %v8054 = vadd.f32 %v8022, %v7953
      %v8055 = vadd.f32 %v8023, %v7956
      %v8056 = vadd.f32 %v8024, %v7958
      %v8057 = vadd.f32 %v8025, %v7961
      %v8058 = vadd.f32 %v8026, %v7963
      %v8059 = vadd.f32 %v8027, %v7966
      %v8060 = vadd.f32 %v8028, %v7968
      %v8061 = vadd.f32 %v8029, %v7971
      %v8062 = vadd.f32 %v8030, %v7973
      %v8063 = vadd.f32 %v8031, %v7976
      %v8064 = vadd.f32 %v8032, %v7978
      %v8065 = vadd.f32 %v8033, %v7981
      %v8066 = vadd.f32 %v8034, %v7983
      %v8067 = vadd.f32 %v8035, %v7986
      %v8068 = vadd.f32 %v8036, %v7988
      %v8069 = vadd.f32 %v8037, %v7991
      %v8070 = vadd.f32 %v8038, %v7993
      %v8071 = vadd.f32 %v8039, %v7996
      %v8072 = vadd.f32 %v8040, %v7998
      %v8073 = vadd.f32 %v8041, %v8001
      %v8074 = vadd.f32 %v8042, %v8003
      %v8075 = vadd.f32 %v8043, %v8006
      %v8076 = vadd.f32 %v8044, %v8008
      %v8077 = vadd.f32 %v8045, %v8011
      %v8078 = vadd.f32 %v8046, %v8013
      %8079 = vst [vmem:[#allocation2] sm:$0xff] %v8047
      %8080 = vst [vmem:[#allocation2 + $0x8] sm:$0xff] %v8048
      %8081 = vst [vmem:[#allocation2 + $0x10] sm:$0xff] %v8049
      %8082 = vst [vmem:[#allocation2 + $0x18] sm:$0xff] %v8050
      %8083 = vst [vmem:[#allocation2 + $0x20] sm:$0xff] %v8051
      %8084 = vst [vmem:[#allocation2 + $0x28] sm:$0xff] %v8052
      %8085 = vst [vmem:[#allocation2 + $0x30] sm:$0xff] %v8053
      %8086 = vst [vmem:[#allocation2 + $0x38] sm:$0xff] %v8054
      %8087 = vst [vmem:[#allocation2 + $0x40] sm:$0xff] %v8055
      %8088 = vst [vmem:[#allocation2 + $0x48] sm:$0xff] %v8056
      %8089 = vst [vmem:[#allocation2 + $0x50] sm:$0xff] %v8057
      %8090 = vst [vmem:[#allocation2 + $0x58] sm:$0xff] %v8058
      %8091 = vst [vmem:[#allocation2 + $0x60] sm:$0xff] %v8059
      %8092 = vst [vmem:[#allocation2 + $0x68] sm:$0xff] %v8060
      %8093 = vst [vmem:[#allocation2 + $0x70] sm:$0xff] %v8061
      %8094 = vst [vmem:[#allocation2 + $0x78] sm:$0xff] %v8062
      %8095 = vst [vmem:[#allocation2 + $0x80] sm:$0xff] %v8063
      %8096 = vst [vmem:[#allocation2 + $0x88] sm:$0xff] %v8064
      %8097 = vst [vmem:[#allocation2 + $0x90] sm:$0xff] %v8065
      %8098 = vst [vmem:[#allocation2 + $0x98] sm:$0xff] %v8066
      %8099 = vst [vmem:[#allocation2 + $0xa0] sm:$0xff] %v8067
      %8100 = vst [vmem:[#allocation2 + $0xa8] sm:$0xff] %v8068
      %8101 = vst [vmem:[#allocation2 + $0xb0] sm:$0xff] %v8069
      %8102 = vst [vmem:[#allocation2 + $0xb8] sm:$0xff] %v8070
      %8103 = vst [vmem:[#allocation2 + $0xc0] sm:$0xff] %v8071
      %8104 = vst [vmem:[#allocation2 + $0xc8] sm:$0xff] %v8072
      %8105 = vst [vmem:[#allocation2 + $0xd0] sm:$0xff] %v8073
      %8106 = vst [vmem:[#allocation2 + $0xd8] sm:$0xff] %v8074
      %8107 = vst [vmem:[#allocation2 + $0xe0] sm:$0xff] %v8075
      %8108 = vst [vmem:[#allocation2 + $0xe8] sm:$0xff] %v8076
      %8109 = vst [vmem:[#allocation2 + $0xf0] sm:$0xff] %v8077
      %8110 = vst [vmem:[#allocation2 + $0xf8] sm:$0xff] %v8078
      %v8111 = vld [vmem:[%s307] sm:$0xc]
      %v8112 = vld [vmem:[%s307 + $0x4] sm:$0xf]
      %v8113 = vld [vmem:[%s307 + $0x8] sm:$0x7]
      %v8114 = vld [vmem:[%s307 + $0xc] sm:$0xc]
      %v8115 = vld [vmem:[%s307 + $0x10] sm:$0xf]
      %v8116 = vld [vmem:[%s307 + $0x14] sm:$0x7]
      %v8117 = vld [vmem:[%s307 + $0x18] sm:$0xc]
      %v8118 = vld [vmem:[%s307 + $0x1c] sm:$0xf]
      %v8119 = vld [vmem:[%s307 + $0x20] sm:$0x7]
      %v8120 = vld [vmem:[%s307 + $0x24] sm:$0xc]
      %v8121 = vld [vmem:[%s307 + $0x28] sm:$0xf]
      %v8122 = vld [vmem:[%s307 + $0x2c] sm:$0x7]
      %v8123 = vld [vmem:[%s307 + $0x30] sm:$0xc]
      %v8124 = vld [vmem:[%s307 + $0x34] sm:$0xf]
      %v8125 = vld [vmem:[%s307 + $0x38] sm:$0x7]
      %v8126 = vld [vmem:[%s307 + $0x3c] sm:$0xc]
      %v8127 = vld [vmem:[%s307 + $0x40] sm:$0xf]
      %v8128 = vld [vmem:[%s307 + $0x44] sm:$0x7]
      %v8129 = vld [vmem:[%s307 + $0x48] sm:$0xc]
      %v8130 = vld [vmem:[%s307 + $0x4c] sm:$0xf]
      %v8131 = vld [vmem:[%s307 + $0x50] sm:$0x7]
      %v8132 = vld [vmem:[%s307 + $0x54] sm:$0xc]
      %v8133 = vld [vmem:[%s307 + $0x58] sm:$0xf]
      %v8134 = vld [vmem:[%s307 + $0x5c] sm:$0x7]
      %v8135 = vld [vmem:[%s307 + $0x60] sm:$0xc]
      %v8136 = vld [vmem:[%s307 + $0x64] sm:$0xf]
      %v8137 = vld [vmem:[%s307 + $0x68] sm:$0x7]
      %v8138 = vld [vmem:[%s307 + $0x6c] sm:$0xc]
      %v8139 = vld [vmem:[%s307 + $0x70] sm:$0xf]
      %v8140 = vld [vmem:[%s307 + $0x74] sm:$0x7]
      %v8141 = vld [vmem:[%s307 + $0x78] sm:$0xc]
      %v8142 = vld [vmem:[%s307 + $0x7c] sm:$0xf]
      %v8143 = vld [vmem:[%s307 + $0x80] sm:$0x7]
      %v8144 = vld [vmem:[%s307 + $0x84] sm:$0xc]
      %v8145 = vld [vmem:[%s307 + $0x88] sm:$0xf]
      %v8146 = vld [vmem:[%s307 + $0x8c] sm:$0x7]
      %v8147 = vld [vmem:[%s307 + $0x90] sm:$0xc]
      %v8148 = vld [vmem:[%s307 + $0x94] sm:$0xf]
      %v8149 = vld [vmem:[%s307 + $0x98] sm:$0x7]
      %v8150 = vld [vmem:[%s307 + $0x9c] sm:$0xc]
      %v8151 = vld [vmem:[%s307 + $0xa0] sm:$0xf]
      %v8152 = vld [vmem:[%s307 + $0xa4] sm:$0x7]
      %v8153 = vld [vmem:[%s307 + $0xa8] sm:$0xc]
      %v8154 = vld [vmem:[%s307 + $0xac] sm:$0xf]
      %v8155 = vld [vmem:[%s307 + $0xb0] sm:$0x7]
      %v8156 = vld [vmem:[%s307 + $0xb4] sm:$0xc]
      %v8157 = vld [vmem:[%s307 + $0xb8] sm:$0xf]
      %v8158 = vld [vmem:[%s307 + $0xbc] sm:$0x7]
      %v8159 = vld [vmem:[%s307 + $0xc0] sm:$0xc]
      %v8160 = vld [vmem:[%s307 + $0xc4] sm:$0xf]
      %v8161 = vld [vmem:[%s307 + $0xc8] sm:$0x7]
      %v8162 = vld [vmem:[%s307 + $0xcc] sm:$0xc]
      %v8163 = vld [vmem:[%s307 + $0xd0] sm:$0xf]
      %v8164 = vld [vmem:[%s307 + $0xd4] sm:$0x7]
      %v8165 = vld [vmem:[%s307 + $0xd8] sm:$0xc]
      %v8166 = vld [vmem:[%s307 + $0xdc] sm:$0xf]
      %v8167 = vld [vmem:[%s307 + $0xe0] sm:$0x7]
      %v8168 = vld [vmem:[%s307 + $0xe4] sm:$0xc]
      %v8169 = vld [vmem:[%s307 + $0xe8] sm:$0xf]
      %v8170 = vld [vmem:[%s307 + $0xec] sm:$0x7]
      %v8171 = vld [vmem:[%s307 + $0xf0] sm:$0xc]
      %v8172 = vld [vmem:[%s307 + $0xf4] sm:$0xf]
      %v8173 = vld [vmem:[%s307 + $0xf8] sm:$0x7]
      %v8174 = vld [vmem:[%s307 + $0xfc] sm:$0xc]
      %v8175 = vld [vmem:[%s307 + $0x100] sm:$0xf]
      %v8176 = vld [vmem:[%s307 + $0x104] sm:$0x7]
      %v8225 = vunpack.c.l.b16 %v8111
      %v8226 = vunpack.c.l.b16 %v8112
      %v8227 = vunpack.c.l.b16 %v8113
      %v8228 = vunpack.c.l.b16 %v8114
      %v8229 = vunpack.c.l.b16 %v8115
      %v8230 = vunpack.c.l.b16 %v8116
      %v8231 = vunpack.c.l.b16 %v8117
      %v8232 = vunpack.c.l.b16 %v8118
      %v8233 = vunpack.c.l.b16 %v8119
      %v8234 = vunpack.c.l.b16 %v8120
      %v8235 = vunpack.c.l.b16 %v8121
      %v8236 = vunpack.c.l.b16 %v8122
      %v8237 = vunpack.c.l.b16 %v8123
      %v8238 = vunpack.c.l.b16 %v8124
      %v8239 = vunpack.c.l.b16 %v8125
      %v8240 = vunpack.c.l.b16 %v8126
      %v8241 = vunpack.c.l.b16 %v8127
      %v8242 = vunpack.c.l.b16 %v8128
      %v8243 = vunpack.c.l.b16 %v8129
      %v8244 = vunpack.c.l.b16 %v8130
      %v8245 = vunpack.c.l.b16 %v8131
      %v8246 = vunpack.c.l.b16 %v8132
      %v8247 = vunpack.c.l.b16 %v8133
      %v8248 = vunpack.c.l.b16 %v8134
      %v8249 = vunpack.c.l.b16 %v8135
      %v8250 = vunpack.c.l.b16 %v8136
      %v8251 = vunpack.c.l.b16 %v8137
      %v8252 = vunpack.c.l.b16 %v8138
      %v8253 = vunpack.c.l.b16 %v8139
      %v8254 = vunpack.c.l.b16 %v8140
      %v8255 = vunpack.c.l.b16 %v8141
      %v8256 = vunpack.c.l.b16 %v8142
      %v8257 = vunpack.c.l.b16 %v8143
      %v8258 = vunpack.c.l.b16 %v8144
      %v8259 = vunpack.c.l.b16 %v8145
      %v8260 = vunpack.c.l.b16 %v8146
      %v8261 = vunpack.c.l.b16 %v8147
      %v8262 = vunpack.c.l.b16 %v8148
      %v8263 = vunpack.c.l.b16 %v8149
      %v8264 = vunpack.c.l.b16 %v8150
      %v8265 = vunpack.c.l.b16 %v8151
      %v8266 = vunpack.c.l.b16 %v8152
      %v8267 = vunpack.c.l.b16 %v8153
      %v8268 = vunpack.c.l.b16 %v8154
      %v8269 = vunpack.c.l.b16 %v8155
      %v8270 = vunpack.c.l.b16 %v8156
      %v8271 = vunpack.c.l.b16 %v8157
      %v8272 = vunpack.c.l.b16 %v8158
      %v8273 = vpack.c.b16 %v8226, %v8225
      %v8274 = vpack.c.b16 %v8227, %v8227
      %v8275 = vpack.c.b16 %v8229, %v8228
      %v8276 = vpack.c.b16 %v8230, %v8230
      %v8277 = vpack.c.b16 %v8232, %v8231
      %v8278 = vpack.c.b16 %v8233, %v8233
      %v8279 = vpack.c.b16 %v8235, %v8234
      %v8280 = vpack.c.b16 %v8236, %v8236
      %v8281 = vpack.c.b16 %v8238, %v8237
      %v8282 = vpack.c.b16 %v8239, %v8239
      %v8283 = vpack.c.b16 %v8241, %v8240
      %v8284 = vpack.c.b16 %v8242, %v8242
      %v8285 = vpack.c.b16 %v8244, %v8243
      %v8286 = vpack.c.b16 %v8245, %v8245
      %v8287 = vpack.c.b16 %v8247, %v8246
      %v8288 = vpack.c.b16 %v8248, %v8248
      %v8289 = vpack.c.b16 %v8250, %v8249
      %v8290 = vpack.c.b16 %v8251, %v8251
      %v8291 = vpack.c.b16 %v8253, %v8252
      %v8292 = vpack.c.b16 %v8254, %v8254
      %v8293 = vpack.c.b16 %v8256, %v8255
      %v8294 = vpack.c.b16 %v8257, %v8257
      %v8295 = vpack.c.b16 %v8259, %v8258
      %v8296 = vpack.c.b16 %v8260, %v8260
      %v8297 = vpack.c.b16 %v8262, %v8261
      %v8298 = vpack.c.b16 %v8263, %v8263
      %v8299 = vpack.c.b16 %v8265, %v8264
      %v8300 = vpack.c.b16 %v8266, %v8266
      %v8301 = vpack.c.b16 %v8268, %v8267
      %v8302 = vpack.c.b16 %v8269, %v8269
      %v8303 = vpack.c.b16 %v8271, %v8270
      %v8304 = vpack.c.b16 %v8272, %v8272
      %v8308 = vunpack.c.l.b16 %v8159
      %v8309 = vunpack.c.l.b16 %v8160
      %v8310 = vunpack.c.l.b16 %v8161
      %v8311 = vpack.c.b16 %v8309, %v8308
      %v8312 = vpack.c.b16 %v8310, %v8310
      %v8316 = vunpack.c.l.b16 %v8162
      %v8317 = vunpack.c.l.b16 %v8163
      %v8318 = vunpack.c.l.b16 %v8164
      %v8319 = vpack.c.b16 %v8317, %v8316
      %v8320 = vpack.c.b16 %v8318, %v8318
      %v8324 = vunpack.c.l.b16 %v8165
      %v8325 = vunpack.c.l.b16 %v8166
      %v8326 = vunpack.c.l.b16 %v8167
      %v8327 = vpack.c.b16 %v8325, %v8324
      %v8328 = vpack.c.b16 %v8326, %v8326
      %v8332 = vunpack.c.l.b16 %v8168
      %v8333 = vunpack.c.l.b16 %v8169
      %v8334 = vunpack.c.l.b16 %v8170
      %v8335 = vpack.c.b16 %v8333, %v8332
      %v8336 = vpack.c.b16 %v8334, %v8334
      %v8340 = vunpack.c.l.b16 %v8171
      %v8341 = vunpack.c.l.b16 %v8172
      %v8342 = vunpack.c.l.b16 %v8173
      %v8343 = vpack.c.b16 %v8341, %v8340
      %v8344 = vpack.c.b16 %v8342, %v8342
      %v8348 = vunpack.c.l.b16 %v8174
      %v8349 = vunpack.c.l.b16 %v8175
      %v8350 = vunpack.c.l.b16 %v8176
      %v8351 = vpack.c.b16 %v8349, %v8348
      %v8352 = vpack.c.b16 %v8350, %v8350
      %vm8353 = vsmask.f32 5376
      %v8355 = vshrl.u32 %v8273, 16
      %v8357 = vrot.slane %v8355, 2
      %v8358 = vshll.u32 %v8273, 16
      %v8360 = vrot.slane %v8358, 3
      %v8361 = vor.u32 %v8357, %v8360
      %v8363 = vshrl.u32 %v8274, 16
      %v8365 = vrot.slane %v8363, 2
      %v8366 = vshll.u32 %v8274, 16
      %v8368 = vrot.slane %v8366, 3
      %v8369 = vor.u32 %v8365, %v8368
      %v8370 = vsel %vm8353, %v8361, %v8369
      %v8372 = vshrl.u32 %v8275, 16
      %v8374 = vrot.slane %v8372, 2
      %v8375 = vshll.u32 %v8275, 16
      %v8377 = vrot.slane %v8375, 3
      %v8378 = vor.u32 %v8374, %v8377
      %v8380 = vshrl.u32 %v8276, 16
      %v8382 = vrot.slane %v8380, 2
      %v8383 = vshll.u32 %v8276, 16
      %v8385 = vrot.slane %v8383, 3
      %v8386 = vor.u32 %v8382, %v8385
      %v8387 = vsel %vm8353, %v8378, %v8386
      %v8389 = vshrl.u32 %v8277, 16
      %v8391 = vrot.slane %v8389, 2
      %v8392 = vshll.u32 %v8277, 16
      %v8394 = vrot.slane %v8392, 3
      %v8395 = vor.u32 %v8391, %v8394
      %v8397 = vshrl.u32 %v8278, 16
      %v8399 = vrot.slane %v8397, 2
      %v8400 = vshll.u32 %v8278, 16
      %v8402 = vrot.slane %v8400, 3
      %v8403 = vor.u32 %v8399, %v8402
      %v8404 = vsel %vm8353, %v8395, %v8403
      %v8406 = vshrl.u32 %v8279, 16
      %v8408 = vrot.slane %v8406, 2
      %v8409 = vshll.u32 %v8279, 16
      %v8411 = vrot.slane %v8409, 3
      %v8412 = vor.u32 %v8408, %v8411
      %v8414 = vshrl.u32 %v8280, 16
      %v8416 = vrot.slane %v8414, 2
      %v8417 = vshll.u32 %v8280, 16
      %v8419 = vrot.slane %v8417, 3
      %v8420 = vor.u32 %v8416, %v8419
      %v8421 = vsel %vm8353, %v8412, %v8420
      %v8423 = vshrl.u32 %v8281, 16
      %v8425 = vrot.slane %v8423, 2
      %v8426 = vshll.u32 %v8281, 16
      %v8428 = vrot.slane %v8426, 3
      %v8429 = vor.u32 %v8425, %v8428
      %v8431 = vshrl.u32 %v8282, 16
      %v8433 = vrot.slane %v8431, 2
      %v8434 = vshll.u32 %v8282, 16
      %v8436 = vrot.slane %v8434, 3
      %v8437 = vor.u32 %v8433, %v8436
      %v8438 = vsel %vm8353, %v8429, %v8437
      %v8440 = vshrl.u32 %v8283, 16
      %v8442 = vrot.slane %v8440, 2
      %v8443 = vshll.u32 %v8283, 16
      %v8445 = vrot.slane %v8443, 3
      %v8446 = vor.u32 %v8442, %v8445
      %v8448 = vshrl.u32 %v8284, 16
      %v8450 = vrot.slane %v8448, 2
      %v8451 = vshll.u32 %v8284, 16
      %v8453 = vrot.slane %v8451, 3
      %v8454 = vor.u32 %v8450, %v8453
      %v8455 = vsel %vm8353, %v8446, %v8454
      %v8457 = vshrl.u32 %v8285, 16
      %v8459 = vrot.slane %v8457, 2
      %v8460 = vshll.u32 %v8285, 16
      %v8462 = vrot.slane %v8460, 3
      %v8463 = vor.u32 %v8459, %v8462
      %v8465 = vshrl.u32 %v8286, 16
      %v8467 = vrot.slane %v8465, 2
      %v8468 = vshll.u32 %v8286, 16
      %v8470 = vrot.slane %v8468, 3
      %v8471 = vor.u32 %v8467, %v8470
      %v8472 = vsel %vm8353, %v8463, %v8471
      %v8474 = vshrl.u32 %v8287, 16
      %v8476 = vrot.slane %v8474, 2
      %v8477 = vshll.u32 %v8287, 16
      %v8479 = vrot.slane %v8477, 3
      %v8480 = vor.u32 %v8476, %v8479
      %v8482 = vshrl.u32 %v8288, 16
      %v8484 = vrot.slane %v8482, 2
      %v8485 = vshll.u32 %v8288, 16
      %v8487 = vrot.slane %v8485, 3
      %v8488 = vor.u32 %v8484, %v8487
      %v8489 = vsel %vm8353, %v8480, %v8488
      %v8491 = vshrl.u32 %v8289, 16
      %v8493 = vrot.slane %v8491, 2
      %v8494 = vshll.u32 %v8289, 16
      %v8496 = vrot.slane %v8494, 3
      %v8497 = vor.u32 %v8493, %v8496
      %v8499 = vshrl.u32 %v8290, 16
      %v8501 = vrot.slane %v8499, 2
      %v8502 = vshll.u32 %v8290, 16
      %v8504 = vrot.slane %v8502, 3
      %v8505 = vor.u32 %v8501, %v8504
      %v8506 = vsel %vm8353, %v8497, %v8505
      %v8508 = vshrl.u32 %v8291, 16
      %v8510 = vrot.slane %v8508, 2
      %v8511 = vshll.u32 %v8291, 16
      %v8513 = vrot.slane %v8511, 3
      %v8514 = vor.u32 %v8510, %v8513
      %v8516 = vshrl.u32 %v8292, 16
      %v8518 = vrot.slane %v8516, 2
      %v8519 = vshll.u32 %v8292, 16
      %v8521 = vrot.slane %v8519, 3
      %v8522 = vor.u32 %v8518, %v8521
      %v8523 = vsel %vm8353, %v8514, %v8522
      %v8525 = vshrl.u32 %v8293, 16
      %v8527 = vrot.slane %v8525, 2
      %v8528 = vshll.u32 %v8293, 16
      %v8530 = vrot.slane %v8528, 3
      %v8531 = vor.u32 %v8527, %v8530
      %v8533 = vshrl.u32 %v8294, 16
      %v8535 = vrot.slane %v8533, 2
      %v8536 = vshll.u32 %v8294, 16
      %v8538 = vrot.slane %v8536, 3
      %v8539 = vor.u32 %v8535, %v8538
      %v8540 = vsel %vm8353, %v8531, %v8539
      %v8542 = vshrl.u32 %v8295, 16
      %v8544 = vrot.slane %v8542, 2
      %v8545 = vshll.u32 %v8295, 16
      %v8547 = vrot.slane %v8545, 3
      %v8548 = vor.u32 %v8544, %v8547
      %v8550 = vshrl.u32 %v8296, 16
      %v8552 = vrot.slane %v8550, 2
      %v8553 = vshll.u32 %v8296, 16
      %v8555 = vrot.slane %v8553, 3
      %v8556 = vor.u32 %v8552, %v8555
      %v8557 = vsel %vm8353, %v8548, %v8556
      %v8559 = vshrl.u32 %v8297, 16
      %v8561 = vrot.slane %v8559, 2
      %v8562 = vshll.u32 %v8297, 16
      %v8564 = vrot.slane %v8562, 3
      %v8565 = vor.u32 %v8561, %v8564
      %v8567 = vshrl.u32 %v8298, 16
      %v8569 = vrot.slane %v8567, 2
      %v8570 = vshll.u32 %v8298, 16
      %v8572 = vrot.slane %v8570, 3
      %v8573 = vor.u32 %v8569, %v8572
      %v8574 = vsel %vm8353, %v8565, %v8573
      %v8576 = vshrl.u32 %v8299, 16
      %v8578 = vrot.slane %v8576, 2
      %v8579 = vshll.u32 %v8299, 16
      %v8581 = vrot.slane %v8579, 3
      %v8582 = vor.u32 %v8578, %v8581
      %v8584 = vshrl.u32 %v8300, 16
      %v8586 = vrot.slane %v8584, 2
      %v8587 = vshll.u32 %v8300, 16
      %v8589 = vrot.slane %v8587, 3
      %v8590 = vor.u32 %v8586, %v8589
      %v8591 = vsel %vm8353, %v8582, %v8590
      %v8593 = vshrl.u32 %v8301, 16
      %v8595 = vrot.slane %v8593, 2
      %v8596 = vshll.u32 %v8301, 16
      %v8598 = vrot.slane %v8596, 3
      %v8599 = vor.u32 %v8595, %v8598
      %v8601 = vshrl.u32 %v8302, 16
      %v8603 = vrot.slane %v8601, 2
      %v8604 = vshll.u32 %v8302, 16
      %v8606 = vrot.slane %v8604, 3
      %v8607 = vor.u32 %v8603, %v8606
      %v8608 = vsel %vm8353, %v8599, %v8607
      %v8610 = vshrl.u32 %v8303, 16
      %v8612 = vrot.slane %v8610, 2
      %v8613 = vshll.u32 %v8303, 16
      %v8615 = vrot.slane %v8613, 3
      %v8616 = vor.u32 %v8612, %v8615
      %v8618 = vshrl.u32 %v8304, 16
      %v8620 = vrot.slane %v8618, 2
      %v8621 = vshll.u32 %v8304, 16
      %v8623 = vrot.slane %v8621, 3
      %v8624 = vor.u32 %v8620, %v8623
      %v8625 = vsel %vm8353, %v8616, %v8624
      %v8627 = vshrl.u32 %v8311, 16
      %v8629 = vrot.slane %v8627, 2
      %v8630 = vshll.u32 %v8311, 16
      %v8632 = vrot.slane %v8630, 3
      %v8633 = vor.u32 %v8629, %v8632
      %v8635 = vshrl.u32 %v8312, 16
      %v8637 = vrot.slane %v8635, 2
      %v8638 = vshll.u32 %v8312, 16
      %v8640 = vrot.slane %v8638, 3
      %v8641 = vor.u32 %v8637, %v8640
      %v8642 = vsel %vm8353, %v8633, %v8641
      %v8644 = vshrl.u32 %v8319, 16
      %v8646 = vrot.slane %v8644, 2
      %v8647 = vshll.u32 %v8319, 16
      %v8649 = vrot.slane %v8647, 3
      %v8650 = vor.u32 %v8646, %v8649
      %v8652 = vshrl.u32 %v8320, 16
      %v8654 = vrot.slane %v8652, 2
      %v8655 = vshll.u32 %v8320, 16
      %v8657 = vrot.slane %v8655, 3
      %v8658 = vor.u32 %v8654, %v8657
      %v8659 = vsel %vm8353, %v8650, %v8658
      %v8661 = vshrl.u32 %v8327, 16
      %v8663 = vrot.slane %v8661, 2
      %v8664 = vshll.u32 %v8327, 16
      %v8666 = vrot.slane %v8664, 3
      %v8667 = vor.u32 %v8663, %v8666
      %v8669 = vshrl.u32 %v8328, 16
      %v8671 = vrot.slane %v8669, 2
      %v8672 = vshll.u32 %v8328, 16
      %v8674 = vrot.slane %v8672, 3
      %v8675 = vor.u32 %v8671, %v8674
      %v8676 = vsel %vm8353, %v8667, %v8675
      %v8678 = vshrl.u32 %v8335, 16
      %v8680 = vrot.slane %v8678, 2
      %v8681 = vshll.u32 %v8335, 16
      %v8683 = vrot.slane %v8681, 3
      %v8684 = vor.u32 %v8680, %v8683
      %v8686 = vshrl.u32 %v8336, 16
      %v8688 = vrot.slane %v8686, 2
      %v8689 = vshll.u32 %v8336, 16
      %v8691 = vrot.slane %v8689, 3
      %v8692 = vor.u32 %v8688, %v8691
      %v8693 = vsel %vm8353, %v8684, %v8692
      %v8695 = vshrl.u32 %v8343, 16
      %v8697 = vrot.slane %v8695, 2
      %v8698 = vshll.u32 %v8343, 16
      %v8700 = vrot.slane %v8698, 3
      %v8701 = vor.u32 %v8697, %v8700
      %v8703 = vshrl.u32 %v8344, 16
      %v8705 = vrot.slane %v8703, 2
      %v8706 = vshll.u32 %v8344, 16
      %v8708 = vrot.slane %v8706, 3
      %v8709 = vor.u32 %v8705, %v8708
      %v8710 = vsel %vm8353, %v8701, %v8709
      %v8712 = vshrl.u32 %v8351, 16
      %v8714 = vrot.slane %v8712, 2
      %v8715 = vshll.u32 %v8351, 16
      %v8717 = vrot.slane %v8715, 3
      %v8718 = vor.u32 %v8714, %v8717
      %v8720 = vshrl.u32 %v8352, 16
      %v8722 = vrot.slane %v8720, 2
      %v8723 = vshll.u32 %v8352, 16
      %v8725 = vrot.slane %v8723, 3
      %v8726 = vor.u32 %v8722, %v8725
      %v8727 = vsel %vm8353, %v8718, %v8726
      %s8750 = scalar_lea.vmem %s2, 2240
      %v8751 = vld [vmem:[%s8750] sm:$0xf]
      %v8752 = vld [vmem:[%s8750 + $0x4] sm:$0xf]
      %v8753 = vld [vmem:[%s8750 + $0x8] sm:$0xf]
      %v8754 = vld [vmem:[%s8750 + $0xc] sm:$0xf]
      %v8755 = vld [vmem:[%s8750 + $0x10] sm:$0xf]
      %v8756 = vld [vmem:[%s8750 + $0x14] sm:$0xf]
      %v8757 = vld [vmem:[%s8750 + $0x18] sm:$0xf]
      %v8758 = vld [vmem:[%s8750 + $0x1c] sm:$0xf]
      %v8759 = vld [vmem:[%s8750 + $0x20] sm:$0xf]
      %v8760 = vld [vmem:[%s8750 + $0x24] sm:$0xf]
      %v8761 = vld [vmem:[%s8750 + $0x28] sm:$0xf]
      %v8762 = vld [vmem:[%s8750 + $0x2c] sm:$0xf]
      %v8763 = vld [vmem:[%s8750 + $0x30] sm:$0xf]
      %v8764 = vld [vmem:[%s8750 + $0x34] sm:$0xf]
      %v8765 = vld [vmem:[%s8750 + $0x38] sm:$0xf]
      %v8766 = vld [vmem:[%s8750 + $0x3c] sm:$0xf]
      %v8767 = vld [vmem:[%s8750 + $0x40] sm:$0xf]
      %v8768 = vld [vmem:[%s8750 + $0x44] sm:$0xf]
      %v8769 = vld [vmem:[%s8750 + $0x48] sm:$0xf]
      %v8770 = vld [vmem:[%s8750 + $0x4c] sm:$0xf]
      %v8771 = vld [vmem:[%s8750 + $0x50] sm:$0xf]
      %v8772 = vld [vmem:[%s8750 + $0x54] sm:$0xf]
      %v8773 = vld [vmem:[%s8750 + $0x58] sm:$0xf]
      %v8774 = vld [vmem:[%s8750 + $0x5c] sm:$0xf]
      %v8775 = vld [vmem:[%s8750 + $0x60] sm:$0xf]
      %v8776 = vld [vmem:[%s8750 + $0x64] sm:$0xf]
      %v8777 = vld [vmem:[%s8750 + $0x68] sm:$0xf]
      %v8778 = vld [vmem:[%s8750 + $0x6c] sm:$0xf]
      %v8779 = vld [vmem:[%s8750 + $0x70] sm:$0xf]
      %v8780 = vld [vmem:[%s8750 + $0x74] sm:$0xf]
      %v8781 = vld [vmem:[%s8750 + $0x78] sm:$0xf]
      %v8782 = vld [vmem:[%s8750 + $0x7c] sm:$0xf]
      %v8783 = vld [vmem:[%s8750 + $0x80] sm:$0xf]
      %v8784 = vld [vmem:[%s8750 + $0x84] sm:$0xf]
      %v8785 = vld [vmem:[%s8750 + $0x88] sm:$0xf]
      %v8786 = vld [vmem:[%s8750 + $0x8c] sm:$0xf]
      %v8787 = vld [vmem:[%s8750 + $0x90] sm:$0xf]
      %v8788 = vld [vmem:[%s8750 + $0x94] sm:$0xf]
      %v8789 = vld [vmem:[%s8750 + $0x98] sm:$0xf]
      %v8790 = vld [vmem:[%s8750 + $0x9c] sm:$0xf]
      %v8791 = vld [vmem:[%s8750 + $0xa0] sm:$0xf]
      %v8792 = vld [vmem:[%s8750 + $0xa4] sm:$0xf]
      %v8793 = vld [vmem:[%s8750 + $0xa8] sm:$0xf]
      %v8794 = vld [vmem:[%s8750 + $0xac] sm:$0xf]
      %v8795 = vld [vmem:[%s8750 + $0xb0] sm:$0xf]
      %v8796 = vld [vmem:[%s8750 + $0xb4] sm:$0xf]
      %v8797 = vld [vmem:[%s8750 + $0xb8] sm:$0xf]
      %v8798 = vld [vmem:[%s8750 + $0xbc] sm:$0xf]
      %v8799 = vld [vmem:[%s8750 + $0xc0] sm:$0xf]
      %v8800 = vld [vmem:[%s8750 + $0xc4] sm:$0xf]
      %v8801 = vld [vmem:[%s8750 + $0xc8] sm:$0xf]
      %v8802 = vld [vmem:[%s8750 + $0xcc] sm:$0xf]
      %v8803 = vld [vmem:[%s8750 + $0xd0] sm:$0xf]
      %v8804 = vld [vmem:[%s8750 + $0xd4] sm:$0xf]
      %v8805 = vld [vmem:[%s8750 + $0xd8] sm:$0xf]
      %v8806 = vld [vmem:[%s8750 + $0xdc] sm:$0xf]
      %v8807 = vld [vmem:[%s8750 + $0xe0] sm:$0xf]
      %v8808 = vld [vmem:[%s8750 + $0xe4] sm:$0xf]
      %v8809 = vld [vmem:[%s8750 + $0xe8] sm:$0xf]
      %v8810 = vld [vmem:[%s8750 + $0xec] sm:$0xf]
      %v8811 = vld [vmem:[%s8750 + $0xf0] sm:$0xf]
      %v8812 = vld [vmem:[%s8750 + $0xf4] sm:$0xf]
      %v8813 = vld [vmem:[%s8750 + $0xf8] sm:$0xf]
      %v8814 = vld [vmem:[%s8750 + $0xfc] sm:$0xf]
      %v8815 = vld [vmem:[%s8750 + $0x100] sm:$0xf]
      %v8816 = vld [vmem:[%s8750 + $0x104] sm:$0xf]
      %v8817 = vld [vmem:[%s8750 + $0x108] sm:$0xf]
      %v8818 = vld [vmem:[%s8750 + $0x10c] sm:$0xf]
      %v8819 = vld [vmem:[%s8750 + $0x110] sm:$0xf]
      %v8820 = vld [vmem:[%s8750 + $0x114] sm:$0xf]
      %v8821 = vld [vmem:[%s8750 + $0x118] sm:$0xf]
      %v8822 = vld [vmem:[%s8750 + $0x11c] sm:$0xf]
      %v8823 = vld [vmem:[%s8750 + $0x120] sm:$0xf]
      %v8824 = vld [vmem:[%s8750 + $0x124] sm:$0xf]
      %v8825 = vld [vmem:[%s8750 + $0x128] sm:$0xf]
      %v8826 = vld [vmem:[%s8750 + $0x12c] sm:$0xf]
      %v8827 = vld [vmem:[%s8750 + $0x130] sm:$0xf]
      %v8828 = vld [vmem:[%s8750 + $0x134] sm:$0xf]
      %v8829 = vld [vmem:[%s8750 + $0x138] sm:$0xf]
      %v8830 = vld [vmem:[%s8750 + $0x13c] sm:$0xf]
      %v8831 = vld [vmem:[%s8750 + $0x140] sm:$0xf]
      %v8832 = vld [vmem:[%s8750 + $0x144] sm:$0xf]
      %v8833 = vld [vmem:[%s8750 + $0x148] sm:$0xf]
      %v8834 = vld [vmem:[%s8750 + $0x14c] sm:$0xf]
      %v8835 = vld [vmem:[%s8750 + $0x150] sm:$0xf]
      %v8836 = vld [vmem:[%s8750 + $0x154] sm:$0xf]
      %v8837 = vld [vmem:[%s8750 + $0x158] sm:$0xf]
      %v8838 = vld [vmem:[%s8750 + $0x15c] sm:$0xf]
      %v8839 = vld [vmem:[%s8750 + $0x160] sm:$0xf]
      %v8840 = vld [vmem:[%s8750 + $0x164] sm:$0xf]
      %v8841 = vld [vmem:[%s8750 + $0x168] sm:$0xf]
      %v8842 = vld [vmem:[%s8750 + $0x16c] sm:$0xf]
      %v8843 = vld [vmem:[%s8750 + $0x170] sm:$0xf]
      %v8844 = vld [vmem:[%s8750 + $0x174] sm:$0xf]
      %v8845 = vld [vmem:[%s8750 + $0x178] sm:$0xf]
      %v8846 = vld [vmem:[%s8750 + $0x17c] sm:$0xf]
      %v8847 = vld [vmem:[%s8750 + $0x180] sm:$0xf]
      %v8848 = vld [vmem:[%s8750 + $0x184] sm:$0xf]
      %v8849 = vld [vmem:[%s8750 + $0x188] sm:$0xf]
      %v8850 = vld [vmem:[%s8750 + $0x18c] sm:$0xf]
      %v8851 = vld [vmem:[%s8750 + $0x190] sm:$0xf]
      %v8852 = vld [vmem:[%s8750 + $0x194] sm:$0xf]
      %v8853 = vld [vmem:[%s8750 + $0x198] sm:$0xf]
      %v8854 = vld [vmem:[%s8750 + $0x19c] sm:$0xf]
      %v8855 = vld [vmem:[%s8750 + $0x1a0] sm:$0xf]
      %v8856 = vld [vmem:[%s8750 + $0x1a4] sm:$0xf]
      %v8857 = vld [vmem:[%s8750 + $0x1a8] sm:$0xf]
      %v8858 = vld [vmem:[%s8750 + $0x1ac] sm:$0xf]
      %v8859 = vld [vmem:[%s8750 + $0x1b0] sm:$0xf]
      %v8860 = vld [vmem:[%s8750 + $0x1b4] sm:$0xf]
      %v8861 = vld [vmem:[%s8750 + $0x1b8] sm:$0xf]
      %v8862 = vld [vmem:[%s8750 + $0x1bc] sm:$0xf]
      %v8975 = vunpack.c.l.b16 %v8751
      %v8976 = vunpack.c.l.b16 %v8752
      %v8977 = vunpack.c.l.b16 %v8753
      %v8978 = vunpack.c.l.b16 %v8754
      %v8979 = vunpack.c.l.b16 %v8755
      %v8980 = vunpack.c.l.b16 %v8756
      %v8981 = vunpack.c.l.b16 %v8757
      %v8982 = vunpack.c.l.b16 %v8758
      %v8983 = vunpack.c.l.b16 %v8759
      %v8984 = vunpack.c.l.b16 %v8760
      %v8985 = vunpack.c.l.b16 %v8761
      %v8986 = vunpack.c.l.b16 %v8762
      %v8987 = vunpack.c.l.b16 %v8763
      %v8988 = vunpack.c.l.b16 %v8764
      %v8989 = vunpack.c.l.b16 %v8765
      %v8990 = vunpack.c.l.b16 %v8766
      %v8991 = vunpack.c.l.b16 %v8767
      %v8992 = vunpack.c.l.b16 %v8768
      %v8993 = vunpack.c.l.b16 %v8769
      %v8994 = vunpack.c.l.b16 %v8770
      %v8995 = vunpack.c.l.b16 %v8771
      %v8996 = vunpack.c.l.b16 %v8772
      %v8997 = vunpack.c.l.b16 %v8773
      %v8998 = vunpack.c.l.b16 %v8774
      %v8999 = vunpack.c.l.b16 %v8775
      %v9000 = vunpack.c.l.b16 %v8776
      %v9001 = vunpack.c.l.b16 %v8777
      %v9002 = vunpack.c.l.b16 %v8778
      %v9003 = vunpack.c.l.b16 %v8779
      %v9004 = vunpack.c.l.b16 %v8780
      %v9005 = vunpack.c.l.b16 %v8781
      %v9006 = vunpack.c.l.b16 %v8782
      %v9007 = vunpack.c.l.b16 %v8783
      %v9008 = vunpack.c.l.b16 %v8784
      %v9009 = vunpack.c.l.b16 %v8785
      %v9010 = vunpack.c.l.b16 %v8786
      %v9011 = vunpack.c.l.b16 %v8787
      %v9012 = vunpack.c.l.b16 %v8788
      %v9013 = vunpack.c.l.b16 %v8789
      %v9014 = vunpack.c.l.b16 %v8790
      %v9015 = vunpack.c.l.b16 %v8791
      %v9016 = vunpack.c.l.b16 %v8792
      %v9017 = vunpack.c.l.b16 %v8793
      %v9018 = vunpack.c.l.b16 %v8794
      %v9019 = vunpack.c.l.b16 %v8795
      %v9020 = vunpack.c.l.b16 %v8796
      %v9021 = vunpack.c.l.b16 %v8797
      %v9022 = vunpack.c.l.b16 %v8798
      %v9023 = vunpack.c.l.b16 %v8799
      %v9024 = vunpack.c.l.b16 %v8800
      %v9025 = vunpack.c.l.b16 %v8801
      %v9026 = vunpack.c.l.b16 %v8802
      %v9027 = vunpack.c.l.b16 %v8803
      %v9028 = vunpack.c.l.b16 %v8804
      %v9029 = vunpack.c.l.b16 %v8805
      %v9030 = vunpack.c.l.b16 %v8806
      %v9031 = vunpack.c.l.b16 %v8807
      %v9032 = vunpack.c.l.b16 %v8808
      %v9033 = vunpack.c.l.b16 %v8809
      %v9034 = vunpack.c.l.b16 %v8810
      %v9035 = vunpack.c.l.b16 %v8811
      %v9036 = vunpack.c.l.b16 %v8812
      %v9037 = vunpack.c.l.b16 %v8813
      %v9038 = vunpack.c.l.b16 %v8814
      %v9039 = vunpack.c.l.b16 %v8815
      %v9040 = vunpack.c.l.b16 %v8816
      %v9041 = vunpack.c.l.b16 %v8817
      %v9042 = vunpack.c.l.b16 %v8818
      %v9043 = vunpack.c.l.b16 %v8819
      %v9044 = vunpack.c.l.b16 %v8820
      %v9045 = vunpack.c.l.b16 %v8821
      %v9046 = vunpack.c.l.b16 %v8822
      %v9047 = vunpack.c.l.b16 %v8823
      %v9048 = vunpack.c.l.b16 %v8824
      %v9049 = vunpack.c.l.b16 %v8825
      %v9050 = vunpack.c.l.b16 %v8826
      %v9051 = vunpack.c.l.b16 %v8827
      %v9052 = vunpack.c.l.b16 %v8828
      %v9053 = vunpack.c.l.b16 %v8829
      %v9054 = vunpack.c.l.b16 %v8830
      %v9055 = vunpack.c.l.b16 %v8831
      %v9056 = vunpack.c.l.b16 %v8832
      %v9057 = vunpack.c.l.b16 %v8833
      %v9058 = vunpack.c.l.b16 %v8834
      %v9059 = vunpack.c.l.b16 %v8835
      %v9060 = vunpack.c.l.b16 %v8836
      %v9061 = vunpack.c.l.b16 %v8837
      %v9062 = vunpack.c.l.b16 %v8838
      %v9063 = vunpack.c.l.b16 %v8839
      %v9064 = vunpack.c.l.b16 %v8840
      %v9065 = vunpack.c.l.b16 %v8841
      %v9066 = vunpack.c.l.b16 %v8842
      %v9067 = vunpack.c.l.b16 %v8843
      %v9068 = vunpack.c.l.b16 %v8844
      %v9069 = vunpack.c.l.b16 %v8845
      %v9070 = vunpack.c.l.b16 %v8846
      %v9071 = vunpack.c.l.b16 %v8847
      %v9072 = vunpack.c.l.b16 %v8848
      %v9073 = vunpack.c.l.b16 %v8849
      %v9074 = vunpack.c.l.b16 %v8850
      %v9075 = vunpack.c.l.b16 %v8851
      %v9076 = vunpack.c.l.b16 %v8852
      %v9077 = vunpack.c.l.b16 %v8853
      %v9078 = vunpack.c.l.b16 %v8854
      %v9079 = vunpack.c.l.b16 %v8855
      %v9080 = vunpack.c.l.b16 %v8856
      %v9081 = vunpack.c.l.b16 %v8857
      %v9082 = vunpack.c.l.b16 %v8858
      %v9083 = vunpack.c.l.b16 %v8859
      %v9084 = vunpack.c.l.b16 %v8860
      %v9085 = vunpack.c.l.b16 %v8861
      %v9086 = vunpack.c.l.b16 %v8862
      %v9087 = vpack.c.b16 %v8976, %v8975
      %v9088 = vpack.c.b16 %v8978, %v8977
      %v9089 = vpack.c.b16 %v8980, %v8979
      %v9090 = vpack.c.b16 %v8982, %v8981
      %v9091 = vpack.c.b16 %v8984, %v8983
      %v9092 = vpack.c.b16 %v8986, %v8985
      %v9093 = vpack.c.b16 %v8988, %v8987
      %v9094 = vpack.c.b16 %v8990, %v8989
      %v9095 = vpack.c.b16 %v8992, %v8991
      %v9096 = vpack.c.b16 %v8994, %v8993
      %v9097 = vpack.c.b16 %v8996, %v8995
      %v9098 = vpack.c.b16 %v8998, %v8997
      %v9099 = vpack.c.b16 %v9000, %v8999
      %v9100 = vpack.c.b16 %v9002, %v9001
      %v9101 = vpack.c.b16 %v9004, %v9003
      %v9102 = vpack.c.b16 %v9006, %v9005
      %v9103 = vpack.c.b16 %v9008, %v9007
      %v9104 = vpack.c.b16 %v9010, %v9009
      %v9105 = vpack.c.b16 %v9012, %v9011
      %v9106 = vpack.c.b16 %v9014, %v9013
      %v9107 = vpack.c.b16 %v9016, %v9015
      %v9108 = vpack.c.b16 %v9018, %v9017
      %v9109 = vpack.c.b16 %v9020, %v9019
      %v9110 = vpack.c.b16 %v9022, %v9021
      %v9111 = vpack.c.b16 %v9024, %v9023
      %v9112 = vpack.c.b16 %v9026, %v9025
      %v9113 = vpack.c.b16 %v9028, %v9027
      %v9114 = vpack.c.b16 %v9030, %v9029
      %v9115 = vpack.c.b16 %v9032, %v9031
      %v9116 = vpack.c.b16 %v9034, %v9033
      %v9117 = vpack.c.b16 %v9036, %v9035
      %v9118 = vpack.c.b16 %v9038, %v9037
      %v9119 = vpack.c.b16 %v9040, %v9039
      %v9120 = vpack.c.b16 %v9042, %v9041
      %v9121 = vpack.c.b16 %v9044, %v9043
      %v9122 = vpack.c.b16 %v9046, %v9045
      %v9123 = vpack.c.b16 %v9048, %v9047
      %v9124 = vpack.c.b16 %v9050, %v9049
      %v9125 = vpack.c.b16 %v9052, %v9051
      %v9126 = vpack.c.b16 %v9054, %v9053
      %v9127 = vpack.c.b16 %v9056, %v9055
      %v9128 = vpack.c.b16 %v9058, %v9057
      %v9129 = vpack.c.b16 %v9060, %v9059
      %v9130 = vpack.c.b16 %v9062, %v9061
      %v9131 = vpack.c.b16 %v9064, %v9063
      %v9132 = vpack.c.b16 %v9066, %v9065
      %v9133 = vpack.c.b16 %v9068, %v9067
      %v9134 = vpack.c.b16 %v9070, %v9069
      %v9135 = vpack.c.b16 %v9072, %v9071
      %v9136 = vpack.c.b16 %v9074, %v9073
      %v9137 = vpack.c.b16 %v9076, %v9075
      %v9138 = vpack.c.b16 %v9078, %v9077
      %v9139 = vpack.c.b16 %v9080, %v9079
      %v9140 = vpack.c.b16 %v9082, %v9081
      %v9141 = vpack.c.b16 %v9084, %v9083
      %v9142 = vpack.c.b16 %v9086, %v9085
      %9199 = vmatpush.bf16.msra.mxu0 %v9094
      %9200 = vmatpush.bf16.msra.mxu0 %v9093
      %9201 = vmatpush.bf16.msra.mxu0 %v9092
      %9202 = vmatpush.bf16.msra.mxu0 %v9091
      %9203 = vmatpush.bf16.msra.mxu0 %v9090
      %9204 = vmatpush.bf16.msra.mxu0 %v9089
      %9205 = vmatpush.bf16.msra.mxu0 %v9088
      %9206 = vmatpush.bf16.msra.mxu0 %v9087
      %9207 = vmatmul.bf16.gmra.mxu0 %v8370
      %v9208 = vpop.f32.mrf.mxu0
      %v9209 = vadd.f32 0.0, %v9208
      %v9210 = vpop.f32.mrf.mxu0
      %v9211 = vadd.f32 0.0, %v9210
      %9212 = vmatmul.bf16.gmra.mxu0 %v8387
      %v9213 = vpop.f32.mrf.mxu0
      %v9214 = vadd.f32 0.0, %v9213
      %v9215 = vpop.f32.mrf.mxu0
      %v9216 = vadd.f32 0.0, %v9215
      %9217 = vmatmul.bf16.gmra.mxu0 %v8404
      %v9218 = vpop.f32.mrf.mxu0
      %v9219 = vadd.f32 0.0, %v9218
      %v9220 = vpop.f32.mrf.mxu0
      %v9221 = vadd.f32 0.0, %v9220
      %9222 = vmatmul.bf16.gmra.mxu0 %v8421
      %v9223 = vpop.f32.mrf.mxu0
      %v9224 = vadd.f32 0.0, %v9223
      %v9225 = vpop.f32.mrf.mxu0
      %v9226 = vadd.f32 0.0, %v9225
      %9227 = vmatmul.bf16.gmra.mxu0 %v8438
      %v9228 = vpop.f32.mrf.mxu0
      %v9229 = vadd.f32 0.0, %v9228
      %v9230 = vpop.f32.mrf.mxu0
      %v9231 = vadd.f32 0.0, %v9230
      %9232 = vmatmul.bf16.gmra.mxu0 %v8455
      %v9233 = vpop.f32.mrf.mxu0
      %v9234 = vadd.f32 0.0, %v9233
      %v9235 = vpop.f32.mrf.mxu0
      %v9236 = vadd.f32 0.0, %v9235
      %9237 = vmatmul.bf16.gmra.mxu0 %v8472
      %v9238 = vpop.f32.mrf.mxu0
      %v9239 = vadd.f32 0.0, %v9238
      %v9240 = vpop.f32.mrf.mxu0
      %v9241 = vadd.f32 0.0, %v9240
      %9242 = vmatmul.bf16.gmra.mxu0 %v8489
      %v9243 = vpop.f32.mrf.mxu0
      %v9244 = vadd.f32 0.0, %v9243
      %v9245 = vpop.f32.mrf.mxu0
      %v9246 = vadd.f32 0.0, %v9245
      %9247 = vmatmul.bf16.gmra.mxu0 %v8506
      %v9248 = vpop.f32.mrf.mxu0
      %v9249 = vadd.f32 0.0, %v9248
      %v9250 = vpop.f32.mrf.mxu0
      %v9251 = vadd.f32 0.0, %v9250
      %9252 = vmatmul.bf16.gmra.mxu0 %v8523
      %v9253 = vpop.f32.mrf.mxu0
      %v9254 = vadd.f32 0.0, %v9253
      %v9255 = vpop.f32.mrf.mxu0
      %v9256 = vadd.f32 0.0, %v9255
      %9257 = vmatmul.bf16.gmra.mxu0 %v8540
      %v9258 = vpop.f32.mrf.mxu0
      %v9259 = vadd.f32 0.0, %v9258
      %v9260 = vpop.f32.mrf.mxu0
      %v9261 = vadd.f32 0.0, %v9260
      %9262 = vmatmul.bf16.gmra.mxu0 %v8557
      %v9263 = vpop.f32.mrf.mxu0
      %v9264 = vadd.f32 0.0, %v9263
      %v9265 = vpop.f32.mrf.mxu0
      %v9266 = vadd.f32 0.0, %v9265
      %9267 = vmatmul.bf16.gmra.mxu0 %v8574
      %v9268 = vpop.f32.mrf.mxu0
      %v9269 = vadd.f32 0.0, %v9268
      %v9270 = vpop.f32.mrf.mxu0
      %v9271 = vadd.f32 0.0, %v9270
      %9272 = vmatmul.bf16.gmra.mxu0 %v8591
      %v9273 = vpop.f32.mrf.mxu0
      %v9274 = vadd.f32 0.0, %v9273
      %v9275 = vpop.f32.mrf.mxu0
      %v9276 = vadd.f32 0.0, %v9275
      %9277 = vmatmul.bf16.gmra.mxu0 %v8608
      %v9278 = vpop.f32.mrf.mxu0
      %v9279 = vadd.f32 0.0, %v9278
      %v9280 = vpop.f32.mrf.mxu0
      %v9281 = vadd.f32 0.0, %v9280
      %9282 = vmatmul.bf16.gmra.mxu0 %v8625
      %v9283 = vpop.f32.mrf.mxu0
      %v9284 = vadd.f32 0.0, %v9283
      %v9285 = vpop.f32.mrf.mxu0
      %v9286 = vadd.f32 0.0, %v9285
      %9287 = vdwg.mxu0
      %9288 = vmatpush.bf16.msra.mxu0 %v9102
      %9289 = vmatpush.bf16.msra.mxu0 %v9101
      %9290 = vmatpush.bf16.msra.mxu0 %v9100
      %9291 = vmatpush.bf16.msra.mxu0 %v9099
      %9292 = vmatpush.bf16.msra.mxu0 %v9098
      %9293 = vmatpush.bf16.msra.mxu0 %v9097
      %9294 = vmatpush.bf16.msra.mxu0 %v9096
      %9295 = vmatpush.bf16.msra.mxu0 %v9095
      %9296 = vmatmul.bf16.gmra.mxu0 %v8387
      %v9297 = vpop.f32.mrf.mxu0
      %v9298 = vadd.f32 %v9209, %v9297
      %v9299 = vpop.f32.mrf.mxu0
      %v9300 = vadd.f32 %v9211, %v9299
      %9301 = vmatmul.bf16.gmra.mxu0 %v8404
      %v9302 = vpop.f32.mrf.mxu0
      %v9303 = vadd.f32 %v9214, %v9302
      %v9304 = vpop.f32.mrf.mxu0
      %v9305 = vadd.f32 %v9216, %v9304
      %9306 = vmatmul.bf16.gmra.mxu0 %v8421
      %v9307 = vpop.f32.mrf.mxu0
      %v9308 = vadd.f32 %v9219, %v9307
      %v9309 = vpop.f32.mrf.mxu0
      %v9310 = vadd.f32 %v9221, %v9309
      %9311 = vmatmul.bf16.gmra.mxu0 %v8438
      %v9312 = vpop.f32.mrf.mxu0
      %v9313 = vadd.f32 %v9224, %v9312
      %v9314 = vpop.f32.mrf.mxu0
      %v9315 = vadd.f32 %v9226, %v9314
      %9316 = vmatmul.bf16.gmra.mxu0 %v8455
      %v9317 = vpop.f32.mrf.mxu0
      %v9318 = vadd.f32 %v9229, %v9317
      %v9319 = vpop.f32.mrf.mxu0
      %v9320 = vadd.f32 %v9231, %v9319
      %9321 = vmatmul.bf16.gmra.mxu0 %v8472
      %v9322 = vpop.f32.mrf.mxu0
      %v9323 = vadd.f32 %v9234, %v9322
      %v9324 = vpop.f32.mrf.mxu0
      %v9325 = vadd.f32 %v9236, %v9324
      %9326 = vmatmul.bf16.gmra.mxu0 %v8489
      %v9327 = vpop.f32.mrf.mxu0
      %v9328 = vadd.f32 %v9239, %v9327
      %v9329 = vpop.f32.mrf.mxu0
      %v9330 = vadd.f32 %v9241, %v9329
      %9331 = vmatmul.bf16.gmra.mxu0 %v8506
      %v9332 = vpop.f32.mrf.mxu0
      %v9333 = vadd.f32 %v9244, %v9332
      %v9334 = vpop.f32.mrf.mxu0
      %v9335 = vadd.f32 %v9246, %v9334
      %9336 = vmatmul.bf16.gmra.mxu0 %v8523
      %v9337 = vpop.f32.mrf.mxu0
      %v9338 = vadd.f32 %v9249, %v9337
      %v9339 = vpop.f32.mrf.mxu0
      %v9340 = vadd.f32 %v9251, %v9339
      %9341 = vmatmul.bf16.gmra.mxu0 %v8540
      %v9342 = vpop.f32.mrf.mxu0
      %v9343 = vadd.f32 %v9254, %v9342
      %v9344 = vpop.f32.mrf.mxu0
      %v9345 = vadd.f32 %v9256, %v9344
      %9346 = vmatmul.bf16.gmra.mxu0 %v8557
      %v9347 = vpop.f32.mrf.mxu0
      %v9348 = vadd.f32 %v9259, %v9347
      %v9349 = vpop.f32.mrf.mxu0
      %v9350 = vadd.f32 %v9261, %v9349
      %9351 = vmatmul.bf16.gmra.mxu0 %v8574
      %v9352 = vpop.f32.mrf.mxu0
      %v9353 = vadd.f32 %v9264, %v9352
      %v9354 = vpop.f32.mrf.mxu0
      %v9355 = vadd.f32 %v9266, %v9354
      %9356 = vmatmul.bf16.gmra.mxu0 %v8591
      %v9357 = vpop.f32.mrf.mxu0
      %v9358 = vadd.f32 %v9269, %v9357
      %v9359 = vpop.f32.mrf.mxu0
      %v9360 = vadd.f32 %v9271, %v9359
      %9361 = vmatmul.bf16.gmra.mxu0 %v8608
      %v9362 = vpop.f32.mrf.mxu0
      %v9363 = vadd.f32 %v9274, %v9362
      %v9364 = vpop.f32.mrf.mxu0
      %v9365 = vadd.f32 %v9276, %v9364
      %9366 = vmatmul.bf16.gmra.mxu0 %v8625
      %v9367 = vpop.f32.mrf.mxu0
      %v9368 = vadd.f32 %v9279, %v9367
      %v9369 = vpop.f32.mrf.mxu0
      %v9370 = vadd.f32 %v9281, %v9369
      %9371 = vmatmul.bf16.gmra.mxu0 %v8642
      %v9372 = vpop.f32.mrf.mxu0
      %v9373 = vadd.f32 %v9284, %v9372
      %v9374 = vpop.f32.mrf.mxu0
      %v9375 = vadd.f32 %v9286, %v9374
      %9376 = vdwg.mxu0
      %9377 = vmatpush.bf16.msra.mxu0 %v9110
      %9378 = vmatpush.bf16.msra.mxu0 %v9109
      %9379 = vmatpush.bf16.msra.mxu0 %v9108
      %9380 = vmatpush.bf16.msra.mxu0 %v9107
      %9381 = vmatpush.bf16.msra.mxu0 %v9106
      %9382 = vmatpush.bf16.msra.mxu0 %v9105
      %9383 = vmatpush.bf16.msra.mxu0 %v9104
      %9384 = vmatpush.bf16.msra.mxu0 %v9103
      %9385 = vmatmul.bf16.gmra.mxu0 %v8404
      %v9386 = vpop.f32.mrf.mxu0
      %v9387 = vadd.f32 %v9298, %v9386
      %v9388 = vpop.f32.mrf.mxu0
      %v9389 = vadd.f32 %v9300, %v9388
      %9390 = vmatmul.bf16.gmra.mxu0 %v8421
      %v9391 = vpop.f32.mrf.mxu0
      %v9392 = vadd.f32 %v9303, %v9391
      %v9393 = vpop.f32.mrf.mxu0
      %v9394 = vadd.f32 %v9305, %v9393
      %9395 = vmatmul.bf16.gmra.mxu0 %v8438
      %v9396 = vpop.f32.mrf.mxu0
      %v9397 = vadd.f32 %v9308, %v9396
      %v9398 = vpop.f32.mrf.mxu0
      %v9399 = vadd.f32 %v9310, %v9398
      %9400 = vmatmul.bf16.gmra.mxu0 %v8455
      %v9401 = vpop.f32.mrf.mxu0
      %v9402 = vadd.f32 %v9313, %v9401
      %v9403 = vpop.f32.mrf.mxu0
      %v9404 = vadd.f32 %v9315, %v9403
      %9405 = vmatmul.bf16.gmra.mxu0 %v8472
      %v9406 = vpop.f32.mrf.mxu0
      %v9407 = vadd.f32 %v9318, %v9406
      %v9408 = vpop.f32.mrf.mxu0
      %v9409 = vadd.f32 %v9320, %v9408
      %9410 = vmatmul.bf16.gmra.mxu0 %v8489
      %v9411 = vpop.f32.mrf.mxu0
      %v9412 = vadd.f32 %v9323, %v9411
      %v9413 = vpop.f32.mrf.mxu0
      %v9414 = vadd.f32 %v9325, %v9413
      %9415 = vmatmul.bf16.gmra.mxu0 %v8506
      %v9416 = vpop.f32.mrf.mxu0
      %v9417 = vadd.f32 %v9328, %v9416
      %v9418 = vpop.f32.mrf.mxu0
      %v9419 = vadd.f32 %v9330, %v9418
      %9420 = vmatmul.bf16.gmra.mxu0 %v8523
      %v9421 = vpop.f32.mrf.mxu0
      %v9422 = vadd.f32 %v9333, %v9421
      %v9423 = vpop.f32.mrf.mxu0
      %v9424 = vadd.f32 %v9335, %v9423
      %9425 = vmatmul.bf16.gmra.mxu0 %v8540
      %v9426 = vpop.f32.mrf.mxu0
      %v9427 = vadd.f32 %v9338, %v9426
      %v9428 = vpop.f32.mrf.mxu0
      %v9429 = vadd.f32 %v9340, %v9428
      %9430 = vmatmul.bf16.gmra.mxu0 %v8557
      %v9431 = vpop.f32.mrf.mxu0
      %v9432 = vadd.f32 %v9343, %v9431
      %v9433 = vpop.f32.mrf.mxu0
      %v9434 = vadd.f32 %v9345, %v9433
      %9435 = vmatmul.bf16.gmra.mxu0 %v8574
      %v9436 = vpop.f32.mrf.mxu0
      %v9437 = vadd.f32 %v9348, %v9436
      %v9438 = vpop.f32.mrf.mxu0
      %v9439 = vadd.f32 %v9350, %v9438
      %9440 = vmatmul.bf16.gmra.mxu0 %v8591
      %v9441 = vpop.f32.mrf.mxu0
      %v9442 = vadd.f32 %v9353, %v9441
      %v9443 = vpop.f32.mrf.mxu0
      %v9444 = vadd.f32 %v9355, %v9443
      %9445 = vmatmul.bf16.gmra.mxu0 %v8608
      %v9446 = vpop.f32.mrf.mxu0
      %v9447 = vadd.f32 %v9358, %v9446
      %v9448 = vpop.f32.mrf.mxu0
      %v9449 = vadd.f32 %v9360, %v9448
      %9450 = vmatmul.bf16.gmra.mxu0 %v8625
      %v9451 = vpop.f32.mrf.mxu0
      %v9452 = vadd.f32 %v9363, %v9451
      %v9453 = vpop.f32.mrf.mxu0
      %v9454 = vadd.f32 %v9365, %v9453
      %9455 = vmatmul.bf16.gmra.mxu0 %v8642
      %v9456 = vpop.f32.mrf.mxu0
      %v9457 = vadd.f32 %v9368, %v9456
      %v9458 = vpop.f32.mrf.mxu0
      %v9459 = vadd.f32 %v9370, %v9458
      %9460 = vmatmul.bf16.gmra.mxu0 %v8659
      %v9461 = vpop.f32.mrf.mxu0
      %v9462 = vadd.f32 %v9373, %v9461
      %v9463 = vpop.f32.mrf.mxu0
      %v9464 = vadd.f32 %v9375, %v9463
      %9465 = vdwg.mxu0
      %9466 = vmatpush.bf16.msra.mxu0 %v9118
      %9467 = vmatpush.bf16.msra.mxu0 %v9117
      %9468 = vmatpush.bf16.msra.mxu0 %v9116
      %9469 = vmatpush.bf16.msra.mxu0 %v9115
      %9470 = vmatpush.bf16.msra.mxu0 %v9114
      %9471 = vmatpush.bf16.msra.mxu0 %v9113
      %9472 = vmatpush.bf16.msra.mxu0 %v9112
      %9473 = vmatpush.bf16.msra.mxu0 %v9111
      %9474 = vmatmul.bf16.gmra.mxu0 %v8421
      %v9475 = vpop.f32.mrf.mxu0
      %v9476 = vadd.f32 %v9387, %v9475
      %v9477 = vpop.f32.mrf.mxu0
      %v9478 = vadd.f32 %v9389, %v9477
      %9479 = vmatmul.bf16.gmra.mxu0 %v8438
      %v9480 = vpop.f32.mrf.mxu0
      %v9481 = vadd.f32 %v9392, %v9480
      %v9482 = vpop.f32.mrf.mxu0
      %v9483 = vadd.f32 %v9394, %v9482
      %9484 = vmatmul.bf16.gmra.mxu0 %v8455
      %v9485 = vpop.f32.mrf.mxu0
      %v9486 = vadd.f32 %v9397, %v9485
      %v9487 = vpop.f32.mrf.mxu0
      %v9488 = vadd.f32 %v9399, %v9487
      %9489 = vmatmul.bf16.gmra.mxu0 %v8472
      %v9490 = vpop.f32.mrf.mxu0
      %v9491 = vadd.f32 %v9402, %v9490
      %v9492 = vpop.f32.mrf.mxu0
      %v9493 = vadd.f32 %v9404, %v9492
      %9494 = vmatmul.bf16.gmra.mxu0 %v8489
      %v9495 = vpop.f32.mrf.mxu0
      %v9496 = vadd.f32 %v9407, %v9495
      %v9497 = vpop.f32.mrf.mxu0
      %v9498 = vadd.f32 %v9409, %v9497
      %9499 = vmatmul.bf16.gmra.mxu0 %v8506
      %v9500 = vpop.f32.mrf.mxu0
      %v9501 = vadd.f32 %v9412, %v9500
      %v9502 = vpop.f32.mrf.mxu0
      %v9503 = vadd.f32 %v9414, %v9502
      %9504 = vmatmul.bf16.gmra.mxu0 %v8523
      %v9505 = vpop.f32.mrf.mxu0
      %v9506 = vadd.f32 %v9417, %v9505
      %v9507 = vpop.f32.mrf.mxu0
      %v9508 = vadd.f32 %v9419, %v9507
      %9509 = vmatmul.bf16.gmra.mxu0 %v8540
      %v9510 = vpop.f32.mrf.mxu0
      %v9511 = vadd.f32 %v9422, %v9510
      %v9512 = vpop.f32.mrf.mxu0
      %v9513 = vadd.f32 %v9424, %v9512
      %9514 = vmatmul.bf16.gmra.mxu0 %v8557
      %v9515 = vpop.f32.mrf.mxu0
      %v9516 = vadd.f32 %v9427, %v9515
      %v9517 = vpop.f32.mrf.mxu0
      %v9518 = vadd.f32 %v9429, %v9517
      %9519 = vmatmul.bf16.gmra.mxu0 %v8574
      %v9520 = vpop.f32.mrf.mxu0
      %v9521 = vadd.f32 %v9432, %v9520
      %v9522 = vpop.f32.mrf.mxu0
      %v9523 = vadd.f32 %v9434, %v9522
      %9524 = vmatmul.bf16.gmra.mxu0 %v8591
      %v9525 = vpop.f32.mrf.mxu0
      %v9526 = vadd.f32 %v9437, %v9525
      %v9527 = vpop.f32.mrf.mxu0
      %v9528 = vadd.f32 %v9439, %v9527
      %9529 = vmatmul.bf16.gmra.mxu0 %v8608
      %v9530 = vpop.f32.mrf.mxu0
      %v9531 = vadd.f32 %v9442, %v9530
      %v9532 = vpop.f32.mrf.mxu0
      %v9533 = vadd.f32 %v9444, %v9532
      %9534 = vmatmul.bf16.gmra.mxu0 %v8625
      %v9535 = vpop.f32.mrf.mxu0
      %v9536 = vadd.f32 %v9447, %v9535
      %v9537 = vpop.f32.mrf.mxu0
      %v9538 = vadd.f32 %v9449, %v9537
      %9539 = vmatmul.bf16.gmra.mxu0 %v8642
      %v9540 = vpop.f32.mrf.mxu0
      %v9541 = vadd.f32 %v9452, %v9540
      %v9542 = vpop.f32.mrf.mxu0
      %v9543 = vadd.f32 %v9454, %v9542
      %9544 = vmatmul.bf16.gmra.mxu0 %v8659
      %v9545 = vpop.f32.mrf.mxu0
      %v9546 = vadd.f32 %v9457, %v9545
      %v9547 = vpop.f32.mrf.mxu0
      %v9548 = vadd.f32 %v9459, %v9547
      %9549 = vmatmul.bf16.gmra.mxu0 %v8676
      %v9550 = vpop.f32.mrf.mxu0
      %v9551 = vadd.f32 %v9462, %v9550
      %v9552 = vpop.f32.mrf.mxu0
      %v9553 = vadd.f32 %v9464, %v9552
      %9554 = vdwg.mxu0
      %9555 = vmatpush.bf16.msra.mxu0 %v9126
      %9556 = vmatpush.bf16.msra.mxu0 %v9125
      %9557 = vmatpush.bf16.msra.mxu0 %v9124
      %9558 = vmatpush.bf16.msra.mxu0 %v9123
      %9559 = vmatpush.bf16.msra.mxu0 %v9122
      %9560 = vmatpush.bf16.msra.mxu0 %v9121
      %9561 = vmatpush.bf16.msra.mxu0 %v9120
      %9562 = vmatpush.bf16.msra.mxu0 %v9119
      %9563 = vmatmul.bf16.gmra.mxu0 %v8438
      %v9564 = vpop.f32.mrf.mxu0
      %v9565 = vadd.f32 %v9476, %v9564
      %v9566 = vpop.f32.mrf.mxu0
      %v9567 = vadd.f32 %v9478, %v9566
      %9568 = vmatmul.bf16.gmra.mxu0 %v8455
      %v9569 = vpop.f32.mrf.mxu0
      %v9570 = vadd.f32 %v9481, %v9569
      %v9571 = vpop.f32.mrf.mxu0
      %v9572 = vadd.f32 %v9483, %v9571
      %9573 = vmatmul.bf16.gmra.mxu0 %v8472
      %v9574 = vpop.f32.mrf.mxu0
      %v9575 = vadd.f32 %v9486, %v9574
      %v9576 = vpop.f32.mrf.mxu0
      %v9577 = vadd.f32 %v9488, %v9576
      %9578 = vmatmul.bf16.gmra.mxu0 %v8489
      %v9579 = vpop.f32.mrf.mxu0
      %v9580 = vadd.f32 %v9491, %v9579
      %v9581 = vpop.f32.mrf.mxu0
      %v9582 = vadd.f32 %v9493, %v9581
      %9583 = vmatmul.bf16.gmra.mxu0 %v8506
      %v9584 = vpop.f32.mrf.mxu0
      %v9585 = vadd.f32 %v9496, %v9584
      %v9586 = vpop.f32.mrf.mxu0
      %v9587 = vadd.f32 %v9498, %v9586
      %9588 = vmatmul.bf16.gmra.mxu0 %v8523
      %v9589 = vpop.f32.mrf.mxu0
      %v9590 = vadd.f32 %v9501, %v9589
      %v9591 = vpop.f32.mrf.mxu0
      %v9592 = vadd.f32 %v9503, %v9591
      %9593 = vmatmul.bf16.gmra.mxu0 %v8540
      %v9594 = vpop.f32.mrf.mxu0
      %v9595 = vadd.f32 %v9506, %v9594
      %v9596 = vpop.f32.mrf.mxu0
      %v9597 = vadd.f32 %v9508, %v9596
      %9598 = vmatmul.bf16.gmra.mxu0 %v8557
      %v9599 = vpop.f32.mrf.mxu0
      %v9600 = vadd.f32 %v9511, %v9599
      %v9601 = vpop.f32.mrf.mxu0
      %v9602 = vadd.f32 %v9513, %v9601
      %9603 = vmatmul.bf16.gmra.mxu0 %v8574
      %v9604 = vpop.f32.mrf.mxu0
      %v9605 = vadd.f32 %v9516, %v9604
      %v9606 = vpop.f32.mrf.mxu0
      %v9607 = vadd.f32 %v9518, %v9606
      %9608 = vmatmul.bf16.gmra.mxu0 %v8591
      %v9609 = vpop.f32.mrf.mxu0
      %v9610 = vadd.f32 %v9521, %v9609
      %v9611 = vpop.f32.mrf.mxu0
      %v9612 = vadd.f32 %v9523, %v9611
      %9613 = vmatmul.bf16.gmra.mxu0 %v8608
      %v9614 = vpop.f32.mrf.mxu0
      %v9615 = vadd.f32 %v9526, %v9614
      %v9616 = vpop.f32.mrf.mxu0
      %v9617 = vadd.f32 %v9528, %v9616
      %9618 = vmatmul.bf16.gmra.mxu0 %v8625
      %v9619 = vpop.f32.mrf.mxu0
      %v9620 = vadd.f32 %v9531, %v9619
      %v9621 = vpop.f32.mrf.mxu0
      %v9622 = vadd.f32 %v9533, %v9621
      %9623 = vmatmul.bf16.gmra.mxu0 %v8642
      %v9624 = vpop.f32.mrf.mxu0
      %v9625 = vadd.f32 %v9536, %v9624
      %v9626 = vpop.f32.mrf.mxu0
      %v9627 = vadd.f32 %v9538, %v9626
      %9628 = vmatmul.bf16.gmra.mxu0 %v8659
      %v9629 = vpop.f32.mrf.mxu0
      %v9630 = vadd.f32 %v9541, %v9629
      %v9631 = vpop.f32.mrf.mxu0
      %v9632 = vadd.f32 %v9543, %v9631
      %9633 = vmatmul.bf16.gmra.mxu0 %v8676
      %v9634 = vpop.f32.mrf.mxu0
      %v9635 = vadd.f32 %v9546, %v9634
      %v9636 = vpop.f32.mrf.mxu0
      %v9637 = vadd.f32 %v9548, %v9636
      %9638 = vmatmul.bf16.gmra.mxu0 %v8693
      %v9639 = vpop.f32.mrf.mxu0
      %v9640 = vadd.f32 %v9551, %v9639
      %v9641 = vpop.f32.mrf.mxu0
      %v9642 = vadd.f32 %v9553, %v9641
      %9643 = vdwg.mxu0
      %9644 = vmatpush.bf16.msra.mxu0 %v9134
      %9645 = vmatpush.bf16.msra.mxu0 %v9133
      %9646 = vmatpush.bf16.msra.mxu0 %v9132
      %9647 = vmatpush.bf16.msra.mxu0 %v9131
      %9648 = vmatpush.bf16.msra.mxu0 %v9130
      %9649 = vmatpush.bf16.msra.mxu0 %v9129
      %9650 = vmatpush.bf16.msra.mxu0 %v9128
      %9651 = vmatpush.bf16.msra.mxu0 %v9127
      %9652 = vmatmul.bf16.gmra.mxu0 %v8455
      %v9653 = vpop.f32.mrf.mxu0
      %v9654 = vadd.f32 %v9565, %v9653
      %v9655 = vpop.f32.mrf.mxu0
      %v9656 = vadd.f32 %v9567, %v9655
      %9657 = vmatmul.bf16.gmra.mxu0 %v8472
      %v9658 = vpop.f32.mrf.mxu0
      %v9659 = vadd.f32 %v9570, %v9658
      %v9660 = vpop.f32.mrf.mxu0
      %v9661 = vadd.f32 %v9572, %v9660
      %9662 = vmatmul.bf16.gmra.mxu0 %v8489
      %v9663 = vpop.f32.mrf.mxu0
      %v9664 = vadd.f32 %v9575, %v9663
      %v9665 = vpop.f32.mrf.mxu0
      %v9666 = vadd.f32 %v9577, %v9665
      %9667 = vmatmul.bf16.gmra.mxu0 %v8506
      %v9668 = vpop.f32.mrf.mxu0
      %v9669 = vadd.f32 %v9580, %v9668
      %v9670 = vpop.f32.mrf.mxu0
      %v9671 = vadd.f32 %v9582, %v9670
      %9672 = vmatmul.bf16.gmra.mxu0 %v8523
      %v9673 = vpop.f32.mrf.mxu0
      %v9674 = vadd.f32 %v9585, %v9673
      %v9675 = vpop.f32.mrf.mxu0
      %v9676 = vadd.f32 %v9587, %v9675
      %9677 = vmatmul.bf16.gmra.mxu0 %v8540
      %v9678 = vpop.f32.mrf.mxu0
      %v9679 = vadd.f32 %v9590, %v9678
      %v9680 = vpop.f32.mrf.mxu0
      %v9681 = vadd.f32 %v9592, %v9680
      %9682 = vmatmul.bf16.gmra.mxu0 %v8557
      %v9683 = vpop.f32.mrf.mxu0
      %v9684 = vadd.f32 %v9595, %v9683
      %v9685 = vpop.f32.mrf.mxu0
      %v9686 = vadd.f32 %v9597, %v9685
      %9687 = vmatmul.bf16.gmra.mxu0 %v8574
      %v9688 = vpop.f32.mrf.mxu0
      %v9689 = vadd.f32 %v9600, %v9688
      %v9690 = vpop.f32.mrf.mxu0
      %v9691 = vadd.f32 %v9602, %v9690
      %9692 = vmatmul.bf16.gmra.mxu0 %v8591
      %v9693 = vpop.f32.mrf.mxu0
      %v9694 = vadd.f32 %v9605, %v9693
      %v9695 = vpop.f32.mrf.mxu0
      %v9696 = vadd.f32 %v9607, %v9695
      %9697 = vmatmul.bf16.gmra.mxu0 %v8608
      %v9698 = vpop.f32.mrf.mxu0
      %v9699 = vadd.f32 %v9610, %v9698
      %v9700 = vpop.f32.mrf.mxu0
      %v9701 = vadd.f32 %v9612, %v9700
      %9702 = vmatmul.bf16.gmra.mxu0 %v8625
      %v9703 = vpop.f32.mrf.mxu0
      %v9704 = vadd.f32 %v9615, %v9703
      %v9705 = vpop.f32.mrf.mxu0
      %v9706 = vadd.f32 %v9617, %v9705
      %9707 = vmatmul.bf16.gmra.mxu0 %v8642
      %v9708 = vpop.f32.mrf.mxu0
      %v9709 = vadd.f32 %v9620, %v9708
      %v9710 = vpop.f32.mrf.mxu0
      %v9711 = vadd.f32 %v9622, %v9710
      %9712 = vmatmul.bf16.gmra.mxu0 %v8659
      %v9713 = vpop.f32.mrf.mxu0
      %v9714 = vadd.f32 %v9625, %v9713
      %v9715 = vpop.f32.mrf.mxu0
      %v9716 = vadd.f32 %v9627, %v9715
      %9717 = vmatmul.bf16.gmra.mxu0 %v8676
      %v9718 = vpop.f32.mrf.mxu0
      %v9719 = vadd.f32 %v9630, %v9718
      %v9720 = vpop.f32.mrf.mxu0
      %v9721 = vadd.f32 %v9632, %v9720
      %9722 = vmatmul.bf16.gmra.mxu0 %v8693
      %v9723 = vpop.f32.mrf.mxu0
      %v9724 = vadd.f32 %v9635, %v9723
      %v9725 = vpop.f32.mrf.mxu0
      %v9726 = vadd.f32 %v9637, %v9725
      %9727 = vmatmul.bf16.gmra.mxu0 %v8710
      %v9728 = vpop.f32.mrf.mxu0
      %v9729 = vadd.f32 %v9640, %v9728
      %v9730 = vpop.f32.mrf.mxu0
      %v9731 = vadd.f32 %v9642, %v9730
      %9732 = vdwg.mxu0
      %9733 = vmatpush.bf16.msra.mxu0 %v9142
      %9734 = vmatpush.bf16.msra.mxu0 %v9141
      %9735 = vmatpush.bf16.msra.mxu0 %v9140
      %9736 = vmatpush.bf16.msra.mxu0 %v9139
      %9737 = vmatpush.bf16.msra.mxu0 %v9138
      %9738 = vmatpush.bf16.msra.mxu0 %v9137
      %9739 = vmatpush.bf16.msra.mxu0 %v9136
      %9740 = vmatpush.bf16.msra.mxu0 %v9135
      %9741 = vmatmul.bf16.gmra.mxu0 %v8472
      %v9742 = vpop.f32.mrf.mxu0
      %v9743 = vadd.f32 %v9654, %v9742
      %v9744 = vpop.f32.mrf.mxu0
      %v9745 = vadd.f32 %v9656, %v9744
      %9746 = vmatmul.bf16.gmra.mxu0 %v8489
      %v9747 = vpop.f32.mrf.mxu0
      %v9748 = vadd.f32 %v9659, %v9747
      %v9749 = vpop.f32.mrf.mxu0
      %v9750 = vadd.f32 %v9661, %v9749
      %9751 = vmatmul.bf16.gmra.mxu0 %v8506
      %v9752 = vpop.f32.mrf.mxu0
      %v9753 = vadd.f32 %v9664, %v9752
      %v9754 = vpop.f32.mrf.mxu0
      %v9755 = vadd.f32 %v9666, %v9754
      %9756 = vmatmul.bf16.gmra.mxu0 %v8523
      %v9757 = vpop.f32.mrf.mxu0
      %v9758 = vadd.f32 %v9669, %v9757
      %v9759 = vpop.f32.mrf.mxu0
      %v9760 = vadd.f32 %v9671, %v9759
      %9761 = vmatmul.bf16.gmra.mxu0 %v8540
      %v9762 = vpop.f32.mrf.mxu0
      %v9763 = vadd.f32 %v9674, %v9762
      %v9764 = vpop.f32.mrf.mxu0
      %v9765 = vadd.f32 %v9676, %v9764
      %9766 = vmatmul.bf16.gmra.mxu0 %v8557
      %v9767 = vpop.f32.mrf.mxu0
      %v9768 = vadd.f32 %v9679, %v9767
      %v9769 = vpop.f32.mrf.mxu0
      %v9770 = vadd.f32 %v9681, %v9769
      %9771 = vmatmul.bf16.gmra.mxu0 %v8574
      %v9772 = vpop.f32.mrf.mxu0
      %v9773 = vadd.f32 %v9684, %v9772
      %v9774 = vpop.f32.mrf.mxu0
      %v9775 = vadd.f32 %v9686, %v9774
      %9776 = vmatmul.bf16.gmra.mxu0 %v8591
      %v9777 = vpop.f32.mrf.mxu0
      %v9778 = vadd.f32 %v9689, %v9777
      %v9779 = vpop.f32.mrf.mxu0
      %v9780 = vadd.f32 %v9691, %v9779
      %9781 = vmatmul.bf16.gmra.mxu0 %v8608
      %v9782 = vpop.f32.mrf.mxu0
      %v9783 = vadd.f32 %v9694, %v9782
      %v9784 = vpop.f32.mrf.mxu0
      %v9785 = vadd.f32 %v9696, %v9784
      %9786 = vmatmul.bf16.gmra.mxu0 %v8625
      %v9787 = vpop.f32.mrf.mxu0
      %v9788 = vadd.f32 %v9699, %v9787
      %v9789 = vpop.f32.mrf.mxu0
      %v9790 = vadd.f32 %v9701, %v9789
      %9791 = vmatmul.bf16.gmra.mxu0 %v8642
      %v9792 = vpop.f32.mrf.mxu0
      %v9793 = vadd.f32 %v9704, %v9792
      %v9794 = vpop.f32.mrf.mxu0
      %v9795 = vadd.f32 %v9706, %v9794
      %9796 = vmatmul.bf16.gmra.mxu0 %v8659
      %v9797 = vpop.f32.mrf.mxu0
      %v9798 = vadd.f32 %v9709, %v9797
      %v9799 = vpop.f32.mrf.mxu0
      %v9800 = vadd.f32 %v9711, %v9799
      %9801 = vmatmul.bf16.gmra.mxu0 %v8676
      %v9802 = vpop.f32.mrf.mxu0
      %v9803 = vadd.f32 %v9714, %v9802
      %v9804 = vpop.f32.mrf.mxu0
      %v9805 = vadd.f32 %v9716, %v9804
      %9806 = vmatmul.bf16.gmra.mxu0 %v8693
      %v9807 = vpop.f32.mrf.mxu0
      %v9808 = vadd.f32 %v9719, %v9807
      %v9809 = vpop.f32.mrf.mxu0
      %v9810 = vadd.f32 %v9721, %v9809
      %9811 = vmatmul.bf16.gmra.mxu0 %v8710
      %v9812 = vpop.f32.mrf.mxu0
      %v9813 = vadd.f32 %v9724, %v9812
      %v9814 = vpop.f32.mrf.mxu0
      %v9815 = vadd.f32 %v9726, %v9814
      %9816 = vmatmul.bf16.gmra.mxu0 %v8727
      %v9817 = vpop.f32.mrf.mxu0
      %v9818 = vadd.f32 %v9729, %v9817
      %v9819 = vpop.f32.mrf.mxu0
      %v9820 = vadd.f32 %v9731, %v9819
      %9821 = vdwg.mxu0
      %v9822 = vld [vmem:[#allocation2] sm:$0xff]
      %v9823 = vld [vmem:[#allocation2 + $0x8] sm:$0xff]
      %v9824 = vld [vmem:[#allocation2 + $0x10] sm:$0xff]
      %v9825 = vld [vmem:[#allocation2 + $0x18] sm:$0xff]
      %v9826 = vld [vmem:[#allocation2 + $0x20] sm:$0xff]
      %v9827 = vld [vmem:[#allocation2 + $0x28] sm:$0xff]
      %v9828 = vld [vmem:[#allocation2 + $0x30] sm:$0xff]
      %v9829 = vld [vmem:[#allocation2 + $0x38] sm:$0xff]
      %v9830 = vld [vmem:[#allocation2 + $0x40] sm:$0xff]
      %v9831 = vld [vmem:[#allocation2 + $0x48] sm:$0xff]
      %v9832 = vld [vmem:[#allocation2 + $0x50] sm:$0xff]
      %v9833 = vld [vmem:[#allocation2 + $0x58] sm:$0xff]
      %v9834 = vld [vmem:[#allocation2 + $0x60] sm:$0xff]
      %v9835 = vld [vmem:[#allocation2 + $0x68] sm:$0xff]
      %v9836 = vld [vmem:[#allocation2 + $0x70] sm:$0xff]
      %v9837 = vld [vmem:[#allocation2 + $0x78] sm:$0xff]
      %v9838 = vld [vmem:[#allocation2 + $0x80] sm:$0xff]
      %v9839 = vld [vmem:[#allocation2 + $0x88] sm:$0xff]
      %v9840 = vld [vmem:[#allocation2 + $0x90] sm:$0xff]
      %v9841 = vld [vmem:[#allocation2 + $0x98] sm:$0xff]
      %v9842 = vld [vmem:[#allocation2 + $0xa0] sm:$0xff]
      %v9843 = vld [vmem:[#allocation2 + $0xa8] sm:$0xff]
      %v9844 = vld [vmem:[#allocation2 + $0xb0] sm:$0xff]
      %v9845 = vld [vmem:[#allocation2 + $0xb8] sm:$0xff]
      %v9846 = vld [vmem:[#allocation2 + $0xc0] sm:$0xff]
      %v9847 = vld [vmem:[#allocation2 + $0xc8] sm:$0xff]
      %v9848 = vld [vmem:[#allocation2 + $0xd0] sm:$0xff]
      %v9849 = vld [vmem:[#allocation2 + $0xd8] sm:$0xff]
      %v9850 = vld [vmem:[#allocation2 + $0xe0] sm:$0xff]
      %v9851 = vld [vmem:[#allocation2 + $0xe8] sm:$0xff]
      %v9852 = vld [vmem:[#allocation2 + $0xf0] sm:$0xff]
      %v9853 = vld [vmem:[#allocation2 + $0xf8] sm:$0xff]
      %v9854 = vadd.f32 %v9822, %v9743
      %v9855 = vadd.f32 %v9823, %v9745
      %v9856 = vadd.f32 %v9824, %v9748
      %v9857 = vadd.f32 %v9825, %v9750
      %v9858 = vadd.f32 %v9826, %v9753
      %v9859 = vadd.f32 %v9827, %v9755
      %v9860 = vadd.f32 %v9828, %v9758
      %v9861 = vadd.f32 %v9829, %v9760
      %v9862 = vadd.f32 %v9830, %v9763
      %v9863 = vadd.f32 %v9831, %v9765
      %v9864 = vadd.f32 %v9832, %v9768
      %v9865 = vadd.f32 %v9833, %v9770
      %v9866 = vadd.f32 %v9834, %v9773
      %v9867 = vadd.f32 %v9835, %v9775
      %v9868 = vadd.f32 %v9836, %v9778
      %v9869 = vadd.f32 %v9837, %v9780
      %v9870 = vadd.f32 %v9838, %v9783
      %v9871 = vadd.f32 %v9839, %v9785
      %v9872 = vadd.f32 %v9840, %v9788
      %v9873 = vadd.f32 %v9841, %v9790
      %v9874 = vadd.f32 %v9842, %v9793
      %v9875 = vadd.f32 %v9843, %v9795
      %v9876 = vadd.f32 %v9844, %v9798
      %v9877 = vadd.f32 %v9845, %v9800
      %v9878 = vadd.f32 %v9846, %v9803
      %v9879 = vadd.f32 %v9847, %v9805
      %v9880 = vadd.f32 %v9848, %v9808
      %v9881 = vadd.f32 %v9849, %v9810
      %v9882 = vadd.f32 %v9850, %v9813
      %v9883 = vadd.f32 %v9851, %v9815
      %v9884 = vadd.f32 %v9852, %v9818
      %v9885 = vadd.f32 %v9853, %v9820
      %9886 = vst [vmem:[#allocation2] sm:$0xff] %v9854
      %9887 = vst [vmem:[#allocation2 + $0x8] sm:$0xff] %v9855
      %9888 = vst [vmem:[#allocation2 + $0x10] sm:$0xff] %v9856
      %9889 = vst [vmem:[#allocation2 + $0x18] sm:$0xff] %v9857
      %9890 = vst [vmem:[#allocation2 + $0x20] sm:$0xff] %v9858
      %9891 = vst [vmem:[#allocation2 + $0x28] sm:$0xff] %v9859
      %9892 = vst [vmem:[#allocation2 + $0x30] sm:$0xff] %v9860
      %9893 = vst [vmem:[#allocation2 + $0x38] sm:$0xff] %v9861
      %9894 = vst [vmem:[#allocation2 + $0x40] sm:$0xff] %v9862
      %9895 = vst [vmem:[#allocation2 + $0x48] sm:$0xff] %v9863
      %9896 = vst [vmem:[#allocation2 + $0x50] sm:$0xff] %v9864
      %9897 = vst [vmem:[#allocation2 + $0x58] sm:$0xff] %v9865
      %9898 = vst [vmem:[#allocation2 + $0x60] sm:$0xff] %v9866
      %9899 = vst [vmem:[#allocation2 + $0x68] sm:$0xff] %v9867
      %9900 = vst [vmem:[#allocation2 + $0x70] sm:$0xff] %v9868
      %9901 = vst [vmem:[#allocation2 + $0x78] sm:$0xff] %v9869
      %9902 = vst [vmem:[#allocation2 + $0x80] sm:$0xff] %v9870
      %9903 = vst [vmem:[#allocation2 + $0x88] sm:$0xff] %v9871
      %9904 = vst [vmem:[#allocation2 + $0x90] sm:$0xff] %v9872
      %9905 = vst [vmem:[#allocation2 + $0x98] sm:$0xff] %v9873
      %9906 = vst [vmem:[#allocation2 + $0xa0] sm:$0xff] %v9874
      %9907 = vst [vmem:[#allocation2 + $0xa8] sm:$0xff] %v9875
      %9908 = vst [vmem:[#allocation2 + $0xb0] sm:$0xff] %v9876
      %9909 = vst [vmem:[#allocation2 + $0xb8] sm:$0xff] %v9877
      %9910 = vst [vmem:[#allocation2 + $0xc0] sm:$0xff] %v9878
      %9911 = vst [vmem:[#allocation2 + $0xc8] sm:$0xff] %v9879
      %9912 = vst [vmem:[#allocation2 + $0xd0] sm:$0xff] %v9880
      %9913 = vst [vmem:[#allocation2 + $0xd8] sm:$0xff] %v9881
      %9914 = vst [vmem:[#allocation2 + $0xe0] sm:$0xff] %v9882
      %9915 = vst [vmem:[#allocation2 + $0xe8] sm:$0xff] %v9883
      %9916 = vst [vmem:[#allocation2 + $0xf0] sm:$0xff] %v9884
      %9917 = vst [vmem:[#allocation2 + $0xf8] sm:$0xff] %v9885
      %v9918 = vld [vmem:[%s307] sm:$0x8]
      %v9919 = vld [vmem:[%s307 + $0x4] sm:$0xf]
      %v9920 = vld [vmem:[%s307 + $0x8] sm:$0x7]
      %v9921 = vld [vmem:[%s307 + $0xc] sm:$0x8]
      %v9922 = vld [vmem:[%s307 + $0x10] sm:$0xf]
      %v9923 = vld [vmem:[%s307 + $0x14] sm:$0x7]
      %v9924 = vld [vmem:[%s307 + $0x18] sm:$0x8]
      %v9925 = vld [vmem:[%s307 + $0x1c] sm:$0xf]
      %v9926 = vld [vmem:[%s307 + $0x20] sm:$0x7]
      %v9927 = vld [vmem:[%s307 + $0x24] sm:$0x8]
      %v9928 = vld [vmem:[%s307 + $0x28] sm:$0xf]
      %v9929 = vld [vmem:[%s307 + $0x2c] sm:$0x7]
      %v9930 = vld [vmem:[%s307 + $0x30] sm:$0x8]
      %v9931 = vld [vmem:[%s307 + $0x34] sm:$0xf]
      %v9932 = vld [vmem:[%s307 + $0x38] sm:$0x7]
      %v9933 = vld [vmem:[%s307 + $0x3c] sm:$0x8]
      %v9934 = vld [vmem:[%s307 + $0x40] sm:$0xf]
      %v9935 = vld [vmem:[%s307 + $0x44] sm:$0x7]
      %v9936 = vld [vmem:[%s307 + $0x48] sm:$0x8]
      %v9937 = vld [vmem:[%s307 + $0x4c] sm:$0xf]
      %v9938 = vld [vmem:[%s307 + $0x50] sm:$0x7]
      %v9939 = vld [vmem:[%s307 + $0x54] sm:$0x8]
      %v9940 = vld [vmem:[%s307 + $0x58] sm:$0xf]
      %v9941 = vld [vmem:[%s307 + $0x5c] sm:$0x7]
      %v9942 = vld [vmem:[%s307 + $0x60] sm:$0x8]
      %v9943 = vld [vmem:[%s307 + $0x64] sm:$0xf]
      %v9944 = vld [vmem:[%s307 + $0x68] sm:$0x7]
      %v9945 = vld [vmem:[%s307 + $0x6c] sm:$0x8]
      %v9946 = vld [vmem:[%s307 + $0x70] sm:$0xf]
      %v9947 = vld [vmem:[%s307 + $0x74] sm:$0x7]
      %v9948 = vld [vmem:[%s307 + $0x78] sm:$0x8]
      %v9949 = vld [vmem:[%s307 + $0x7c] sm:$0xf]
      %v9950 = vld [vmem:[%s307 + $0x80] sm:$0x7]
      %v9951 = vld [vmem:[%s307 + $0x84] sm:$0x8]
      %v9952 = vld [vmem:[%s307 + $0x88] sm:$0xf]
      %v9953 = vld [vmem:[%s307 + $0x8c] sm:$0x7]
      %v9954 = vld [vmem:[%s307 + $0x90] sm:$0x8]
      %v9955 = vld [vmem:[%s307 + $0x94] sm:$0xf]
      %v9956 = vld [vmem:[%s307 + $0x98] sm:$0x7]
      %v9957 = vld [vmem:[%s307 + $0x9c] sm:$0x8]
      %v9958 = vld [vmem:[%s307 + $0xa0] sm:$0xf]
      %v9959 = vld [vmem:[%s307 + $0xa4] sm:$0x7]
      %v9960 = vld [vmem:[%s307 + $0xa8] sm:$0x8]
      %v9961 = vld [vmem:[%s307 + $0xac] sm:$0xf]
      %v9962 = vld [vmem:[%s307 + $0xb0] sm:$0x7]
      %v9963 = vld [vmem:[%s307 + $0xb4] sm:$0x8]
      %v9964 = vld [vmem:[%s307 + $0xb8] sm:$0xf]
      %v9965 = vld [vmem:[%s307 + $0xbc] sm:$0x7]
      %v9966 = vld [vmem:[%s307 + $0xc0] sm:$0x8]
      %v9967 = vld [vmem:[%s307 + $0xc4] sm:$0xf]
      %v9968 = vld [vmem:[%s307 + $0xc8] sm:$0x7]
      %v9969 = vld [vmem:[%s307 + $0xcc] sm:$0x8]
      %v9970 = vld [vmem:[%s307 + $0xd0] sm:$0xf]
      %v9971 = vld [vmem:[%s307 + $0xd4] sm:$0x7]
      %v9972 = vld [vmem:[%s307 + $0xd8] sm:$0x8]
      %v9973 = vld [vmem:[%s307 + $0xdc] sm:$0xf]
      %v9974 = vld [vmem:[%s307 + $0xe0] sm:$0x7]
      %v9975 = vld [vmem:[%s307 + $0xe4] sm:$0x8]
      %v9976 = vld [vmem:[%s307 + $0xe8] sm:$0xf]
      %v9977 = vld [vmem:[%s307 + $0xec] sm:$0x7]
      %v9978 = vld [vmem:[%s307 + $0xf0] sm:$0x8]
      %v9979 = vld [vmem:[%s307 + $0xf4] sm:$0xf]
      %v9980 = vld [vmem:[%s307 + $0xf8] sm:$0x7]
      %v9981 = vld [vmem:[%s307 + $0xfc] sm:$0x8]
      %v9982 = vld [vmem:[%s307 + $0x100] sm:$0xf]
      %v9983 = vld [vmem:[%s307 + $0x104] sm:$0x7]
      %v10032 = vunpack.c.l.b16 %v9918
      %v10033 = vunpack.c.l.b16 %v9919
      %v10034 = vunpack.c.l.b16 %v9920
      %v10035 = vunpack.c.l.b16 %v9921
      %v10036 = vunpack.c.l.b16 %v9922
      %v10037 = vunpack.c.l.b16 %v9923
      %v10038 = vunpack.c.l.b16 %v9924
      %v10039 = vunpack.c.l.b16 %v9925
      %v10040 = vunpack.c.l.b16 %v9926
      %v10041 = vunpack.c.l.b16 %v9927
      %v10042 = vunpack.c.l.b16 %v9928
      %v10043 = vunpack.c.l.b16 %v9929
      %v10044 = vunpack.c.l.b16 %v9930
      %v10045 = vunpack.c.l.b16 %v9931
      %v10046 = vunpack.c.l.b16 %v9932
      %v10047 = vunpack.c.l.b16 %v9933
      %v10048 = vunpack.c.l.b16 %v9934
      %v10049 = vunpack.c.l.b16 %v9935
      %v10050 = vunpack.c.l.b16 %v9936
      %v10051 = vunpack.c.l.b16 %v9937
      %v10052 = vunpack.c.l.b16 %v9938
      %v10053 = vunpack.c.l.b16 %v9939
      %v10054 = vunpack.c.l.b16 %v9940
      %v10055 = vunpack.c.l.b16 %v9941
      %v10056 = vunpack.c.l.b16 %v9942
      %v10057 = vunpack.c.l.b16 %v9943
      %v10058 = vunpack.c.l.b16 %v9944
      %v10059 = vunpack.c.l.b16 %v9945
      %v10060 = vunpack.c.l.b16 %v9946
      %v10061 = vunpack.c.l.b16 %v9947
      %v10062 = vunpack.c.l.b16 %v9948
      %v10063 = vunpack.c.l.b16 %v9949
      %v10064 = vunpack.c.l.b16 %v9950
      %v10065 = vunpack.c.l.b16 %v9951
      %v10066 = vunpack.c.l.b16 %v9952
      %v10067 = vunpack.c.l.b16 %v9953
      %v10068 = vunpack.c.l.b16 %v9954
      %v10069 = vunpack.c.l.b16 %v9955
      %v10070 = vunpack.c.l.b16 %v9956
      %v10071 = vunpack.c.l.b16 %v9957
      %v10072 = vunpack.c.l.b16 %v9958
      %v10073 = vunpack.c.l.b16 %v9959
      %v10074 = vunpack.c.l.b16 %v9960
      %v10075 = vunpack.c.l.b16 %v9961
      %v10076 = vunpack.c.l.b16 %v9962
      %v10077 = vunpack.c.l.b16 %v9963
      %v10078 = vunpack.c.l.b16 %v9964
      %v10079 = vunpack.c.l.b16 %v9965
      %v10080 = vpack.c.b16 %v10033, %v10032
      %v10081 = vpack.c.b16 %v10034, %v10034
      %v10082 = vpack.c.b16 %v10036, %v10035
      %v10083 = vpack.c.b16 %v10037, %v10037
      %v10084 = vpack.c.b16 %v10039, %v10038
      %v10085 = vpack.c.b16 %v10040, %v10040
      %v10086 = vpack.c.b16 %v10042, %v10041
      %v10087 = vpack.c.b16 %v10043, %v10043
      %v10088 = vpack.c.b16 %v10045, %v10044
      %v10089 = vpack.c.b16 %v10046, %v10046
      %v10090 = vpack.c.b16 %v10048, %v10047
      %v10091 = vpack.c.b16 %v10049, %v10049
      %v10092 = vpack.c.b16 %v10051, %v10050
      %v10093 = vpack.c.b16 %v10052, %v10052
      %v10094 = vpack.c.b16 %v10054, %v10053
      %v10095 = vpack.c.b16 %v10055, %v10055
      %v10096 = vpack.c.b16 %v10057, %v10056
      %v10097 = vpack.c.b16 %v10058, %v10058
      %v10098 = vpack.c.b16 %v10060, %v10059
      %v10099 = vpack.c.b16 %v10061, %v10061
      %v10100 = vpack.c.b16 %v10063, %v10062
      %v10101 = vpack.c.b16 %v10064, %v10064
      %v10102 = vpack.c.b16 %v10066, %v10065
      %v10103 = vpack.c.b16 %v10067, %v10067
      %v10104 = vpack.c.b16 %v10069, %v10068
      %v10105 = vpack.c.b16 %v10070, %v10070
      %v10106 = vpack.c.b16 %v10072, %v10071
      %v10107 = vpack.c.b16 %v10073, %v10073
      %v10108 = vpack.c.b16 %v10075, %v10074
      %v10109 = vpack.c.b16 %v10076, %v10076
      %v10110 = vpack.c.b16 %v10078, %v10077
      %v10111 = vpack.c.b16 %v10079, %v10079
      %v10115 = vunpack.c.l.b16 %v9966
      %v10116 = vunpack.c.l.b16 %v9967
      %v10117 = vunpack.c.l.b16 %v9968
      %v10118 = vpack.c.b16 %v10116, %v10115
      %v10119 = vpack.c.b16 %v10117, %v10117
      %v10123 = vunpack.c.l.b16 %v9969
      %v10124 = vunpack.c.l.b16 %v9970
      %v10125 = vunpack.c.l.b16 %v9971
      %v10126 = vpack.c.b16 %v10124, %v10123
      %v10127 = vpack.c.b16 %v10125, %v10125
      %v10131 = vunpack.c.l.b16 %v9972
      %v10132 = vunpack.c.l.b16 %v9973
      %v10133 = vunpack.c.l.b16 %v9974
      %v10134 = vpack.c.b16 %v10132, %v10131
      %v10135 = vpack.c.b16 %v10133, %v10133
      %v10139 = vunpack.c.l.b16 %v9975
      %v10140 = vunpack.c.l.b16 %v9976
      %v10141 = vunpack.c.l.b16 %v9977
      %v10142 = vpack.c.b16 %v10140, %v10139
      %v10143 = vpack.c.b16 %v10141, %v10141
      %v10147 = vunpack.c.l.b16 %v9978
      %v10148 = vunpack.c.l.b16 %v9979
      %v10149 = vunpack.c.l.b16 %v9980
      %v10150 = vpack.c.b16 %v10148, %v10147
      %v10151 = vpack.c.b16 %v10149, %v10149
      %v10155 = vunpack.c.l.b16 %v9981
      %v10156 = vunpack.c.l.b16 %v9982
      %v10157 = vunpack.c.l.b16 %v9983
      %v10158 = vpack.c.b16 %v10156, %v10155
      %v10159 = vpack.c.b16 %v10157, %v10157
      %vm10160 = vcmask 1044480
      %v10161 = vrot.slane %v10080, 3
      %v10162 = vrot.slane %v10081, 3
      %v10163 = vsel %vm10160, %v10161, %v10162
      %v10164 = vrot.slane %v10082, 3
      %v10165 = vrot.slane %v10083, 3
      %v10166 = vsel %vm10160, %v10164, %v10165
      %v10167 = vrot.slane %v10084, 3
      %v10168 = vrot.slane %v10085, 3
      %v10169 = vsel %vm10160, %v10167, %v10168
      %v10170 = vrot.slane %v10086, 3
      %v10171 = vrot.slane %v10087, 3
      %v10172 = vsel %vm10160, %v10170, %v10171
      %v10173 = vrot.slane %v10088, 3
      %v10174 = vrot.slane %v10089, 3
      %v10175 = vsel %vm10160, %v10173, %v10174
      %v10176 = vrot.slane %v10090, 3
      %v10177 = vrot.slane %v10091, 3
      %v10178 = vsel %vm10160, %v10176, %v10177
      %v10179 = vrot.slane %v10092, 3
      %v10180 = vrot.slane %v10093, 3
      %v10181 = vsel %vm10160, %v10179, %v10180
      %v10182 = vrot.slane %v10094, 3
      %v10183 = vrot.slane %v10095, 3
      %v10184 = vsel %vm10160, %v10182, %v10183
      %v10185 = vrot.slane %v10096, 3
      %v10186 = vrot.slane %v10097, 3
      %v10187 = vsel %vm10160, %v10185, %v10186
      %v10188 = vrot.slane %v10098, 3
      %v10189 = vrot.slane %v10099, 3
      %v10190 = vsel %vm10160, %v10188, %v10189
      %v10191 = vrot.slane %v10100, 3
      %v10192 = vrot.slane %v10101, 3
      %v10193 = vsel %vm10160, %v10191, %v10192
      %v10194 = vrot.slane %v10102, 3
      %v10195 = vrot.slane %v10103, 3
      %v10196 = vsel %vm10160, %v10194, %v10195
      %v10197 = vrot.slane %v10104, 3
      %v10198 = vrot.slane %v10105, 3
      %v10199 = vsel %vm10160, %v10197, %v10198
      %v10200 = vrot.slane %v10106, 3
      %v10201 = vrot.slane %v10107, 3
      %v10202 = vsel %vm10160, %v10200, %v10201
      %v10203 = vrot.slane %v10108, 3
      %v10204 = vrot.slane %v10109, 3
      %v10205 = vsel %vm10160, %v10203, %v10204
      %v10206 = vrot.slane %v10110, 3
      %v10207 = vrot.slane %v10111, 3
      %v10208 = vsel %vm10160, %v10206, %v10207
      %v10209 = vrot.slane %v10118, 3
      %v10210 = vrot.slane %v10119, 3
      %v10211 = vsel %vm10160, %v10209, %v10210
      %v10212 = vrot.slane %v10126, 3
      %v10213 = vrot.slane %v10127, 3
      %v10214 = vsel %vm10160, %v10212, %v10213
      %v10215 = vrot.slane %v10134, 3
      %v10216 = vrot.slane %v10135, 3
      %v10217 = vsel %vm10160, %v10215, %v10216
      %v10218 = vrot.slane %v10142, 3
      %v10219 = vrot.slane %v10143, 3
      %v10220 = vsel %vm10160, %v10218, %v10219
      %v10221 = vrot.slane %v10150, 3
      %v10222 = vrot.slane %v10151, 3
      %v10223 = vsel %vm10160, %v10221, %v10222
      %v10224 = vrot.slane %v10158, 3
      %v10225 = vrot.slane %v10159, 3
      %v10226 = vsel %vm10160, %v10224, %v10225
      %s10249 = scalar_lea.vmem %s2, 2688
      %v10250 = vld [vmem:[%s10249] sm:$0xf]
      %v10251 = vld [vmem:[%s10249 + $0x4] sm:$0xf]
      %v10252 = vld [vmem:[%s10249 + $0x8] sm:$0xf]
      %v10253 = vld [vmem:[%s10249 + $0xc] sm:$0xf]
      %v10254 = vld [vmem:[%s10249 + $0x10] sm:$0xf]
      %v10255 = vld [vmem:[%s10249 + $0x14] sm:$0xf]
      %v10256 = vld [vmem:[%s10249 + $0x18] sm:$0xf]
      %v10257 = vld [vmem:[%s10249 + $0x1c] sm:$0xf]
      %v10258 = vld [vmem:[%s10249 + $0x20] sm:$0xf]
      %v10259 = vld [vmem:[%s10249 + $0x24] sm:$0xf]
      %v10260 = vld [vmem:[%s10249 + $0x28] sm:$0xf]
      %v10261 = vld [vmem:[%s10249 + $0x2c] sm:$0xf]
      %v10262 = vld [vmem:[%s10249 + $0x30] sm:$0xf]
      %v10263 = vld [vmem:[%s10249 + $0x34] sm:$0xf]
      %v10264 = vld [vmem:[%s10249 + $0x38] sm:$0xf]
      %v10265 = vld [vmem:[%s10249 + $0x3c] sm:$0xf]
      %v10266 = vld [vmem:[%s10249 + $0x40] sm:$0xf]
      %v10267 = vld [vmem:[%s10249 + $0x44] sm:$0xf]
      %v10268 = vld [vmem:[%s10249 + $0x48] sm:$0xf]
      %v10269 = vld [vmem:[%s10249 + $0x4c] sm:$0xf]
      %v10270 = vld [vmem:[%s10249 + $0x50] sm:$0xf]
      %v10271 = vld [vmem:[%s10249 + $0x54] sm:$0xf]
      %v10272 = vld [vmem:[%s10249 + $0x58] sm:$0xf]
      %v10273 = vld [vmem:[%s10249 + $0x5c] sm:$0xf]
      %v10274 = vld [vmem:[%s10249 + $0x60] sm:$0xf]
      %v10275 = vld [vmem:[%s10249 + $0x64] sm:$0xf]
      %v10276 = vld [vmem:[%s10249 + $0x68] sm:$0xf]
      %v10277 = vld [vmem:[%s10249 + $0x6c] sm:$0xf]
      %v10278 = vld [vmem:[%s10249 + $0x70] sm:$0xf]
      %v10279 = vld [vmem:[%s10249 + $0x74] sm:$0xf]
      %v10280 = vld [vmem:[%s10249 + $0x78] sm:$0xf]
      %v10281 = vld [vmem:[%s10249 + $0x7c] sm:$0xf]
      %v10282 = vld [vmem:[%s10249 + $0x80] sm:$0xf]
      %v10283 = vld [vmem:[%s10249 + $0x84] sm:$0xf]
      %v10284 = vld [vmem:[%s10249 + $0x88] sm:$0xf]
      %v10285 = vld [vmem:[%s10249 + $0x8c] sm:$0xf]
      %v10286 = vld [vmem:[%s10249 + $0x90] sm:$0xf]
      %v10287 = vld [vmem:[%s10249 + $0x94] sm:$0xf]
      %v10288 = vld [vmem:[%s10249 + $0x98] sm:$0xf]
      %v10289 = vld [vmem:[%s10249 + $0x9c] sm:$0xf]
      %v10290 = vld [vmem:[%s10249 + $0xa0] sm:$0xf]
      %v10291 = vld [vmem:[%s10249 + $0xa4] sm:$0xf]
      %v10292 = vld [vmem:[%s10249 + $0xa8] sm:$0xf]
      %v10293 = vld [vmem:[%s10249 + $0xac] sm:$0xf]
      %v10294 = vld [vmem:[%s10249 + $0xb0] sm:$0xf]
      %v10295 = vld [vmem:[%s10249 + $0xb4] sm:$0xf]
      %v10296 = vld [vmem:[%s10249 + $0xb8] sm:$0xf]
      %v10297 = vld [vmem:[%s10249 + $0xbc] sm:$0xf]
      %v10298 = vld [vmem:[%s10249 + $0xc0] sm:$0xf]
      %v10299 = vld [vmem:[%s10249 + $0xc4] sm:$0xf]
      %v10300 = vld [vmem:[%s10249 + $0xc8] sm:$0xf]
      %v10301 = vld [vmem:[%s10249 + $0xcc] sm:$0xf]
      %v10302 = vld [vmem:[%s10249 + $0xd0] sm:$0xf]
      %v10303 = vld [vmem:[%s10249 + $0xd4] sm:$0xf]
      %v10304 = vld [vmem:[%s10249 + $0xd8] sm:$0xf]
      %v10305 = vld [vmem:[%s10249 + $0xdc] sm:$0xf]
      %v10306 = vld [vmem:[%s10249 + $0xe0] sm:$0xf]
      %v10307 = vld [vmem:[%s10249 + $0xe4] sm:$0xf]
      %v10308 = vld [vmem:[%s10249 + $0xe8] sm:$0xf]
      %v10309 = vld [vmem:[%s10249 + $0xec] sm:$0xf]
      %v10310 = vld [vmem:[%s10249 + $0xf0] sm:$0xf]
      %v10311 = vld [vmem:[%s10249 + $0xf4] sm:$0xf]
      %v10312 = vld [vmem:[%s10249 + $0xf8] sm:$0xf]
      %v10313 = vld [vmem:[%s10249 + $0xfc] sm:$0xf]
      %v10314 = vld [vmem:[%s10249 + $0x100] sm:$0xf]
      %v10315 = vld [vmem:[%s10249 + $0x104] sm:$0xf]
      %v10316 = vld [vmem:[%s10249 + $0x108] sm:$0xf]
      %v10317 = vld [vmem:[%s10249 + $0x10c] sm:$0xf]
      %v10318 = vld [vmem:[%s10249 + $0x110] sm:$0xf]
      %v10319 = vld [vmem:[%s10249 + $0x114] sm:$0xf]
      %v10320 = vld [vmem:[%s10249 + $0x118] sm:$0xf]
      %v10321 = vld [vmem:[%s10249 + $0x11c] sm:$0xf]
      %v10322 = vld [vmem:[%s10249 + $0x120] sm:$0xf]
      %v10323 = vld [vmem:[%s10249 + $0x124] sm:$0xf]
      %v10324 = vld [vmem:[%s10249 + $0x128] sm:$0xf]
      %v10325 = vld [vmem:[%s10249 + $0x12c] sm:$0xf]
      %v10326 = vld [vmem:[%s10249 + $0x130] sm:$0xf]
      %v10327 = vld [vmem:[%s10249 + $0x134] sm:$0xf]
      %v10328 = vld [vmem:[%s10249 + $0x138] sm:$0xf]
      %v10329 = vld [vmem:[%s10249 + $0x13c] sm:$0xf]
      %v10330 = vld [vmem:[%s10249 + $0x140] sm:$0xf]
      %v10331 = vld [vmem:[%s10249 + $0x144] sm:$0xf]
      %v10332 = vld [vmem:[%s10249 + $0x148] sm:$0xf]
      %v10333 = vld [vmem:[%s10249 + $0x14c] sm:$0xf]
      %v10334 = vld [vmem:[%s10249 + $0x150] sm:$0xf]
      %v10335 = vld [vmem:[%s10249 + $0x154] sm:$0xf]
      %v10336 = vld [vmem:[%s10249 + $0x158] sm:$0xf]
      %v10337 = vld [vmem:[%s10249 + $0x15c] sm:$0xf]
      %v10338 = vld [vmem:[%s10249 + $0x160] sm:$0xf]
      %v10339 = vld [vmem:[%s10249 + $0x164] sm:$0xf]
      %v10340 = vld [vmem:[%s10249 + $0x168] sm:$0xf]
      %v10341 = vld [vmem:[%s10249 + $0x16c] sm:$0xf]
      %v10342 = vld [vmem:[%s10249 + $0x170] sm:$0xf]
      %v10343 = vld [vmem:[%s10249 + $0x174] sm:$0xf]
      %v10344 = vld [vmem:[%s10249 + $0x178] sm:$0xf]
      %v10345 = vld [vmem:[%s10249 + $0x17c] sm:$0xf]
      %v10346 = vld [vmem:[%s10249 + $0x180] sm:$0xf]
      %v10347 = vld [vmem:[%s10249 + $0x184] sm:$0xf]
      %v10348 = vld [vmem:[%s10249 + $0x188] sm:$0xf]
      %v10349 = vld [vmem:[%s10249 + $0x18c] sm:$0xf]
      %v10350 = vld [vmem:[%s10249 + $0x190] sm:$0xf]
      %v10351 = vld [vmem:[%s10249 + $0x194] sm:$0xf]
      %v10352 = vld [vmem:[%s10249 + $0x198] sm:$0xf]
      %v10353 = vld [vmem:[%s10249 + $0x19c] sm:$0xf]
      %v10354 = vld [vmem:[%s10249 + $0x1a0] sm:$0xf]
      %v10355 = vld [vmem:[%s10249 + $0x1a4] sm:$0xf]
      %v10356 = vld [vmem:[%s10249 + $0x1a8] sm:$0xf]
      %v10357 = vld [vmem:[%s10249 + $0x1ac] sm:$0xf]
      %v10358 = vld [vmem:[%s10249 + $0x1b0] sm:$0xf]
      %v10359 = vld [vmem:[%s10249 + $0x1b4] sm:$0xf]
      %v10360 = vld [vmem:[%s10249 + $0x1b8] sm:$0xf]
      %v10361 = vld [vmem:[%s10249 + $0x1bc] sm:$0xf]
      %v10474 = vunpack.c.l.b16 %v10250
      %v10475 = vunpack.c.l.b16 %v10251
      %v10476 = vunpack.c.l.b16 %v10252
      %v10477 = vunpack.c.l.b16 %v10253
      %v10478 = vunpack.c.l.b16 %v10254
      %v10479 = vunpack.c.l.b16 %v10255
      %v10480 = vunpack.c.l.b16 %v10256
      %v10481 = vunpack.c.l.b16 %v10257
      %v10482 = vunpack.c.l.b16 %v10258
      %v10483 = vunpack.c.l.b16 %v10259
      %v10484 = vunpack.c.l.b16 %v10260
      %v10485 = vunpack.c.l.b16 %v10261
      %v10486 = vunpack.c.l.b16 %v10262
      %v10487 = vunpack.c.l.b16 %v10263
      %v10488 = vunpack.c.l.b16 %v10264
      %v10489 = vunpack.c.l.b16 %v10265
      %v10490 = vunpack.c.l.b16 %v10266
      %v10491 = vunpack.c.l.b16 %v10267
      %v10492 = vunpack.c.l.b16 %v10268
      %v10493 = vunpack.c.l.b16 %v10269
      %v10494 = vunpack.c.l.b16 %v10270
      %v10495 = vunpack.c.l.b16 %v10271
      %v10496 = vunpack.c.l.b16 %v10272
      %v10497 = vunpack.c.l.b16 %v10273
      %v10498 = vunpack.c.l.b16 %v10274
      %v10499 = vunpack.c.l.b16 %v10275
      %v10500 = vunpack.c.l.b16 %v10276
      %v10501 = vunpack.c.l.b16 %v10277
      %v10502 = vunpack.c.l.b16 %v10278
      %v10503 = vunpack.c.l.b16 %v10279
      %v10504 = vunpack.c.l.b16 %v10280
      %v10505 = vunpack.c.l.b16 %v10281
      %v10506 = vunpack.c.l.b16 %v10282
      %v10507 = vunpack.c.l.b16 %v10283
      %v10508 = vunpack.c.l.b16 %v10284
      %v10509 = vunpack.c.l.b16 %v10285
      %v10510 = vunpack.c.l.b16 %v10286
      %v10511 = vunpack.c.l.b16 %v10287
      %v10512 = vunpack.c.l.b16 %v10288
      %v10513 = vunpack.c.l.b16 %v10289
      %v10514 = vunpack.c.l.b16 %v10290
      %v10515 = vunpack.c.l.b16 %v10291
      %v10516 = vunpack.c.l.b16 %v10292
      %v10517 = vunpack.c.l.b16 %v10293
      %v10518 = vunpack.c.l.b16 %v10294
      %v10519 = vunpack.c.l.b16 %v10295
      %v10520 = vunpack.c.l.b16 %v10296
      %v10521 = vunpack.c.l.b16 %v10297
      %v10522 = vunpack.c.l.b16 %v10298
      %v10523 = vunpack.c.l.b16 %v10299
      %v10524 = vunpack.c.l.b16 %v10300
      %v10525 = vunpack.c.l.b16 %v10301
      %v10526 = vunpack.c.l.b16 %v10302
      %v10527 = vunpack.c.l.b16 %v10303
      %v10528 = vunpack.c.l.b16 %v10304
      %v10529 = vunpack.c.l.b16 %v10305
      %v10530 = vunpack.c.l.b16 %v10306
      %v10531 = vunpack.c.l.b16 %v10307
      %v10532 = vunpack.c.l.b16 %v10308
      %v10533 = vunpack.c.l.b16 %v10309
      %v10534 = vunpack.c.l.b16 %v10310
      %v10535 = vunpack.c.l.b16 %v10311
      %v10536 = vunpack.c.l.b16 %v10312
      %v10537 = vunpack.c.l.b16 %v10313
      %v10538 = vunpack.c.l.b16 %v10314
      %v10539 = vunpack.c.l.b16 %v10315
      %v10540 = vunpack.c.l.b16 %v10316
      %v10541 = vunpack.c.l.b16 %v10317
      %v10542 = vunpack.c.l.b16 %v10318
      %v10543 = vunpack.c.l.b16 %v10319
      %v10544 = vunpack.c.l.b16 %v10320
      %v10545 = vunpack.c.l.b16 %v10321
      %v10546 = vunpack.c.l.b16 %v10322
      %v10547 = vunpack.c.l.b16 %v10323
      %v10548 = vunpack.c.l.b16 %v10324
      %v10549 = vunpack.c.l.b16 %v10325
      %v10550 = vunpack.c.l.b16 %v10326
      %v10551 = vunpack.c.l.b16 %v10327
      %v10552 = vunpack.c.l.b16 %v10328
      %v10553 = vunpack.c.l.b16 %v10329
      %v10554 = vunpack.c.l.b16 %v10330
      %v10555 = vunpack.c.l.b16 %v10331
      %v10556 = vunpack.c.l.b16 %v10332
      %v10557 = vunpack.c.l.b16 %v10333
      %v10558 = vunpack.c.l.b16 %v10334
      %v10559 = vunpack.c.l.b16 %v10335
      %v10560 = vunpack.c.l.b16 %v10336
      %v10561 = vunpack.c.l.b16 %v10337
      %v10562 = vunpack.c.l.b16 %v10338
      %v10563 = vunpack.c.l.b16 %v10339
      %v10564 = vunpack.c.l.b16 %v10340
      %v10565 = vunpack.c.l.b16 %v10341
      %v10566 = vunpack.c.l.b16 %v10342
      %v10567 = vunpack.c.l.b16 %v10343
      %v10568 = vunpack.c.l.b16 %v10344
      %v10569 = vunpack.c.l.b16 %v10345
      %v10570 = vunpack.c.l.b16 %v10346
      %v10571 = vunpack.c.l.b16 %v10347
      %v10572 = vunpack.c.l.b16 %v10348
      %v10573 = vunpack.c.l.b16 %v10349
      %v10574 = vunpack.c.l.b16 %v10350
      %v10575 = vunpack.c.l.b16 %v10351
      %v10576 = vunpack.c.l.b16 %v10352
      %v10577 = vunpack.c.l.b16 %v10353
      %v10578 = vunpack.c.l.b16 %v10354
      %v10579 = vunpack.c.l.b16 %v10355
      %v10580 = vunpack.c.l.b16 %v10356
      %v10581 = vunpack.c.l.b16 %v10357
      %v10582 = vunpack.c.l.b16 %v10358
      %v10583 = vunpack.c.l.b16 %v10359
      %v10584 = vunpack.c.l.b16 %v10360
      %v10585 = vunpack.c.l.b16 %v10361
      %v10586 = vpack.c.b16 %v10475, %v10474
      %v10587 = vpack.c.b16 %v10477, %v10476
      %v10588 = vpack.c.b16 %v10479, %v10478
      %v10589 = vpack.c.b16 %v10481, %v10480
      %v10590 = vpack.c.b16 %v10483, %v10482
      %v10591 = vpack.c.b16 %v10485, %v10484
      %v10592 = vpack.c.b16 %v10487, %v10486
      %v10593 = vpack.c.b16 %v10489, %v10488
      %v10594 = vpack.c.b16 %v10491, %v10490
      %v10595 = vpack.c.b16 %v10493, %v10492
      %v10596 = vpack.c.b16 %v10495, %v10494
      %v10597 = vpack.c.b16 %v10497, %v10496
      %v10598 = vpack.c.b16 %v10499, %v10498
      %v10599 = vpack.c.b16 %v10501, %v10500
      %v10600 = vpack.c.b16 %v10503, %v10502
      %v10601 = vpack.c.b16 %v10505, %v10504
      %v10602 = vpack.c.b16 %v10507, %v10506
      %v10603 = vpack.c.b16 %v10509, %v10508
      %v10604 = vpack.c.b16 %v10511, %v10510
      %v10605 = vpack.c.b16 %v10513, %v10512
      %v10606 = vpack.c.b16 %v10515, %v10514
      %v10607 = vpack.c.b16 %v10517, %v10516
      %v10608 = vpack.c.b16 %v10519, %v10518
      %v10609 = vpack.c.b16 %v10521, %v10520
      %v10610 = vpack.c.b16 %v10523, %v10522
      %v10611 = vpack.c.b16 %v10525, %v10524
      %v10612 = vpack.c.b16 %v10527, %v10526
      %v10613 = vpack.c.b16 %v10529, %v10528
      %v10614 = vpack.c.b16 %v10531, %v10530
      %v10615 = vpack.c.b16 %v10533, %v10532
      %v10616 = vpack.c.b16 %v10535, %v10534
      %v10617 = vpack.c.b16 %v10537, %v10536
      %v10618 = vpack.c.b16 %v10539, %v10538
      %v10619 = vpack.c.b16 %v10541, %v10540
      %v10620 = vpack.c.b16 %v10543, %v10542
      %v10621 = vpack.c.b16 %v10545, %v10544
      %v10622 = vpack.c.b16 %v10547, %v10546
      %v10623 = vpack.c.b16 %v10549, %v10548
      %v10624 = vpack.c.b16 %v10551, %v10550
      %v10625 = vpack.c.b16 %v10553, %v10552
      %v10626 = vpack.c.b16 %v10555, %v10554
      %v10627 = vpack.c.b16 %v10557, %v10556
      %v10628 = vpack.c.b16 %v10559, %v10558
      %v10629 = vpack.c.b16 %v10561, %v10560
      %v10630 = vpack.c.b16 %v10563, %v10562
      %v10631 = vpack.c.b16 %v10565, %v10564
      %v10632 = vpack.c.b16 %v10567, %v10566
      %v10633 = vpack.c.b16 %v10569, %v10568
      %v10634 = vpack.c.b16 %v10571, %v10570
      %v10635 = vpack.c.b16 %v10573, %v10572
      %v10636 = vpack.c.b16 %v10575, %v10574
      %v10637 = vpack.c.b16 %v10577, %v10576
      %v10638 = vpack.c.b16 %v10579, %v10578
      %v10639 = vpack.c.b16 %v10581, %v10580
      %v10640 = vpack.c.b16 %v10583, %v10582
      %v10641 = vpack.c.b16 %v10585, %v10584
      %10698 = vmatpush.bf16.msra.mxu0 %v10593
      %10699 = vmatpush.bf16.msra.mxu0 %v10592
      %10700 = vmatpush.bf16.msra.mxu0 %v10591
      %10701 = vmatpush.bf16.msra.mxu0 %v10590
      %10702 = vmatpush.bf16.msra.mxu0 %v10589
      %10703 = vmatpush.bf16.msra.mxu0 %v10588
      %10704 = vmatpush.bf16.msra.mxu0 %v10587
      %10705 = vmatpush.bf16.msra.mxu0 %v10586
      %10706 = vmatmul.bf16.gmra.mxu0 %v10163
      %v10707 = vpop.f32.mrf.mxu0
      %v10708 = vadd.f32 0.0, %v10707
      %v10709 = vpop.f32.mrf.mxu0
      %v10710 = vadd.f32 0.0, %v10709
      %10711 = vmatmul.bf16.gmra.mxu0 %v10166
      %v10712 = vpop.f32.mrf.mxu0
      %v10713 = vadd.f32 0.0, %v10712
      %v10714 = vpop.f32.mrf.mxu0
      %v10715 = vadd.f32 0.0, %v10714
      %10716 = vmatmul.bf16.gmra.mxu0 %v10169
      %v10717 = vpop.f32.mrf.mxu0
      %v10718 = vadd.f32 0.0, %v10717
      %v10719 = vpop.f32.mrf.mxu0
      %v10720 = vadd.f32 0.0, %v10719
      %10721 = vmatmul.bf16.gmra.mxu0 %v10172
      %v10722 = vpop.f32.mrf.mxu0
      %v10723 = vadd.f32 0.0, %v10722
      %v10724 = vpop.f32.mrf.mxu0
      %v10725 = vadd.f32 0.0, %v10724
      %10726 = vmatmul.bf16.gmra.mxu0 %v10175
      %v10727 = vpop.f32.mrf.mxu0
      %v10728 = vadd.f32 0.0, %v10727
      %v10729 = vpop.f32.mrf.mxu0
      %v10730 = vadd.f32 0.0, %v10729
      %10731 = vmatmul.bf16.gmra.mxu0 %v10178
      %v10732 = vpop.f32.mrf.mxu0
      %v10733 = vadd.f32 0.0, %v10732
      %v10734 = vpop.f32.mrf.mxu0
      %v10735 = vadd.f32 0.0, %v10734
      %10736 = vmatmul.bf16.gmra.mxu0 %v10181
      %v10737 = vpop.f32.mrf.mxu0
      %v10738 = vadd.f32 0.0, %v10737
      %v10739 = vpop.f32.mrf.mxu0
      %v10740 = vadd.f32 0.0, %v10739
      %10741 = vmatmul.bf16.gmra.mxu0 %v10184
      %v10742 = vpop.f32.mrf.mxu0
      %v10743 = vadd.f32 0.0, %v10742
      %v10744 = vpop.f32.mrf.mxu0
      %v10745 = vadd.f32 0.0, %v10744
      %10746 = vmatmul.bf16.gmra.mxu0 %v10187
      %v10747 = vpop.f32.mrf.mxu0
      %v10748 = vadd.f32 0.0, %v10747
      %v10749 = vpop.f32.mrf.mxu0
      %v10750 = vadd.f32 0.0, %v10749
      %10751 = vmatmul.bf16.gmra.mxu0 %v10190
      %v10752 = vpop.f32.mrf.mxu0
      %v10753 = vadd.f32 0.0, %v10752
      %v10754 = vpop.f32.mrf.mxu0
      %v10755 = vadd.f32 0.0, %v10754
      %10756 = vmatmul.bf16.gmra.mxu0 %v10193
      %v10757 = vpop.f32.mrf.mxu0
      %v10758 = vadd.f32 0.0, %v10757
      %v10759 = vpop.f32.mrf.mxu0
      %v10760 = vadd.f32 0.0, %v10759
      %10761 = vmatmul.bf16.gmra.mxu0 %v10196
      %v10762 = vpop.f32.mrf.mxu0
      %v10763 = vadd.f32 0.0, %v10762
      %v10764 = vpop.f32.mrf.mxu0
      %v10765 = vadd.f32 0.0, %v10764
      %10766 = vmatmul.bf16.gmra.mxu0 %v10199
      %v10767 = vpop.f32.mrf.mxu0
      %v10768 = vadd.f32 0.0, %v10767
      %v10769 = vpop.f32.mrf.mxu0
      %v10770 = vadd.f32 0.0, %v10769
      %10771 = vmatmul.bf16.gmra.mxu0 %v10202
      %v10772 = vpop.f32.mrf.mxu0
      %v10773 = vadd.f32 0.0, %v10772
      %v10774 = vpop.f32.mrf.mxu0
      %v10775 = vadd.f32 0.0, %v10774
      %10776 = vmatmul.bf16.gmra.mxu0 %v10205
      %v10777 = vpop.f32.mrf.mxu0
      %v10778 = vadd.f32 0.0, %v10777
      %v10779 = vpop.f32.mrf.mxu0
      %v10780 = vadd.f32 0.0, %v10779
      %10781 = vmatmul.bf16.gmra.mxu0 %v10208
      %v10782 = vpop.f32.mrf.mxu0
      %v10783 = vadd.f32 0.0, %v10782
      %v10784 = vpop.f32.mrf.mxu0
      %v10785 = vadd.f32 0.0, %v10784
      %10786 = vdwg.mxu0
      %10787 = vmatpush.bf16.msra.mxu0 %v10601
      %10788 = vmatpush.bf16.msra.mxu0 %v10600
      %10789 = vmatpush.bf16.msra.mxu0 %v10599
      %10790 = vmatpush.bf16.msra.mxu0 %v10598
      %10791 = vmatpush.bf16.msra.mxu0 %v10597
      %10792 = vmatpush.bf16.msra.mxu0 %v10596
      %10793 = vmatpush.bf16.msra.mxu0 %v10595
      %10794 = vmatpush.bf16.msra.mxu0 %v10594
      %10795 = vmatmul.bf16.gmra.mxu0 %v10166
      %v10796 = vpop.f32.mrf.mxu0
      %v10797 = vadd.f32 %v10708, %v10796
      %v10798 = vpop.f32.mrf.mxu0
      %v10799 = vadd.f32 %v10710, %v10798
      %10800 = vmatmul.bf16.gmra.mxu0 %v10169
      %v10801 = vpop.f32.mrf.mxu0
      %v10802 = vadd.f32 %v10713, %v10801
      %v10803 = vpop.f32.mrf.mxu0
      %v10804 = vadd.f32 %v10715, %v10803
      %10805 = vmatmul.bf16.gmra.mxu0 %v10172
      %v10806 = vpop.f32.mrf.mxu0
      %v10807 = vadd.f32 %v10718, %v10806
      %v10808 = vpop.f32.mrf.mxu0
      %v10809 = vadd.f32 %v10720, %v10808
      %10810 = vmatmul.bf16.gmra.mxu0 %v10175
      %v10811 = vpop.f32.mrf.mxu0
      %v10812 = vadd.f32 %v10723, %v10811
      %v10813 = vpop.f32.mrf.mxu0
      %v10814 = vadd.f32 %v10725, %v10813
      %10815 = vmatmul.bf16.gmra.mxu0 %v10178
      %v10816 = vpop.f32.mrf.mxu0
      %v10817 = vadd.f32 %v10728, %v10816
      %v10818 = vpop.f32.mrf.mxu0
      %v10819 = vadd.f32 %v10730, %v10818
      %10820 = vmatmul.bf16.gmra.mxu0 %v10181
      %v10821 = vpop.f32.mrf.mxu0
      %v10822 = vadd.f32 %v10733, %v10821
      %v10823 = vpop.f32.mrf.mxu0
      %v10824 = vadd.f32 %v10735, %v10823
      %10825 = vmatmul.bf16.gmra.mxu0 %v10184
      %v10826 = vpop.f32.mrf.mxu0
      %v10827 = vadd.f32 %v10738, %v10826
      %v10828 = vpop.f32.mrf.mxu0
      %v10829 = vadd.f32 %v10740, %v10828
      %10830 = vmatmul.bf16.gmra.mxu0 %v10187
      %v10831 = vpop.f32.mrf.mxu0
      %v10832 = vadd.f32 %v10743, %v10831
      %v10833 = vpop.f32.mrf.mxu0
      %v10834 = vadd.f32 %v10745, %v10833
      %10835 = vmatmul.bf16.gmra.mxu0 %v10190
      %v10836 = vpop.f32.mrf.mxu0
      %v10837 = vadd.f32 %v10748, %v10836
      %v10838 = vpop.f32.mrf.mxu0
      %v10839 = vadd.f32 %v10750, %v10838
      %10840 = vmatmul.bf16.gmra.mxu0 %v10193
      %v10841 = vpop.f32.mrf.mxu0
      %v10842 = vadd.f32 %v10753, %v10841
      %v10843 = vpop.f32.mrf.mxu0
      %v10844 = vadd.f32 %v10755, %v10843
      %10845 = vmatmul.bf16.gmra.mxu0 %v10196
      %v10846 = vpop.f32.mrf.mxu0
      %v10847 = vadd.f32 %v10758, %v10846
      %v10848 = vpop.f32.mrf.mxu0
      %v10849 = vadd.f32 %v10760, %v10848
      %10850 = vmatmul.bf16.gmra.mxu0 %v10199
      %v10851 = vpop.f32.mrf.mxu0
      %v10852 = vadd.f32 %v10763, %v10851
      %v10853 = vpop.f32.mrf.mxu0
      %v10854 = vadd.f32 %v10765, %v10853
      %10855 = vmatmul.bf16.gmra.mxu0 %v10202
      %v10856 = vpop.f32.mrf.mxu0
      %v10857 = vadd.f32 %v10768, %v10856
      %v10858 = vpop.f32.mrf.mxu0
      %v10859 = vadd.f32 %v10770, %v10858
      %10860 = vmatmul.bf16.gmra.mxu0 %v10205
      %v10861 = vpop.f32.mrf.mxu0
      %v10862 = vadd.f32 %v10773, %v10861
      %v10863 = vpop.f32.mrf.mxu0
      %v10864 = vadd.f32 %v10775, %v10863
      %10865 = vmatmul.bf16.gmra.mxu0 %v10208
      %v10866 = vpop.f32.mrf.mxu0
      %v10867 = vadd.f32 %v10778, %v10866
      %v10868 = vpop.f32.mrf.mxu0
      %v10869 = vadd.f32 %v10780, %v10868
      %10870 = vmatmul.bf16.gmra.mxu0 %v10211
      %v10871 = vpop.f32.mrf.mxu0
      %v10872 = vadd.f32 %v10783, %v10871
      %v10873 = vpop.f32.mrf.mxu0
      %v10874 = vadd.f32 %v10785, %v10873
      %10875 = vdwg.mxu0
      %10876 = vmatpush.bf16.msra.mxu0 %v10609
      %10877 = vmatpush.bf16.msra.mxu0 %v10608
      %10878 = vmatpush.bf16.msra.mxu0 %v10607
      %10879 = vmatpush.bf16.msra.mxu0 %v10606
      %10880 = vmatpush.bf16.msra.mxu0 %v10605
      %10881 = vmatpush.bf16.msra.mxu0 %v10604
      %10882 = vmatpush.bf16.msra.mxu0 %v10603
      %10883 = vmatpush.bf16.msra.mxu0 %v10602
      %10884 = vmatmul.bf16.gmra.mxu0 %v10169
      %v10885 = vpop.f32.mrf.mxu0
      %v10886 = vadd.f32 %v10797, %v10885
      %v10887 = vpop.f32.mrf.mxu0
      %v10888 = vadd.f32 %v10799, %v10887
      %10889 = vmatmul.bf16.gmra.mxu0 %v10172
      %v10890 = vpop.f32.mrf.mxu0
      %v10891 = vadd.f32 %v10802, %v10890
      %v10892 = vpop.f32.mrf.mxu0
      %v10893 = vadd.f32 %v10804, %v10892
      %10894 = vmatmul.bf16.gmra.mxu0 %v10175
      %v10895 = vpop.f32.mrf.mxu0
      %v10896 = vadd.f32 %v10807, %v10895
      %v10897 = vpop.f32.mrf.mxu0
      %v10898 = vadd.f32 %v10809, %v10897
      %10899 = vmatmul.bf16.gmra.mxu0 %v10178
      %v10900 = vpop.f32.mrf.mxu0
      %v10901 = vadd.f32 %v10812, %v10900
      %v10902 = vpop.f32.mrf.mxu0
      %v10903 = vadd.f32 %v10814, %v10902
      %10904 = vmatmul.bf16.gmra.mxu0 %v10181
      %v10905 = vpop.f32.mrf.mxu0
      %v10906 = vadd.f32 %v10817, %v10905
      %v10907 = vpop.f32.mrf.mxu0
      %v10908 = vadd.f32 %v10819, %v10907
      %10909 = vmatmul.bf16.gmra.mxu0 %v10184
      %v10910 = vpop.f32.mrf.mxu0
      %v10911 = vadd.f32 %v10822, %v10910
      %v10912 = vpop.f32.mrf.mxu0
      %v10913 = vadd.f32 %v10824, %v10912
      %10914 = vmatmul.bf16.gmra.mxu0 %v10187
      %v10915 = vpop.f32.mrf.mxu0
      %v10916 = vadd.f32 %v10827, %v10915
      %v10917 = vpop.f32.mrf.mxu0
      %v10918 = vadd.f32 %v10829, %v10917
      %10919 = vmatmul.bf16.gmra.mxu0 %v10190
      %v10920 = vpop.f32.mrf.mxu0
      %v10921 = vadd.f32 %v10832, %v10920
      %v10922 = vpop.f32.mrf.mxu0
      %v10923 = vadd.f32 %v10834, %v10922
      %10924 = vmatmul.bf16.gmra.mxu0 %v10193
      %v10925 = vpop.f32.mrf.mxu0
      %v10926 = vadd.f32 %v10837, %v10925
      %v10927 = vpop.f32.mrf.mxu0
      %v10928 = vadd.f32 %v10839, %v10927
      %10929 = vmatmul.bf16.gmra.mxu0 %v10196
      %v10930 = vpop.f32.mrf.mxu0
      %v10931 = vadd.f32 %v10842, %v10930
      %v10932 = vpop.f32.mrf.mxu0
      %v10933 = vadd.f32 %v10844, %v10932
      %10934 = vmatmul.bf16.gmra.mxu0 %v10199
      %v10935 = vpop.f32.mrf.mxu0
      %v10936 = vadd.f32 %v10847, %v10935
      %v10937 = vpop.f32.mrf.mxu0
      %v10938 = vadd.f32 %v10849, %v10937
      %10939 = vmatmul.bf16.gmra.mxu0 %v10202
      %v10940 = vpop.f32.mrf.mxu0
      %v10941 = vadd.f32 %v10852, %v10940
      %v10942 = vpop.f32.mrf.mxu0
      %v10943 = vadd.f32 %v10854, %v10942
      %10944 = vmatmul.bf16.gmra.mxu0 %v10205
      %v10945 = vpop.f32.mrf.mxu0
      %v10946 = vadd.f32 %v10857, %v10945
      %v10947 = vpop.f32.mrf.mxu0
      %v10948 = vadd.f32 %v10859, %v10947
      %10949 = vmatmul.bf16.gmra.mxu0 %v10208
      %v10950 = vpop.f32.mrf.mxu0
      %v10951 = vadd.f32 %v10862, %v10950
      %v10952 = vpop.f32.mrf.mxu0
      %v10953 = vadd.f32 %v10864, %v10952
      %10954 = vmatmul.bf16.gmra.mxu0 %v10211
      %v10955 = vpop.f32.mrf.mxu0
      %v10956 = vadd.f32 %v10867, %v10955
      %v10957 = vpop.f32.mrf.mxu0
      %v10958 = vadd.f32 %v10869, %v10957
      %10959 = vmatmul.bf16.gmra.mxu0 %v10214
      %v10960 = vpop.f32.mrf.mxu0
      %v10961 = vadd.f32 %v10872, %v10960
      %v10962 = vpop.f32.mrf.mxu0
      %v10963 = vadd.f32 %v10874, %v10962
      %10964 = vdwg.mxu0
      %10965 = vmatpush.bf16.msra.mxu0 %v10617
      %10966 = vmatpush.bf16.msra.mxu0 %v10616
      %10967 = vmatpush.bf16.msra.mxu0 %v10615
      %10968 = vmatpush.bf16.msra.mxu0 %v10614
      %10969 = vmatpush.bf16.msra.mxu0 %v10613
      %10970 = vmatpush.bf16.msra.mxu0 %v10612
      %10971 = vmatpush.bf16.msra.mxu0 %v10611
      %10972 = vmatpush.bf16.msra.mxu0 %v10610
      %10973 = vmatmul.bf16.gmra.mxu0 %v10172
      %v10974 = vpop.f32.mrf.mxu0
      %v10975 = vadd.f32 %v10886, %v10974
      %v10976 = vpop.f32.mrf.mxu0
      %v10977 = vadd.f32 %v10888, %v10976
      %10978 = vmatmul.bf16.gmra.mxu0 %v10175
      %v10979 = vpop.f32.mrf.mxu0
      %v10980 = vadd.f32 %v10891, %v10979
      %v10981 = vpop.f32.mrf.mxu0
      %v10982 = vadd.f32 %v10893, %v10981
      %10983 = vmatmul.bf16.gmra.mxu0 %v10178
      %v10984 = vpop.f32.mrf.mxu0
      %v10985 = vadd.f32 %v10896, %v10984
      %v10986 = vpop.f32.mrf.mxu0
      %v10987 = vadd.f32 %v10898, %v10986
      %10988 = vmatmul.bf16.gmra.mxu0 %v10181
      %v10989 = vpop.f32.mrf.mxu0
      %v10990 = vadd.f32 %v10901, %v10989
      %v10991 = vpop.f32.mrf.mxu0
      %v10992 = vadd.f32 %v10903, %v10991
      %10993 = vmatmul.bf16.gmra.mxu0 %v10184
      %v10994 = vpop.f32.mrf.mxu0
      %v10995 = vadd.f32 %v10906, %v10994
      %v10996 = vpop.f32.mrf.mxu0
      %v10997 = vadd.f32 %v10908, %v10996
      %10998 = vmatmul.bf16.gmra.mxu0 %v10187
      %v10999 = vpop.f32.mrf.mxu0
      %v11000 = vadd.f32 %v10911, %v10999
      %v11001 = vpop.f32.mrf.mxu0
      %v11002 = vadd.f32 %v10913, %v11001
      %11003 = vmatmul.bf16.gmra.mxu0 %v10190
      %v11004 = vpop.f32.mrf.mxu0
      %v11005 = vadd.f32 %v10916, %v11004
      %v11006 = vpop.f32.mrf.mxu0
      %v11007 = vadd.f32 %v10918, %v11006
      %11008 = vmatmul.bf16.gmra.mxu0 %v10193
      %v11009 = vpop.f32.mrf.mxu0
      %v11010 = vadd.f32 %v10921, %v11009
      %v11011 = vpop.f32.mrf.mxu0
      %v11012 = vadd.f32 %v10923, %v11011
      %11013 = vmatmul.bf16.gmra.mxu0 %v10196
      %v11014 = vpop.f32.mrf.mxu0
      %v11015 = vadd.f32 %v10926, %v11014
      %v11016 = vpop.f32.mrf.mxu0
      %v11017 = vadd.f32 %v10928, %v11016
      %11018 = vmatmul.bf16.gmra.mxu0 %v10199
      %v11019 = vpop.f32.mrf.mxu0
      %v11020 = vadd.f32 %v10931, %v11019
      %v11021 = vpop.f32.mrf.mxu0
      %v11022 = vadd.f32 %v10933, %v11021
      %11023 = vmatmul.bf16.gmra.mxu0 %v10202
      %v11024 = vpop.f32.mrf.mxu0
      %v11025 = vadd.f32 %v10936, %v11024
      %v11026 = vpop.f32.mrf.mxu0
      %v11027 = vadd.f32 %v10938, %v11026
      %11028 = vmatmul.bf16.gmra.mxu0 %v10205
      %v11029 = vpop.f32.mrf.mxu0
      %v11030 = vadd.f32 %v10941, %v11029
      %v11031 = vpop.f32.mrf.mxu0
      %v11032 = vadd.f32 %v10943, %v11031
      %11033 = vmatmul.bf16.gmra.mxu0 %v10208
      %v11034 = vpop.f32.mrf.mxu0
      %v11035 = vadd.f32 %v10946, %v11034
      %v11036 = vpop.f32.mrf.mxu0
      %v11037 = vadd.f32 %v10948, %v11036
      %11038 = vmatmul.bf16.gmra.mxu0 %v10211
      %v11039 = vpop.f32.mrf.mxu0
      %v11040 = vadd.f32 %v10951, %v11039
      %v11041 = vpop.f32.mrf.mxu0
      %v11042 = vadd.f32 %v10953, %v11041
      %11043 = vmatmul.bf16.gmra.mxu0 %v10214
      %v11044 = vpop.f32.mrf.mxu0
      %v11045 = vadd.f32 %v10956, %v11044
      %v11046 = vpop.f32.mrf.mxu0
      %v11047 = vadd.f32 %v10958, %v11046
      %11048 = vmatmul.bf16.gmra.mxu0 %v10217
      %v11049 = vpop.f32.mrf.mxu0
      %v11050 = vadd.f32 %v10961, %v11049
      %v11051 = vpop.f32.mrf.mxu0
      %v11052 = vadd.f32 %v10963, %v11051
      %11053 = vdwg.mxu0
      %11054 = vmatpush.bf16.msra.mxu0 %v10625
      %11055 = vmatpush.bf16.msra.mxu0 %v10624
      %11056 = vmatpush.bf16.msra.mxu0 %v10623
      %11057 = vmatpush.bf16.msra.mxu0 %v10622
      %11058 = vmatpush.bf16.msra.mxu0 %v10621
      %11059 = vmatpush.bf16.msra.mxu0 %v10620
      %11060 = vmatpush.bf16.msra.mxu0 %v10619
      %11061 = vmatpush.bf16.msra.mxu0 %v10618
      %11062 = vmatmul.bf16.gmra.mxu0 %v10175
      %v11063 = vpop.f32.mrf.mxu0
      %v11064 = vadd.f32 %v10975, %v11063
      %v11065 = vpop.f32.mrf.mxu0
      %v11066 = vadd.f32 %v10977, %v11065
      %11067 = vmatmul.bf16.gmra.mxu0 %v10178
      %v11068 = vpop.f32.mrf.mxu0
      %v11069 = vadd.f32 %v10980, %v11068
      %v11070 = vpop.f32.mrf.mxu0
      %v11071 = vadd.f32 %v10982, %v11070
      %11072 = vmatmul.bf16.gmra.mxu0 %v10181
      %v11073 = vpop.f32.mrf.mxu0
      %v11074 = vadd.f32 %v10985, %v11073
      %v11075 = vpop.f32.mrf.mxu0
      %v11076 = vadd.f32 %v10987, %v11075
      %11077 = vmatmul.bf16.gmra.mxu0 %v10184
      %v11078 = vpop.f32.mrf.mxu0
      %v11079 = vadd.f32 %v10990, %v11078
      %v11080 = vpop.f32.mrf.mxu0
      %v11081 = vadd.f32 %v10992, %v11080
      %11082 = vmatmul.bf16.gmra.mxu0 %v10187
      %v11083 = vpop.f32.mrf.mxu0
      %v11084 = vadd.f32 %v10995, %v11083
      %v11085 = vpop.f32.mrf.mxu0
      %v11086 = vadd.f32 %v10997, %v11085
      %11087 = vmatmul.bf16.gmra.mxu0 %v10190
      %v11088 = vpop.f32.mrf.mxu0
      %v11089 = vadd.f32 %v11000, %v11088
      %v11090 = vpop.f32.mrf.mxu0
      %v11091 = vadd.f32 %v11002, %v11090
      %11092 = vmatmul.bf16.gmra.mxu0 %v10193
      %v11093 = vpop.f32.mrf.mxu0
      %v11094 = vadd.f32 %v11005, %v11093
      %v11095 = vpop.f32.mrf.mxu0
      %v11096 = vadd.f32 %v11007, %v11095
      %11097 = vmatmul.bf16.gmra.mxu0 %v10196
      %v11098 = vpop.f32.mrf.mxu0
      %v11099 = vadd.f32 %v11010, %v11098
      %v11100 = vpop.f32.mrf.mxu0
      %v11101 = vadd.f32 %v11012, %v11100
      %11102 = vmatmul.bf16.gmra.mxu0 %v10199
      %v11103 = vpop.f32.mrf.mxu0
      %v11104 = vadd.f32 %v11015, %v11103
      %v11105 = vpop.f32.mrf.mxu0
      %v11106 = vadd.f32 %v11017, %v11105
      %11107 = vmatmul.bf16.gmra.mxu0 %v10202
      %v11108 = vpop.f32.mrf.mxu0
      %v11109 = vadd.f32 %v11020, %v11108
      %v11110 = vpop.f32.mrf.mxu0
      %v11111 = vadd.f32 %v11022, %v11110
      %11112 = vmatmul.bf16.gmra.mxu0 %v10205
      %v11113 = vpop.f32.mrf.mxu0
      %v11114 = vadd.f32 %v11025, %v11113
      %v11115 = vpop.f32.mrf.mxu0
      %v11116 = vadd.f32 %v11027, %v11115
      %11117 = vmatmul.bf16.gmra.mxu0 %v10208
      %v11118 = vpop.f32.mrf.mxu0
      %v11119 = vadd.f32 %v11030, %v11118
      %v11120 = vpop.f32.mrf.mxu0
      %v11121 = vadd.f32 %v11032, %v11120
      %11122 = vmatmul.bf16.gmra.mxu0 %v10211
      %v11123 = vpop.f32.mrf.mxu0
      %v11124 = vadd.f32 %v11035, %v11123
      %v11125 = vpop.f32.mrf.mxu0
      %v11126 = vadd.f32 %v11037, %v11125
      %11127 = vmatmul.bf16.gmra.mxu0 %v10214
      %v11128 = vpop.f32.mrf.mxu0
      %v11129 = vadd.f32 %v11040, %v11128
      %v11130 = vpop.f32.mrf.mxu0
      %v11131 = vadd.f32 %v11042, %v11130
      %11132 = vmatmul.bf16.gmra.mxu0 %v10217
      %v11133 = vpop.f32.mrf.mxu0
      %v11134 = vadd.f32 %v11045, %v11133
      %v11135 = vpop.f32.mrf.mxu0
      %v11136 = vadd.f32 %v11047, %v11135
      %11137 = vmatmul.bf16.gmra.mxu0 %v10220
      %v11138 = vpop.f32.mrf.mxu0
      %v11139 = vadd.f32 %v11050, %v11138
      %v11140 = vpop.f32.mrf.mxu0
      %v11141 = vadd.f32 %v11052, %v11140
      %11142 = vdwg.mxu0
      %11143 = vmatpush.bf16.msra.mxu0 %v10633
      %11144 = vmatpush.bf16.msra.mxu0 %v10632
      %11145 = vmatpush.bf16.msra.mxu0 %v10631
      %11146 = vmatpush.bf16.msra.mxu0 %v10630
      %11147 = vmatpush.bf16.msra.mxu0 %v10629
      %11148 = vmatpush.bf16.msra.mxu0 %v10628
      %11149 = vmatpush.bf16.msra.mxu0 %v10627
      %11150 = vmatpush.bf16.msra.mxu0 %v10626
      %11151 = vmatmul.bf16.gmra.mxu0 %v10178
      %v11152 = vpop.f32.mrf.mxu0
      %v11153 = vadd.f32 %v11064, %v11152
      %v11154 = vpop.f32.mrf.mxu0
      %v11155 = vadd.f32 %v11066, %v11154
      %11156 = vmatmul.bf16.gmra.mxu0 %v10181
      %v11157 = vpop.f32.mrf.mxu0
      %v11158 = vadd.f32 %v11069, %v11157
      %v11159 = vpop.f32.mrf.mxu0
      %v11160 = vadd.f32 %v11071, %v11159
      %11161 = vmatmul.bf16.gmra.mxu0 %v10184
      %v11162 = vpop.f32.mrf.mxu0
      %v11163 = vadd.f32 %v11074, %v11162
      %v11164 = vpop.f32.mrf.mxu0
      %v11165 = vadd.f32 %v11076, %v11164
      %11166 = vmatmul.bf16.gmra.mxu0 %v10187
      %v11167 = vpop.f32.mrf.mxu0
      %v11168 = vadd.f32 %v11079, %v11167
      %v11169 = vpop.f32.mrf.mxu0
      %v11170 = vadd.f32 %v11081, %v11169
      %11171 = vmatmul.bf16.gmra.mxu0 %v10190
      %v11172 = vpop.f32.mrf.mxu0
      %v11173 = vadd.f32 %v11084, %v11172
      %v11174 = vpop.f32.mrf.mxu0
      %v11175 = vadd.f32 %v11086, %v11174
      %11176 = vmatmul.bf16.gmra.mxu0 %v10193
      %v11177 = vpop.f32.mrf.mxu0
      %v11178 = vadd.f32 %v11089, %v11177
      %v11179 = vpop.f32.mrf.mxu0
      %v11180 = vadd.f32 %v11091, %v11179
      %11181 = vmatmul.bf16.gmra.mxu0 %v10196
      %v11182 = vpop.f32.mrf.mxu0
      %v11183 = vadd.f32 %v11094, %v11182
      %v11184 = vpop.f32.mrf.mxu0
      %v11185 = vadd.f32 %v11096, %v11184
      %11186 = vmatmul.bf16.gmra.mxu0 %v10199
      %v11187 = vpop.f32.mrf.mxu0
      %v11188 = vadd.f32 %v11099, %v11187
      %v11189 = vpop.f32.mrf.mxu0
      %v11190 = vadd.f32 %v11101, %v11189
      %11191 = vmatmul.bf16.gmra.mxu0 %v10202
      %v11192 = vpop.f32.mrf.mxu0
      %v11193 = vadd.f32 %v11104, %v11192
      %v11194 = vpop.f32.mrf.mxu0
      %v11195 = vadd.f32 %v11106, %v11194
      %11196 = vmatmul.bf16.gmra.mxu0 %v10205
      %v11197 = vpop.f32.mrf.mxu0
      %v11198 = vadd.f32 %v11109, %v11197
      %v11199 = vpop.f32.mrf.mxu0
      %v11200 = vadd.f32 %v11111, %v11199
      %11201 = vmatmul.bf16.gmra.mxu0 %v10208
      %v11202 = vpop.f32.mrf.mxu0
      %v11203 = vadd.f32 %v11114, %v11202
      %v11204 = vpop.f32.mrf.mxu0
      %v11205 = vadd.f32 %v11116, %v11204
      %11206 = vmatmul.bf16.gmra.mxu0 %v10211
      %v11207 = vpop.f32.mrf.mxu0
      %v11208 = vadd.f32 %v11119, %v11207
      %v11209 = vpop.f32.mrf.mxu0
      %v11210 = vadd.f32 %v11121, %v11209
      %11211 = vmatmul.bf16.gmra.mxu0 %v10214
      %v11212 = vpop.f32.mrf.mxu0
      %v11213 = vadd.f32 %v11124, %v11212
      %v11214 = vpop.f32.mrf.mxu0
      %v11215 = vadd.f32 %v11126, %v11214
      %11216 = vmatmul.bf16.gmra.mxu0 %v10217
      %v11217 = vpop.f32.mrf.mxu0
      %v11218 = vadd.f32 %v11129, %v11217
      %v11219 = vpop.f32.mrf.mxu0
      %v11220 = vadd.f32 %v11131, %v11219
      %11221 = vmatmul.bf16.gmra.mxu0 %v10220
      %v11222 = vpop.f32.mrf.mxu0
      %v11223 = vadd.f32 %v11134, %v11222
      %v11224 = vpop.f32.mrf.mxu0
      %v11225 = vadd.f32 %v11136, %v11224
      %11226 = vmatmul.bf16.gmra.mxu0 %v10223
      %v11227 = vpop.f32.mrf.mxu0
      %v11228 = vadd.f32 %v11139, %v11227
      %v11229 = vpop.f32.mrf.mxu0
      %v11230 = vadd.f32 %v11141, %v11229
      %11231 = vdwg.mxu0
      %11232 = vmatpush.bf16.msra.mxu0 %v10641
      %11233 = vmatpush.bf16.msra.mxu0 %v10640
      %11234 = vmatpush.bf16.msra.mxu0 %v10639
      %11235 = vmatpush.bf16.msra.mxu0 %v10638
      %11236 = vmatpush.bf16.msra.mxu0 %v10637
      %11237 = vmatpush.bf16.msra.mxu0 %v10636
      %11238 = vmatpush.bf16.msra.mxu0 %v10635
      %11239 = vmatpush.bf16.msra.mxu0 %v10634
      %11240 = vmatmul.bf16.gmra.mxu0 %v10181
      %v11241 = vpop.f32.mrf.mxu0
      %v11242 = vadd.f32 %v11153, %v11241
      %v11243 = vpop.f32.mrf.mxu0
      %v11244 = vadd.f32 %v11155, %v11243
      %11245 = vmatmul.bf16.gmra.mxu0 %v10184
      %v11246 = vpop.f32.mrf.mxu0
      %v11247 = vadd.f32 %v11158, %v11246
      %v11248 = vpop.f32.mrf.mxu0
      %v11249 = vadd.f32 %v11160, %v11248
      %11250 = vmatmul.bf16.gmra.mxu0 %v10187
      %v11251 = vpop.f32.mrf.mxu0
      %v11252 = vadd.f32 %v11163, %v11251
      %v11253 = vpop.f32.mrf.mxu0
      %v11254 = vadd.f32 %v11165, %v11253
      %11255 = vmatmul.bf16.gmra.mxu0 %v10190
      %v11256 = vpop.f32.mrf.mxu0
      %v11257 = vadd.f32 %v11168, %v11256
      %v11258 = vpop.f32.mrf.mxu0
      %v11259 = vadd.f32 %v11170, %v11258
      %11260 = vmatmul.bf16.gmra.mxu0 %v10193
      %v11261 = vpop.f32.mrf.mxu0
      %v11262 = vadd.f32 %v11173, %v11261
      %v11263 = vpop.f32.mrf.mxu0
      %v11264 = vadd.f32 %v11175, %v11263
      %11265 = vmatmul.bf16.gmra.mxu0 %v10196
      %v11266 = vpop.f32.mrf.mxu0
      %v11267 = vadd.f32 %v11178, %v11266
      %v11268 = vpop.f32.mrf.mxu0
      %v11269 = vadd.f32 %v11180, %v11268
      %11270 = vmatmul.bf16.gmra.mxu0 %v10199
      %v11271 = vpop.f32.mrf.mxu0
      %v11272 = vadd.f32 %v11183, %v11271
      %v11273 = vpop.f32.mrf.mxu0
      %v11274 = vadd.f32 %v11185, %v11273
      %11275 = vmatmul.bf16.gmra.mxu0 %v10202
      %v11276 = vpop.f32.mrf.mxu0
      %v11277 = vadd.f32 %v11188, %v11276
      %v11278 = vpop.f32.mrf.mxu0
      %v11279 = vadd.f32 %v11190, %v11278
      %11280 = vmatmul.bf16.gmra.mxu0 %v10205
      %v11281 = vpop.f32.mrf.mxu0
      %v11282 = vadd.f32 %v11193, %v11281
      %v11283 = vpop.f32.mrf.mxu0
      %v11284 = vadd.f32 %v11195, %v11283
      %11285 = vmatmul.bf16.gmra.mxu0 %v10208
      %v11286 = vpop.f32.mrf.mxu0
      %v11287 = vadd.f32 %v11198, %v11286
      %v11288 = vpop.f32.mrf.mxu0
      %v11289 = vadd.f32 %v11200, %v11288
      %11290 = vmatmul.bf16.gmra.mxu0 %v10211
      %v11291 = vpop.f32.mrf.mxu0
      %v11292 = vadd.f32 %v11203, %v11291
      %v11293 = vpop.f32.mrf.mxu0
      %v11294 = vadd.f32 %v11205, %v11293
      %11295 = vmatmul.bf16.gmra.mxu0 %v10214
      %v11296 = vpop.f32.mrf.mxu0
      %v11297 = vadd.f32 %v11208, %v11296
      %v11298 = vpop.f32.mrf.mxu0
      %v11299 = vadd.f32 %v11210, %v11298
      %11300 = vmatmul.bf16.gmra.mxu0 %v10217
      %v11301 = vpop.f32.mrf.mxu0
      %v11302 = vadd.f32 %v11213, %v11301
      %v11303 = vpop.f32.mrf.mxu0
      %v11304 = vadd.f32 %v11215, %v11303
      %11305 = vmatmul.bf16.gmra.mxu0 %v10220
      %v11306 = vpop.f32.mrf.mxu0
      %v11307 = vadd.f32 %v11218, %v11306
      %v11308 = vpop.f32.mrf.mxu0
      %v11309 = vadd.f32 %v11220, %v11308
      %11310 = vmatmul.bf16.gmra.mxu0 %v10223
      %v11311 = vpop.f32.mrf.mxu0
      %v11312 = vadd.f32 %v11223, %v11311
      %v11313 = vpop.f32.mrf.mxu0
      %v11314 = vadd.f32 %v11225, %v11313
      %11315 = vmatmul.bf16.gmra.mxu0 %v10226
      %v11316 = vpop.f32.mrf.mxu0
      %v11317 = vadd.f32 %v11228, %v11316
      %v11318 = vpop.f32.mrf.mxu0
      %v11319 = vadd.f32 %v11230, %v11318
      %11320 = vdwg.mxu0
      %v11321 = vld [vmem:[#allocation2] sm:$0xff]
      %v11322 = vld [vmem:[#allocation2 + $0x8] sm:$0xff]
      %v11323 = vld [vmem:[#allocation2 + $0x10] sm:$0xff]
      %v11324 = vld [vmem:[#allocation2 + $0x18] sm:$0xff]
      %v11325 = vld [vmem:[#allocation2 + $0x20] sm:$0xff]
      %v11326 = vld [vmem:[#allocation2 + $0x28] sm:$0xff]
      %v11327 = vld [vmem:[#allocation2 + $0x30] sm:$0xff]
      %v11328 = vld [vmem:[#allocation2 + $0x38] sm:$0xff]
      %v11329 = vld [vmem:[#allocation2 + $0x40] sm:$0xff]
      %v11330 = vld [vmem:[#allocation2 + $0x48] sm:$0xff]
      %v11331 = vld [vmem:[#allocation2 + $0x50] sm:$0xff]
      %v11332 = vld [vmem:[#allocation2 + $0x58] sm:$0xff]
      %v11333 = vld [vmem:[#allocation2 + $0x60] sm:$0xff]
      %v11334 = vld [vmem:[#allocation2 + $0x68] sm:$0xff]
      %v11335 = vld [vmem:[#allocation2 + $0x70] sm:$0xff]
      %v11336 = vld [vmem:[#allocation2 + $0x78] sm:$0xff]
      %v11337 = vld [vmem:[#allocation2 + $0x80] sm:$0xff]
      %v11338 = vld [vmem:[#allocation2 + $0x88] sm:$0xff]
      %v11339 = vld [vmem:[#allocation2 + $0x90] sm:$0xff]
      %v11340 = vld [vmem:[#allocation2 + $0x98] sm:$0xff]
      %v11341 = vld [vmem:[#allocation2 + $0xa0] sm:$0xff]
      %v11342 = vld [vmem:[#allocation2 + $0xa8] sm:$0xff]
      %v11343 = vld [vmem:[#allocation2 + $0xb0] sm:$0xff]
      %v11344 = vld [vmem:[#allocation2 + $0xb8] sm:$0xff]
      %v11345 = vld [vmem:[#allocation2 + $0xc0] sm:$0xff]
      %v11346 = vld [vmem:[#allocation2 + $0xc8] sm:$0xff]
      %v11347 = vld [vmem:[#allocation2 + $0xd0] sm:$0xff]
      %v11348 = vld [vmem:[#allocation2 + $0xd8] sm:$0xff]
      %v11349 = vld [vmem:[#allocation2 + $0xe0] sm:$0xff]
      %v11350 = vld [vmem:[#allocation2 + $0xe8] sm:$0xff]
      %v11351 = vld [vmem:[#allocation2 + $0xf0] sm:$0xff]
      %v11352 = vld [vmem:[#allocation2 + $0xf8] sm:$0xff]
      %v11353 = vadd.f32 %v11321, %v11242
      %v11354 = vadd.f32 %v11322, %v11244
      %v11355 = vadd.f32 %v11323, %v11247
      %v11356 = vadd.f32 %v11324, %v11249
      %v11357 = vadd.f32 %v11325, %v11252
      %v11358 = vadd.f32 %v11326, %v11254
      %v11359 = vadd.f32 %v11327, %v11257
      %v11360 = vadd.f32 %v11328, %v11259
      %v11361 = vadd.f32 %v11329, %v11262
      %v11362 = vadd.f32 %v11330, %v11264
      %v11363 = vadd.f32 %v11331, %v11267
      %v11364 = vadd.f32 %v11332, %v11269
      %v11365 = vadd.f32 %v11333, %v11272
      %v11366 = vadd.f32 %v11334, %v11274
      %v11367 = vadd.f32 %v11335, %v11277
      %v11368 = vadd.f32 %v11336, %v11279
      %v11369 = vadd.f32 %v11337, %v11282
      %v11370 = vadd.f32 %v11338, %v11284
      %v11371 = vadd.f32 %v11339, %v11287
      %v11372 = vadd.f32 %v11340, %v11289
      %v11373 = vadd.f32 %v11341, %v11292
      %v11374 = vadd.f32 %v11342, %v11294
      %v11375 = vadd.f32 %v11343, %v11297
      %v11376 = vadd.f32 %v11344, %v11299
      %v11377 = vadd.f32 %v11345, %v11302
      %v11378 = vadd.f32 %v11346, %v11304
      %v11379 = vadd.f32 %v11347, %v11307
      %v11380 = vadd.f32 %v11348, %v11309
      %v11381 = vadd.f32 %v11349, %v11312
      %v11382 = vadd.f32 %v11350, %v11314
      %v11383 = vadd.f32 %v11351, %v11317
      %v11384 = vadd.f32 %v11352, %v11319
      %11385 = vst [vmem:[#allocation2] sm:$0xff] %v11353
      %11386 = vst [vmem:[#allocation2 + $0x8] sm:$0xff] %v11354
      %11387 = vst [vmem:[#allocation2 + $0x10] sm:$0xff] %v11355
      %11388 = vst [vmem:[#allocation2 + $0x18] sm:$0xff] %v11356
      %11389 = vst [vmem:[#allocation2 + $0x20] sm:$0xff] %v11357
      %11390 = vst [vmem:[#allocation2 + $0x28] sm:$0xff] %v11358
      %11391 = vst [vmem:[#allocation2 + $0x30] sm:$0xff] %v11359
      %11392 = vst [vmem:[#allocation2 + $0x38] sm:$0xff] %v11360
      %11393 = vst [vmem:[#allocation2 + $0x40] sm:$0xff] %v11361
      %11394 = vst [vmem:[#allocation2 + $0x48] sm:$0xff] %v11362
      %11395 = vst [vmem:[#allocation2 + $0x50] sm:$0xff] %v11363
      %11396 = vst [vmem:[#allocation2 + $0x58] sm:$0xff] %v11364
      %11397 = vst [vmem:[#allocation2 + $0x60] sm:$0xff] %v11365
      %11398 = vst [vmem:[#allocation2 + $0x68] sm:$0xff] %v11366
      %11399 = vst [vmem:[#allocation2 + $0x70] sm:$0xff] %v11367
      %11400 = vst [vmem:[#allocation2 + $0x78] sm:$0xff] %v11368
      %11401 = vst [vmem:[#allocation2 + $0x80] sm:$0xff] %v11369
      %11402 = vst [vmem:[#allocation2 + $0x88] sm:$0xff] %v11370
      %11403 = vst [vmem:[#allocation2 + $0x90] sm:$0xff] %v11371
      %11404 = vst [vmem:[#allocation2 + $0x98] sm:$0xff] %v11372
      %11405 = vst [vmem:[#allocation2 + $0xa0] sm:$0xff] %v11373
      %11406 = vst [vmem:[#allocation2 + $0xa8] sm:$0xff] %v11374
      %11407 = vst [vmem:[#allocation2 + $0xb0] sm:$0xff] %v11375
      %11408 = vst [vmem:[#allocation2 + $0xb8] sm:$0xff] %v11376
      %11409 = vst [vmem:[#allocation2 + $0xc0] sm:$0xff] %v11377
      %11410 = vst [vmem:[#allocation2 + $0xc8] sm:$0xff] %v11378
      %11411 = vst [vmem:[#allocation2 + $0xd0] sm:$0xff] %v11379
      %11412 = vst [vmem:[#allocation2 + $0xd8] sm:$0xff] %v11380
      %11413 = vst [vmem:[#allocation2 + $0xe0] sm:$0xff] %v11381
      %11414 = vst [vmem:[#allocation2 + $0xe8] sm:$0xff] %v11382
      %11415 = vst [vmem:[#allocation2 + $0xf0] sm:$0xff] %v11383
      %11416 = vst [vmem:[#allocation2 + $0xf8] sm:$0xff] %v11384
      %v11417 = vld [vmem:[#allocation2] sm:$0xff]
      %v11418 = vld [vmem:[#allocation2 + $0x8] sm:$0xff]
      %v11419 = vld [vmem:[#allocation2 + $0x10] sm:$0xff]
      %v11420 = vld [vmem:[#allocation2 + $0x18] sm:$0xff]
      %v11421 = vld [vmem:[#allocation2 + $0x20] sm:$0xff]
      %v11422 = vld [vmem:[#allocation2 + $0x28] sm:$0xff]
      %v11423 = vld [vmem:[#allocation2 + $0x30] sm:$0xff]
      %v11424 = vld [vmem:[#allocation2 + $0x38] sm:$0xff]
      %v11425 = vld [vmem:[#allocation2 + $0x40] sm:$0xff]
      %v11426 = vld [vmem:[#allocation2 + $0x48] sm:$0xff]
      %v11427 = vld [vmem:[#allocation2 + $0x50] sm:$0xff]
      %v11428 = vld [vmem:[#allocation2 + $0x58] sm:$0xff]
      %v11429 = vld [vmem:[#allocation2 + $0x60] sm:$0xff]
      %v11430 = vld [vmem:[#allocation2 + $0x68] sm:$0xff]
      %v11431 = vld [vmem:[#allocation2 + $0x70] sm:$0xff]
      %v11432 = vld [vmem:[#allocation2 + $0x78] sm:$0xff]
      %v11433 = vld [vmem:[#allocation2 + $0x80] sm:$0xff]
      %v11434 = vld [vmem:[#allocation2 + $0x88] sm:$0xff]
      %v11435 = vld [vmem:[#allocation2 + $0x90] sm:$0xff]
      %v11436 = vld [vmem:[#allocation2 + $0x98] sm:$0xff]
      %v11437 = vld [vmem:[#allocation2 + $0xa0] sm:$0xff]
      %v11438 = vld [vmem:[#allocation2 + $0xa8] sm:$0xff]
      %v11439 = vld [vmem:[#allocation2 + $0xb0] sm:$0xff]
      %v11440 = vld [vmem:[#allocation2 + $0xb8] sm:$0xff]
      %v11441 = vld [vmem:[#allocation2 + $0xc0] sm:$0xff]
      %v11442 = vld [vmem:[#allocation2 + $0xc8] sm:$0xff]
      %v11443 = vld [vmem:[#allocation2 + $0xd0] sm:$0xff]
      %v11444 = vld [vmem:[#allocation2 + $0xd8] sm:$0xff]
      %v11445 = vld [vmem:[#allocation2 + $0xe0] sm:$0xff]
      %v11446 = vld [vmem:[#allocation2 + $0xe8] sm:$0xff]
      %v11447 = vld [vmem:[#allocation2 + $0xf0] sm:$0xff]
      %v11448 = vld [vmem:[#allocation2 + $0xf8] sm:$0xff]
      %v11449 = vld [vmem:[%s3] sm:$0x1]
      %v11451 = vperm.slane %v11449, 0
      %v11453 = vadd.f32 %v11417, %v11451
      %v11454 = vadd.f32 %v11418, %v11451
      %v11455 = vadd.f32 %v11419, %v11451
      %v11456 = vadd.f32 %v11420, %v11451
      %v11457 = vadd.f32 %v11421, %v11451
      %v11458 = vadd.f32 %v11422, %v11451
      %v11459 = vadd.f32 %v11423, %v11451
      %v11460 = vadd.f32 %v11424, %v11451
      %v11461 = vadd.f32 %v11425, %v11451
      %v11462 = vadd.f32 %v11426, %v11451
      %v11463 = vadd.f32 %v11427, %v11451
      %v11464 = vadd.f32 %v11428, %v11451
      %v11465 = vadd.f32 %v11429, %v11451
      %v11466 = vadd.f32 %v11430, %v11451
      %v11467 = vadd.f32 %v11431, %v11451
      %v11468 = vadd.f32 %v11432, %v11451
      %v11469 = vadd.f32 %v11433, %v11451
      %v11470 = vadd.f32 %v11434, %v11451
      %v11471 = vadd.f32 %v11435, %v11451
      %v11472 = vadd.f32 %v11436, %v11451
      %v11473 = vadd.f32 %v11437, %v11451
      %v11474 = vadd.f32 %v11438, %v11451
      %v11475 = vadd.f32 %v11439, %v11451
      %v11476 = vadd.f32 %v11440, %v11451
      %v11477 = vadd.f32 %v11441, %v11451
      %v11478 = vadd.f32 %v11442, %v11451
      %v11479 = vadd.f32 %v11443, %v11451
      %v11480 = vadd.f32 %v11444, %v11451
      %v11481 = vadd.f32 %v11445, %v11451
      %v11482 = vadd.f32 %v11446, %v11451
      %v11483 = vadd.f32 %v11447, %v11451
      %v11484 = vadd.f32 %v11448, %v11451
      %v11485 = vmax.f32 %v11453, 0.0
      %v11486 = vmax.f32 %v11454, 0.0
      %v11487 = vmax.f32 %v11455, 0.0
      %v11488 = vmax.f32 %v11456, 0.0
      %v11489 = vmax.f32 %v11457, 0.0
      %v11490 = vmax.f32 %v11458, 0.0
      %v11491 = vmax.f32 %v11459, 0.0
      %v11492 = vmax.f32 %v11460, 0.0
      %v11493 = vmax.f32 %v11461, 0.0
      %v11494 = vmax.f32 %v11462, 0.0
      %v11495 = vmax.f32 %v11463, 0.0
      %v11496 = vmax.f32 %v11464, 0.0
      %v11497 = vmax.f32 %v11465, 0.0
      %v11498 = vmax.f32 %v11466, 0.0
      %v11499 = vmax.f32 %v11467, 0.0
      %v11500 = vmax.f32 %v11468, 0.0
      %v11501 = vmax.f32 %v11469, 0.0
      %v11502 = vmax.f32 %v11470, 0.0
      %v11503 = vmax.f32 %v11471, 0.0
      %v11504 = vmax.f32 %v11472, 0.0
      %v11505 = vmax.f32 %v11473, 0.0
      %v11506 = vmax.f32 %v11474, 0.0
      %v11507 = vmax.f32 %v11475, 0.0
      %v11508 = vmax.f32 %v11476, 0.0
      %v11509 = vmax.f32 %v11477, 0.0
      %v11510 = vmax.f32 %v11478, 0.0
      %v11511 = vmax.f32 %v11479, 0.0
      %v11512 = vmax.f32 %v11480, 0.0
      %v11513 = vmax.f32 %v11481, 0.0
      %v11514 = vmax.f32 %v11482, 0.0
      %v11515 = vmax.f32 %v11483, 0.0
      %v11516 = vmax.f32 %v11484, 0.0
      %v11517 = vpack.c.bf16 %v11486, %v11485
      %v11518 = vpack.c.bf16 %v11488, %v11487
      %v11519 = vpack.c.bf16 %v11490, %v11489
      %v11520 = vpack.c.bf16 %v11492, %v11491
      %v11521 = vpack.c.bf16 %v11494, %v11493
      %v11522 = vpack.c.bf16 %v11496, %v11495
      %v11523 = vpack.c.bf16 %v11498, %v11497
      %v11524 = vpack.c.bf16 %v11500, %v11499
      %v11525 = vpack.c.bf16 %v11502, %v11501
      %v11526 = vpack.c.bf16 %v11504, %v11503
      %v11527 = vpack.c.bf16 %v11506, %v11505
      %v11528 = vpack.c.bf16 %v11508, %v11507
      %v11529 = vpack.c.bf16 %v11510, %v11509
      %v11530 = vpack.c.bf16 %v11512, %v11511
      %v11531 = vpack.c.bf16 %v11514, %v11513
      %v11532 = vpack.c.bf16 %v11516, %v11515
      %v11533 = vld [vmem:[%s4] sm:$0xf]
      %v11534 = vld [vmem:[%s4 + $0x4] sm:$0xf]
      %v11535 = vld [vmem:[%s4 + $0x8] sm:$0xf]
      %v11536 = vld [vmem:[%s4 + $0xc] sm:$0xf]
      %v11537 = vld [vmem:[%s4 + $0x10] sm:$0xf]
      %v11538 = vld [vmem:[%s4 + $0x14] sm:$0xf]
      %v11539 = vld [vmem:[%s4 + $0x18] sm:$0xf]
      %v11540 = vld [vmem:[%s4 + $0x1c] sm:$0xf]
      %v11541 = vld [vmem:[%s4 + $0x20] sm:$0xf]
      %v11542 = vld [vmem:[%s4 + $0x24] sm:$0xf]
      %v11543 = vld [vmem:[%s4 + $0x28] sm:$0xf]
      %v11544 = vld [vmem:[%s4 + $0x2c] sm:$0xf]
      %v11545 = vld [vmem:[%s4 + $0x30] sm:$0xf]
      %v11546 = vld [vmem:[%s4 + $0x34] sm:$0xf]
      %v11547 = vld [vmem:[%s4 + $0x38] sm:$0xf]
      %v11548 = vld [vmem:[%s4 + $0x3c] sm:$0xf]
      %v11549 = vld [vmem:[%s5] sm:$0x1]
      %v11551 = vperm.slane %v11549, 0
      %v11569 = vunpack.c.l.b16 %v11533
      %v11570 = vunpack.c.l.b16 %v11534
      %v11571 = vunpack.c.l.b16 %v11535
      %v11572 = vunpack.c.l.b16 %v11536
      %v11573 = vunpack.c.l.b16 %v11537
      %v11574 = vunpack.c.l.b16 %v11538
      %v11575 = vunpack.c.l.b16 %v11539
      %v11576 = vunpack.c.l.b16 %v11540
      %v11577 = vunpack.c.l.b16 %v11541
      %v11578 = vunpack.c.l.b16 %v11542
      %v11579 = vunpack.c.l.b16 %v11543
      %v11580 = vunpack.c.l.b16 %v11544
      %v11581 = vunpack.c.l.b16 %v11545
      %v11582 = vunpack.c.l.b16 %v11546
      %v11583 = vunpack.c.l.b16 %v11547
      %v11584 = vunpack.c.l.b16 %v11548
      %v11585 = vpack.c.b16 %v11570, %v11569
      %v11586 = vpack.c.b16 %v11572, %v11571
      %v11587 = vpack.c.b16 %v11574, %v11573
      %v11588 = vpack.c.b16 %v11576, %v11575
      %v11589 = vpack.c.b16 %v11578, %v11577
      %v11590 = vpack.c.b16 %v11580, %v11579
      %v11591 = vpack.c.b16 %v11582, %v11581
      %v11592 = vpack.c.b16 %v11584, %v11583
      %11601 = vmatpush.bf16.msra.mxu0 %v11592
      %11602 = vmatpush.bf16.msra.mxu0 %v11591
      %11603 = vmatpush.bf16.msra.mxu0 %v11590
      %11604 = vmatpush.bf16.msra.mxu0 %v11589
      %11605 = vmatpush.bf16.msra.mxu0 %v11588
      %11606 = vmatpush.bf16.msra.mxu0 %v11587
      %11607 = vmatpush.bf16.msra.mxu0 %v11586
      %11608 = vmatpush.bf16.msra.mxu0 %v11585
      %11609 = vmatmul.bf16.gmra.mxu0 %v11517
      %v11610 = vpop.f32.mrf.mxu0
      %v11611 = vadd.f32 %v11551, %v11610
      %v11612 = vpop.f32.mrf.mxu0
      %v11613 = vadd.f32 %v11551, %v11612
      %11614 = vmatmul.bf16.gmra.mxu0 %v11518
      %v11615 = vpop.f32.mrf.mxu0
      %v11616 = vadd.f32 %v11551, %v11615
      %v11617 = vpop.f32.mrf.mxu0
      %v11618 = vadd.f32 %v11551, %v11617
      %11619 = vmatmul.bf16.gmra.mxu0 %v11519
      %v11620 = vpop.f32.mrf.mxu0
      %v11621 = vadd.f32 %v11551, %v11620
      %v11622 = vpop.f32.mrf.mxu0
      %v11623 = vadd.f32 %v11551, %v11622
      %11624 = vmatmul.bf16.gmra.mxu0 %v11520
      %v11625 = vpop.f32.mrf.mxu0
      %v11626 = vadd.f32 %v11551, %v11625
      %v11627 = vpop.f32.mrf.mxu0
      %v11628 = vadd.f32 %v11551, %v11627
      %11629 = vmatmul.bf16.gmra.mxu0 %v11521
      %v11630 = vpop.f32.mrf.mxu0
      %v11631 = vadd.f32 %v11551, %v11630
      %v11632 = vpop.f32.mrf.mxu0
      %v11633 = vadd.f32 %v11551, %v11632
      %11634 = vmatmul.bf16.gmra.mxu0 %v11522
      %v11635 = vpop.f32.mrf.mxu0
      %v11636 = vadd.f32 %v11551, %v11635
      %v11637 = vpop.f32.mrf.mxu0
      %v11638 = vadd.f32 %v11551, %v11637
      %11639 = vmatmul.bf16.gmra.mxu0 %v11523
      %v11640 = vpop.f32.mrf.mxu0
      %v11641 = vadd.f32 %v11551, %v11640
      %v11642 = vpop.f32.mrf.mxu0
      %v11643 = vadd.f32 %v11551, %v11642
      %11644 = vmatmul.bf16.gmra.mxu0 %v11524
      %v11645 = vpop.f32.mrf.mxu0
      %v11646 = vadd.f32 %v11551, %v11645
      %v11647 = vpop.f32.mrf.mxu0
      %v11648 = vadd.f32 %v11551, %v11647
      %11649 = vmatmul.bf16.gmra.mxu0 %v11525
      %v11650 = vpop.f32.mrf.mxu0
      %v11651 = vadd.f32 %v11551, %v11650
      %v11652 = vpop.f32.mrf.mxu0
      %v11653 = vadd.f32 %v11551, %v11652
      %11654 = vmatmul.bf16.gmra.mxu0 %v11526
      %v11655 = vpop.f32.mrf.mxu0
      %v11656 = vadd.f32 %v11551, %v11655
      %v11657 = vpop.f32.mrf.mxu0
      %v11658 = vadd.f32 %v11551, %v11657
      %11659 = vmatmul.bf16.gmra.mxu0 %v11527
      %v11660 = vpop.f32.mrf.mxu0
      %v11661 = vadd.f32 %v11551, %v11660
      %v11662 = vpop.f32.mrf.mxu0
      %v11663 = vadd.f32 %v11551, %v11662
      %11664 = vmatmul.bf16.gmra.mxu0 %v11528
      %v11665 = vpop.f32.mrf.mxu0
      %v11666 = vadd.f32 %v11551, %v11665
      %v11667 = vpop.f32.mrf.mxu0
      %v11668 = vadd.f32 %v11551, %v11667
      %11669 = vmatmul.bf16.gmra.mxu0 %v11529
      %v11670 = vpop.f32.mrf.mxu0
      %v11671 = vadd.f32 %v11551, %v11670
      %v11672 = vpop.f32.mrf.mxu0
      %v11673 = vadd.f32 %v11551, %v11672
      %11674 = vmatmul.bf16.gmra.mxu0 %v11530
      %v11675 = vpop.f32.mrf.mxu0
      %v11676 = vadd.f32 %v11551, %v11675
      %v11677 = vpop.f32.mrf.mxu0
      %v11678 = vadd.f32 %v11551, %v11677
      %11679 = vmatmul.bf16.gmra.mxu0 %v11531
      %v11680 = vpop.f32.mrf.mxu0
      %v11681 = vadd.f32 %v11551, %v11680
      %v11682 = vpop.f32.mrf.mxu0
      %v11683 = vadd.f32 %v11551, %v11682
      %11684 = vmatmul.bf16.gmra.mxu0 %v11532
      %v11685 = vpop.f32.mrf.mxu0
      %v11686 = vadd.f32 %v11551, %v11685
      %v11687 = vpop.f32.mrf.mxu0
      %v11688 = vadd.f32 %v11551, %v11687
      %11689 = vdwg.mxu0
      %v11690 = vld [vmem:[%s317] sm:$0xff]
      %v11691 = vld [vmem:[%s317 + $0x8] sm:$0xff]
      %v11692 = vld [vmem:[%s317 + $0x10] sm:$0xff]
      %v11693 = vld [vmem:[%s317 + $0x18] sm:$0xff]
      %v11694 = vld [vmem:[%s317 + $0x20] sm:$0xff]
      %v11695 = vld [vmem:[%s317 + $0x28] sm:$0xff]
      %v11696 = vld [vmem:[%s317 + $0x30] sm:$0xff]
      %v11697 = vld [vmem:[%s317 + $0x38] sm:$0xff]
      %v11698 = vld [vmem:[%s317 + $0x40] sm:$0xff]
      %v11699 = vld [vmem:[%s317 + $0x48] sm:$0xff]
      %v11700 = vld [vmem:[%s317 + $0x50] sm:$0xff]
      %v11701 = vld [vmem:[%s317 + $0x58] sm:$0xff]
      %v11702 = vld [vmem:[%s317 + $0x60] sm:$0xff]
      %v11703 = vld [vmem:[%s317 + $0x68] sm:$0xff]
      %v11704 = vld [vmem:[%s317 + $0x70] sm:$0xff]
      %v11705 = vld [vmem:[%s317 + $0x78] sm:$0xff]
      %v11706 = vld [vmem:[%s317 + $0x80] sm:$0xff]
      %v11707 = vld [vmem:[%s317 + $0x88] sm:$0xff]
      %v11708 = vld [vmem:[%s317 + $0x90] sm:$0xff]
      %v11709 = vld [vmem:[%s317 + $0x98] sm:$0xff]
      %v11710 = vld [vmem:[%s317 + $0xa0] sm:$0xff]
      %v11711 = vld [vmem:[%s317 + $0xa8] sm:$0xff]
      %v11712 = vld [vmem:[%s317 + $0xb0] sm:$0xff]
      %v11713 = vld [vmem:[%s317 + $0xb8] sm:$0xff]
      %v11714 = vld [vmem:[%s317 + $0xc0] sm:$0xff]
      %v11715 = vld [vmem:[%s317 + $0xc8] sm:$0xff]
      %v11716 = vld [vmem:[%s317 + $0xd0] sm:$0xff]
      %v11717 = vld [vmem:[%s317 + $0xd8] sm:$0xff]
      %v11718 = vld [vmem:[%s317 + $0xe0] sm:$0xff]
      %v11719 = vld [vmem:[%s317 + $0xe8] sm:$0xff]
      %v11720 = vld [vmem:[%s317 + $0xf0] sm:$0xff]
      %v11721 = vld [vmem:[%s317 + $0xf8] sm:$0xff]
      %v11722 = vadd.f32 %v11611, %v11690
      %v11723 = vadd.f32 %v11613, %v11691
      %v11724 = vadd.f32 %v11616, %v11692
      %v11725 = vadd.f32 %v11618, %v11693
      %v11726 = vadd.f32 %v11621, %v11694
      %v11727 = vadd.f32 %v11623, %v11695
      %v11728 = vadd.f32 %v11626, %v11696
      %v11729 = vadd.f32 %v11628, %v11697
      %v11730 = vadd.f32 %v11631, %v11698
      %v11731 = vadd.f32 %v11633, %v11699
      %v11732 = vadd.f32 %v11636, %v11700
      %v11733 = vadd.f32 %v11638, %v11701
      %v11734 = vadd.f32 %v11641, %v11702
      %v11735 = vadd.f32 %v11643, %v11703
      %v11736 = vadd.f32 %v11646, %v11704
      %v11737 = vadd.f32 %v11648, %v11705
      %v11738 = vadd.f32 %v11651, %v11706
      %v11739 = vadd.f32 %v11653, %v11707
      %v11740 = vadd.f32 %v11656, %v11708
      %v11741 = vadd.f32 %v11658, %v11709
      %v11742 = vadd.f32 %v11661, %v11710
      %v11743 = vadd.f32 %v11663, %v11711
      %v11744 = vadd.f32 %v11666, %v11712
      %v11745 = vadd.f32 %v11668, %v11713
      %v11746 = vadd.f32 %v11671, %v11714
      %v11747 = vadd.f32 %v11673, %v11715
      %v11748 = vadd.f32 %v11676, %v11716
      %v11749 = vadd.f32 %v11678, %v11717
      %v11750 = vadd.f32 %v11681, %v11718
      %v11751 = vadd.f32 %v11683, %v11719
      %v11752 = vadd.f32 %v11686, %v11720
      %v11753 = vadd.f32 %v11688, %v11721
      %11754 = vst [vmem:[%s328] sm:$0xff] %v11722
      %11755 = vst [vmem:[%s328 + $0x8] sm:$0xff] %v11723
      %11756 = vst [vmem:[%s328 + $0x10] sm:$0xff] %v11724
      %11757 = vst [vmem:[%s328 + $0x18] sm:$0xff] %v11725
      %11758 = vst [vmem:[%s328 + $0x20] sm:$0xff] %v11726
      %11759 = vst [vmem:[%s328 + $0x28] sm:$0xff] %v11727
      %11760 = vst [vmem:[%s328 + $0x30] sm:$0xff] %v11728
      %11761 = vst [vmem:[%s328 + $0x38] sm:$0xff] %v11729
      %11762 = vst [vmem:[%s328 + $0x40] sm:$0xff] %v11730
      %11763 = vst [vmem:[%s328 + $0x48] sm:$0xff] %v11731
      %11764 = vst [vmem:[%s328 + $0x50] sm:$0xff] %v11732
      %11765 = vst [vmem:[%s328 + $0x58] sm:$0xff] %v11733
      %11766 = vst [vmem:[%s328 + $0x60] sm:$0xff] %v11734
      %11767 = vst [vmem:[%s328 + $0x68] sm:$0xff] %v11735
      %11768 = vst [vmem:[%s328 + $0x70] sm:$0xff] %v11736
      %11769 = vst [vmem:[%s328 + $0x78] sm:$0xff] %v11737
      %11770 = vst [vmem:[%s328 + $0x80] sm:$0xff] %v11738
      %11771 = vst [vmem:[%s328 + $0x88] sm:$0xff] %v11739
      %11772 = vst [vmem:[%s328 + $0x90] sm:$0xff] %v11740
      %11773 = vst [vmem:[%s328 + $0x98] sm:$0xff] %v11741
      %11774 = vst [vmem:[%s328 + $0xa0] sm:$0xff] %v11742
      %11775 = vst [vmem:[%s328 + $0xa8] sm:$0xff] %v11743
      %11776 = vst [vmem:[%s328 + $0xb0] sm:$0xff] %v11744
      %11777 = vst [vmem:[%s328 + $0xb8] sm:$0xff] %v11745
      %11778 = vst [vmem:[%s328 + $0xc0] sm:$0xff] %v11746
      %11779 = vst [vmem:[%s328 + $0xc8] sm:$0xff] %v11747
      %11780 = vst [vmem:[%s328 + $0xd0] sm:$0xff] %v11748
      %11781 = vst [vmem:[%s328 + $0xd8] sm:$0xff] %v11749
      %11782 = vst [vmem:[%s328 + $0xe0] sm:$0xff] %v11750
      %11783 = vst [vmem:[%s328 + $0xe8] sm:$0xff] %v11751
      %11784 = vst [vmem:[%s328 + $0xf0] sm:$0xff] %v11752
      %11785 = vst [vmem:[%s328 + $0xf8] sm:$0xff] %v11753
      %s11786 = smul.u32 16, %s22
      %p11787 = scmp.lt.s32.totalorder %s21, 1
      %s11788 = scalar_select %p11787, %s21, 1
      %p11789 = scmp.lt.s32.totalorder %s11786, 15
      %s11790 = scalar_select %p11789, %s11786, 15
      %s11791 = smul.addr %s11790, 2
      %s11792 = smul.addr %s11788, 32
      %s11793 = sadd.s32 %s11791, %s11792
      %s11794 = smul.addr %s11793, 8
      %s11795 = scalar_lea.vmem %s6, %s11794
      // Predicated region
      $region45: #{multi_scale_feature_extraction.1} parent=43 // pred_check
        %p11796 = pneg %p189
      $region46: #{multi_scale_feature_extraction.1} parent=43 // pred_check_branch
        %11798 = sbr.rel (%p11796) target = $region48
      $region47: #{multi_scale_feature_extraction.1} parent=43 // pred_region
        %s11799 = smul.u32 16, %s22
      $region48: #{multi_scale_feature_extraction.1} parent=43 // pred_fallthru
        _
    $region44: #{multi_scale_feature_extraction.1} parent=5 // pred_fallthru
      _
    %p11800 = scmp.le.s32.totalorder 2, %s12
    // Predicated region
    $region49: #{multi_scale_feature_extraction.1} parent=5 // pred_check
      %p11801 = pneg %p11800
    $region50: #{multi_scale_feature_extraction.1} parent=5 // pred_check_branch
      %11803 = sbr.rel (%p11801) target = $region52
    $region51: #{multi_scale_feature_extraction.1} parent=5 // pred_region
      %s11804 = ssub.s32 %s12, 2
      // Predicated region
      $region53: #{multi_scale_feature_extraction.1} parent=51 // pred_check
        %p11805 = pneg %p195
      $region54: #{multi_scale_feature_extraction.1} parent=51 // pred_check_branch
        %11807 = sbr.rel (%p11805) target = $region56
      $region55: #{multi_scale_feature_extraction.1} parent=51 // pred_region
        %s11808 = smul.u32 16, %s24
        %p11809 = scmp.lt.s32.totalorder %s23, 1
        %s11810 = scalar_select %p11809, %s23, 1
        %p11811 = scmp.lt.s32.totalorder %s11808, 15
        %s11812 = scalar_select %p11811, %s11808, 15
        %s11813 = smul.addr %s11812, 2
        %s11814 = smul.addr %s11810, 32
        %s11815 = sadd.s32 %s11813, %s11814
        %s11816 = smul.addr %s11815, 8
        %s11817 = scalar_lea.vmem %s6, %s11816
      $region56: #{multi_scale_feature_extraction.1} parent=51 // pred_fallthru
        _
    $region52: #{multi_scale_feature_extraction.1} parent=5 // pred_fallthru
      _
  $region6: #{multi_scale_feature_extraction.1} parent=0 // loop_footer
    %s16 = sadd.s32 1, %s12
  $region7: #{multi_scale_feature_extraction.1} parent=0 // loop_footer_branch
    %11 = sbr.rel target = $region3
  $region8: #{multi_scale_feature_extraction.1} parent=0 // loop_exit
    _

</llo_original>
